<compile_context>
chip_gen: v5e
topology: v5e:2x2
jax: 0.10.0
libtpu: 0.0.40
codegen_flags: <defaults>
</compile_context>

<pallas_src>
import jax
import jax.numpy as jnp
from jax.experimental import pallas as pl
from jax.experimental.pallas import tpu as pltpu

# ---- model hyper-parameters (from the PyTorch module) -----------------------
A_IN, A_OUT, A_HIDDEN, A_NEURONS = 1, 3, 2, 10     # axis_model   (sigmoid)
R_IN, R_OUT, R_HIDDEN, R_NEURONS = 3, 1, 8, 40     # radius_model (relu)
RS_MIN = 0.5
RS_MAX = 2.0

_MAX_TILE = 1024   # lanes (samples) per grid step
_LANE = 128


def _choose_tile(n):
    # Lane-dense tile (multiple of 128).  Cap near ceil(N/2) so the grid has
    # >= 2 "parallel" steps when N is large enough (v7x dual-TensorCore).
    half = -(-((n + 1) // 2) // _LANE) * _LANE
    return max(_LANE, min(_MAX_TILE, half))


# ---- Pallas kernel -----------------------------------------------------------
def shape_kernel(x_ref, rw_ref, rb_ref, aw_ref, ab_ref, o_ref):
    x = x_ref[...]                          # (3, T) f32, samples on lanes
    x0 = x[0:1, :]                          # theta (1, T)
    x1 = x[1:2, :]                          # phi   (1, T)
    t = x[2:3, :]                           # time  (1, T)

    # ---------------- radius_model: ReLU MLP, slabs are (40, T) --------------
    h = jnp.dot(rw_ref[0, :, 0:R_IN], x, preferred_element_type=jnp.float32)
    h = jnp.maximum(h + rb_ref[0], 0.0)
    for l in range(R_HIDDEN):               # static unroll (8 hidden layers)
        h = jnp.dot(rw_ref[l + 1], h, preferred_element_type=jnp.float32)
        h = jnp.maximum(h + rb_ref[l + 1], 0.0)
    rs = (jnp.dot(rw_ref[R_HIDDEN + 1, 0:R_OUT, :], h,
                  preferred_element_type=jnp.float32)
          + rb_ref[R_HIDDEN + 1, 0:R_OUT])  # (1, T)

    # ---------------- axis_model: sigmoid MLP, slabs are (10, T) -------------
    # input layer has K == 1: the broadcasted multiply IS the exact matmul.
    g = aw_ref[0, :, 0:A_IN] * t + ab_ref[0]           # (10,1)*(1,T)+(10,1)
    g = jax.nn.sigmoid(g)
    for l in range(A_HIDDEN):               # static unroll (2 hidden layers)
        g = jnp.dot(aw_ref[l + 1], g, preferred_element_type=jnp.float32) + ab_ref[l + 1]
        g = jax.nn.sigmoid(g)
    axis = (jnp.dot(aw_ref[A_HIDDEN + 1, 0:A_OUT, :], g,
                    preferred_element_type=jnp.float32)
            + ab_ref[A_HIDDEN + 1, 0:A_OUT])           # (3, T)

    # ---------------- ellipsoidal radius + final combine ---------------------
    sin0 = jnp.sin(x0)                      # each transcendental pushed once
    cos0 = jnp.cos(x0)
    sin1 = jnp.sin(x1)
    cos1 = jnp.cos(x1)
    a0 = axis[0:1, :]
    a1 = axis[1:2, :]
    a2 = axis[2:3, :]
    re = jnp.sqrt((a0 * sin0 * cos1) ** 2
                  + (a1 * cos0) ** 2
                  + (a2 * sin0 * sin1) ** 2)
    # lane-dense (1, T) store
    o_ref[...] = (rs * (RS_MAX - RS_MIN) + RS_MIN) * re


# ---- wrapper -----------------------------------------------------------------
def _full_spec(arr):
    zeros = (0,) * arr.ndim
    return pl.BlockSpec(arr.shape, lambda i, z=zeros: z)


def shape_model_forward(x, params):
    """x: (N, 3) float32 -> r: (N,) float32."""
    n = x.shape[0]
    tile = _choose_tile(n)
    n_pad = ((n + tile - 1) // tile) * tile

    # Transpose once in the wrapper so the sample axis is the lane axis.
    xt = x.T                                           # (3, N)
    if n_pad != n:
        xt = jnp.pad(xt, ((0, 0), (0, n_pad - n)))     # (3, n_pad)

    out = pl.pallas_call(
        shape_kernel,
        out_shape=jax.ShapeDtypeStruct((1, n_pad), jnp.float32),
        grid_spec=pltpu.PrefetchScalarGridSpec(
            num_scalar_prefetch=0,
            grid=(n_pad // tile,),
            in_specs=[pl.BlockSpec((3, tile), lambda i: (0, i)),
                      _full_spec(params["r_w"]),
                      _full_spec(params["r_b"]),
                      _full_spec(params["a_w"]),
                      _full_spec(params["a_b"])],
            out_specs=pl.BlockSpec((1, tile), lambda i: (0, i)),
        ),
        compiler_params=pltpu.CompilerParams(dimension_semantics=("parallel",)),
    )(xt, params["r_w"], params["r_b"], params["a_w"], params["a_b"])

    return out[0, :n]


# ---- deterministic parameter init (PyTorch-Linear-style uniform) -------------
def _linear_init(key, fan_in, fan_out):
    kw, kb = jax.random.split(key)
    bound = 1.0 / (float(fan_in) ** 0.5)
    w = jax.random.uniform(kw, (fan_out, fan_in), jnp.float32, -bound, bound)  # (out, in)
    b = jax.random.uniform(kb, (fan_out,), jnp.float32, -bound, bound)         # (out,)
    return w, b


def _pack(layers, width):
    """Pack per-layer (W(out,in), b(out,)) into (L, width, width) / (L, width, 1)."""
    n_slots = len(layers)
    w_pack = jnp.zeros((n_slots, width, width), jnp.float32)
    b_pack = jnp.zeros((n_slots, width, 1), jnp.float32)
    for l, (wl, bl) in enumerate(layers):
        o, i = wl.shape
        w_pack = w_pack.at[l, :o, :i].set(wl)
        b_pack = b_pack.at[l, :o, 0].set(bl)
    return w_pack, b_pack


def make_params(key):
    keys = jax.random.split(key, 14)
    ki = iter(range(14))

    axis_layers = [_linear_init(keys[next(ki)], A_IN, A_NEURONS)]
    for _ in range(A_HIDDEN):
        axis_layers.append(_linear_init(keys[next(ki)], A_NEURONS, A_NEURONS))
    axis_layers.append(_linear_init(keys[next(ki)], A_NEURONS, A_OUT))

    radius_layers = [_linear_init(keys[next(ki)], R_IN, R_NEURONS)]
    for _ in range(R_HIDDEN):
        radius_layers.append(_linear_init(keys[next(ki)], R_NEURONS, R_NEURONS))
    radius_layers.append(_linear_init(keys[next(ki)], R_NEURONS, R_OUT))

    a_w, a_b = _pack(axis_layers, A_NEURONS)       # (4, 10, 10), (4, 10, 1)
    r_w, r_b = _pack(radius_layers, R_NEURONS)     # (10, 40, 40), (10, 40, 1)
    return {
        "axis_layers": axis_layers, "radius_layers": radius_layers,
        "a_w": a_w, "a_b": a_b, "r_w": r_w, "r_b": r_b,
    }


# ---- pure-JAX reference (for a correctness check) ----------------------------
def reference_forward(x, p):
    h = x
    for idx, (w, b) in enumerate(p["radius_layers"]):
        h = h @ w.T + b
        if idx < len(p["radius_layers"]) - 1:
            h = jnp.maximum(h, 0.0)
    rs = h[:, 0]

    g = x[:, 2:3]
    for idx, (w, b) in enumerate(p["axis_layers"]):
        g = g @ w.T + b
        if idx < len(p["axis_layers"]) - 1:
            g = jax.nn.sigmoid(g)
    axis = g

    re = jnp.sqrt((axis[:, 0] * jnp.sin(x[:, 0]) * jnp.cos(x[:, 1])) ** 2
                  + (axis[:, 1] * jnp.cos(x[:, 0])) ** 2
                  + (axis[:, 2] * jnp.sin(x[:, 0]) * jnp.sin(x[:, 1])) ** 2)
    return (rs * (RS_MAX - RS_MIN) + RS_MIN) * re


if __name__ == "__main__":
    key = jax.random.PRNGKey(0)
    k_param, k_x = jax.random.split(key)
    params = make_params(k_param)

    n = 2500  # small batch of (theta, phi, t) samples; exercises multi-step grid
    x = jax.random.uniform(k_x, (n, 3), jnp.float32, -1.0, 1.0)

    r = shape_model_forward(x, params)
    r = jax.block_until_ready(r)

    r_ref = reference_forward(x, params)
    assert r.shape == (n,)
    assert jnp.allclose(r, r_ref, atol=1e-4, rtol=1e-4), (r, r_ref)

    print("KERNEL_OK")
</pallas_src>

<mosaic_0001>
module attributes {stable_mosaic.version = 11 : i64} {
  func.func @shape_kernel(%arg0: i32, %arg1: memref<3x1024xf32, #tpu.memory_space<vmem>>, %arg2: memref<10x40x40xf32, #tpu.memory_space<vmem>>, %arg3: memref<10x40x1xf32, #tpu.memory_space<vmem>>, %arg4: memref<4x10x10xf32, #tpu.memory_space<vmem>>, %arg5: memref<4x10x1xf32, #tpu.memory_space<vmem>>, %arg6: memref<1x1024xf32, #tpu.memory_space<vmem>>) attributes {dimension_semantics = [#tpu.dimension_semantics<parallel>], iteration_bounds = array<i64: 3>, scalar_prefetch = 0 : i64, scratch_operands = 0 : i64, tpu.core_type = #tpu.core_type<tc>, window_params = [{transform_indices = @transform_0, window_bounds = array<i64: 3, 1024>}, {pipeline_mode = #tpu.pipeline_mode<synchronous>, transform_indices = @transform_1, window_bounds = array<i64: 10, 40, 40>}, {pipeline_mode = #tpu.pipeline_mode<synchronous>, transform_indices = @transform_2, window_bounds = array<i64: 10, 40, 1>}, {pipeline_mode = #tpu.pipeline_mode<synchronous>, transform_indices = @transform_3, window_bounds = array<i64: 4, 10, 10>}, {pipeline_mode = #tpu.pipeline_mode<synchronous>, transform_indices = @transform_4, window_bounds = array<i64: 4, 10, 1>}, {transform_indices = @transform_5, window_bounds = array<i64: 1, 1024>}]} {
    %c0 = arith.constant 0 : index
    %c0_0 = arith.constant 0 : index
    %0 = vector.load %arg1[%c0, %c0_0] : memref<3x1024xf32, #tpu.memory_space<vmem>>, vector<3x1024xf32>
    %1 = vector.extract_strided_slice %0 {offsets = [0, 0], sizes = [1, 1024], strides = [1, 1]} : vector<3x1024xf32> to vector<1x1024xf32>
    %2 = vector.extract_strided_slice %0 {offsets = [1, 0], sizes = [1, 1024], strides = [1, 1]} : vector<3x1024xf32> to vector<1x1024xf32>
    %3 = vector.extract_strided_slice %0 {offsets = [2, 0], sizes = [1, 1024], strides = [1, 1]} : vector<3x1024xf32> to vector<1x1024xf32>
    %c0_1 = arith.constant 0 : index
    %c0_2 = arith.constant 0 : index
    %c0_3 = arith.constant 0 : index
    %4 = vector.load %arg2[%c0_1, %c0_2, %c0_3] : memref<10x40x40xf32, #tpu.memory_space<vmem>>, vector<1x40x3xf32>
    %5 = vector.shape_cast %4 : vector<1x40x3xf32> to vector<40x3xf32>
    %cst = arith.constant dense<0.000000e+00> : vector<40x1024xf32>
    %6 = tpu.matmul %5, %0, %cst {dimension_numbers = #tpu.dot_dimension_numbers<[1], [0], [0], [1], [0, 0, 1, 1], [], []>} : vector<40x3xf32>, vector<3x1024xf32>, vector<40x1024xf32> -> vector<40x1024xf32>
    %c0_4 = arith.constant 0 : index
    %c0_5 = arith.constant 0 : index
    %c0_6 = arith.constant 0 : index
    %7 = vector.load %arg3[%c0_4, %c0_5, %c0_6] : memref<10x40x1xf32, #tpu.memory_space<vmem>>, vector<1x40x1xf32>
    %8 = vector.shape_cast %7 : vector<1x40x1xf32> to vector<40x1xf32>
    %9 = vector.broadcast %8 : vector<40x1xf32> to vector<40x1024xf32>
    %10 = arith.addf %6, %9 : vector<40x1024xf32>
    %cst_7 = arith.constant 0.000000e+00 : f32
    %11 = vector.broadcast %cst_7 : f32 to vector<40x1024xf32>
    %12 = arith.maximumf %10, %11 : vector<40x1024xf32>
    %c1 = arith.constant 1 : index
    %c0_8 = arith.constant 0 : index
    %c0_9 = arith.constant 0 : index
    %13 = vector.load %arg2[%c1, %c0_8, %c0_9] : memref<10x40x40xf32, #tpu.memory_space<vmem>>, vector<1x40x40xf32>
    %14 = vector.shape_cast %13 : vector<1x40x40xf32> to vector<40x40xf32>
    %cst_10 = arith.constant dense<0.000000e+00> : vector<40x1024xf32>
    %15 = tpu.matmul %14, %12, %cst_10 {dimension_numbers = #tpu.dot_dimension_numbers<[1], [0], [0], [1], [0, 0, 1, 1], [], []>} : vector<40x40xf32>, vector<40x1024xf32>, vector<40x1024xf32> -> vector<40x1024xf32>
    %c1_11 = arith.constant 1 : index
    %c0_12 = arith.constant 0 : index
    %c0_13 = arith.constant 0 : index
    %16 = vector.load %arg3[%c1_11, %c0_12, %c0_13] : memref<10x40x1xf32, #tpu.memory_space<vmem>>, vector<1x40x1xf32>
    %17 = vector.shape_cast %16 : vector<1x40x1xf32> to vector<40x1xf32>
    %18 = vector.broadcast %17 : vector<40x1xf32> to vector<40x1024xf32>
    %19 = arith.addf %15, %18 : vector<40x1024xf32>
    %cst_14 = arith.constant 0.000000e+00 : f32
    %20 = vector.broadcast %cst_14 : f32 to vector<40x1024xf32>
    %21 = arith.maximumf %19, %20 : vector<40x1024xf32>
    %c2 = arith.constant 2 : index
    %c0_15 = arith.constant 0 : index
    %c0_16 = arith.constant 0 : index
    %22 = vector.load %arg2[%c2, %c0_15, %c0_16] : memref<10x40x40xf32, #tpu.memory_space<vmem>>, vector<1x40x40xf32>
    %23 = vector.shape_cast %22 : vector<1x40x40xf32> to vector<40x40xf32>
    %cst_17 = arith.constant dense<0.000000e+00> : vector<40x1024xf32>
    %24 = tpu.matmul %23, %21, %cst_17 {dimension_numbers = #tpu.dot_dimension_numbers<[1], [0], [0], [1], [0, 0, 1, 1], [], []>} : vector<40x40xf32>, vector<40x1024xf32>, vector<40x1024xf32> -> vector<40x1024xf32>
    %c2_18 = arith.constant 2 : index
    %c0_19 = arith.constant 0 : index
    %c0_20 = arith.constant 0 : index
    %25 = vector.load %arg3[%c2_18, %c0_19, %c0_20] : memref<10x40x1xf32, #tpu.memory_space<vmem>>, vector<1x40x1xf32>
    %26 = vector.shape_cast %25 : vector<1x40x1xf32> to vector<40x1xf32>
    %27 = vector.broadcast %26 : vector<40x1xf32> to vector<40x1024xf32>
    %28 = arith.addf %24, %27 : vector<40x1024xf32>
    %cst_21 = arith.constant 0.000000e+00 : f32
    %29 = vector.broadcast %cst_21 : f32 to vector<40x1024xf32>
    %30 = arith.maximumf %28, %29 : vector<40x1024xf32>
    %c3 = arith.constant 3 : index
    %c0_22 = arith.constant 0 : index
    %c0_23 = arith.constant 0 : index
    %31 = vector.load %arg2[%c3, %c0_22, %c0_23] : memref<10x40x40xf32, #tpu.memory_space<vmem>>, vector<1x40x40xf32>
    %32 = vector.shape_cast %31 : vector<1x40x40xf32> to vector<40x40xf32>
    %cst_24 = arith.constant dense<0.000000e+00> : vector<40x1024xf32>
    %33 = tpu.matmul %32, %30, %cst_24 {dimension_numbers = #tpu.dot_dimension_numbers<[1], [0], [0], [1], [0, 0, 1, 1], [], []>} : vector<40x40xf32>, vector<40x1024xf32>, vector<40x1024xf32> -> vector<40x1024xf32>
    %c3_25 = arith.constant 3 : index
    %c0_26 = arith.constant 0 : index
    %c0_27 = arith.constant 0 : index
    %34 = vector.load %arg3[%c3_25, %c0_26, %c0_27] : memref<10x40x1xf32, #tpu.memory_space<vmem>>, vector<1x40x1xf32>
    %35 = vector.shape_cast %34 : vector<1x40x1xf32> to vector<40x1xf32>
    %36 = vector.broadcast %35 : vector<40x1xf32> to vector<40x1024xf32>
    %37 = arith.addf %33, %36 : vector<40x1024xf32>
    %cst_28 = arith.constant 0.000000e+00 : f32
    %38 = vector.broadcast %cst_28 : f32 to vector<40x1024xf32>
    %39 = arith.maximumf %37, %38 : vector<40x1024xf32>
    %c4 = arith.constant 4 : index
    %c0_29 = arith.constant 0 : index
    %c0_30 = arith.constant 0 : index
    %40 = vector.load %arg2[%c4, %c0_29, %c0_30] : memref<10x40x40xf32, #tpu.memory_space<vmem>>, vector<1x40x40xf32>
    %41 = vector.shape_cast %40 : vector<1x40x40xf32> to vector<40x40xf32>
    %cst_31 = arith.constant dense<0.000000e+00> : vector<40x1024xf32>
    %42 = tpu.matmul %41, %39, %cst_31 {dimension_numbers = #tpu.dot_dimension_numbers<[1], [0], [0], [1], [0, 0, 1, 1], [], []>} : vector<40x40xf32>, vector<40x1024xf32>, vector<40x1024xf32> -> vector<40x1024xf32>
    %c4_32 = arith.constant 4 : index
    %c0_33 = arith.constant 0 : index
    %c0_34 = arith.constant 0 : index
    %43 = vector.load %arg3[%c4_32, %c0_33, %c0_34] : memref<10x40x1xf32, #tpu.memory_space<vmem>>, vector<1x40x1xf32>
    %44 = vector.shape_cast %43 : vector<1x40x1xf32> to vector<40x1xf32>
    %45 = vector.broadcast %44 : vector<40x1xf32> to vector<40x1024xf32>
    %46 = arith.addf %42, %45 : vector<40x1024xf32>
    %cst_35 = arith.constant 0.000000e+00 : f32
    %47 = vector.broadcast %cst_35 : f32 to vector<40x1024xf32>
    %48 = arith.maximumf %46, %47 : vector<40x1024xf32>
    %c5 = arith.constant 5 : index
    %c0_36 = arith.constant 0 : index
    %c0_37 = arith.constant 0 : index
    %49 = vector.load %arg2[%c5, %c0_36, %c0_37] : memref<10x40x40xf32, #tpu.memory_space<vmem>>, vector<1x40x40xf32>
    %50 = vector.shape_cast %49 : vector<1x40x40xf32> to vector<40x40xf32>
    %cst_38 = arith.constant dense<0.000000e+00> : vector<40x1024xf32>
    %51 = tpu.matmul %50, %48, %cst_38 {dimension_numbers = #tpu.dot_dimension_numbers<[1], [0], [0], [1], [0, 0, 1, 1], [], []>} : vector<40x40xf32>, vector<40x1024xf32>, vector<40x1024xf32> -> vector<40x1024xf32>
    %c5_39 = arith.constant 5 : index
    %c0_40 = arith.constant 0 : index
    %c0_41 = arith.constant 0 : index
    %52 = vector.load %arg3[%c5_39, %c0_40, %c0_41] : memref<10x40x1xf32, #tpu.memory_space<vmem>>, vector<1x40x1xf32>
    %53 = vector.shape_cast %52 : vector<1x40x1xf32> to vector<40x1xf32>
    %54 = vector.broadcast %53 : vector<40x1xf32> to vector<40x1024xf32>
    %55 = arith.addf %51, %54 : vector<40x1024xf32>
    %cst_42 = arith.constant 0.000000e+00 : f32
    %56 = vector.broadcast %cst_42 : f32 to vector<40x1024xf32>
    %57 = arith.maximumf %55, %56 : vector<40x1024xf32>
    %c6 = arith.constant 6 : index
    %c0_43 = arith.constant 0 : index
    %c0_44 = arith.constant 0 : index
    %58 = vector.load %arg2[%c6, %c0_43, %c0_44] : memref<10x40x40xf32, #tpu.memory_space<vmem>>, vector<1x40x40xf32>
    %59 = vector.shape_cast %58 : vector<1x40x40xf32> to vector<40x40xf32>
    %cst_45 = arith.constant dense<0.000000e+00> : vector<40x1024xf32>
    %60 = tpu.matmul %59, %57, %cst_45 {dimension_numbers = #tpu.dot_dimension_numbers<[1], [0], [0], [1], [0, 0, 1, 1], [], []>} : vector<40x40xf32>, vector<40x1024xf32>, vector<40x1024xf32> -> vector<40x1024xf32>
    %c6_46 = arith.constant 6 : index
    %c0_47 = arith.constant 0 : index
    %c0_48 = arith.constant 0 : index
    %61 = vector.load %arg3[%c6_46, %c0_47, %c0_48] : memref<10x40x1xf32, #tpu.memory_space<vmem>>, vector<1x40x1xf32>
    %62 = vector.shape_cast %61 : vector<1x40x1xf32> to vector<40x1xf32>
    %63 = vector.broadcast %62 : vector<40x1xf32> to vector<40x1024xf32>
    %64 = arith.addf %60, %63 : vector<40x1024xf32>
    %cst_49 = arith.constant 0.000000e+00 : f32
    %65 = vector.broadcast %cst_49 : f32 to vector<40x1024xf32>
    %66 = arith.maximumf %64, %65 : vector<40x1024xf32>
    %c7 = arith.constant 7 : index
    %c0_50 = arith.constant 0 : index
    %c0_51 = arith.constant 0 : index
    %67 = vector.load %arg2[%c7, %c0_50, %c0_51] : memref<10x40x40xf32, #tpu.memory_space<vmem>>, vector<1x40x40xf32>
    %68 = vector.shape_cast %67 : vector<1x40x40xf32> to vector<40x40xf32>
    %cst_52 = arith.constant dense<0.000000e+00> : vector<40x1024xf32>
    %69 = tpu.matmul %68, %66, %cst_52 {dimension_numbers = #tpu.dot_dimension_numbers<[1], [0], [0], [1], [0, 0, 1, 1], [], []>} : vector<40x40xf32>, vector<40x1024xf32>, vector<40x1024xf32> -> vector<40x1024xf32>
    %c7_53 = arith.constant 7 : index
    %c0_54 = arith.constant 0 : index
    %c0_55 = arith.constant 0 : index
    %70 = vector.load %arg3[%c7_53, %c0_54, %c0_55] : memref<10x40x1xf32, #tpu.memory_space<vmem>>, vector<1x40x1xf32>
    %71 = vector.shape_cast %70 : vector<1x40x1xf32> to vector<40x1xf32>
    %72 = vector.broadcast %71 : vector<40x1xf32> to vector<40x1024xf32>
    %73 = arith.addf %69, %72 : vector<40x1024xf32>
    %cst_56 = arith.constant 0.000000e+00 : f32
    %74 = vector.broadcast %cst_56 : f32 to vector<40x1024xf32>
    %75 = arith.maximumf %73, %74 : vector<40x1024xf32>
    %c8 = arith.constant 8 : index
    %c0_57 = arith.constant 0 : index
    %c0_58 = arith.constant 0 : index
    %76 = vector.load %arg2[%c8, %c0_57, %c0_58] : memref<10x40x40xf32, #tpu.memory_space<vmem>>, vector<1x40x40xf32>
    %77 = vector.shape_cast %76 : vector<1x40x40xf32> to vector<40x40xf32>
    %cst_59 = arith.constant dense<0.000000e+00> : vector<40x1024xf32>
    %78 = tpu.matmul %77, %75, %cst_59 {dimension_numbers = #tpu.dot_dimension_numbers<[1], [0], [0], [1], [0, 0, 1, 1], [], []>} : vector<40x40xf32>, vector<40x1024xf32>, vector<40x1024xf32> -> vector<40x1024xf32>
    %c8_60 = arith.constant 8 : index
    %c0_61 = arith.constant 0 : index
    %c0_62 = arith.constant 0 : index
    %79 = vector.load %arg3[%c8_60, %c0_61, %c0_62] : memref<10x40x1xf32, #tpu.memory_space<vmem>>, vector<1x40x1xf32>
    %80 = vector.shape_cast %79 : vector<1x40x1xf32> to vector<40x1xf32>
    %81 = vector.broadcast %80 : vector<40x1xf32> to vector<40x1024xf32>
    %82 = arith.addf %78, %81 : vector<40x1024xf32>
    %cst_63 = arith.constant 0.000000e+00 : f32
    %83 = vector.broadcast %cst_63 : f32 to vector<40x1024xf32>
    %84 = arith.maximumf %82, %83 : vector<40x1024xf32>
    %c9 = arith.constant 9 : index
    %c0_64 = arith.constant 0 : index
    %c0_65 = arith.constant 0 : index
    %85 = vector.load %arg2[%c9, %c0_64, %c0_65] : memref<10x40x40xf32, #tpu.memory_space<vmem>>, vector<1x1x40xf32>
    %86 = vector.shape_cast %85 : vector<1x1x40xf32> to vector<1x40xf32>
    %cst_66 = arith.constant dense<0.000000e+00> : vector<1x1024xf32>
    %87 = tpu.matmul %86, %84, %cst_66 {dimension_numbers = #tpu.dot_dimension_numbers<[1], [0], [0], [1], [0, 0, 1, 1], [], []>} : vector<1x40xf32>, vector<40x1024xf32>, vector<1x1024xf32> -> vector<1x1024xf32>
    %c9_67 = arith.constant 9 : index
    %c0_68 = arith.constant 0 : index
    %c0_69 = arith.constant 0 : index
    %88 = vector.load %arg3[%c9_67, %c0_68, %c0_69] : memref<10x40x1xf32, #tpu.memory_space<vmem>>, vector<1x1x1xf32>
    %89 = vector.shape_cast %88 : vector<1x1x1xf32> to vector<1x1xf32>
    %90 = vector.broadcast %89 : vector<1x1xf32> to vector<1x1024xf32>
    %91 = arith.addf %87, %90 : vector<1x1024xf32>
    %c0_70 = arith.constant 0 : index
    %c0_71 = arith.constant 0 : index
    %c0_72 = arith.constant 0 : index
    %92 = vector.load %arg4[%c0_70, %c0_71, %c0_72] : memref<4x10x10xf32, #tpu.memory_space<vmem>>, vector<1x10x1xf32>
    %93 = vector.shape_cast %92 : vector<1x10x1xf32> to vector<10x1xf32>
    %94 = vector.broadcast %93 : vector<10x1xf32> to vector<10x1024xf32>
    %95 = vector.broadcast %3 : vector<1x1024xf32> to vector<10x1024xf32>
    %96 = arith.mulf %94, %95 : vector<10x1024xf32>
    %c0_73 = arith.constant 0 : index
    %c0_74 = arith.constant 0 : index
    %c0_75 = arith.constant 0 : index
    %97 = vector.load %arg5[%c0_73, %c0_74, %c0_75] : memref<4x10x1xf32, #tpu.memory_space<vmem>>, vector<1x10x1xf32>
    %98 = vector.shape_cast %97 : vector<1x10x1xf32> to vector<10x1xf32>
    %99 = vector.broadcast %98 : vector<10x1xf32> to vector<10x1024xf32>
    %100 = arith.addf %96, %99 : vector<10x1024xf32>
    %101 = arith.negf %100 : vector<10x1024xf32>
    %102 = math.exp %101 : vector<10x1024xf32>
    %cst_76 = arith.constant 1.000000e+00 : f32
    %103 = vector.broadcast %cst_76 : f32 to vector<10x1024xf32>
    %104 = arith.addf %103, %102 : vector<10x1024xf32>
    %105 = arith.divf %103, %104 : vector<10x1024xf32>
    %c1_77 = arith.constant 1 : index
    %c0_78 = arith.constant 0 : index
    %c0_79 = arith.constant 0 : index
    %106 = vector.load %arg4[%c1_77, %c0_78, %c0_79] : memref<4x10x10xf32, #tpu.memory_space<vmem>>, vector<1x10x10xf32>
    %107 = vector.shape_cast %106 : vector<1x10x10xf32> to vector<10x10xf32>
    %cst_80 = arith.constant dense<0.000000e+00> : vector<10x1024xf32>
    %108 = tpu.matmul %107, %105, %cst_80 {dimension_numbers = #tpu.dot_dimension_numbers<[1], [0], [0], [1], [0, 0, 1, 1], [], []>} : vector<10x10xf32>, vector<10x1024xf32>, vector<10x1024xf32> -> vector<10x1024xf32>
    %c1_81 = arith.constant 1 : index
    %c0_82 = arith.constant 0 : index
    %c0_83 = arith.constant 0 : index
    %109 = vector.load %arg5[%c1_81, %c0_82, %c0_83] : memref<4x10x1xf32, #tpu.memory_space<vmem>>, vector<1x10x1xf32>
    %110 = vector.shape_cast %109 : vector<1x10x1xf32> to vector<10x1xf32>
    %111 = vector.broadcast %110 : vector<10x1xf32> to vector<10x1024xf32>
    %112 = arith.addf %108, %111 : vector<10x1024xf32>
    %113 = arith.negf %112 : vector<10x1024xf32>
    %114 = math.exp %113 : vector<10x1024xf32>
    %cst_84 = arith.constant 1.000000e+00 : f32
    %115 = vector.broadcast %cst_84 : f32 to vector<10x1024xf32>
    %116 = arith.addf %115, %114 : vector<10x1024xf32>
    %117 = arith.divf %115, %116 : vector<10x1024xf32>
    %c2_85 = arith.constant 2 : index
    %c0_86 = arith.constant 0 : index
    %c0_87 = arith.constant 0 : index
    %118 = vector.load %arg4[%c2_85, %c0_86, %c0_87] : memref<4x10x10xf32, #tpu.memory_space<vmem>>, vector<1x10x10xf32>
    %119 = vector.shape_cast %118 : vector<1x10x10xf32> to vector<10x10xf32>
    %cst_88 = arith.constant dense<0.000000e+00> : vector<10x1024xf32>
    %120 = tpu.matmul %119, %117, %cst_88 {dimension_numbers = #tpu.dot_dimension_numbers<[1], [0], [0], [1], [0, 0, 1, 1], [], []>} : vector<10x10xf32>, vector<10x1024xf32>, vector<10x1024xf32> -> vector<10x1024xf32>
    %c2_89 = arith.constant 2 : index
    %c0_90 = arith.constant 0 : index
    %c0_91 = arith.constant 0 : index
    %121 = vector.load %arg5[%c2_89, %c0_90, %c0_91] : memref<4x10x1xf32, #tpu.memory_space<vmem>>, vector<1x10x1xf32>
    %122 = vector.shape_cast %121 : vector<1x10x1xf32> to vector<10x1xf32>
    %123 = vector.broadcast %122 : vector<10x1xf32> to vector<10x1024xf32>
    %124 = arith.addf %120, %123 : vector<10x1024xf32>
    %125 = arith.negf %124 : vector<10x1024xf32>
    %126 = math.exp %125 : vector<10x1024xf32>
    %cst_92 = arith.constant 1.000000e+00 : f32
    %127 = vector.broadcast %cst_92 : f32 to vector<10x1024xf32>
    %128 = arith.addf %127, %126 : vector<10x1024xf32>
    %129 = arith.divf %127, %128 : vector<10x1024xf32>
    %c3_93 = arith.constant 3 : index
    %c0_94 = arith.constant 0 : index
    %c0_95 = arith.constant 0 : index
    %130 = vector.load %arg4[%c3_93, %c0_94, %c0_95] : memref<4x10x10xf32, #tpu.memory_space<vmem>>, vector<1x3x10xf32>
    %131 = vector.shape_cast %130 : vector<1x3x10xf32> to vector<3x10xf32>
    %cst_96 = arith.constant dense<0.000000e+00> : vector<3x1024xf32>
    %132 = tpu.matmul %131, %129, %cst_96 {dimension_numbers = #tpu.dot_dimension_numbers<[1], [0], [0], [1], [0, 0, 1, 1], [], []>} : vector<3x10xf32>, vector<10x1024xf32>, vector<3x1024xf32> -> vector<3x1024xf32>
    %c3_97 = arith.constant 3 : index
    %c0_98 = arith.constant 0 : index
    %c0_99 = arith.constant 0 : index
    %133 = vector.load %arg5[%c3_97, %c0_98, %c0_99] : memref<4x10x1xf32, #tpu.memory_space<vmem>>, vector<1x3x1xf32>
    %134 = vector.shape_cast %133 : vector<1x3x1xf32> to vector<3x1xf32>
    %135 = vector.broadcast %134 : vector<3x1xf32> to vector<3x1024xf32>
    %136 = arith.addf %132, %135 : vector<3x1024xf32>
    %137 = math.sin %1 : vector<1x1024xf32>
    %138 = math.cos %1 : vector<1x1024xf32>
    %139 = math.sin %2 : vector<1x1024xf32>
    %140 = math.cos %2 : vector<1x1024xf32>
    %141 = vector.extract_strided_slice %136 {offsets = [0, 0], sizes = [1, 1024], strides = [1, 1]} : vector<3x1024xf32> to vector<1x1024xf32>
    %142 = vector.extract_strided_slice %136 {offsets = [1, 0], sizes = [1, 1024], strides = [1, 1]} : vector<3x1024xf32> to vector<1x1024xf32>
    %143 = vector.extract_strided_slice %136 {offsets = [2, 0], sizes = [1, 1024], strides = [1, 1]} : vector<3x1024xf32> to vector<1x1024xf32>
    %144 = arith.mulf %141, %137 : vector<1x1024xf32>
    %145 = arith.mulf %144, %140 : vector<1x1024xf32>
    %146 = arith.mulf %145, %145 : vector<1x1024xf32>
    %147 = arith.mulf %142, %138 : vector<1x1024xf32>
    %148 = arith.mulf %147, %147 : vector<1x1024xf32>
    %149 = arith.addf %146, %148 : vector<1x1024xf32>
    %150 = arith.mulf %143, %137 : vector<1x1024xf32>
    %151 = arith.mulf %150, %139 : vector<1x1024xf32>
    %152 = arith.mulf %151, %151 : vector<1x1024xf32>
    %153 = arith.addf %149, %152 : vector<1x1024xf32>
    %154 = math.sqrt %153 : vector<1x1024xf32>
    %cst_100 = arith.constant 1.500000e+00 : f32
    %155 = vector.broadcast %cst_100 : f32 to vector<1x1024xf32>
    %156 = arith.mulf %91, %155 : vector<1x1024xf32>
    %cst_101 = arith.constant 5.000000e-01 : f32
    %157 = vector.broadcast %cst_101 : f32 to vector<1x1024xf32>
    %158 = arith.addf %156, %157 : vector<1x1024xf32>
    %159 = arith.mulf %158, %154 : vector<1x1024xf32>
    %c0_102 = arith.constant 0 : index
    %c0_103 = arith.constant 0 : index
    %160 = vector.load %arg6[%c0_102, %c0_103] : memref<1x1024xf32, #tpu.memory_space<vmem>>, vector<1x1024xf32>
    tpu.vector_store %arg6[%c0_102, %c0_103], %159 {strides = array<i32>} : memref<1x1024xf32, #tpu.memory_space<vmem>>, vector<1x1024xf32>,
    return
  }
  func.func @transform_0(%arg0: i32) -> (i32, i32) {
    %c0_i32 = arith.constant 0 : i32
    %c0_i32_0 = arith.constant 0 : i32
    return %c0_i32, %arg0 : i32, i32
  }
  func.func @transform_1(%arg0: i32) -> (i32, i32, i32) {
    %c0_i32 = arith.constant 0 : i32
    %c0_i32_0 = arith.constant 0 : i32
    %c0_i32_1 = arith.constant 0 : i32
    %c0_i32_2 = arith.constant 0 : i32
    return %c0_i32, %c0_i32_0, %c0_i32_1 : i32, i32, i32
  }
  func.func @transform_2(%arg0: i32) -> (i32, i32, i32) {
    %c0_i32 = arith.constant 0 : i32
    %c0_i32_0 = arith.constant 0 : i32
    %c0_i32_1 = arith.constant 0 : i32
    %c0_i32_2 = arith.constant 0 : i32
    return %c0_i32, %c0_i32_0, %c0_i32_1 : i32, i32, i32
  }
  func.func @transform_3(%arg0: i32) -> (i32, i32, i32) {
    %c0_i32 = arith.constant 0 : i32
    %c0_i32_0 = arith.constant 0 : i32
    %c0_i32_1 = arith.constant 0 : i32
    %c0_i32_2 = arith.constant 0 : i32
    return %c0_i32, %c0_i32_0, %c0_i32_1 : i32, i32, i32
  }
  func.func @transform_4(%arg0: i32) -> (i32, i32, i32) {
    %c0_i32 = arith.constant 0 : i32
    %c0_i32_0 = arith.constant 0 : i32
    %c0_i32_1 = arith.constant 0 : i32
    %c0_i32_2 = arith.constant 0 : i32
    return %c0_i32, %c0_i32_0, %c0_i32_1 : i32, i32, i32
  }
  func.func @transform_5(%arg0: i32) -> (i32, i32) {
    %c0_i32 = arith.constant 0 : i32
    %c0_i32_0 = arith.constant 0 : i32
    return %c0_i32, %arg0 : i32, i32
  }
}

</mosaic_0001>

<llo_original>
// kernel: tpu_custom_call.1
$region0: #{tpu_custom_call.1}
  #allocation0 [shape = 'u32[]', space=smem, size = 0x4, offset = 0x4, fixed_abs, tag = 'smem constant byte address 0x4 - core index']
  #allocation1 [shape = 'u32[72,128]{1,0:T(1,128)}', space=vmem, size = 0x9000, scoped, tag = 'internal scratch']
  %s0 = inlined_call_operand.vmem [shape: f32[3,3072], index: 0, kind: input, shape index: {}]
  %s1 = inlined_call_operand.vmem [shape: f32[10,40,40], index: 1, kind: input, shape index: {}]
  %s2 = inlined_call_operand.vmem [shape: f32[10,40,1], index: 2, kind: input, shape index: {}]
  %s3 = inlined_call_operand.vmem [shape: f32[4,10,10], index: 3, kind: input, shape index: {}]
  %s4 = inlined_call_operand.vmem [shape: f32[4,10,1], index: 4, kind: input, shape index: {}]
  %s5 = inlined_call_operand.hbm [shape: f32[1,3072], index: 5, kind: output, shape index: {}]
  %s6 = sld [smem:[#allocation0]]
  $region53: #{tpu_custom_call.1} parent=0
    _
  %s8 = ssub.s32 1, %s6
  %s9 = scalar_select 0, %s8, %s6
  $region1: #{tpu_custom_call.1} parent=0
    #allocation2 [shape = 'u8[8192]{0}', space=vmem, size = 0x2000, scoped, tag = 'output window, operand 0']
    #allocation3 [shape = 's32[2]{0}', space=sflag, size = 0x8, scoped, tag = 'scoped memory for tpu_custom_call.1']
    %10 = vsyncpa [#allocation3], 0
    %s11 = scalar_lea.sflag [#allocation3], 1
    %12 = vsyncpa %s11, 0
    loop: start=0, step=1, limit=5
    $region2: #{tpu_custom_call.1} parent=1 // loop_pre_header
      _
    $region3: #{tpu_custom_call.1} parent=1 // loop_header
      %s14 = sphi 0, %s18
      %p15 = scmp.ge.s32.totalorder %s14, 5
      %s24 = sphi 0, %s26
      %s27 = sphi 0, %s24
      %s28 = sphi 0, %s27
      %s44 = sphi 0, %s28
      %s48 = sphi 0, %s48
      %s50 = sphi 0, %s48
      %s51 = sphi 0, %s50
      %s65 = sphi 0, %s51
      %s69 = sphi 0, %s69
      %s71 = sphi 0, %s69
      %s72 = sphi 0, %s71
      %s86 = sphi 0, %s72
      %s90 = sphi 0, %s90
      %s92 = sphi 0, %s90
      %s93 = sphi 0, %s92
      %s107 = sphi 0, %s93
      %s111 = sphi 0, %s111
      %s113 = sphi 0, %s111
      %s114 = sphi 0, %s113
      %s128 = sphi 0, %s114
      %s134 = sphi 0, %s136
      %s137 = sphi 0, %s134
      %s138 = sphi 0, %s137
      %s154 = sphi 0, %s138
    $region4: #{tpu_custom_call.1} parent=1 // loop_header_branch
      %17 = sbr.rel (%p15) target = $region8
    $region5: #{tpu_custom_call.1} parent=1 // loop_body
      %s19 = ssub.s32 %s14, 1
      %s20 = ssub.s32 %s14, 2
      %s21 = sadd.s32 %s14, 1
      %s22 = ssub.s32 %s14, %s21
      %p23 = scmp.eq.s32.totalorder %s22, 0
      %s25 = sadd.s32 %s24, 1
      %s26 = scalar_select %p23, %s24, %s25
      %p29 = pneg %p23
      %p30 = scmp.eq.s32.totalorder %s14, 2
      %p31 = por %p29, %p30
      %p32 = scmp.ne.s32.totalorder %s24, %s27
      %p33 = scmp.eq.s32.totalorder %s14, 0
      %p34 = por %p32, %p33
      %p35 = scmp.ne.s32.totalorder %s24, %s27
      %p36 = scmp.eq.s32.totalorder %s19, 2
      %p37 = por %p35, %p36
      %p38 = scmp.ne.s32.totalorder %s27, %s28
      %p39 = scmp.eq.s32.totalorder %s19, 0
      %p40 = por %p38, %p39
      %p41 = scmp.ne.s32.totalorder %s27, %s28
      %p42 = scmp.eq.s32.totalorder %s20, 2
      %p43 = por %p41, %p42
      %p45 = scmp.ne.s32.totalorder %s28, %s44
      %p46 = scmp.eq.s32.totalorder %s20, 0
      %p47 = por %p45, %p46
      %s49 = sadd.s32 %s48, 1
      %p52 = scmp.eq.s32.totalorder %s14, 2
      %p53 = scmp.ne.s32.totalorder %s48, %s50
      %p54 = scmp.eq.s32.totalorder %s14, 0
      %p55 = por %p53, %p54
      %p56 = scmp.ne.s32.totalorder %s48, %s50
      %p57 = scmp.eq.s32.totalorder %s19, 2
      %p58 = por %p56, %p57
      %p59 = scmp.ne.s32.totalorder %s50, %s51
      %p60 = scmp.eq.s32.totalorder %s19, 0
      %p61 = por %p59, %p60
      %p62 = scmp.ne.s32.totalorder %s50, %s51
      %p63 = scmp.eq.s32.totalorder %s20, 2
      %p64 = por %p62, %p63
      %p66 = scmp.ne.s32.totalorder %s51, %s65
      %p67 = scmp.eq.s32.totalorder %s20, 0
      %p68 = por %p66, %p67
      %s70 = sadd.s32 %s69, 1
      %p73 = scmp.eq.s32.totalorder %s14, 2
      %p74 = scmp.ne.s32.totalorder %s69, %s71
      %p75 = scmp.eq.s32.totalorder %s14, 0
      %p76 = por %p74, %p75
      %p77 = scmp.ne.s32.totalorder %s69, %s71
      %p78 = scmp.eq.s32.totalorder %s19, 2
      %p79 = por %p77, %p78
      %p80 = scmp.ne.s32.totalorder %s71, %s72
      %p81 = scmp.eq.s32.totalorder %s19, 0
      %p82 = por %p80, %p81
      %p83 = scmp.ne.s32.totalorder %s71, %s72
      %p84 = scmp.eq.s32.totalorder %s20, 2
      %p85 = por %p83, %p84
      %p87 = scmp.ne.s32.totalorder %s72, %s86
      %p88 = scmp.eq.s32.totalorder %s20, 0
      %p89 = por %p87, %p88
      %s91 = sadd.s32 %s90, 1
      %p94 = scmp.eq.s32.totalorder %s14, 2
      %p95 = scmp.ne.s32.totalorder %s90, %s92
      %p96 = scmp.eq.s32.totalorder %s14, 0
      %p97 = por %p95, %p96
      %p98 = scmp.ne.s32.totalorder %s90, %s92
      %p99 = scmp.eq.s32.totalorder %s19, 2
      %p100 = por %p98, %p99
      %p101 = scmp.ne.s32.totalorder %s92, %s93
      %p102 = scmp.eq.s32.totalorder %s19, 0
      %p103 = por %p101, %p102
      %p104 = scmp.ne.s32.totalorder %s92, %s93
      %p105 = scmp.eq.s32.totalorder %s20, 2
      %p106 = por %p104, %p105
      %p108 = scmp.ne.s32.totalorder %s93, %s107
      %p109 = scmp.eq.s32.totalorder %s20, 0
      %p110 = por %p108, %p109
      %s112 = sadd.s32 %s111, 1
      %p115 = scmp.eq.s32.totalorder %s14, 2
      %p116 = scmp.ne.s32.totalorder %s111, %s113
      %p117 = scmp.eq.s32.totalorder %s14, 0
      %p118 = por %p116, %p117
      %p119 = scmp.ne.s32.totalorder %s111, %s113
      %p120 = scmp.eq.s32.totalorder %s19, 2
      %p121 = por %p119, %p120
      %p122 = scmp.ne.s32.totalorder %s113, %s114
      %p123 = scmp.eq.s32.totalorder %s19, 0
      %p124 = por %p122, %p123
      %p125 = scmp.ne.s32.totalorder %s113, %s114
      %p126 = scmp.eq.s32.totalorder %s20, 2
      %p127 = por %p125, %p126
      %p129 = scmp.ne.s32.totalorder %s114, %s128
      %p130 = scmp.eq.s32.totalorder %s20, 0
      %p131 = por %p129, %p130
      %s132 = ssub.s32 %s14, %s21
      %p133 = scmp.eq.s32.totalorder %s132, 0
      %s135 = sadd.s32 %s134, 1
      %s136 = scalar_select %p133, %s134, %s135
      %p139 = pneg %p133
      %p140 = scmp.eq.s32.totalorder %s14, 2
      %p141 = por %p139, %p140
      %p142 = scmp.ne.s32.totalorder %s134, %s137
      %p143 = scmp.eq.s32.totalorder %s14, 0
      %p144 = por %p142, %p143
      %p145 = scmp.ne.s32.totalorder %s134, %s137
      %p146 = scmp.eq.s32.totalorder %s19, 2
      %p147 = por %p145, %p146
      %p148 = scmp.ne.s32.totalorder %s137, %s138
      %p149 = scmp.eq.s32.totalorder %s19, 0
      %p150 = por %p148, %p149
      %p151 = scmp.ne.s32.totalorder %s137, %s138
      %p152 = scmp.eq.s32.totalorder %s20, 2
      %p153 = por %p151, %p152
      %p155 = scmp.ne.s32.totalorder %s138, %s154
      %p156 = scmp.eq.s32.totalorder %s20, 0
      %p157 = por %p155, %p156
      %p158 = scmp.le.s32.totalorder 1, %s14
      %p159 = scmp.lt.s32.totalorder %s14, 4
      %p160 = pnand %p158, %p159
      %p161 = pneg %p160
      // Predicated region
      $region9: #{tpu_custom_call.1} parent=5 // pred_check
        _
      $region10: #{tpu_custom_call.1} parent=5 // pred_check_branch
        %163 = sbr.rel (%p160) target = $region12
      $region11: #{tpu_custom_call.1} parent=5 // pred_region
        %s164 = ssub.s32 %s14, 1
        // Predicated region
        $region13: #{tpu_custom_call.1} parent=11 // pred_check
          %p165 = pneg %p61
        $region14: #{tpu_custom_call.1} parent=11 // pred_check_branch
          %167 = sbr.rel (%p165) target = $region16
        $region15: #{tpu_custom_call.1} parent=11 // pred_region
          _
        $region16: #{tpu_custom_call.1} parent=11 // pred_fallthru
          _
        // Predicated region
        $region17: #{tpu_custom_call.1} parent=11 // pred_check
          %p168 = pneg %p82
        $region18: #{tpu_custom_call.1} parent=11 // pred_check_branch
          %170 = sbr.rel (%p168) target = $region20
        $region19: #{tpu_custom_call.1} parent=11 // pred_region
          _
        $region20: #{tpu_custom_call.1} parent=11 // pred_fallthru
          _
        // Predicated region
        $region21: #{tpu_custom_call.1} parent=11 // pred_check
          %p171 = pneg %p103
        $region22: #{tpu_custom_call.1} parent=11 // pred_check_branch
          %173 = sbr.rel (%p171) target = $region24
        $region23: #{tpu_custom_call.1} parent=11 // pred_region
          _
        $region24: #{tpu_custom_call.1} parent=11 // pred_fallthru
          _
        // Predicated region
        $region25: #{tpu_custom_call.1} parent=11 // pred_check
          %p174 = pneg %p124
        $region26: #{tpu_custom_call.1} parent=11 // pred_check_branch
          %176 = sbr.rel (%p174) target = $region28
        $region27: #{tpu_custom_call.1} parent=11 // pred_region
          _
        $region28: #{tpu_custom_call.1} parent=11 // pred_fallthru
          _
      $region12: #{tpu_custom_call.1} parent=5 // pred_fallthru
        _
      %p177 = scmp.lt.s32.totalorder %s14, 3
      // Predicated region
      $region29: #{tpu_custom_call.1} parent=5 // pred_check
        %p178 = pneg %p177
      $region30: #{tpu_custom_call.1} parent=5 // pred_check_branch
        %180 = sbr.rel (%p178) target = $region32
      $region31: #{tpu_custom_call.1} parent=5 // pred_region
        // Predicated region
        $region33: #{tpu_custom_call.1} parent=31 // pred_check
          %p181 = pneg %p34
        $region34: #{tpu_custom_call.1} parent=31 // pred_check_branch
          %183 = sbr.rel (%p181) target = $region36
        $region35: #{tpu_custom_call.1} parent=31 // pred_region
          %s184 = smul.u32 8, %s14
          %p185 = scmp.lt.s32.totalorder %s184, 23
          %s186 = scalar_select %p185, %s184, 23
          %s187 = smul.addr %s186, 4
          %s188 = scalar_lea.vmem %s0, %s187
          %s189 = smul.u32 8, %s14
        $region36: #{tpu_custom_call.1} parent=31 // pred_fallthru
          _
      $region32: #{tpu_custom_call.1} parent=5 // pred_fallthru
        _
      %p190 = scmp.le.s32.totalorder 1, %s14
      %p191 = scmp.lt.s32.totalorder %s14, 4
      %p192 = pnand %p190, %p191
      %p193 = pneg %p192
      // Predicated region
      $region37: #{tpu_custom_call.1} parent=5 // pred_check
        _
      $region38: #{tpu_custom_call.1} parent=5 // pred_check_branch
        %195 = sbr.rel (%p192) target = $region40
      $region39: #{tpu_custom_call.1} parent=5 // pred_region
        %s196 = ssub.s32 %s14, 1
        %s197 = smul.u32 8, %s19
        %p198 = scmp.lt.s32.totalorder %s197, 23
        %s199 = scalar_select %p198, %s197, 23
        %s200 = smul.addr %s199, 4
        %s201 = scalar_lea.vmem %s0, %s200
        %p202 = pneg %p40
        %p203 = pneg %p37
        %p204 = pneg %p61
        %p205 = pneg %p58
        %p206 = pneg %p82
        %p207 = pneg %p79
        %p208 = pneg %p103
        %p209 = pneg %p100
        %p210 = pneg %p124
        %p211 = pneg %p121
        %p212 = pneg %p150
        %p213 = pneg %p147
        %s214 = sand.u32 %s137, 1
        %s215 = scalar_lea.sflag [#allocation3], %s214
        %s216 = sand.u32 %s137, 1
        %s217 = smul.addr %s216, 8
        %s218 = scalar_lea.vmem [#allocation2], %s217
        %s219 = smul.u32 8, %s19
        %p220 = scmp.lt.s32.totalorder %s219, 23
        %s221 = scalar_select %p220, %s219, 23
        %s222 = smul.addr %s221, 4
        %s223 = scalar_lea.vmem %s0, %s222
        %s224 = smul.u32 8, %s19
        %s225 = smul.u32 8, %s19
        %v226 = vld [vmem:[%s223] sm:$0x77]
        %v227 = vld [vmem:[%s223 + $0x8] sm:$0x77]
        %v228 = vld [vmem:[%s223 + $0x10] sm:$0x77]
        %v229 = vld [vmem:[%s223 + $0x18] sm:$0x77]
        %v230 = vld [vmem:[%s1] sm:$0xff]
        %v231 = vld [vmem:[%s1 + $0x8] sm:$0xff]
        %v232 = vld [vmem:[%s1 + $0x10] sm:$0xff]
        %v233 = vld [vmem:[%s1 + $0x18] sm:$0xff]
        %v234 = vld [vmem:[%s1 + $0x20] sm:$0xff]
        %v235 = vld [vmem:[%s2] sm:$0xff]
        %v236 = vld [vmem:[%s2 + $0x8] sm:$0xff]
        %v237 = vld [vmem:[%s2 + $0x10] sm:$0xff]
        %v238 = vld [vmem:[%s2 + $0x18] sm:$0xff]
        %v239 = vld [vmem:[%s2 + $0x20] sm:$0xff]
        %241 = vset.pattern.permute.xlu0 0
        %242 = vperm.xlu0 %241, %v235
        %v243 = vpop.permute.xlu0 %242
        %246 = vset.pattern.permute.xlu0 0
        %247 = vperm.xlu0 %246, %v236
        %v248 = vpop.permute.xlu0 %247
        %251 = vset.pattern.permute.xlu0 0
        %252 = vperm.xlu0 %251, %v237
        %v253 = vpop.permute.xlu0 %252
        %256 = vset.pattern.permute.xlu0 0
        %257 = vperm.xlu0 %256, %v238
        %v258 = vpop.permute.xlu0 %257
        %261 = vset.pattern.permute.xlu0 0
        %262 = vperm.xlu0 %261, %v239
        %v263 = vpop.permute.xlu0 %262
        %269 = vst [vmem:[#allocation1] ss:$2 sm:$0xff] %v226
        %s270 = scalar_lea.vmem [#allocation1], 16
        %271 = vst [vmem:[%s270] ss:$2 sm:$0xff] %v227
        %s272 = scalar_lea.vmem [#allocation1], 32
        %273 = vst [vmem:[%s272] ss:$2 sm:$0xff] %v228
        %s274 = scalar_lea.vmem [#allocation1], 48
        %275 = vst [vmem:[%s274] ss:$2 sm:$0xff] %v229
        %v276 = vld.sshfl [vmem:[#allocation1] sm:$0xff pattern:$0x75316420]
        %v277 = vld.sshfl [vmem:[#allocation1 + $0x8] sm:$0xff pattern:$0x75316420]
        %v278 = vld.sshfl [vmem:[#allocation1 + $0x10] sm:$0xff pattern:$0x75316420]
        %v279 = vld.sshfl [vmem:[#allocation1 + $0x18] sm:$0xff pattern:$0x75316420]
        %v280 = vld.sshfl [vmem:[#allocation1 + $0x20] sm:$0xff pattern:$0x75316420]
        %v281 = vld.sshfl [vmem:[#allocation1 + $0x28] sm:$0xff pattern:$0x75316420]
        %v282 = vld.sshfl [vmem:[#allocation1 + $0x30] sm:$0xff pattern:$0x75316420]
        %v283 = vld.sshfl [vmem:[#allocation1 + $0x38] sm:$0xff pattern:$0x75316420]
        %vm284 = vcmask 23552
        %v286 = vsel %vm284, %v230, 0
        %v289 = vsel %vm284, %v231, 0
        %v292 = vsel %vm284, %v232, 0
        %v295 = vsel %vm284, %v233, 0
        %v298 = vsel %vm284, %v234, 0
        %vm300 = vcmask 1042432
        %v301 = vsel %vm300, %v276, 0
        %v303 = vsel %vm300, %v277, 0
        %v305 = vsel %vm300, %v278, 0
        %v307 = vsel %vm300, %v279, 0
        %v309 = vsel %vm300, %v280, 0
        %v311 = vsel %vm300, %v281, 0
        %v313 = vsel %vm300, %v282, 0
        %v315 = vsel %vm300, %v283, 0
        %317 = vmatpush.msra.mxu0 0.0
        %318 = vmatpush.msra.mxu0 0.0
        %319 = vmatpush.msra.mxu0 0.0
        %320 = vmatpush.msra.mxu0 0.0
        %321 = vmatpush.msra.mxu0 0.0
        %322 = vmatpush.msra.mxu0 0.0
        %323 = vmatpush.msra.mxu0 0.0
        %324 = vmatpush.msra.mxu0 0.0
        %325 = vmatpush.msra.mxu0 0.0
        %326 = vmatpush.msra.mxu0 0.0
        %327 = vmatpush.msra.mxu0 0.0
        %328 = vmatpush.msra.mxu0 0.0
        %329 = vmatpush.msra.mxu0 0.0
        %330 = vmatpush.msra.mxu0 0.0
        %331 = vmatpush.msra.mxu0 0.0
        %332 = vmatpush.msra.mxu0 %v301
        %333 = vmatmul.f32.gmra.mxu0 %v286
        %v334 = vpop.f32.mrf.mxu0
        %v335 = vadd.f32 %v243, %v334
        %336 = vmatmul.f32.gmra.mxu0 %v289
        %v337 = vpop.f32.mrf.mxu0
        %v338 = vadd.f32 %v248, %v337
        %339 = vmatmul.f32.gmra.mxu0 %v292
        %v340 = vpop.f32.mrf.mxu0
        %v341 = vadd.f32 %v253, %v340
        %342 = vmatmul.f32.gmra.mxu0 %v295
        %v343 = vpop.f32.mrf.mxu0
        %v344 = vadd.f32 %v258, %v343
        %345 = vmatmul.f32.gmra.mxu0 %v298
        %v346 = vpop.f32.mrf.mxu0
        %v347 = vadd.f32 %v263, %v346
        %348 = vdwg.mxu0
        %349 = vmatpush.msra.mxu0 0.0
        %350 = vmatpush.msra.mxu0 0.0
        %351 = vmatpush.msra.mxu0 0.0
        %352 = vmatpush.msra.mxu0 0.0
        %353 = vmatpush.msra.mxu0 0.0
        %354 = vmatpush.msra.mxu0 0.0
        %355 = vmatpush.msra.mxu0 0.0
        %356 = vmatpush.msra.mxu0 0.0
        %357 = vmatpush.msra.mxu0 0.0
        %358 = vmatpush.msra.mxu0 0.0
        %359 = vmatpush.msra.mxu0 0.0
        %360 = vmatpush.msra.mxu0 0.0
        %361 = vmatpush.msra.mxu0 0.0
        %362 = vmatpush.msra.mxu0 0.0
        %363 = vmatpush.msra.mxu0 0.0
        %364 = vmatpush.msra.mxu0 %v303
        %365 = vmatmul.f32.gmra.mxu0 %v286
        %v366 = vpop.f32.mrf.mxu0
        %v367 = vadd.f32 %v243, %v366
        %368 = vmatmul.f32.gmra.mxu0 %v289
        %v369 = vpop.f32.mrf.mxu0
        %v370 = vadd.f32 %v248, %v369
        %371 = vmatmul.f32.gmra.mxu0 %v292
        %v372 = vpop.f32.mrf.mxu0
        %v373 = vadd.f32 %v253, %v372
        %374 = vmatmul.f32.gmra.mxu0 %v295
        %v375 = vpop.f32.mrf.mxu0
        %v376 = vadd.f32 %v258, %v375
        %377 = vmatmul.f32.gmra.mxu0 %v298
        %v378 = vpop.f32.mrf.mxu0
        %v379 = vadd.f32 %v263, %v378
        %380 = vdwg.mxu0
        %381 = vmatpush.msra.mxu0 0.0
        %382 = vmatpush.msra.mxu0 0.0
        %383 = vmatpush.msra.mxu0 0.0
        %384 = vmatpush.msra.mxu0 0.0
        %385 = vmatpush.msra.mxu0 0.0
        %386 = vmatpush.msra.mxu0 0.0
        %387 = vmatpush.msra.mxu0 0.0
        %388 = vmatpush.msra.mxu0 0.0
        %389 = vmatpush.msra.mxu0 0.0
        %390 = vmatpush.msra.mxu0 0.0
        %391 = vmatpush.msra.mxu0 0.0
        %392 = vmatpush.msra.mxu0 0.0
        %393 = vmatpush.msra.mxu0 0.0
        %394 = vmatpush.msra.mxu0 0.0
        %395 = vmatpush.msra.mxu0 0.0
        %396 = vmatpush.msra.mxu0 %v305
        %397 = vmatmul.f32.gmra.mxu0 %v286
        %v398 = vpop.f32.mrf.mxu0
        %v399 = vadd.f32 %v243, %v398
        %400 = vmatmul.f32.gmra.mxu0 %v289
        %v401 = vpop.f32.mrf.mxu0
        %v402 = vadd.f32 %v248, %v401
        %403 = vmatmul.f32.gmra.mxu0 %v292
        %v404 = vpop.f32.mrf.mxu0
        %v405 = vadd.f32 %v253, %v404
        %406 = vmatmul.f32.gmra.mxu0 %v295
        %v407 = vpop.f32.mrf.mxu0
        %v408 = vadd.f32 %v258, %v407
        %409 = vmatmul.f32.gmra.mxu0 %v298
        %v410 = vpop.f32.mrf.mxu0
        %v411 = vadd.f32 %v263, %v410
        %412 = vdwg.mxu0
        %413 = vmatpush.msra.mxu0 0.0
        %414 = vmatpush.msra.mxu0 0.0
        %415 = vmatpush.msra.mxu0 0.0
        %416 = vmatpush.msra.mxu0 0.0
        %417 = vmatpush.msra.mxu0 0.0
        %418 = vmatpush.msra.mxu0 0.0
        %419 = vmatpush.msra.mxu0 0.0
        %420 = vmatpush.msra.mxu0 0.0
        %421 = vmatpush.msra.mxu0 0.0
        %422 = vmatpush.msra.mxu0 0.0
        %423 = vmatpush.msra.mxu0 0.0
        %424 = vmatpush.msra.mxu0 0.0
        %425 = vmatpush.msra.mxu0 0.0
        %426 = vmatpush.msra.mxu0 0.0
        %427 = vmatpush.msra.mxu0 0.0
        %428 = vmatpush.msra.mxu0 %v307
        %429 = vmatmul.f32.gmra.mxu0 %v286
        %v430 = vpop.f32.mrf.mxu0
        %v431 = vadd.f32 %v243, %v430
        %432 = vmatmul.f32.gmra.mxu0 %v289
        %v433 = vpop.f32.mrf.mxu0
        %v434 = vadd.f32 %v248, %v433
        %435 = vmatmul.f32.gmra.mxu0 %v292
        %v436 = vpop.f32.mrf.mxu0
        %v437 = vadd.f32 %v253, %v436
        %438 = vmatmul.f32.gmra.mxu0 %v295
        %v439 = vpop.f32.mrf.mxu0
        %v440 = vadd.f32 %v258, %v439
        %441 = vmatmul.f32.gmra.mxu0 %v298
        %v442 = vpop.f32.mrf.mxu0
        %v443 = vadd.f32 %v263, %v442
        %444 = vdwg.mxu0
        %445 = vmatpush.msra.mxu0 0.0
        %446 = vmatpush.msra.mxu0 0.0
        %447 = vmatpush.msra.mxu0 0.0
        %448 = vmatpush.msra.mxu0 0.0
        %449 = vmatpush.msra.mxu0 0.0
        %450 = vmatpush.msra.mxu0 0.0
        %451 = vmatpush.msra.mxu0 0.0
        %452 = vmatpush.msra.mxu0 0.0
        %453 = vmatpush.msra.mxu0 0.0
        %454 = vmatpush.msra.mxu0 0.0
        %455 = vmatpush.msra.mxu0 0.0
        %456 = vmatpush.msra.mxu0 0.0
        %457 = vmatpush.msra.mxu0 0.0
        %458 = vmatpush.msra.mxu0 0.0
        %459 = vmatpush.msra.mxu0 0.0
        %460 = vmatpush.msra.mxu0 %v309
        %461 = vmatmul.f32.gmra.mxu0 %v286
        %v462 = vpop.f32.mrf.mxu0
        %v463 = vadd.f32 %v243, %v462
        %464 = vmatmul.f32.gmra.mxu0 %v289
        %v465 = vpop.f32.mrf.mxu0
        %v466 = vadd.f32 %v248, %v465
        %467 = vmatmul.f32.gmra.mxu0 %v292
        %v468 = vpop.f32.mrf.mxu0
        %v469 = vadd.f32 %v253, %v468
        %470 = vmatmul.f32.gmra.mxu0 %v295
        %v471 = vpop.f32.mrf.mxu0
        %v472 = vadd.f32 %v258, %v471
        %473 = vmatmul.f32.gmra.mxu0 %v298
        %v474 = vpop.f32.mrf.mxu0
        %v475 = vadd.f32 %v263, %v474
        %476 = vdwg.mxu0
        %477 = vmatpush.msra.mxu0 0.0
        %478 = vmatpush.msra.mxu0 0.0
        %479 = vmatpush.msra.mxu0 0.0
        %480 = vmatpush.msra.mxu0 0.0
        %481 = vmatpush.msra.mxu0 0.0
        %482 = vmatpush.msra.mxu0 0.0
        %483 = vmatpush.msra.mxu0 0.0
        %484 = vmatpush.msra.mxu0 0.0
        %485 = vmatpush.msra.mxu0 0.0
        %486 = vmatpush.msra.mxu0 0.0
        %487 = vmatpush.msra.mxu0 0.0
        %488 = vmatpush.msra.mxu0 0.0
        %489 = vmatpush.msra.mxu0 0.0
        %490 = vmatpush.msra.mxu0 0.0
        %491 = vmatpush.msra.mxu0 0.0
        %492 = vmatpush.msra.mxu0 %v311
        %493 = vmatmul.f32.gmra.mxu0 %v286
        %v494 = vpop.f32.mrf.mxu0
        %v495 = vadd.f32 %v243, %v494
        %496 = vmatmul.f32.gmra.mxu0 %v289
        %v497 = vpop.f32.mrf.mxu0
        %v498 = vadd.f32 %v248, %v497
        %499 = vmatmul.f32.gmra.mxu0 %v292
        %v500 = vpop.f32.mrf.mxu0
        %v501 = vadd.f32 %v253, %v500
        %502 = vmatmul.f32.gmra.mxu0 %v295
        %v503 = vpop.f32.mrf.mxu0
        %v504 = vadd.f32 %v258, %v503
        %505 = vmatmul.f32.gmra.mxu0 %v298
        %v506 = vpop.f32.mrf.mxu0
        %v507 = vadd.f32 %v263, %v506
        %508 = vdwg.mxu0
        %509 = vmatpush.msra.mxu0 0.0
        %510 = vmatpush.msra.mxu0 0.0
        %511 = vmatpush.msra.mxu0 0.0
        %512 = vmatpush.msra.mxu0 0.0
        %513 = vmatpush.msra.mxu0 0.0
        %514 = vmatpush.msra.mxu0 0.0
        %515 = vmatpush.msra.mxu0 0.0
        %516 = vmatpush.msra.mxu0 0.0
        %517 = vmatpush.msra.mxu0 0.0
        %518 = vmatpush.msra.mxu0 0.0
        %519 = vmatpush.msra.mxu0 0.0
        %520 = vmatpush.msra.mxu0 0.0
        %521 = vmatpush.msra.mxu0 0.0
        %522 = vmatpush.msra.mxu0 0.0
        %523 = vmatpush.msra.mxu0 0.0
        %524 = vmatpush.msra.mxu0 %v313
        %525 = vmatmul.f32.gmra.mxu0 %v286
        %v526 = vpop.f32.mrf.mxu0
        %v527 = vadd.f32 %v243, %v526
        %528 = vmatmul.f32.gmra.mxu0 %v289
        %v529 = vpop.f32.mrf.mxu0
        %v530 = vadd.f32 %v248, %v529
        %531 = vmatmul.f32.gmra.mxu0 %v292
        %v532 = vpop.f32.mrf.mxu0
        %v533 = vadd.f32 %v253, %v532
        %534 = vmatmul.f32.gmra.mxu0 %v295
        %v535 = vpop.f32.mrf.mxu0
        %v536 = vadd.f32 %v258, %v535
        %537 = vmatmul.f32.gmra.mxu0 %v298
        %v538 = vpop.f32.mrf.mxu0
        %v539 = vadd.f32 %v263, %v538
        %540 = vdwg.mxu0
        %541 = vmatpush.msra.mxu0 0.0
        %542 = vmatpush.msra.mxu0 0.0
        %543 = vmatpush.msra.mxu0 0.0
        %544 = vmatpush.msra.mxu0 0.0
        %545 = vmatpush.msra.mxu0 0.0
        %546 = vmatpush.msra.mxu0 0.0
        %547 = vmatpush.msra.mxu0 0.0
        %548 = vmatpush.msra.mxu0 0.0
        %549 = vmatpush.msra.mxu0 0.0
        %550 = vmatpush.msra.mxu0 0.0
        %551 = vmatpush.msra.mxu0 0.0
        %552 = vmatpush.msra.mxu0 0.0
        %553 = vmatpush.msra.mxu0 0.0
        %554 = vmatpush.msra.mxu0 0.0
        %555 = vmatpush.msra.mxu0 0.0
        %556 = vmatpush.msra.mxu0 %v315
        %557 = vmatmul.f32.gmra.mxu0 %v286
        %v558 = vpop.f32.mrf.mxu0
        %v559 = vadd.f32 %v243, %v558
        %560 = vmatmul.f32.gmra.mxu0 %v289
        %v561 = vpop.f32.mrf.mxu0
        %v562 = vadd.f32 %v248, %v561
        %563 = vmatmul.f32.gmra.mxu0 %v292
        %v564 = vpop.f32.mrf.mxu0
        %v565 = vadd.f32 %v253, %v564
        %566 = vmatmul.f32.gmra.mxu0 %v295
        %v567 = vpop.f32.mrf.mxu0
        %v568 = vadd.f32 %v258, %v567
        %569 = vmatmul.f32.gmra.mxu0 %v298
        %v570 = vpop.f32.mrf.mxu0
        %v571 = vadd.f32 %v263, %v570
        %572 = vdwg.mxu0
        %v573 = vmax.f32 %v335, 0.0
        %v574 = vmax.f32 %v367, 0.0
        %v575 = vmax.f32 %v399, 0.0
        %v576 = vmax.f32 %v431, 0.0
        %v577 = vmax.f32 %v463, 0.0
        %v578 = vmax.f32 %v495, 0.0
        %v579 = vmax.f32 %v527, 0.0
        %v580 = vmax.f32 %v559, 0.0
        %v581 = vmax.f32 %v338, 0.0
        %v582 = vmax.f32 %v370, 0.0
        %v583 = vmax.f32 %v402, 0.0
        %v584 = vmax.f32 %v434, 0.0
        %v585 = vmax.f32 %v466, 0.0
        %v586 = vmax.f32 %v498, 0.0
        %v587 = vmax.f32 %v530, 0.0
        %v588 = vmax.f32 %v562, 0.0
        %v589 = vmax.f32 %v341, 0.0
        %v590 = vmax.f32 %v373, 0.0
        %v591 = vmax.f32 %v405, 0.0
        %v592 = vmax.f32 %v437, 0.0
        %v593 = vmax.f32 %v469, 0.0
        %v594 = vmax.f32 %v501, 0.0
        %v595 = vmax.f32 %v533, 0.0
        %v596 = vmax.f32 %v565, 0.0
        %v597 = vmax.f32 %v344, 0.0
        %v598 = vmax.f32 %v376, 0.0
        %v599 = vmax.f32 %v408, 0.0
        %v600 = vmax.f32 %v440, 0.0
        %v601 = vmax.f32 %v472, 0.0
        %v602 = vmax.f32 %v504, 0.0
        %v603 = vmax.f32 %v536, 0.0
        %v604 = vmax.f32 %v568, 0.0
        %v605 = vmax.f32 %v347, 0.0
        %v606 = vmax.f32 %v379, 0.0
        %v607 = vmax.f32 %v411, 0.0
        %v608 = vmax.f32 %v443, 0.0
        %v609 = vmax.f32 %v475, 0.0
        %v610 = vmax.f32 %v507, 0.0
        %v611 = vmax.f32 %v539, 0.0
        %v612 = vmax.f32 %v571, 0.0
        %s613 = scalar_lea.vmem %s1, 40
        %v614 = vld [vmem:[%s613] sm:$0xff]
        %v615 = vld [vmem:[%s613 + $0x8] sm:$0xff]
        %v616 = vld [vmem:[%s613 + $0x10] sm:$0xff]
        %v617 = vld [vmem:[%s613 + $0x18] sm:$0xff]
        %v618 = vld [vmem:[%s613 + $0x20] sm:$0xff]
        %s619 = scalar_lea.vmem %s2, 40
        %v620 = vld [vmem:[%s619] sm:$0xff]
        %v621 = vld [vmem:[%s619 + $0x8] sm:$0xff]
        %v622 = vld [vmem:[%s619 + $0x10] sm:$0xff]
        %v623 = vld [vmem:[%s619 + $0x18] sm:$0xff]
        %v624 = vld [vmem:[%s619 + $0x20] sm:$0xff]
        %626 = vset.pattern.permute.xlu0 0
        %627 = vperm.xlu0 %626, %v620
        %v628 = vpop.permute.xlu0 %627
        %631 = vset.pattern.permute.xlu0 0
        %632 = vperm.xlu0 %631, %v621
        %v633 = vpop.permute.xlu0 %632
        %636 = vset.pattern.permute.xlu0 0
        %637 = vperm.xlu0 %636, %v622
        %v638 = vpop.permute.xlu0 %637
        %641 = vset.pattern.permute.xlu0 0
        %642 = vperm.xlu0 %641, %v623
        %v643 = vpop.permute.xlu0 %642
        %646 = vset.pattern.permute.xlu0 0
        %647 = vperm.xlu0 %646, %v624
        %v648 = vpop.permute.xlu0 %647
        %vm650 = vcmask 326656
        %v652 = vsel %vm650, %v614, 0
        %v655 = vsel %vm650, %v615, 0
        %v658 = vsel %vm650, %v616, 0
        %v661 = vsel %vm650, %v617, 0
        %v664 = vsel %vm650, %v618, 0
        %666 = vmatpush.msra.mxu0 0.0
        %667 = vmatpush.msra.mxu0 0.0
        %668 = vmatpush.msra.mxu0 0.0
        %669 = vmatpush.msra.mxu0 0.0
        %670 = vmatpush.msra.mxu0 0.0
        %671 = vmatpush.msra.mxu0 0.0
        %672 = vmatpush.msra.mxu0 0.0
        %673 = vmatpush.msra.mxu0 0.0
        %674 = vmatpush.msra.mxu0 0.0
        %675 = vmatpush.msra.mxu0 0.0
        %676 = vmatpush.msra.mxu0 0.0
        %677 = vmatpush.msra.mxu0 %v605
        %678 = vmatpush.msra.mxu0 %v597
        %679 = vmatpush.msra.mxu0 %v589
        %680 = vmatpush.msra.mxu0 %v581
        %681 = vmatpush.msra.mxu0 %v573
        %682 = vmatmul.f32.gmra.mxu0 %v652
        %v683 = vpop.f32.mrf.mxu0
        %v684 = vadd.f32 %v628, %v683
        %685 = vmatmul.f32.gmra.mxu0 %v655
        %v686 = vpop.f32.mrf.mxu0
        %v687 = vadd.f32 %v633, %v686
        %688 = vmatmul.f32.gmra.mxu0 %v658
        %v689 = vpop.f32.mrf.mxu0
        %v690 = vadd.f32 %v638, %v689
        %691 = vmatmul.f32.gmra.mxu0 %v661
        %v692 = vpop.f32.mrf.mxu0
        %v693 = vadd.f32 %v643, %v692
        %694 = vmatmul.f32.gmra.mxu0 %v664
        %v695 = vpop.f32.mrf.mxu0
        %v696 = vadd.f32 %v648, %v695
        %697 = vdwg.mxu0
        %698 = vmatpush.msra.mxu0 0.0
        %699 = vmatpush.msra.mxu0 0.0
        %700 = vmatpush.msra.mxu0 0.0
        %701 = vmatpush.msra.mxu0 0.0
        %702 = vmatpush.msra.mxu0 0.0
        %703 = vmatpush.msra.mxu0 0.0
        %704 = vmatpush.msra.mxu0 0.0
        %705 = vmatpush.msra.mxu0 0.0
        %706 = vmatpush.msra.mxu0 0.0
        %707 = vmatpush.msra.mxu0 0.0
        %708 = vmatpush.msra.mxu0 0.0
        %709 = vmatpush.msra.mxu0 %v606
        %710 = vmatpush.msra.mxu0 %v598
        %711 = vmatpush.msra.mxu0 %v590
        %712 = vmatpush.msra.mxu0 %v582
        %713 = vmatpush.msra.mxu0 %v574
        %714 = vmatmul.f32.gmra.mxu0 %v652
        %v715 = vpop.f32.mrf.mxu0
        %v716 = vadd.f32 %v628, %v715
        %717 = vmatmul.f32.gmra.mxu0 %v655
        %v718 = vpop.f32.mrf.mxu0
        %v719 = vadd.f32 %v633, %v718
        %720 = vmatmul.f32.gmra.mxu0 %v658
        %v721 = vpop.f32.mrf.mxu0
        %v722 = vadd.f32 %v638, %v721
        %723 = vmatmul.f32.gmra.mxu0 %v661
        %v724 = vpop.f32.mrf.mxu0
        %v725 = vadd.f32 %v643, %v724
        %726 = vmatmul.f32.gmra.mxu0 %v664
        %v727 = vpop.f32.mrf.mxu0
        %v728 = vadd.f32 %v648, %v727
        %729 = vdwg.mxu0
        %730 = vmatpush.msra.mxu0 0.0
        %731 = vmatpush.msra.mxu0 0.0
        %732 = vmatpush.msra.mxu0 0.0
        %733 = vmatpush.msra.mxu0 0.0
        %734 = vmatpush.msra.mxu0 0.0
        %735 = vmatpush.msra.mxu0 0.0
        %736 = vmatpush.msra.mxu0 0.0
        %737 = vmatpush.msra.mxu0 0.0
        %738 = vmatpush.msra.mxu0 0.0
        %739 = vmatpush.msra.mxu0 0.0
        %740 = vmatpush.msra.mxu0 0.0
        %741 = vmatpush.msra.mxu0 %v607
        %742 = vmatpush.msra.mxu0 %v599
        %743 = vmatpush.msra.mxu0 %v591
        %744 = vmatpush.msra.mxu0 %v583
        %745 = vmatpush.msra.mxu0 %v575
        %746 = vmatmul.f32.gmra.mxu0 %v652
        %v747 = vpop.f32.mrf.mxu0
        %v748 = vadd.f32 %v628, %v747
        %749 = vmatmul.f32.gmra.mxu0 %v655
        %v750 = vpop.f32.mrf.mxu0
        %v751 = vadd.f32 %v633, %v750
        %752 = vmatmul.f32.gmra.mxu0 %v658
        %v753 = vpop.f32.mrf.mxu0
        %v754 = vadd.f32 %v638, %v753
        %755 = vmatmul.f32.gmra.mxu0 %v661
        %v756 = vpop.f32.mrf.mxu0
        %v757 = vadd.f32 %v643, %v756
        %758 = vmatmul.f32.gmra.mxu0 %v664
        %v759 = vpop.f32.mrf.mxu0
        %v760 = vadd.f32 %v648, %v759
        %761 = vdwg.mxu0
        %762 = vmatpush.msra.mxu0 0.0
        %763 = vmatpush.msra.mxu0 0.0
        %764 = vmatpush.msra.mxu0 0.0
        %765 = vmatpush.msra.mxu0 0.0
        %766 = vmatpush.msra.mxu0 0.0
        %767 = vmatpush.msra.mxu0 0.0
        %768 = vmatpush.msra.mxu0 0.0
        %769 = vmatpush.msra.mxu0 0.0
        %770 = vmatpush.msra.mxu0 0.0
        %771 = vmatpush.msra.mxu0 0.0
        %772 = vmatpush.msra.mxu0 0.0
        %773 = vmatpush.msra.mxu0 %v608
        %774 = vmatpush.msra.mxu0 %v600
        %775 = vmatpush.msra.mxu0 %v592
        %776 = vmatpush.msra.mxu0 %v584
        %777 = vmatpush.msra.mxu0 %v576
        %778 = vmatmul.f32.gmra.mxu0 %v652
        %v779 = vpop.f32.mrf.mxu0
        %v780 = vadd.f32 %v628, %v779
        %781 = vmatmul.f32.gmra.mxu0 %v655
        %v782 = vpop.f32.mrf.mxu0
        %v783 = vadd.f32 %v633, %v782
        %784 = vmatmul.f32.gmra.mxu0 %v658
        %v785 = vpop.f32.mrf.mxu0
        %v786 = vadd.f32 %v638, %v785
        %787 = vmatmul.f32.gmra.mxu0 %v661
        %v788 = vpop.f32.mrf.mxu0
        %v789 = vadd.f32 %v643, %v788
        %790 = vmatmul.f32.gmra.mxu0 %v664
        %v791 = vpop.f32.mrf.mxu0
        %v792 = vadd.f32 %v648, %v791
        %793 = vdwg.mxu0
        %794 = vmatpush.msra.mxu0 0.0
        %795 = vmatpush.msra.mxu0 0.0
        %796 = vmatpush.msra.mxu0 0.0
        %797 = vmatpush.msra.mxu0 0.0
        %798 = vmatpush.msra.mxu0 0.0
        %799 = vmatpush.msra.mxu0 0.0
        %800 = vmatpush.msra.mxu0 0.0
        %801 = vmatpush.msra.mxu0 0.0
        %802 = vmatpush.msra.mxu0 0.0
        %803 = vmatpush.msra.mxu0 0.0
        %804 = vmatpush.msra.mxu0 0.0
        %805 = vmatpush.msra.mxu0 %v609
        %806 = vmatpush.msra.mxu0 %v601
        %807 = vmatpush.msra.mxu0 %v593
        %808 = vmatpush.msra.mxu0 %v585
        %809 = vmatpush.msra.mxu0 %v577
        %810 = vmatmul.f32.gmra.mxu0 %v652
        %v811 = vpop.f32.mrf.mxu0
        %v812 = vadd.f32 %v628, %v811
        %813 = vmatmul.f32.gmra.mxu0 %v655
        %v814 = vpop.f32.mrf.mxu0
        %v815 = vadd.f32 %v633, %v814
        %816 = vmatmul.f32.gmra.mxu0 %v658
        %v817 = vpop.f32.mrf.mxu0
        %v818 = vadd.f32 %v638, %v817
        %819 = vmatmul.f32.gmra.mxu0 %v661
        %v820 = vpop.f32.mrf.mxu0
        %v821 = vadd.f32 %v643, %v820
        %822 = vmatmul.f32.gmra.mxu0 %v664
        %v823 = vpop.f32.mrf.mxu0
        %v824 = vadd.f32 %v648, %v823
        %825 = vdwg.mxu0
        %826 = vmatpush.msra.mxu0 0.0
        %827 = vmatpush.msra.mxu0 0.0
        %828 = vmatpush.msra.mxu0 0.0
        %829 = vmatpush.msra.mxu0 0.0
        %830 = vmatpush.msra.mxu0 0.0
        %831 = vmatpush.msra.mxu0 0.0
        %832 = vmatpush.msra.mxu0 0.0
        %833 = vmatpush.msra.mxu0 0.0
        %834 = vmatpush.msra.mxu0 0.0
        %835 = vmatpush.msra.mxu0 0.0
        %836 = vmatpush.msra.mxu0 0.0
        %837 = vmatpush.msra.mxu0 %v610
        %838 = vmatpush.msra.mxu0 %v602
        %839 = vmatpush.msra.mxu0 %v594
        %840 = vmatpush.msra.mxu0 %v586
        %841 = vmatpush.msra.mxu0 %v578
        %842 = vmatmul.f32.gmra.mxu0 %v652
        %v843 = vpop.f32.mrf.mxu0
        %v844 = vadd.f32 %v628, %v843
        %845 = vmatmul.f32.gmra.mxu0 %v655
        %v846 = vpop.f32.mrf.mxu0
        %v847 = vadd.f32 %v633, %v846
        %848 = vmatmul.f32.gmra.mxu0 %v658
        %v849 = vpop.f32.mrf.mxu0
        %v850 = vadd.f32 %v638, %v849
        %851 = vmatmul.f32.gmra.mxu0 %v661
        %v852 = vpop.f32.mrf.mxu0
        %v853 = vadd.f32 %v643, %v852
        %854 = vmatmul.f32.gmra.mxu0 %v664
        %v855 = vpop.f32.mrf.mxu0
        %v856 = vadd.f32 %v648, %v855
        %857 = vdwg.mxu0
        %858 = vmatpush.msra.mxu0 0.0
        %859 = vmatpush.msra.mxu0 0.0
        %860 = vmatpush.msra.mxu0 0.0
        %861 = vmatpush.msra.mxu0 0.0
        %862 = vmatpush.msra.mxu0 0.0
        %863 = vmatpush.msra.mxu0 0.0
        %864 = vmatpush.msra.mxu0 0.0
        %865 = vmatpush.msra.mxu0 0.0
        %866 = vmatpush.msra.mxu0 0.0
        %867 = vmatpush.msra.mxu0 0.0
        %868 = vmatpush.msra.mxu0 0.0
        %869 = vmatpush.msra.mxu0 %v611
        %870 = vmatpush.msra.mxu0 %v603
        %871 = vmatpush.msra.mxu0 %v595
        %872 = vmatpush.msra.mxu0 %v587
        %873 = vmatpush.msra.mxu0 %v579
        %874 = vmatmul.f32.gmra.mxu0 %v652
        %v875 = vpop.f32.mrf.mxu0
        %v876 = vadd.f32 %v628, %v875
        %877 = vmatmul.f32.gmra.mxu0 %v655
        %v878 = vpop.f32.mrf.mxu0
        %v879 = vadd.f32 %v633, %v878
        %880 = vmatmul.f32.gmra.mxu0 %v658
        %v881 = vpop.f32.mrf.mxu0
        %v882 = vadd.f32 %v638, %v881
        %883 = vmatmul.f32.gmra.mxu0 %v661
        %v884 = vpop.f32.mrf.mxu0
        %v885 = vadd.f32 %v643, %v884
        %886 = vmatmul.f32.gmra.mxu0 %v664
        %v887 = vpop.f32.mrf.mxu0
        %v888 = vadd.f32 %v648, %v887
        %889 = vdwg.mxu0
        %890 = vmatpush.msra.mxu0 0.0
        %891 = vmatpush.msra.mxu0 0.0
        %892 = vmatpush.msra.mxu0 0.0
        %893 = vmatpush.msra.mxu0 0.0
        %894 = vmatpush.msra.mxu0 0.0
        %895 = vmatpush.msra.mxu0 0.0
        %896 = vmatpush.msra.mxu0 0.0
        %897 = vmatpush.msra.mxu0 0.0
        %898 = vmatpush.msra.mxu0 0.0
        %899 = vmatpush.msra.mxu0 0.0
        %900 = vmatpush.msra.mxu0 0.0
        %901 = vmatpush.msra.mxu0 %v612
        %902 = vmatpush.msra.mxu0 %v604
        %903 = vmatpush.msra.mxu0 %v596
        %904 = vmatpush.msra.mxu0 %v588
        %905 = vmatpush.msra.mxu0 %v580
        %906 = vmatmul.f32.gmra.mxu0 %v652
        %v907 = vpop.f32.mrf.mxu0
        %v908 = vadd.f32 %v628, %v907
        %909 = vmatmul.f32.gmra.mxu0 %v655
        %v910 = vpop.f32.mrf.mxu0
        %v911 = vadd.f32 %v633, %v910
        %912 = vmatmul.f32.gmra.mxu0 %v658
        %v913 = vpop.f32.mrf.mxu0
        %v914 = vadd.f32 %v638, %v913
        %915 = vmatmul.f32.gmra.mxu0 %v661
        %v916 = vpop.f32.mrf.mxu0
        %v917 = vadd.f32 %v643, %v916
        %918 = vmatmul.f32.gmra.mxu0 %v664
        %v919 = vpop.f32.mrf.mxu0
        %v920 = vadd.f32 %v648, %v919
        %921 = vdwg.mxu0
        %v922 = vmax.f32 %v684, 0.0
        %v923 = vmax.f32 %v716, 0.0
        %v924 = vmax.f32 %v748, 0.0
        %v925 = vmax.f32 %v780, 0.0
        %v926 = vmax.f32 %v812, 0.0
        %v927 = vmax.f32 %v844, 0.0
        %v928 = vmax.f32 %v876, 0.0
        %v929 = vmax.f32 %v908, 0.0
        %v930 = vmax.f32 %v687, 0.0
        %v931 = vmax.f32 %v719, 0.0
        %v932 = vmax.f32 %v751, 0.0
        %v933 = vmax.f32 %v783, 0.0
        %v934 = vmax.f32 %v815, 0.0
        %v935 = vmax.f32 %v847, 0.0
        %v936 = vmax.f32 %v879, 0.0
        %v937 = vmax.f32 %v911, 0.0
        %v938 = vmax.f32 %v690, 0.0
        %v939 = vmax.f32 %v722, 0.0
        %v940 = vmax.f32 %v754, 0.0
        %v941 = vmax.f32 %v786, 0.0
        %v942 = vmax.f32 %v818, 0.0
        %v943 = vmax.f32 %v850, 0.0
        %v944 = vmax.f32 %v882, 0.0
        %v945 = vmax.f32 %v914, 0.0
        %v946 = vmax.f32 %v693, 0.0
        %v947 = vmax.f32 %v725, 0.0
        %v948 = vmax.f32 %v757, 0.0
        %v949 = vmax.f32 %v789, 0.0
        %v950 = vmax.f32 %v821, 0.0
        %v951 = vmax.f32 %v853, 0.0
        %v952 = vmax.f32 %v885, 0.0
        %v953 = vmax.f32 %v917, 0.0
        %v954 = vmax.f32 %v696, 0.0
        %v955 = vmax.f32 %v728, 0.0
        %v956 = vmax.f32 %v760, 0.0
        %v957 = vmax.f32 %v792, 0.0
        %v958 = vmax.f32 %v824, 0.0
        %v959 = vmax.f32 %v856, 0.0
        %v960 = vmax.f32 %v888, 0.0
        %v961 = vmax.f32 %v920, 0.0
        %s962 = scalar_lea.vmem %s1, 80
        %v963 = vld [vmem:[%s962] sm:$0xff]
        %v964 = vld [vmem:[%s962 + $0x8] sm:$0xff]
        %v965 = vld [vmem:[%s962 + $0x10] sm:$0xff]
        %v966 = vld [vmem:[%s962 + $0x18] sm:$0xff]
        %v967 = vld [vmem:[%s962 + $0x20] sm:$0xff]
        %s968 = scalar_lea.vmem %s2, 80
        %v969 = vld [vmem:[%s968] sm:$0xff]
        %v970 = vld [vmem:[%s968 + $0x8] sm:$0xff]
        %v971 = vld [vmem:[%s968 + $0x10] sm:$0xff]
        %v972 = vld [vmem:[%s968 + $0x18] sm:$0xff]
        %v973 = vld [vmem:[%s968 + $0x20] sm:$0xff]
        %975 = vset.pattern.permute.xlu0 0
        %976 = vperm.xlu0 %975, %v969
        %v977 = vpop.permute.xlu0 %976
        %980 = vset.pattern.permute.xlu0 0
        %981 = vperm.xlu0 %980, %v970
        %v982 = vpop.permute.xlu0 %981
        %985 = vset.pattern.permute.xlu0 0
        %986 = vperm.xlu0 %985, %v971
        %v987 = vpop.permute.xlu0 %986
        %990 = vset.pattern.permute.xlu0 0
        %991 = vperm.xlu0 %990, %v972
        %v992 = vpop.permute.xlu0 %991
        %995 = vset.pattern.permute.xlu0 0
        %996 = vperm.xlu0 %995, %v973
        %v997 = vpop.permute.xlu0 %996
        %v1000 = vsel %vm650, %v963, 0
        %v1003 = vsel %vm650, %v964, 0
        %v1006 = vsel %vm650, %v965, 0
        %v1009 = vsel %vm650, %v966, 0
        %v1012 = vsel %vm650, %v967, 0
        %1014 = vmatpush.msra.mxu0 0.0
        %1015 = vmatpush.msra.mxu0 0.0
        %1016 = vmatpush.msra.mxu0 0.0
        %1017 = vmatpush.msra.mxu0 0.0
        %1018 = vmatpush.msra.mxu0 0.0
        %1019 = vmatpush.msra.mxu0 0.0
        %1020 = vmatpush.msra.mxu0 0.0
        %1021 = vmatpush.msra.mxu0 0.0
        %1022 = vmatpush.msra.mxu0 0.0
        %1023 = vmatpush.msra.mxu0 0.0
        %1024 = vmatpush.msra.mxu0 0.0
        %1025 = vmatpush.msra.mxu0 %v954
        %1026 = vmatpush.msra.mxu0 %v946
        %1027 = vmatpush.msra.mxu0 %v938
        %1028 = vmatpush.msra.mxu0 %v930
        %1029 = vmatpush.msra.mxu0 %v922
        %1030 = vmatmul.f32.gmra.mxu0 %v1000
        %v1031 = vpop.f32.mrf.mxu0
        %v1032 = vadd.f32 %v977, %v1031
        %1033 = vmatmul.f32.gmra.mxu0 %v1003
        %v1034 = vpop.f32.mrf.mxu0
        %v1035 = vadd.f32 %v982, %v1034
        %1036 = vmatmul.f32.gmra.mxu0 %v1006
        %v1037 = vpop.f32.mrf.mxu0
        %v1038 = vadd.f32 %v987, %v1037
        %1039 = vmatmul.f32.gmra.mxu0 %v1009
        %v1040 = vpop.f32.mrf.mxu0
        %v1041 = vadd.f32 %v992, %v1040
        %1042 = vmatmul.f32.gmra.mxu0 %v1012
        %v1043 = vpop.f32.mrf.mxu0
        %v1044 = vadd.f32 %v997, %v1043
        %1045 = vdwg.mxu0
        %1046 = vmatpush.msra.mxu0 0.0
        %1047 = vmatpush.msra.mxu0 0.0
        %1048 = vmatpush.msra.mxu0 0.0
        %1049 = vmatpush.msra.mxu0 0.0
        %1050 = vmatpush.msra.mxu0 0.0
        %1051 = vmatpush.msra.mxu0 0.0
        %1052 = vmatpush.msra.mxu0 0.0
        %1053 = vmatpush.msra.mxu0 0.0
        %1054 = vmatpush.msra.mxu0 0.0
        %1055 = vmatpush.msra.mxu0 0.0
        %1056 = vmatpush.msra.mxu0 0.0
        %1057 = vmatpush.msra.mxu0 %v955
        %1058 = vmatpush.msra.mxu0 %v947
        %1059 = vmatpush.msra.mxu0 %v939
        %1060 = vmatpush.msra.mxu0 %v931
        %1061 = vmatpush.msra.mxu0 %v923
        %1062 = vmatmul.f32.gmra.mxu0 %v1000
        %v1063 = vpop.f32.mrf.mxu0
        %v1064 = vadd.f32 %v977, %v1063
        %1065 = vmatmul.f32.gmra.mxu0 %v1003
        %v1066 = vpop.f32.mrf.mxu0
        %v1067 = vadd.f32 %v982, %v1066
        %1068 = vmatmul.f32.gmra.mxu0 %v1006
        %v1069 = vpop.f32.mrf.mxu0
        %v1070 = vadd.f32 %v987, %v1069
        %1071 = vmatmul.f32.gmra.mxu0 %v1009
        %v1072 = vpop.f32.mrf.mxu0
        %v1073 = vadd.f32 %v992, %v1072
        %1074 = vmatmul.f32.gmra.mxu0 %v1012
        %v1075 = vpop.f32.mrf.mxu0
        %v1076 = vadd.f32 %v997, %v1075
        %1077 = vdwg.mxu0
        %1078 = vmatpush.msra.mxu0 0.0
        %1079 = vmatpush.msra.mxu0 0.0
        %1080 = vmatpush.msra.mxu0 0.0
        %1081 = vmatpush.msra.mxu0 0.0
        %1082 = vmatpush.msra.mxu0 0.0
        %1083 = vmatpush.msra.mxu0 0.0
        %1084 = vmatpush.msra.mxu0 0.0
        %1085 = vmatpush.msra.mxu0 0.0
        %1086 = vmatpush.msra.mxu0 0.0
        %1087 = vmatpush.msra.mxu0 0.0
        %1088 = vmatpush.msra.mxu0 0.0
        %1089 = vmatpush.msra.mxu0 %v956
        %1090 = vmatpush.msra.mxu0 %v948
        %1091 = vmatpush.msra.mxu0 %v940
        %1092 = vmatpush.msra.mxu0 %v932
        %1093 = vmatpush.msra.mxu0 %v924
        %1094 = vmatmul.f32.gmra.mxu0 %v1000
        %v1095 = vpop.f32.mrf.mxu0
        %v1096 = vadd.f32 %v977, %v1095
        %1097 = vmatmul.f32.gmra.mxu0 %v1003
        %v1098 = vpop.f32.mrf.mxu0
        %v1099 = vadd.f32 %v982, %v1098
        %1100 = vmatmul.f32.gmra.mxu0 %v1006
        %v1101 = vpop.f32.mrf.mxu0
        %v1102 = vadd.f32 %v987, %v1101
        %1103 = vmatmul.f32.gmra.mxu0 %v1009
        %v1104 = vpop.f32.mrf.mxu0
        %v1105 = vadd.f32 %v992, %v1104
        %1106 = vmatmul.f32.gmra.mxu0 %v1012
        %v1107 = vpop.f32.mrf.mxu0
        %v1108 = vadd.f32 %v997, %v1107
        %1109 = vdwg.mxu0
        %1110 = vmatpush.msra.mxu0 0.0
        %1111 = vmatpush.msra.mxu0 0.0
        %1112 = vmatpush.msra.mxu0 0.0
        %1113 = vmatpush.msra.mxu0 0.0
        %1114 = vmatpush.msra.mxu0 0.0
        %1115 = vmatpush.msra.mxu0 0.0
        %1116 = vmatpush.msra.mxu0 0.0
        %1117 = vmatpush.msra.mxu0 0.0
        %1118 = vmatpush.msra.mxu0 0.0
        %1119 = vmatpush.msra.mxu0 0.0
        %1120 = vmatpush.msra.mxu0 0.0
        %1121 = vmatpush.msra.mxu0 %v957
        %1122 = vmatpush.msra.mxu0 %v949
        %1123 = vmatpush.msra.mxu0 %v941
        %1124 = vmatpush.msra.mxu0 %v933
        %1125 = vmatpush.msra.mxu0 %v925
        %1126 = vmatmul.f32.gmra.mxu0 %v1000
        %v1127 = vpop.f32.mrf.mxu0
        %v1128 = vadd.f32 %v977, %v1127
        %1129 = vmatmul.f32.gmra.mxu0 %v1003
        %v1130 = vpop.f32.mrf.mxu0
        %v1131 = vadd.f32 %v982, %v1130
        %1132 = vmatmul.f32.gmra.mxu0 %v1006
        %v1133 = vpop.f32.mrf.mxu0
        %v1134 = vadd.f32 %v987, %v1133
        %1135 = vmatmul.f32.gmra.mxu0 %v1009
        %v1136 = vpop.f32.mrf.mxu0
        %v1137 = vadd.f32 %v992, %v1136
        %1138 = vmatmul.f32.gmra.mxu0 %v1012
        %v1139 = vpop.f32.mrf.mxu0
        %v1140 = vadd.f32 %v997, %v1139
        %1141 = vdwg.mxu0
        %1142 = vmatpush.msra.mxu0 0.0
        %1143 = vmatpush.msra.mxu0 0.0
        %1144 = vmatpush.msra.mxu0 0.0
        %1145 = vmatpush.msra.mxu0 0.0
        %1146 = vmatpush.msra.mxu0 0.0
        %1147 = vmatpush.msra.mxu0 0.0
        %1148 = vmatpush.msra.mxu0 0.0
        %1149 = vmatpush.msra.mxu0 0.0
        %1150 = vmatpush.msra.mxu0 0.0
        %1151 = vmatpush.msra.mxu0 0.0
        %1152 = vmatpush.msra.mxu0 0.0
        %1153 = vmatpush.msra.mxu0 %v958
        %1154 = vmatpush.msra.mxu0 %v950
        %1155 = vmatpush.msra.mxu0 %v942
        %1156 = vmatpush.msra.mxu0 %v934
        %1157 = vmatpush.msra.mxu0 %v926
        %1158 = vmatmul.f32.gmra.mxu0 %v1000
        %v1159 = vpop.f32.mrf.mxu0
        %v1160 = vadd.f32 %v977, %v1159
        %1161 = vmatmul.f32.gmra.mxu0 %v1003
        %v1162 = vpop.f32.mrf.mxu0
        %v1163 = vadd.f32 %v982, %v1162
        %1164 = vmatmul.f32.gmra.mxu0 %v1006
        %v1165 = vpop.f32.mrf.mxu0
        %v1166 = vadd.f32 %v987, %v1165
        %1167 = vmatmul.f32.gmra.mxu0 %v1009
        %v1168 = vpop.f32.mrf.mxu0
        %v1169 = vadd.f32 %v992, %v1168
        %1170 = vmatmul.f32.gmra.mxu0 %v1012
        %v1171 = vpop.f32.mrf.mxu0
        %v1172 = vadd.f32 %v997, %v1171
        %1173 = vdwg.mxu0
        %1174 = vmatpush.msra.mxu0 0.0
        %1175 = vmatpush.msra.mxu0 0.0
        %1176 = vmatpush.msra.mxu0 0.0
        %1177 = vmatpush.msra.mxu0 0.0
        %1178 = vmatpush.msra.mxu0 0.0
        %1179 = vmatpush.msra.mxu0 0.0
        %1180 = vmatpush.msra.mxu0 0.0
        %1181 = vmatpush.msra.mxu0 0.0
        %1182 = vmatpush.msra.mxu0 0.0
        %1183 = vmatpush.msra.mxu0 0.0
        %1184 = vmatpush.msra.mxu0 0.0
        %1185 = vmatpush.msra.mxu0 %v959
        %1186 = vmatpush.msra.mxu0 %v951
        %1187 = vmatpush.msra.mxu0 %v943
        %1188 = vmatpush.msra.mxu0 %v935
        %1189 = vmatpush.msra.mxu0 %v927
        %1190 = vmatmul.f32.gmra.mxu0 %v1000
        %v1191 = vpop.f32.mrf.mxu0
        %v1192 = vadd.f32 %v977, %v1191
        %1193 = vmatmul.f32.gmra.mxu0 %v1003
        %v1194 = vpop.f32.mrf.mxu0
        %v1195 = vadd.f32 %v982, %v1194
        %1196 = vmatmul.f32.gmra.mxu0 %v1006
        %v1197 = vpop.f32.mrf.mxu0
        %v1198 = vadd.f32 %v987, %v1197
        %1199 = vmatmul.f32.gmra.mxu0 %v1009
        %v1200 = vpop.f32.mrf.mxu0
        %v1201 = vadd.f32 %v992, %v1200
        %1202 = vmatmul.f32.gmra.mxu0 %v1012
        %v1203 = vpop.f32.mrf.mxu0
        %v1204 = vadd.f32 %v997, %v1203
        %1205 = vdwg.mxu0
        %1206 = vmatpush.msra.mxu0 0.0
        %1207 = vmatpush.msra.mxu0 0.0
        %1208 = vmatpush.msra.mxu0 0.0
        %1209 = vmatpush.msra.mxu0 0.0
        %1210 = vmatpush.msra.mxu0 0.0
        %1211 = vmatpush.msra.mxu0 0.0
        %1212 = vmatpush.msra.mxu0 0.0
        %1213 = vmatpush.msra.mxu0 0.0
        %1214 = vmatpush.msra.mxu0 0.0
        %1215 = vmatpush.msra.mxu0 0.0
        %1216 = vmatpush.msra.mxu0 0.0
        %1217 = vmatpush.msra.mxu0 %v960
        %1218 = vmatpush.msra.mxu0 %v952
        %1219 = vmatpush.msra.mxu0 %v944
        %1220 = vmatpush.msra.mxu0 %v936
        %1221 = vmatpush.msra.mxu0 %v928
        %1222 = vmatmul.f32.gmra.mxu0 %v1000
        %v1223 = vpop.f32.mrf.mxu0
        %v1224 = vadd.f32 %v977, %v1223
        %1225 = vmatmul.f32.gmra.mxu0 %v1003
        %v1226 = vpop.f32.mrf.mxu0
        %v1227 = vadd.f32 %v982, %v1226
        %1228 = vmatmul.f32.gmra.mxu0 %v1006
        %v1229 = vpop.f32.mrf.mxu0
        %v1230 = vadd.f32 %v987, %v1229
        %1231 = vmatmul.f32.gmra.mxu0 %v1009
        %v1232 = vpop.f32.mrf.mxu0
        %v1233 = vadd.f32 %v992, %v1232
        %1234 = vmatmul.f32.gmra.mxu0 %v1012
        %v1235 = vpop.f32.mrf.mxu0
        %v1236 = vadd.f32 %v997, %v1235
        %1237 = vdwg.mxu0
        %1238 = vmatpush.msra.mxu0 0.0
        %1239 = vmatpush.msra.mxu0 0.0
        %1240 = vmatpush.msra.mxu0 0.0
        %1241 = vmatpush.msra.mxu0 0.0
        %1242 = vmatpush.msra.mxu0 0.0
        %1243 = vmatpush.msra.mxu0 0.0
        %1244 = vmatpush.msra.mxu0 0.0
        %1245 = vmatpush.msra.mxu0 0.0
        %1246 = vmatpush.msra.mxu0 0.0
        %1247 = vmatpush.msra.mxu0 0.0
        %1248 = vmatpush.msra.mxu0 0.0
        %1249 = vmatpush.msra.mxu0 %v961
        %1250 = vmatpush.msra.mxu0 %v953
        %1251 = vmatpush.msra.mxu0 %v945
        %1252 = vmatpush.msra.mxu0 %v937
        %1253 = vmatpush.msra.mxu0 %v929
        %1254 = vmatmul.f32.gmra.mxu0 %v1000
        %v1255 = vpop.f32.mrf.mxu0
        %v1256 = vadd.f32 %v977, %v1255
        %1257 = vmatmul.f32.gmra.mxu0 %v1003
        %v1258 = vpop.f32.mrf.mxu0
        %v1259 = vadd.f32 %v982, %v1258
        %1260 = vmatmul.f32.gmra.mxu0 %v1006
        %v1261 = vpop.f32.mrf.mxu0
        %v1262 = vadd.f32 %v987, %v1261
        %1263 = vmatmul.f32.gmra.mxu0 %v1009
        %v1264 = vpop.f32.mrf.mxu0
        %v1265 = vadd.f32 %v992, %v1264
        %1266 = vmatmul.f32.gmra.mxu0 %v1012
        %v1267 = vpop.f32.mrf.mxu0
        %v1268 = vadd.f32 %v997, %v1267
        %1269 = vdwg.mxu0
        %v1270 = vmax.f32 %v1032, 0.0
        %v1271 = vmax.f32 %v1064, 0.0
        %v1272 = vmax.f32 %v1096, 0.0
        %v1273 = vmax.f32 %v1128, 0.0
        %v1274 = vmax.f32 %v1160, 0.0
        %v1275 = vmax.f32 %v1192, 0.0
        %v1276 = vmax.f32 %v1224, 0.0
        %v1277 = vmax.f32 %v1256, 0.0
        %v1278 = vmax.f32 %v1035, 0.0
        %v1279 = vmax.f32 %v1067, 0.0
        %v1280 = vmax.f32 %v1099, 0.0
        %v1281 = vmax.f32 %v1131, 0.0
        %v1282 = vmax.f32 %v1163, 0.0
        %v1283 = vmax.f32 %v1195, 0.0
        %v1284 = vmax.f32 %v1227, 0.0
        %v1285 = vmax.f32 %v1259, 0.0
        %v1286 = vmax.f32 %v1038, 0.0
        %v1287 = vmax.f32 %v1070, 0.0
        %v1288 = vmax.f32 %v1102, 0.0
        %v1289 = vmax.f32 %v1134, 0.0
        %v1290 = vmax.f32 %v1166, 0.0
        %v1291 = vmax.f32 %v1198, 0.0
        %v1292 = vmax.f32 %v1230, 0.0
        %v1293 = vmax.f32 %v1262, 0.0
        %v1294 = vmax.f32 %v1041, 0.0
        %v1295 = vmax.f32 %v1073, 0.0
        %v1296 = vmax.f32 %v1105, 0.0
        %v1297 = vmax.f32 %v1137, 0.0
        %v1298 = vmax.f32 %v1169, 0.0
        %v1299 = vmax.f32 %v1201, 0.0
        %v1300 = vmax.f32 %v1233, 0.0
        %v1301 = vmax.f32 %v1265, 0.0
        %v1302 = vmax.f32 %v1044, 0.0
        %v1303 = vmax.f32 %v1076, 0.0
        %v1304 = vmax.f32 %v1108, 0.0
        %v1305 = vmax.f32 %v1140, 0.0
        %v1306 = vmax.f32 %v1172, 0.0
        %v1307 = vmax.f32 %v1204, 0.0
        %v1308 = vmax.f32 %v1236, 0.0
        %v1309 = vmax.f32 %v1268, 0.0
        %s1310 = scalar_lea.vmem %s1, 120
        %v1311 = vld [vmem:[%s1310] sm:$0xff]
        %v1312 = vld [vmem:[%s1310 + $0x8] sm:$0xff]
        %v1313 = vld [vmem:[%s1310 + $0x10] sm:$0xff]
        %v1314 = vld [vmem:[%s1310 + $0x18] sm:$0xff]
        %v1315 = vld [vmem:[%s1310 + $0x20] sm:$0xff]
        %s1316 = scalar_lea.vmem %s2, 120
        %v1317 = vld [vmem:[%s1316] sm:$0xff]
        %v1318 = vld [vmem:[%s1316 + $0x8] sm:$0xff]
        %v1319 = vld [vmem:[%s1316 + $0x10] sm:$0xff]
        %v1320 = vld [vmem:[%s1316 + $0x18] sm:$0xff]
        %v1321 = vld [vmem:[%s1316 + $0x20] sm:$0xff]
        %1323 = vset.pattern.permute.xlu0 0
        %1324 = vperm.xlu0 %1323, %v1317
        %v1325 = vpop.permute.xlu0 %1324
        %1328 = vset.pattern.permute.xlu0 0
        %1329 = vperm.xlu0 %1328, %v1318
        %v1330 = vpop.permute.xlu0 %1329
        %1333 = vset.pattern.permute.xlu0 0
        %1334 = vperm.xlu0 %1333, %v1319
        %v1335 = vpop.permute.xlu0 %1334
        %1338 = vset.pattern.permute.xlu0 0
        %1339 = vperm.xlu0 %1338, %v1320
        %v1340 = vpop.permute.xlu0 %1339
        %1343 = vset.pattern.permute.xlu0 0
        %1344 = vperm.xlu0 %1343, %v1321
        %v1345 = vpop.permute.xlu0 %1344
        %v1348 = vsel %vm650, %v1311, 0
        %v1351 = vsel %vm650, %v1312, 0
        %v1354 = vsel %vm650, %v1313, 0
        %v1357 = vsel %vm650, %v1314, 0
        %v1360 = vsel %vm650, %v1315, 0
        %1362 = vmatpush.msra.mxu0 0.0
        %1363 = vmatpush.msra.mxu0 0.0
        %1364 = vmatpush.msra.mxu0 0.0
        %1365 = vmatpush.msra.mxu0 0.0
        %1366 = vmatpush.msra.mxu0 0.0
        %1367 = vmatpush.msra.mxu0 0.0
        %1368 = vmatpush.msra.mxu0 0.0
        %1369 = vmatpush.msra.mxu0 0.0
        %1370 = vmatpush.msra.mxu0 0.0
        %1371 = vmatpush.msra.mxu0 0.0
        %1372 = vmatpush.msra.mxu0 0.0
        %1373 = vmatpush.msra.mxu0 %v1302
        %1374 = vmatpush.msra.mxu0 %v1294
        %1375 = vmatpush.msra.mxu0 %v1286
        %1376 = vmatpush.msra.mxu0 %v1278
        %1377 = vmatpush.msra.mxu0 %v1270
        %1378 = vmatmul.f32.gmra.mxu0 %v1348
        %v1379 = vpop.f32.mrf.mxu0
        %v1380 = vadd.f32 %v1325, %v1379
        %1381 = vmatmul.f32.gmra.mxu0 %v1351
        %v1382 = vpop.f32.mrf.mxu0
        %v1383 = vadd.f32 %v1330, %v1382
        %1384 = vmatmul.f32.gmra.mxu0 %v1354
        %v1385 = vpop.f32.mrf.mxu0
        %v1386 = vadd.f32 %v1335, %v1385
        %1387 = vmatmul.f32.gmra.mxu0 %v1357
        %v1388 = vpop.f32.mrf.mxu0
        %v1389 = vadd.f32 %v1340, %v1388
        %1390 = vmatmul.f32.gmra.mxu0 %v1360
        %v1391 = vpop.f32.mrf.mxu0
        %v1392 = vadd.f32 %v1345, %v1391
        %1393 = vdwg.mxu0
        %1394 = vmatpush.msra.mxu0 0.0
        %1395 = vmatpush.msra.mxu0 0.0
        %1396 = vmatpush.msra.mxu0 0.0
        %1397 = vmatpush.msra.mxu0 0.0
        %1398 = vmatpush.msra.mxu0 0.0
        %1399 = vmatpush.msra.mxu0 0.0
        %1400 = vmatpush.msra.mxu0 0.0
        %1401 = vmatpush.msra.mxu0 0.0
        %1402 = vmatpush.msra.mxu0 0.0
        %1403 = vmatpush.msra.mxu0 0.0
        %1404 = vmatpush.msra.mxu0 0.0
        %1405 = vmatpush.msra.mxu0 %v1303
        %1406 = vmatpush.msra.mxu0 %v1295
        %1407 = vmatpush.msra.mxu0 %v1287
        %1408 = vmatpush.msra.mxu0 %v1279
        %1409 = vmatpush.msra.mxu0 %v1271
        %1410 = vmatmul.f32.gmra.mxu0 %v1348
        %v1411 = vpop.f32.mrf.mxu0
        %v1412 = vadd.f32 %v1325, %v1411
        %1413 = vmatmul.f32.gmra.mxu0 %v1351
        %v1414 = vpop.f32.mrf.mxu0
        %v1415 = vadd.f32 %v1330, %v1414
        %1416 = vmatmul.f32.gmra.mxu0 %v1354
        %v1417 = vpop.f32.mrf.mxu0
        %v1418 = vadd.f32 %v1335, %v1417
        %1419 = vmatmul.f32.gmra.mxu0 %v1357
        %v1420 = vpop.f32.mrf.mxu0
        %v1421 = vadd.f32 %v1340, %v1420
        %1422 = vmatmul.f32.gmra.mxu0 %v1360
        %v1423 = vpop.f32.mrf.mxu0
        %v1424 = vadd.f32 %v1345, %v1423
        %1425 = vdwg.mxu0
        %1426 = vmatpush.msra.mxu0 0.0
        %1427 = vmatpush.msra.mxu0 0.0
        %1428 = vmatpush.msra.mxu0 0.0
        %1429 = vmatpush.msra.mxu0 0.0
        %1430 = vmatpush.msra.mxu0 0.0
        %1431 = vmatpush.msra.mxu0 0.0
        %1432 = vmatpush.msra.mxu0 0.0
        %1433 = vmatpush.msra.mxu0 0.0
        %1434 = vmatpush.msra.mxu0 0.0
        %1435 = vmatpush.msra.mxu0 0.0
        %1436 = vmatpush.msra.mxu0 0.0
        %1437 = vmatpush.msra.mxu0 %v1304
        %1438 = vmatpush.msra.mxu0 %v1296
        %1439 = vmatpush.msra.mxu0 %v1288
        %1440 = vmatpush.msra.mxu0 %v1280
        %1441 = vmatpush.msra.mxu0 %v1272
        %1442 = vmatmul.f32.gmra.mxu0 %v1348
        %v1443 = vpop.f32.mrf.mxu0
        %v1444 = vadd.f32 %v1325, %v1443
        %1445 = vmatmul.f32.gmra.mxu0 %v1351
        %v1446 = vpop.f32.mrf.mxu0
        %v1447 = vadd.f32 %v1330, %v1446
        %1448 = vmatmul.f32.gmra.mxu0 %v1354
        %v1449 = vpop.f32.mrf.mxu0
        %v1450 = vadd.f32 %v1335, %v1449
        %1451 = vmatmul.f32.gmra.mxu0 %v1357
        %v1452 = vpop.f32.mrf.mxu0
        %v1453 = vadd.f32 %v1340, %v1452
        %1454 = vmatmul.f32.gmra.mxu0 %v1360
        %v1455 = vpop.f32.mrf.mxu0
        %v1456 = vadd.f32 %v1345, %v1455
        %1457 = vdwg.mxu0
        %1458 = vmatpush.msra.mxu0 0.0
        %1459 = vmatpush.msra.mxu0 0.0
        %1460 = vmatpush.msra.mxu0 0.0
        %1461 = vmatpush.msra.mxu0 0.0
        %1462 = vmatpush.msra.mxu0 0.0
        %1463 = vmatpush.msra.mxu0 0.0
        %1464 = vmatpush.msra.mxu0 0.0
        %1465 = vmatpush.msra.mxu0 0.0
        %1466 = vmatpush.msra.mxu0 0.0
        %1467 = vmatpush.msra.mxu0 0.0
        %1468 = vmatpush.msra.mxu0 0.0
        %1469 = vmatpush.msra.mxu0 %v1305
        %1470 = vmatpush.msra.mxu0 %v1297
        %1471 = vmatpush.msra.mxu0 %v1289
        %1472 = vmatpush.msra.mxu0 %v1281
        %1473 = vmatpush.msra.mxu0 %v1273
        %1474 = vmatmul.f32.gmra.mxu0 %v1348
        %v1475 = vpop.f32.mrf.mxu0
        %v1476 = vadd.f32 %v1325, %v1475
        %1477 = vmatmul.f32.gmra.mxu0 %v1351
        %v1478 = vpop.f32.mrf.mxu0
        %v1479 = vadd.f32 %v1330, %v1478
        %1480 = vmatmul.f32.gmra.mxu0 %v1354
        %v1481 = vpop.f32.mrf.mxu0
        %v1482 = vadd.f32 %v1335, %v1481
        %1483 = vmatmul.f32.gmra.mxu0 %v1357
        %v1484 = vpop.f32.mrf.mxu0
        %v1485 = vadd.f32 %v1340, %v1484
        %1486 = vmatmul.f32.gmra.mxu0 %v1360
        %v1487 = vpop.f32.mrf.mxu0
        %v1488 = vadd.f32 %v1345, %v1487
        %1489 = vdwg.mxu0
        %1490 = vmatpush.msra.mxu0 0.0
        %1491 = vmatpush.msra.mxu0 0.0
        %1492 = vmatpush.msra.mxu0 0.0
        %1493 = vmatpush.msra.mxu0 0.0
        %1494 = vmatpush.msra.mxu0 0.0
        %1495 = vmatpush.msra.mxu0 0.0
        %1496 = vmatpush.msra.mxu0 0.0
        %1497 = vmatpush.msra.mxu0 0.0
        %1498 = vmatpush.msra.mxu0 0.0
        %1499 = vmatpush.msra.mxu0 0.0
        %1500 = vmatpush.msra.mxu0 0.0
        %1501 = vmatpush.msra.mxu0 %v1306
        %1502 = vmatpush.msra.mxu0 %v1298
        %1503 = vmatpush.msra.mxu0 %v1290
        %1504 = vmatpush.msra.mxu0 %v1282
        %1505 = vmatpush.msra.mxu0 %v1274
        %1506 = vmatmul.f32.gmra.mxu0 %v1348
        %v1507 = vpop.f32.mrf.mxu0
        %v1508 = vadd.f32 %v1325, %v1507
        %1509 = vmatmul.f32.gmra.mxu0 %v1351
        %v1510 = vpop.f32.mrf.mxu0
        %v1511 = vadd.f32 %v1330, %v1510
        %1512 = vmatmul.f32.gmra.mxu0 %v1354
        %v1513 = vpop.f32.mrf.mxu0
        %v1514 = vadd.f32 %v1335, %v1513
        %1515 = vmatmul.f32.gmra.mxu0 %v1357
        %v1516 = vpop.f32.mrf.mxu0
        %v1517 = vadd.f32 %v1340, %v1516
        %1518 = vmatmul.f32.gmra.mxu0 %v1360
        %v1519 = vpop.f32.mrf.mxu0
        %v1520 = vadd.f32 %v1345, %v1519
        %1521 = vdwg.mxu0
        %1522 = vmatpush.msra.mxu0 0.0
        %1523 = vmatpush.msra.mxu0 0.0
        %1524 = vmatpush.msra.mxu0 0.0
        %1525 = vmatpush.msra.mxu0 0.0
        %1526 = vmatpush.msra.mxu0 0.0
        %1527 = vmatpush.msra.mxu0 0.0
        %1528 = vmatpush.msra.mxu0 0.0
        %1529 = vmatpush.msra.mxu0 0.0
        %1530 = vmatpush.msra.mxu0 0.0
        %1531 = vmatpush.msra.mxu0 0.0
        %1532 = vmatpush.msra.mxu0 0.0
        %1533 = vmatpush.msra.mxu0 %v1307
        %1534 = vmatpush.msra.mxu0 %v1299
        %1535 = vmatpush.msra.mxu0 %v1291
        %1536 = vmatpush.msra.mxu0 %v1283
        %1537 = vmatpush.msra.mxu0 %v1275
        %1538 = vmatmul.f32.gmra.mxu0 %v1348
        %v1539 = vpop.f32.mrf.mxu0
        %v1540 = vadd.f32 %v1325, %v1539
        %1541 = vmatmul.f32.gmra.mxu0 %v1351
        %v1542 = vpop.f32.mrf.mxu0
        %v1543 = vadd.f32 %v1330, %v1542
        %1544 = vmatmul.f32.gmra.mxu0 %v1354
        %v1545 = vpop.f32.mrf.mxu0
        %v1546 = vadd.f32 %v1335, %v1545
        %1547 = vmatmul.f32.gmra.mxu0 %v1357
        %v1548 = vpop.f32.mrf.mxu0
        %v1549 = vadd.f32 %v1340, %v1548
        %1550 = vmatmul.f32.gmra.mxu0 %v1360
        %v1551 = vpop.f32.mrf.mxu0
        %v1552 = vadd.f32 %v1345, %v1551
        %1553 = vdwg.mxu0
        %1554 = vmatpush.msra.mxu0 0.0
        %1555 = vmatpush.msra.mxu0 0.0
        %1556 = vmatpush.msra.mxu0 0.0
        %1557 = vmatpush.msra.mxu0 0.0
        %1558 = vmatpush.msra.mxu0 0.0
        %1559 = vmatpush.msra.mxu0 0.0
        %1560 = vmatpush.msra.mxu0 0.0
        %1561 = vmatpush.msra.mxu0 0.0
        %1562 = vmatpush.msra.mxu0 0.0
        %1563 = vmatpush.msra.mxu0 0.0
        %1564 = vmatpush.msra.mxu0 0.0
        %1565 = vmatpush.msra.mxu0 %v1308
        %1566 = vmatpush.msra.mxu0 %v1300
        %1567 = vmatpush.msra.mxu0 %v1292
        %1568 = vmatpush.msra.mxu0 %v1284
        %1569 = vmatpush.msra.mxu0 %v1276
        %1570 = vmatmul.f32.gmra.mxu0 %v1348
        %v1571 = vpop.f32.mrf.mxu0
        %v1572 = vadd.f32 %v1325, %v1571
        %1573 = vmatmul.f32.gmra.mxu0 %v1351
        %v1574 = vpop.f32.mrf.mxu0
        %v1575 = vadd.f32 %v1330, %v1574
        %1576 = vmatmul.f32.gmra.mxu0 %v1354
        %v1577 = vpop.f32.mrf.mxu0
        %v1578 = vadd.f32 %v1335, %v1577
        %1579 = vmatmul.f32.gmra.mxu0 %v1357
        %v1580 = vpop.f32.mrf.mxu0
        %v1581 = vadd.f32 %v1340, %v1580
        %1582 = vmatmul.f32.gmra.mxu0 %v1360
        %v1583 = vpop.f32.mrf.mxu0
        %v1584 = vadd.f32 %v1345, %v1583
        %1585 = vdwg.mxu0
        %1586 = vmatpush.msra.mxu0 0.0
        %1587 = vmatpush.msra.mxu0 0.0
        %1588 = vmatpush.msra.mxu0 0.0
        %1589 = vmatpush.msra.mxu0 0.0
        %1590 = vmatpush.msra.mxu0 0.0
        %1591 = vmatpush.msra.mxu0 0.0
        %1592 = vmatpush.msra.mxu0 0.0
        %1593 = vmatpush.msra.mxu0 0.0
        %1594 = vmatpush.msra.mxu0 0.0
        %1595 = vmatpush.msra.mxu0 0.0
        %1596 = vmatpush.msra.mxu0 0.0
        %1597 = vmatpush.msra.mxu0 %v1309
        %1598 = vmatpush.msra.mxu0 %v1301
        %1599 = vmatpush.msra.mxu0 %v1293
        %1600 = vmatpush.msra.mxu0 %v1285
        %1601 = vmatpush.msra.mxu0 %v1277
        %1602 = vmatmul.f32.gmra.mxu0 %v1348
        %v1603 = vpop.f32.mrf.mxu0
        %v1604 = vadd.f32 %v1325, %v1603
        %1605 = vmatmul.f32.gmra.mxu0 %v1351
        %v1606 = vpop.f32.mrf.mxu0
        %v1607 = vadd.f32 %v1330, %v1606
        %1608 = vmatmul.f32.gmra.mxu0 %v1354
        %v1609 = vpop.f32.mrf.mxu0
        %v1610 = vadd.f32 %v1335, %v1609
        %1611 = vmatmul.f32.gmra.mxu0 %v1357
        %v1612 = vpop.f32.mrf.mxu0
        %v1613 = vadd.f32 %v1340, %v1612
        %1614 = vmatmul.f32.gmra.mxu0 %v1360
        %v1615 = vpop.f32.mrf.mxu0
        %v1616 = vadd.f32 %v1345, %v1615
        %1617 = vdwg.mxu0
        %v1618 = vmax.f32 %v1380, 0.0
        %v1619 = vmax.f32 %v1412, 0.0
        %v1620 = vmax.f32 %v1444, 0.0
        %v1621 = vmax.f32 %v1476, 0.0
        %v1622 = vmax.f32 %v1508, 0.0
        %v1623 = vmax.f32 %v1540, 0.0
        %v1624 = vmax.f32 %v1572, 0.0
        %v1625 = vmax.f32 %v1604, 0.0
        %v1626 = vmax.f32 %v1383, 0.0
        %v1627 = vmax.f32 %v1415, 0.0
        %v1628 = vmax.f32 %v1447, 0.0
        %v1629 = vmax.f32 %v1479, 0.0
        %v1630 = vmax.f32 %v1511, 0.0
        %v1631 = vmax.f32 %v1543, 0.0
        %v1632 = vmax.f32 %v1575, 0.0
        %v1633 = vmax.f32 %v1607, 0.0
        %v1634 = vmax.f32 %v1386, 0.0
        %v1635 = vmax.f32 %v1418, 0.0
        %v1636 = vmax.f32 %v1450, 0.0
        %v1637 = vmax.f32 %v1482, 0.0
        %v1638 = vmax.f32 %v1514, 0.0
        %v1639 = vmax.f32 %v1546, 0.0
        %v1640 = vmax.f32 %v1578, 0.0
        %v1641 = vmax.f32 %v1610, 0.0
        %v1642 = vmax.f32 %v1389, 0.0
        %v1643 = vmax.f32 %v1421, 0.0
        %v1644 = vmax.f32 %v1453, 0.0
        %v1645 = vmax.f32 %v1485, 0.0
        %v1646 = vmax.f32 %v1517, 0.0
        %v1647 = vmax.f32 %v1549, 0.0
        %v1648 = vmax.f32 %v1581, 0.0
        %v1649 = vmax.f32 %v1613, 0.0
        %v1650 = vmax.f32 %v1392, 0.0
        %v1651 = vmax.f32 %v1424, 0.0
        %v1652 = vmax.f32 %v1456, 0.0
        %v1653 = vmax.f32 %v1488, 0.0
        %v1654 = vmax.f32 %v1520, 0.0
        %v1655 = vmax.f32 %v1552, 0.0
        %v1656 = vmax.f32 %v1584, 0.0
        %v1657 = vmax.f32 %v1616, 0.0
        %s1658 = scalar_lea.vmem %s1, 160
        %v1659 = vld [vmem:[%s1658] sm:$0xff]
        %v1660 = vld [vmem:[%s1658 + $0x8] sm:$0xff]
        %v1661 = vld [vmem:[%s1658 + $0x10] sm:$0xff]
        %v1662 = vld [vmem:[%s1658 + $0x18] sm:$0xff]
        %v1663 = vld [vmem:[%s1658 + $0x20] sm:$0xff]
        %s1664 = scalar_lea.vmem %s2, 160
        %v1665 = vld [vmem:[%s1664] sm:$0xff]
        %v1666 = vld [vmem:[%s1664 + $0x8] sm:$0xff]
        %v1667 = vld [vmem:[%s1664 + $0x10] sm:$0xff]
        %v1668 = vld [vmem:[%s1664 + $0x18] sm:$0xff]
        %v1669 = vld [vmem:[%s1664 + $0x20] sm:$0xff]
        %1671 = vset.pattern.permute.xlu0 0
        %1672 = vperm.xlu0 %1671, %v1665
        %v1673 = vpop.permute.xlu0 %1672
        %1676 = vset.pattern.permute.xlu0 0
        %1677 = vperm.xlu0 %1676, %v1666
        %v1678 = vpop.permute.xlu0 %1677
        %1681 = vset.pattern.permute.xlu0 0
        %1682 = vperm.xlu0 %1681, %v1667
        %v1683 = vpop.permute.xlu0 %1682
        %1686 = vset.pattern.permute.xlu0 0
        %1687 = vperm.xlu0 %1686, %v1668
        %v1688 = vpop.permute.xlu0 %1687
        %1691 = vset.pattern.permute.xlu0 0
        %1692 = vperm.xlu0 %1691, %v1669
        %v1693 = vpop.permute.xlu0 %1692
        %v1696 = vsel %vm650, %v1659, 0
        %v1699 = vsel %vm650, %v1660, 0
        %v1702 = vsel %vm650, %v1661, 0
        %v1705 = vsel %vm650, %v1662, 0
        %v1708 = vsel %vm650, %v1663, 0
        %1710 = vmatpush.msra.mxu0 0.0
        %1711 = vmatpush.msra.mxu0 0.0
        %1712 = vmatpush.msra.mxu0 0.0
        %1713 = vmatpush.msra.mxu0 0.0
        %1714 = vmatpush.msra.mxu0 0.0
        %1715 = vmatpush.msra.mxu0 0.0
        %1716 = vmatpush.msra.mxu0 0.0
        %1717 = vmatpush.msra.mxu0 0.0
        %1718 = vmatpush.msra.mxu0 0.0
        %1719 = vmatpush.msra.mxu0 0.0
        %1720 = vmatpush.msra.mxu0 0.0
        %1721 = vmatpush.msra.mxu0 %v1650
        %1722 = vmatpush.msra.mxu0 %v1642
        %1723 = vmatpush.msra.mxu0 %v1634
        %1724 = vmatpush.msra.mxu0 %v1626
        %1725 = vmatpush.msra.mxu0 %v1618
        %1726 = vmatmul.f32.gmra.mxu0 %v1696
        %v1727 = vpop.f32.mrf.mxu0
        %v1728 = vadd.f32 %v1673, %v1727
        %1729 = vmatmul.f32.gmra.mxu0 %v1699
        %v1730 = vpop.f32.mrf.mxu0
        %v1731 = vadd.f32 %v1678, %v1730
        %1732 = vmatmul.f32.gmra.mxu0 %v1702
        %v1733 = vpop.f32.mrf.mxu0
        %v1734 = vadd.f32 %v1683, %v1733
        %1735 = vmatmul.f32.gmra.mxu0 %v1705
        %v1736 = vpop.f32.mrf.mxu0
        %v1737 = vadd.f32 %v1688, %v1736
        %1738 = vmatmul.f32.gmra.mxu0 %v1708
        %v1739 = vpop.f32.mrf.mxu0
        %v1740 = vadd.f32 %v1693, %v1739
        %1741 = vdwg.mxu0
        %1742 = vmatpush.msra.mxu0 0.0
        %1743 = vmatpush.msra.mxu0 0.0
        %1744 = vmatpush.msra.mxu0 0.0
        %1745 = vmatpush.msra.mxu0 0.0
        %1746 = vmatpush.msra.mxu0 0.0
        %1747 = vmatpush.msra.mxu0 0.0
        %1748 = vmatpush.msra.mxu0 0.0
        %1749 = vmatpush.msra.mxu0 0.0
        %1750 = vmatpush.msra.mxu0 0.0
        %1751 = vmatpush.msra.mxu0 0.0
        %1752 = vmatpush.msra.mxu0 0.0
        %1753 = vmatpush.msra.mxu0 %v1651
        %1754 = vmatpush.msra.mxu0 %v1643
        %1755 = vmatpush.msra.mxu0 %v1635
        %1756 = vmatpush.msra.mxu0 %v1627
        %1757 = vmatpush.msra.mxu0 %v1619
        %1758 = vmatmul.f32.gmra.mxu0 %v1696
        %v1759 = vpop.f32.mrf.mxu0
        %v1760 = vadd.f32 %v1673, %v1759
        %1761 = vmatmul.f32.gmra.mxu0 %v1699
        %v1762 = vpop.f32.mrf.mxu0
        %v1763 = vadd.f32 %v1678, %v1762
        %1764 = vmatmul.f32.gmra.mxu0 %v1702
        %v1765 = vpop.f32.mrf.mxu0
        %v1766 = vadd.f32 %v1683, %v1765
        %1767 = vmatmul.f32.gmra.mxu0 %v1705
        %v1768 = vpop.f32.mrf.mxu0
        %v1769 = vadd.f32 %v1688, %v1768
        %1770 = vmatmul.f32.gmra.mxu0 %v1708
        %v1771 = vpop.f32.mrf.mxu0
        %v1772 = vadd.f32 %v1693, %v1771
        %1773 = vdwg.mxu0
        %1774 = vmatpush.msra.mxu0 0.0
        %1775 = vmatpush.msra.mxu0 0.0
        %1776 = vmatpush.msra.mxu0 0.0
        %1777 = vmatpush.msra.mxu0 0.0
        %1778 = vmatpush.msra.mxu0 0.0
        %1779 = vmatpush.msra.mxu0 0.0
        %1780 = vmatpush.msra.mxu0 0.0
        %1781 = vmatpush.msra.mxu0 0.0
        %1782 = vmatpush.msra.mxu0 0.0
        %1783 = vmatpush.msra.mxu0 0.0
        %1784 = vmatpush.msra.mxu0 0.0
        %1785 = vmatpush.msra.mxu0 %v1652
        %1786 = vmatpush.msra.mxu0 %v1644
        %1787 = vmatpush.msra.mxu0 %v1636
        %1788 = vmatpush.msra.mxu0 %v1628
        %1789 = vmatpush.msra.mxu0 %v1620
        %1790 = vmatmul.f32.gmra.mxu0 %v1696
        %v1791 = vpop.f32.mrf.mxu0
        %v1792 = vadd.f32 %v1673, %v1791
        %1793 = vmatmul.f32.gmra.mxu0 %v1699
        %v1794 = vpop.f32.mrf.mxu0
        %v1795 = vadd.f32 %v1678, %v1794
        %1796 = vmatmul.f32.gmra.mxu0 %v1702
        %v1797 = vpop.f32.mrf.mxu0
        %v1798 = vadd.f32 %v1683, %v1797
        %1799 = vmatmul.f32.gmra.mxu0 %v1705
        %v1800 = vpop.f32.mrf.mxu0
        %v1801 = vadd.f32 %v1688, %v1800
        %1802 = vmatmul.f32.gmra.mxu0 %v1708
        %v1803 = vpop.f32.mrf.mxu0
        %v1804 = vadd.f32 %v1693, %v1803
        %1805 = vdwg.mxu0
        %1806 = vmatpush.msra.mxu0 0.0
        %1807 = vmatpush.msra.mxu0 0.0
        %1808 = vmatpush.msra.mxu0 0.0
        %1809 = vmatpush.msra.mxu0 0.0
        %1810 = vmatpush.msra.mxu0 0.0
        %1811 = vmatpush.msra.mxu0 0.0
        %1812 = vmatpush.msra.mxu0 0.0
        %1813 = vmatpush.msra.mxu0 0.0
        %1814 = vmatpush.msra.mxu0 0.0
        %1815 = vmatpush.msra.mxu0 0.0
        %1816 = vmatpush.msra.mxu0 0.0
        %1817 = vmatpush.msra.mxu0 %v1653
        %1818 = vmatpush.msra.mxu0 %v1645
        %1819 = vmatpush.msra.mxu0 %v1637
        %1820 = vmatpush.msra.mxu0 %v1629
        %1821 = vmatpush.msra.mxu0 %v1621
        %1822 = vmatmul.f32.gmra.mxu0 %v1696
        %v1823 = vpop.f32.mrf.mxu0
        %v1824 = vadd.f32 %v1673, %v1823
        %1825 = vmatmul.f32.gmra.mxu0 %v1699
        %v1826 = vpop.f32.mrf.mxu0
        %v1827 = vadd.f32 %v1678, %v1826
        %1828 = vmatmul.f32.gmra.mxu0 %v1702
        %v1829 = vpop.f32.mrf.mxu0
        %v1830 = vadd.f32 %v1683, %v1829
        %1831 = vmatmul.f32.gmra.mxu0 %v1705
        %v1832 = vpop.f32.mrf.mxu0
        %v1833 = vadd.f32 %v1688, %v1832
        %1834 = vmatmul.f32.gmra.mxu0 %v1708
        %v1835 = vpop.f32.mrf.mxu0
        %v1836 = vadd.f32 %v1693, %v1835
        %1837 = vdwg.mxu0
        %1838 = vmatpush.msra.mxu0 0.0
        %1839 = vmatpush.msra.mxu0 0.0
        %1840 = vmatpush.msra.mxu0 0.0
        %1841 = vmatpush.msra.mxu0 0.0
        %1842 = vmatpush.msra.mxu0 0.0
        %1843 = vmatpush.msra.mxu0 0.0
        %1844 = vmatpush.msra.mxu0 0.0
        %1845 = vmatpush.msra.mxu0 0.0
        %1846 = vmatpush.msra.mxu0 0.0
        %1847 = vmatpush.msra.mxu0 0.0
        %1848 = vmatpush.msra.mxu0 0.0
        %1849 = vmatpush.msra.mxu0 %v1654
        %1850 = vmatpush.msra.mxu0 %v1646
        %1851 = vmatpush.msra.mxu0 %v1638
        %1852 = vmatpush.msra.mxu0 %v1630
        %1853 = vmatpush.msra.mxu0 %v1622
        %1854 = vmatmul.f32.gmra.mxu0 %v1696
        %v1855 = vpop.f32.mrf.mxu0
        %v1856 = vadd.f32 %v1673, %v1855
        %1857 = vmatmul.f32.gmra.mxu0 %v1699
        %v1858 = vpop.f32.mrf.mxu0
        %v1859 = vadd.f32 %v1678, %v1858
        %1860 = vmatmul.f32.gmra.mxu0 %v1702
        %v1861 = vpop.f32.mrf.mxu0
        %v1862 = vadd.f32 %v1683, %v1861
        %1863 = vmatmul.f32.gmra.mxu0 %v1705
        %v1864 = vpop.f32.mrf.mxu0
        %v1865 = vadd.f32 %v1688, %v1864
        %1866 = vmatmul.f32.gmra.mxu0 %v1708
        %v1867 = vpop.f32.mrf.mxu0
        %v1868 = vadd.f32 %v1693, %v1867
        %1869 = vdwg.mxu0
        %1870 = vmatpush.msra.mxu0 0.0
        %1871 = vmatpush.msra.mxu0 0.0
        %1872 = vmatpush.msra.mxu0 0.0
        %1873 = vmatpush.msra.mxu0 0.0
        %1874 = vmatpush.msra.mxu0 0.0
        %1875 = vmatpush.msra.mxu0 0.0
        %1876 = vmatpush.msra.mxu0 0.0
        %1877 = vmatpush.msra.mxu0 0.0
        %1878 = vmatpush.msra.mxu0 0.0
        %1879 = vmatpush.msra.mxu0 0.0
        %1880 = vmatpush.msra.mxu0 0.0
        %1881 = vmatpush.msra.mxu0 %v1655
        %1882 = vmatpush.msra.mxu0 %v1647
        %1883 = vmatpush.msra.mxu0 %v1639
        %1884 = vmatpush.msra.mxu0 %v1631
        %1885 = vmatpush.msra.mxu0 %v1623
        %1886 = vmatmul.f32.gmra.mxu0 %v1696
        %v1887 = vpop.f32.mrf.mxu0
        %v1888 = vadd.f32 %v1673, %v1887
        %1889 = vmatmul.f32.gmra.mxu0 %v1699
        %v1890 = vpop.f32.mrf.mxu0
        %v1891 = vadd.f32 %v1678, %v1890
        %1892 = vmatmul.f32.gmra.mxu0 %v1702
        %v1893 = vpop.f32.mrf.mxu0
        %v1894 = vadd.f32 %v1683, %v1893
        %1895 = vmatmul.f32.gmra.mxu0 %v1705
        %v1896 = vpop.f32.mrf.mxu0
        %v1897 = vadd.f32 %v1688, %v1896
        %1898 = vmatmul.f32.gmra.mxu0 %v1708
        %v1899 = vpop.f32.mrf.mxu0
        %v1900 = vadd.f32 %v1693, %v1899
        %1901 = vdwg.mxu0
        %1902 = vmatpush.msra.mxu0 0.0
        %1903 = vmatpush.msra.mxu0 0.0
        %1904 = vmatpush.msra.mxu0 0.0
        %1905 = vmatpush.msra.mxu0 0.0
        %1906 = vmatpush.msra.mxu0 0.0
        %1907 = vmatpush.msra.mxu0 0.0
        %1908 = vmatpush.msra.mxu0 0.0
        %1909 = vmatpush.msra.mxu0 0.0
        %1910 = vmatpush.msra.mxu0 0.0
        %1911 = vmatpush.msra.mxu0 0.0
        %1912 = vmatpush.msra.mxu0 0.0
        %1913 = vmatpush.msra.mxu0 %v1656
        %1914 = vmatpush.msra.mxu0 %v1648
        %1915 = vmatpush.msra.mxu0 %v1640
        %1916 = vmatpush.msra.mxu0 %v1632
        %1917 = vmatpush.msra.mxu0 %v1624
        %1918 = vmatmul.f32.gmra.mxu0 %v1696
        %v1919 = vpop.f32.mrf.mxu0
        %v1920 = vadd.f32 %v1673, %v1919
        %1921 = vmatmul.f32.gmra.mxu0 %v1699
        %v1922 = vpop.f32.mrf.mxu0
        %v1923 = vadd.f32 %v1678, %v1922
        %1924 = vmatmul.f32.gmra.mxu0 %v1702
        %v1925 = vpop.f32.mrf.mxu0
        %v1926 = vadd.f32 %v1683, %v1925
        %1927 = vmatmul.f32.gmra.mxu0 %v1705
        %v1928 = vpop.f32.mrf.mxu0
        %v1929 = vadd.f32 %v1688, %v1928
        %1930 = vmatmul.f32.gmra.mxu0 %v1708
        %v1931 = vpop.f32.mrf.mxu0
        %v1932 = vadd.f32 %v1693, %v1931
        %1933 = vdwg.mxu0
        %1934 = vmatpush.msra.mxu0 0.0
        %1935 = vmatpush.msra.mxu0 0.0
        %1936 = vmatpush.msra.mxu0 0.0
        %1937 = vmatpush.msra.mxu0 0.0
        %1938 = vmatpush.msra.mxu0 0.0
        %1939 = vmatpush.msra.mxu0 0.0
        %1940 = vmatpush.msra.mxu0 0.0
        %1941 = vmatpush.msra.mxu0 0.0
        %1942 = vmatpush.msra.mxu0 0.0
        %1943 = vmatpush.msra.mxu0 0.0
        %1944 = vmatpush.msra.mxu0 0.0
        %1945 = vmatpush.msra.mxu0 %v1657
        %1946 = vmatpush.msra.mxu0 %v1649
        %1947 = vmatpush.msra.mxu0 %v1641
        %1948 = vmatpush.msra.mxu0 %v1633
        %1949 = vmatpush.msra.mxu0 %v1625
        %1950 = vmatmul.f32.gmra.mxu0 %v1696
        %v1951 = vpop.f32.mrf.mxu0
        %v1952 = vadd.f32 %v1673, %v1951
        %1953 = vmatmul.f32.gmra.mxu0 %v1699
        %v1954 = vpop.f32.mrf.mxu0
        %v1955 = vadd.f32 %v1678, %v1954
        %1956 = vmatmul.f32.gmra.mxu0 %v1702
        %v1957 = vpop.f32.mrf.mxu0
        %v1958 = vadd.f32 %v1683, %v1957
        %1959 = vmatmul.f32.gmra.mxu0 %v1705
        %v1960 = vpop.f32.mrf.mxu0
        %v1961 = vadd.f32 %v1688, %v1960
        %1962 = vmatmul.f32.gmra.mxu0 %v1708
        %v1963 = vpop.f32.mrf.mxu0
        %v1964 = vadd.f32 %v1693, %v1963
        %1965 = vdwg.mxu0
        %v1966 = vmax.f32 %v1728, 0.0
        %v1967 = vmax.f32 %v1760, 0.0
        %v1968 = vmax.f32 %v1792, 0.0
        %v1969 = vmax.f32 %v1824, 0.0
        %v1970 = vmax.f32 %v1856, 0.0
        %v1971 = vmax.f32 %v1888, 0.0
        %v1972 = vmax.f32 %v1920, 0.0
        %v1973 = vmax.f32 %v1952, 0.0
        %v1974 = vmax.f32 %v1731, 0.0
        %v1975 = vmax.f32 %v1763, 0.0
        %v1976 = vmax.f32 %v1795, 0.0
        %v1977 = vmax.f32 %v1827, 0.0
        %v1978 = vmax.f32 %v1859, 0.0
        %v1979 = vmax.f32 %v1891, 0.0
        %v1980 = vmax.f32 %v1923, 0.0
        %v1981 = vmax.f32 %v1955, 0.0
        %v1982 = vmax.f32 %v1734, 0.0
        %v1983 = vmax.f32 %v1766, 0.0
        %v1984 = vmax.f32 %v1798, 0.0
        %v1985 = vmax.f32 %v1830, 0.0
        %v1986 = vmax.f32 %v1862, 0.0
        %v1987 = vmax.f32 %v1894, 0.0
        %v1988 = vmax.f32 %v1926, 0.0
        %v1989 = vmax.f32 %v1958, 0.0
        %v1990 = vmax.f32 %v1737, 0.0
        %v1991 = vmax.f32 %v1769, 0.0
        %v1992 = vmax.f32 %v1801, 0.0
        %v1993 = vmax.f32 %v1833, 0.0
        %v1994 = vmax.f32 %v1865, 0.0
        %v1995 = vmax.f32 %v1897, 0.0
        %v1996 = vmax.f32 %v1929, 0.0
        %v1997 = vmax.f32 %v1961, 0.0
        %v1998 = vmax.f32 %v1740, 0.0
        %v1999 = vmax.f32 %v1772, 0.0
        %v2000 = vmax.f32 %v1804, 0.0
        %v2001 = vmax.f32 %v1836, 0.0
        %v2002 = vmax.f32 %v1868, 0.0
        %v2003 = vmax.f32 %v1900, 0.0
        %v2004 = vmax.f32 %v1932, 0.0
        %v2005 = vmax.f32 %v1964, 0.0
        %s2006 = scalar_lea.vmem %s1, 200
        %v2007 = vld [vmem:[%s2006] sm:$0xff]
        %v2008 = vld [vmem:[%s2006 + $0x8] sm:$0xff]
        %v2009 = vld [vmem:[%s2006 + $0x10] sm:$0xff]
        %v2010 = vld [vmem:[%s2006 + $0x18] sm:$0xff]
        %v2011 = vld [vmem:[%s2006 + $0x20] sm:$0xff]
        %s2012 = scalar_lea.vmem %s2, 200
        %v2013 = vld [vmem:[%s2012] sm:$0xff]
        %v2014 = vld [vmem:[%s2012 + $0x8] sm:$0xff]
        %v2015 = vld [vmem:[%s2012 + $0x10] sm:$0xff]
        %v2016 = vld [vmem:[%s2012 + $0x18] sm:$0xff]
        %v2017 = vld [vmem:[%s2012 + $0x20] sm:$0xff]
        %2019 = vset.pattern.permute.xlu0 0
        %2020 = vperm.xlu0 %2019, %v2013
        %v2021 = vpop.permute.xlu0 %2020
        %2024 = vset.pattern.permute.xlu0 0
        %2025 = vperm.xlu0 %2024, %v2014
        %v2026 = vpop.permute.xlu0 %2025
        %2029 = vset.pattern.permute.xlu0 0
        %2030 = vperm.xlu0 %2029, %v2015
        %v2031 = vpop.permute.xlu0 %2030
        %2034 = vset.pattern.permute.xlu0 0
        %2035 = vperm.xlu0 %2034, %v2016
        %v2036 = vpop.permute.xlu0 %2035
        %2039 = vset.pattern.permute.xlu0 0
        %2040 = vperm.xlu0 %2039, %v2017
        %v2041 = vpop.permute.xlu0 %2040
        %v2044 = vsel %vm650, %v2007, 0
        %v2047 = vsel %vm650, %v2008, 0
        %v2050 = vsel %vm650, %v2009, 0
        %v2053 = vsel %vm650, %v2010, 0
        %v2056 = vsel %vm650, %v2011, 0
        %2058 = vmatpush.msra.mxu0 0.0
        %2059 = vmatpush.msra.mxu0 0.0
        %2060 = vmatpush.msra.mxu0 0.0
        %2061 = vmatpush.msra.mxu0 0.0
        %2062 = vmatpush.msra.mxu0 0.0
        %2063 = vmatpush.msra.mxu0 0.0
        %2064 = vmatpush.msra.mxu0 0.0
        %2065 = vmatpush.msra.mxu0 0.0
        %2066 = vmatpush.msra.mxu0 0.0
        %2067 = vmatpush.msra.mxu0 0.0
        %2068 = vmatpush.msra.mxu0 0.0
        %2069 = vmatpush.msra.mxu0 %v1998
        %2070 = vmatpush.msra.mxu0 %v1990
        %2071 = vmatpush.msra.mxu0 %v1982
        %2072 = vmatpush.msra.mxu0 %v1974
        %2073 = vmatpush.msra.mxu0 %v1966
        %2074 = vmatmul.f32.gmra.mxu0 %v2044
        %v2075 = vpop.f32.mrf.mxu0
        %v2076 = vadd.f32 %v2021, %v2075
        %2077 = vmatmul.f32.gmra.mxu0 %v2047
        %v2078 = vpop.f32.mrf.mxu0
        %v2079 = vadd.f32 %v2026, %v2078
        %2080 = vmatmul.f32.gmra.mxu0 %v2050
        %v2081 = vpop.f32.mrf.mxu0
        %v2082 = vadd.f32 %v2031, %v2081
        %2083 = vmatmul.f32.gmra.mxu0 %v2053
        %v2084 = vpop.f32.mrf.mxu0
        %v2085 = vadd.f32 %v2036, %v2084
        %2086 = vmatmul.f32.gmra.mxu0 %v2056
        %v2087 = vpop.f32.mrf.mxu0
        %v2088 = vadd.f32 %v2041, %v2087
        %2089 = vdwg.mxu0
        %2090 = vmatpush.msra.mxu0 0.0
        %2091 = vmatpush.msra.mxu0 0.0
        %2092 = vmatpush.msra.mxu0 0.0
        %2093 = vmatpush.msra.mxu0 0.0
        %2094 = vmatpush.msra.mxu0 0.0
        %2095 = vmatpush.msra.mxu0 0.0
        %2096 = vmatpush.msra.mxu0 0.0
        %2097 = vmatpush.msra.mxu0 0.0
        %2098 = vmatpush.msra.mxu0 0.0
        %2099 = vmatpush.msra.mxu0 0.0
        %2100 = vmatpush.msra.mxu0 0.0
        %2101 = vmatpush.msra.mxu0 %v1999
        %2102 = vmatpush.msra.mxu0 %v1991
        %2103 = vmatpush.msra.mxu0 %v1983
        %2104 = vmatpush.msra.mxu0 %v1975
        %2105 = vmatpush.msra.mxu0 %v1967
        %2106 = vmatmul.f32.gmra.mxu0 %v2044
        %v2107 = vpop.f32.mrf.mxu0
        %v2108 = vadd.f32 %v2021, %v2107
        %2109 = vmatmul.f32.gmra.mxu0 %v2047
        %v2110 = vpop.f32.mrf.mxu0
        %v2111 = vadd.f32 %v2026, %v2110
        %2112 = vmatmul.f32.gmra.mxu0 %v2050
        %v2113 = vpop.f32.mrf.mxu0
        %v2114 = vadd.f32 %v2031, %v2113
        %2115 = vmatmul.f32.gmra.mxu0 %v2053
        %v2116 = vpop.f32.mrf.mxu0
        %v2117 = vadd.f32 %v2036, %v2116
        %2118 = vmatmul.f32.gmra.mxu0 %v2056
        %v2119 = vpop.f32.mrf.mxu0
        %v2120 = vadd.f32 %v2041, %v2119
        %2121 = vdwg.mxu0
        %2122 = vmatpush.msra.mxu0 0.0
        %2123 = vmatpush.msra.mxu0 0.0
        %2124 = vmatpush.msra.mxu0 0.0
        %2125 = vmatpush.msra.mxu0 0.0
        %2126 = vmatpush.msra.mxu0 0.0
        %2127 = vmatpush.msra.mxu0 0.0
        %2128 = vmatpush.msra.mxu0 0.0
        %2129 = vmatpush.msra.mxu0 0.0
        %2130 = vmatpush.msra.mxu0 0.0
        %2131 = vmatpush.msra.mxu0 0.0
        %2132 = vmatpush.msra.mxu0 0.0
        %2133 = vmatpush.msra.mxu0 %v2000
        %2134 = vmatpush.msra.mxu0 %v1992
        %2135 = vmatpush.msra.mxu0 %v1984
        %2136 = vmatpush.msra.mxu0 %v1976
        %2137 = vmatpush.msra.mxu0 %v1968
        %2138 = vmatmul.f32.gmra.mxu0 %v2044
        %v2139 = vpop.f32.mrf.mxu0
        %v2140 = vadd.f32 %v2021, %v2139
        %2141 = vmatmul.f32.gmra.mxu0 %v2047
        %v2142 = vpop.f32.mrf.mxu0
        %v2143 = vadd.f32 %v2026, %v2142
        %2144 = vmatmul.f32.gmra.mxu0 %v2050
        %v2145 = vpop.f32.mrf.mxu0
        %v2146 = vadd.f32 %v2031, %v2145
        %2147 = vmatmul.f32.gmra.mxu0 %v2053
        %v2148 = vpop.f32.mrf.mxu0
        %v2149 = vadd.f32 %v2036, %v2148
        %2150 = vmatmul.f32.gmra.mxu0 %v2056
        %v2151 = vpop.f32.mrf.mxu0
        %v2152 = vadd.f32 %v2041, %v2151
        %2153 = vdwg.mxu0
        %2154 = vmatpush.msra.mxu0 0.0
        %2155 = vmatpush.msra.mxu0 0.0
        %2156 = vmatpush.msra.mxu0 0.0
        %2157 = vmatpush.msra.mxu0 0.0
        %2158 = vmatpush.msra.mxu0 0.0
        %2159 = vmatpush.msra.mxu0 0.0
        %2160 = vmatpush.msra.mxu0 0.0
        %2161 = vmatpush.msra.mxu0 0.0
        %2162 = vmatpush.msra.mxu0 0.0
        %2163 = vmatpush.msra.mxu0 0.0
        %2164 = vmatpush.msra.mxu0 0.0
        %2165 = vmatpush.msra.mxu0 %v2001
        %2166 = vmatpush.msra.mxu0 %v1993
        %2167 = vmatpush.msra.mxu0 %v1985
        %2168 = vmatpush.msra.mxu0 %v1977
        %2169 = vmatpush.msra.mxu0 %v1969
        %2170 = vmatmul.f32.gmra.mxu0 %v2044
        %v2171 = vpop.f32.mrf.mxu0
        %v2172 = vadd.f32 %v2021, %v2171
        %2173 = vmatmul.f32.gmra.mxu0 %v2047
        %v2174 = vpop.f32.mrf.mxu0
        %v2175 = vadd.f32 %v2026, %v2174
        %2176 = vmatmul.f32.gmra.mxu0 %v2050
        %v2177 = vpop.f32.mrf.mxu0
        %v2178 = vadd.f32 %v2031, %v2177
        %2179 = vmatmul.f32.gmra.mxu0 %v2053
        %v2180 = vpop.f32.mrf.mxu0
        %v2181 = vadd.f32 %v2036, %v2180
        %2182 = vmatmul.f32.gmra.mxu0 %v2056
        %v2183 = vpop.f32.mrf.mxu0
        %v2184 = vadd.f32 %v2041, %v2183
        %2185 = vdwg.mxu0
        %2186 = vmatpush.msra.mxu0 0.0
        %2187 = vmatpush.msra.mxu0 0.0
        %2188 = vmatpush.msra.mxu0 0.0
        %2189 = vmatpush.msra.mxu0 0.0
        %2190 = vmatpush.msra.mxu0 0.0
        %2191 = vmatpush.msra.mxu0 0.0
        %2192 = vmatpush.msra.mxu0 0.0
        %2193 = vmatpush.msra.mxu0 0.0
        %2194 = vmatpush.msra.mxu0 0.0
        %2195 = vmatpush.msra.mxu0 0.0
        %2196 = vmatpush.msra.mxu0 0.0
        %2197 = vmatpush.msra.mxu0 %v2002
        %2198 = vmatpush.msra.mxu0 %v1994
        %2199 = vmatpush.msra.mxu0 %v1986
        %2200 = vmatpush.msra.mxu0 %v1978
        %2201 = vmatpush.msra.mxu0 %v1970
        %2202 = vmatmul.f32.gmra.mxu0 %v2044
        %v2203 = vpop.f32.mrf.mxu0
        %v2204 = vadd.f32 %v2021, %v2203
        %2205 = vmatmul.f32.gmra.mxu0 %v2047
        %v2206 = vpop.f32.mrf.mxu0
        %v2207 = vadd.f32 %v2026, %v2206
        %2208 = vmatmul.f32.gmra.mxu0 %v2050
        %v2209 = vpop.f32.mrf.mxu0
        %v2210 = vadd.f32 %v2031, %v2209
        %2211 = vmatmul.f32.gmra.mxu0 %v2053
        %v2212 = vpop.f32.mrf.mxu0
        %v2213 = vadd.f32 %v2036, %v2212
        %2214 = vmatmul.f32.gmra.mxu0 %v2056
        %v2215 = vpop.f32.mrf.mxu0
        %v2216 = vadd.f32 %v2041, %v2215
        %2217 = vdwg.mxu0
        %2218 = vmatpush.msra.mxu0 0.0
        %2219 = vmatpush.msra.mxu0 0.0
        %2220 = vmatpush.msra.mxu0 0.0
        %2221 = vmatpush.msra.mxu0 0.0
        %2222 = vmatpush.msra.mxu0 0.0
        %2223 = vmatpush.msra.mxu0 0.0
        %2224 = vmatpush.msra.mxu0 0.0
        %2225 = vmatpush.msra.mxu0 0.0
        %2226 = vmatpush.msra.mxu0 0.0
        %2227 = vmatpush.msra.mxu0 0.0
        %2228 = vmatpush.msra.mxu0 0.0
        %2229 = vmatpush.msra.mxu0 %v2003
        %2230 = vmatpush.msra.mxu0 %v1995
        %2231 = vmatpush.msra.mxu0 %v1987
        %2232 = vmatpush.msra.mxu0 %v1979
        %2233 = vmatpush.msra.mxu0 %v1971
        %2234 = vmatmul.f32.gmra.mxu0 %v2044
        %v2235 = vpop.f32.mrf.mxu0
        %v2236 = vadd.f32 %v2021, %v2235
        %2237 = vmatmul.f32.gmra.mxu0 %v2047
        %v2238 = vpop.f32.mrf.mxu0
        %v2239 = vadd.f32 %v2026, %v2238
        %2240 = vmatmul.f32.gmra.mxu0 %v2050
        %v2241 = vpop.f32.mrf.mxu0
        %v2242 = vadd.f32 %v2031, %v2241
        %2243 = vmatmul.f32.gmra.mxu0 %v2053
        %v2244 = vpop.f32.mrf.mxu0
        %v2245 = vadd.f32 %v2036, %v2244
        %2246 = vmatmul.f32.gmra.mxu0 %v2056
        %v2247 = vpop.f32.mrf.mxu0
        %v2248 = vadd.f32 %v2041, %v2247
        %2249 = vdwg.mxu0
        %2250 = vmatpush.msra.mxu0 0.0
        %2251 = vmatpush.msra.mxu0 0.0
        %2252 = vmatpush.msra.mxu0 0.0
        %2253 = vmatpush.msra.mxu0 0.0
        %2254 = vmatpush.msra.mxu0 0.0
        %2255 = vmatpush.msra.mxu0 0.0
        %2256 = vmatpush.msra.mxu0 0.0
        %2257 = vmatpush.msra.mxu0 0.0
        %2258 = vmatpush.msra.mxu0 0.0
        %2259 = vmatpush.msra.mxu0 0.0
        %2260 = vmatpush.msra.mxu0 0.0
        %2261 = vmatpush.msra.mxu0 %v2004
        %2262 = vmatpush.msra.mxu0 %v1996
        %2263 = vmatpush.msra.mxu0 %v1988
        %2264 = vmatpush.msra.mxu0 %v1980
        %2265 = vmatpush.msra.mxu0 %v1972
        %2266 = vmatmul.f32.gmra.mxu0 %v2044
        %v2267 = vpop.f32.mrf.mxu0
        %v2268 = vadd.f32 %v2021, %v2267
        %2269 = vmatmul.f32.gmra.mxu0 %v2047
        %v2270 = vpop.f32.mrf.mxu0
        %v2271 = vadd.f32 %v2026, %v2270
        %2272 = vmatmul.f32.gmra.mxu0 %v2050
        %v2273 = vpop.f32.mrf.mxu0
        %v2274 = vadd.f32 %v2031, %v2273
        %2275 = vmatmul.f32.gmra.mxu0 %v2053
        %v2276 = vpop.f32.mrf.mxu0
        %v2277 = vadd.f32 %v2036, %v2276
        %2278 = vmatmul.f32.gmra.mxu0 %v2056
        %v2279 = vpop.f32.mrf.mxu0
        %v2280 = vadd.f32 %v2041, %v2279
        %2281 = vdwg.mxu0
        %2282 = vmatpush.msra.mxu0 0.0
        %2283 = vmatpush.msra.mxu0 0.0
        %2284 = vmatpush.msra.mxu0 0.0
        %2285 = vmatpush.msra.mxu0 0.0
        %2286 = vmatpush.msra.mxu0 0.0
        %2287 = vmatpush.msra.mxu0 0.0
        %2288 = vmatpush.msra.mxu0 0.0
        %2289 = vmatpush.msra.mxu0 0.0
        %2290 = vmatpush.msra.mxu0 0.0
        %2291 = vmatpush.msra.mxu0 0.0
        %2292 = vmatpush.msra.mxu0 0.0
        %2293 = vmatpush.msra.mxu0 %v2005
        %2294 = vmatpush.msra.mxu0 %v1997
        %2295 = vmatpush.msra.mxu0 %v1989
        %2296 = vmatpush.msra.mxu0 %v1981
        %2297 = vmatpush.msra.mxu0 %v1973
        %2298 = vmatmul.f32.gmra.mxu0 %v2044
        %v2299 = vpop.f32.mrf.mxu0
        %v2300 = vadd.f32 %v2021, %v2299
        %2301 = vmatmul.f32.gmra.mxu0 %v2047
        %v2302 = vpop.f32.mrf.mxu0
        %v2303 = vadd.f32 %v2026, %v2302
        %2304 = vmatmul.f32.gmra.mxu0 %v2050
        %v2305 = vpop.f32.mrf.mxu0
        %v2306 = vadd.f32 %v2031, %v2305
        %2307 = vmatmul.f32.gmra.mxu0 %v2053
        %v2308 = vpop.f32.mrf.mxu0
        %v2309 = vadd.f32 %v2036, %v2308
        %2310 = vmatmul.f32.gmra.mxu0 %v2056
        %v2311 = vpop.f32.mrf.mxu0
        %v2312 = vadd.f32 %v2041, %v2311
        %2313 = vdwg.mxu0
        %v2314 = vmax.f32 %v2076, 0.0
        %v2315 = vmax.f32 %v2108, 0.0
        %v2316 = vmax.f32 %v2140, 0.0
        %v2317 = vmax.f32 %v2172, 0.0
        %v2318 = vmax.f32 %v2204, 0.0
        %v2319 = vmax.f32 %v2236, 0.0
        %v2320 = vmax.f32 %v2268, 0.0
        %v2321 = vmax.f32 %v2300, 0.0
        %v2322 = vmax.f32 %v2079, 0.0
        %v2323 = vmax.f32 %v2111, 0.0
        %v2324 = vmax.f32 %v2143, 0.0
        %v2325 = vmax.f32 %v2175, 0.0
        %v2326 = vmax.f32 %v2207, 0.0
        %v2327 = vmax.f32 %v2239, 0.0
        %v2328 = vmax.f32 %v2271, 0.0
        %v2329 = vmax.f32 %v2303, 0.0
        %v2330 = vmax.f32 %v2082, 0.0
        %v2331 = vmax.f32 %v2114, 0.0
        %v2332 = vmax.f32 %v2146, 0.0
        %v2333 = vmax.f32 %v2178, 0.0
        %v2334 = vmax.f32 %v2210, 0.0
        %v2335 = vmax.f32 %v2242, 0.0
        %v2336 = vmax.f32 %v2274, 0.0
        %v2337 = vmax.f32 %v2306, 0.0
        %v2338 = vmax.f32 %v2085, 0.0
        %v2339 = vmax.f32 %v2117, 0.0
        %v2340 = vmax.f32 %v2149, 0.0
        %v2341 = vmax.f32 %v2181, 0.0
        %v2342 = vmax.f32 %v2213, 0.0
        %v2343 = vmax.f32 %v2245, 0.0
        %v2344 = vmax.f32 %v2277, 0.0
        %v2345 = vmax.f32 %v2309, 0.0
        %v2346 = vmax.f32 %v2088, 0.0
        %v2347 = vmax.f32 %v2120, 0.0
        %v2348 = vmax.f32 %v2152, 0.0
        %v2349 = vmax.f32 %v2184, 0.0
        %v2350 = vmax.f32 %v2216, 0.0
        %v2351 = vmax.f32 %v2248, 0.0
        %v2352 = vmax.f32 %v2280, 0.0
        %v2353 = vmax.f32 %v2312, 0.0
        %s2354 = scalar_lea.vmem %s1, 240
        %v2355 = vld [vmem:[%s2354] sm:$0xff]
        %v2356 = vld [vmem:[%s2354 + $0x8] sm:$0xff]
        %v2357 = vld [vmem:[%s2354 + $0x10] sm:$0xff]
        %v2358 = vld [vmem:[%s2354 + $0x18] sm:$0xff]
        %v2359 = vld [vmem:[%s2354 + $0x20] sm:$0xff]
        %s2360 = scalar_lea.vmem %s2, 240
        %v2361 = vld [vmem:[%s2360] sm:$0xff]
        %v2362 = vld [vmem:[%s2360 + $0x8] sm:$0xff]
        %v2363 = vld [vmem:[%s2360 + $0x10] sm:$0xff]
        %v2364 = vld [vmem:[%s2360 + $0x18] sm:$0xff]
        %v2365 = vld [vmem:[%s2360 + $0x20] sm:$0xff]
        %2367 = vset.pattern.permute.xlu0 0
        %2368 = vperm.xlu0 %2367, %v2361
        %v2369 = vpop.permute.xlu0 %2368
        %2372 = vset.pattern.permute.xlu0 0
        %2373 = vperm.xlu0 %2372, %v2362
        %v2374 = vpop.permute.xlu0 %2373
        %2377 = vset.pattern.permute.xlu0 0
        %2378 = vperm.xlu0 %2377, %v2363
        %v2379 = vpop.permute.xlu0 %2378
        %2382 = vset.pattern.permute.xlu0 0
        %2383 = vperm.xlu0 %2382, %v2364
        %v2384 = vpop.permute.xlu0 %2383
        %2387 = vset.pattern.permute.xlu0 0
        %2388 = vperm.xlu0 %2387, %v2365
        %v2389 = vpop.permute.xlu0 %2388
        %v2392 = vsel %vm650, %v2355, 0
        %v2395 = vsel %vm650, %v2356, 0
        %v2398 = vsel %vm650, %v2357, 0
        %v2401 = vsel %vm650, %v2358, 0
        %v2404 = vsel %vm650, %v2359, 0
        %2406 = vmatpush.msra.mxu0 0.0
        %2407 = vmatpush.msra.mxu0 0.0
        %2408 = vmatpush.msra.mxu0 0.0
        %2409 = vmatpush.msra.mxu0 0.0
        %2410 = vmatpush.msra.mxu0 0.0
        %2411 = vmatpush.msra.mxu0 0.0
        %2412 = vmatpush.msra.mxu0 0.0
        %2413 = vmatpush.msra.mxu0 0.0
        %2414 = vmatpush.msra.mxu0 0.0
        %2415 = vmatpush.msra.mxu0 0.0
        %2416 = vmatpush.msra.mxu0 0.0
        %2417 = vmatpush.msra.mxu0 %v2346
        %2418 = vmatpush.msra.mxu0 %v2338
        %2419 = vmatpush.msra.mxu0 %v2330
        %2420 = vmatpush.msra.mxu0 %v2322
        %2421 = vmatpush.msra.mxu0 %v2314
        %2422 = vmatmul.f32.gmra.mxu0 %v2392
        %v2423 = vpop.f32.mrf.mxu0
        %v2424 = vadd.f32 %v2369, %v2423
        %2425 = vmatmul.f32.gmra.mxu0 %v2395
        %v2426 = vpop.f32.mrf.mxu0
        %v2427 = vadd.f32 %v2374, %v2426
        %2428 = vmatmul.f32.gmra.mxu0 %v2398
        %v2429 = vpop.f32.mrf.mxu0
        %v2430 = vadd.f32 %v2379, %v2429
        %2431 = vmatmul.f32.gmra.mxu0 %v2401
        %v2432 = vpop.f32.mrf.mxu0
        %v2433 = vadd.f32 %v2384, %v2432
        %2434 = vmatmul.f32.gmra.mxu0 %v2404
        %v2435 = vpop.f32.mrf.mxu0
        %v2436 = vadd.f32 %v2389, %v2435
        %2437 = vdwg.mxu0
        %2438 = vmatpush.msra.mxu0 0.0
        %2439 = vmatpush.msra.mxu0 0.0
        %2440 = vmatpush.msra.mxu0 0.0
        %2441 = vmatpush.msra.mxu0 0.0
        %2442 = vmatpush.msra.mxu0 0.0
        %2443 = vmatpush.msra.mxu0 0.0
        %2444 = vmatpush.msra.mxu0 0.0
        %2445 = vmatpush.msra.mxu0 0.0
        %2446 = vmatpush.msra.mxu0 0.0
        %2447 = vmatpush.msra.mxu0 0.0
        %2448 = vmatpush.msra.mxu0 0.0
        %2449 = vmatpush.msra.mxu0 %v2347
        %2450 = vmatpush.msra.mxu0 %v2339
        %2451 = vmatpush.msra.mxu0 %v2331
        %2452 = vmatpush.msra.mxu0 %v2323
        %2453 = vmatpush.msra.mxu0 %v2315
        %2454 = vmatmul.f32.gmra.mxu0 %v2392
        %v2455 = vpop.f32.mrf.mxu0
        %v2456 = vadd.f32 %v2369, %v2455
        %2457 = vmatmul.f32.gmra.mxu0 %v2395
        %v2458 = vpop.f32.mrf.mxu0
        %v2459 = vadd.f32 %v2374, %v2458
        %2460 = vmatmul.f32.gmra.mxu0 %v2398
        %v2461 = vpop.f32.mrf.mxu0
        %v2462 = vadd.f32 %v2379, %v2461
        %2463 = vmatmul.f32.gmra.mxu0 %v2401
        %v2464 = vpop.f32.mrf.mxu0
        %v2465 = vadd.f32 %v2384, %v2464
        %2466 = vmatmul.f32.gmra.mxu0 %v2404
        %v2467 = vpop.f32.mrf.mxu0
        %v2468 = vadd.f32 %v2389, %v2467
        %2469 = vdwg.mxu0
        %2470 = vmatpush.msra.mxu0 0.0
        %2471 = vmatpush.msra.mxu0 0.0
        %2472 = vmatpush.msra.mxu0 0.0
        %2473 = vmatpush.msra.mxu0 0.0
        %2474 = vmatpush.msra.mxu0 0.0
        %2475 = vmatpush.msra.mxu0 0.0
        %2476 = vmatpush.msra.mxu0 0.0
        %2477 = vmatpush.msra.mxu0 0.0
        %2478 = vmatpush.msra.mxu0 0.0
        %2479 = vmatpush.msra.mxu0 0.0
        %2480 = vmatpush.msra.mxu0 0.0
        %2481 = vmatpush.msra.mxu0 %v2348
        %2482 = vmatpush.msra.mxu0 %v2340
        %2483 = vmatpush.msra.mxu0 %v2332
        %2484 = vmatpush.msra.mxu0 %v2324
        %2485 = vmatpush.msra.mxu0 %v2316
        %2486 = vmatmul.f32.gmra.mxu0 %v2392
        %v2487 = vpop.f32.mrf.mxu0
        %v2488 = vadd.f32 %v2369, %v2487
        %2489 = vmatmul.f32.gmra.mxu0 %v2395
        %v2490 = vpop.f32.mrf.mxu0
        %v2491 = vadd.f32 %v2374, %v2490
        %2492 = vmatmul.f32.gmra.mxu0 %v2398
        %v2493 = vpop.f32.mrf.mxu0
        %v2494 = vadd.f32 %v2379, %v2493
        %2495 = vmatmul.f32.gmra.mxu0 %v2401
        %v2496 = vpop.f32.mrf.mxu0
        %v2497 = vadd.f32 %v2384, %v2496
        %2498 = vmatmul.f32.gmra.mxu0 %v2404
        %v2499 = vpop.f32.mrf.mxu0
        %v2500 = vadd.f32 %v2389, %v2499
        %2501 = vdwg.mxu0
        %2502 = vmatpush.msra.mxu0 0.0
        %2503 = vmatpush.msra.mxu0 0.0
        %2504 = vmatpush.msra.mxu0 0.0
        %2505 = vmatpush.msra.mxu0 0.0
        %2506 = vmatpush.msra.mxu0 0.0
        %2507 = vmatpush.msra.mxu0 0.0
        %2508 = vmatpush.msra.mxu0 0.0
        %2509 = vmatpush.msra.mxu0 0.0
        %2510 = vmatpush.msra.mxu0 0.0
        %2511 = vmatpush.msra.mxu0 0.0
        %2512 = vmatpush.msra.mxu0 0.0
        %2513 = vmatpush.msra.mxu0 %v2349
        %2514 = vmatpush.msra.mxu0 %v2341
        %2515 = vmatpush.msra.mxu0 %v2333
        %2516 = vmatpush.msra.mxu0 %v2325
        %2517 = vmatpush.msra.mxu0 %v2317
        %2518 = vmatmul.f32.gmra.mxu0 %v2392
        %v2519 = vpop.f32.mrf.mxu0
        %v2520 = vadd.f32 %v2369, %v2519
        %2521 = vmatmul.f32.gmra.mxu0 %v2395
        %v2522 = vpop.f32.mrf.mxu0
        %v2523 = vadd.f32 %v2374, %v2522
        %2524 = vmatmul.f32.gmra.mxu0 %v2398
        %v2525 = vpop.f32.mrf.mxu0
        %v2526 = vadd.f32 %v2379, %v2525
        %2527 = vmatmul.f32.gmra.mxu0 %v2401
        %v2528 = vpop.f32.mrf.mxu0
        %v2529 = vadd.f32 %v2384, %v2528
        %2530 = vmatmul.f32.gmra.mxu0 %v2404
        %v2531 = vpop.f32.mrf.mxu0
        %v2532 = vadd.f32 %v2389, %v2531
        %2533 = vdwg.mxu0
        %2534 = vmatpush.msra.mxu0 0.0
        %2535 = vmatpush.msra.mxu0 0.0
        %2536 = vmatpush.msra.mxu0 0.0
        %2537 = vmatpush.msra.mxu0 0.0
        %2538 = vmatpush.msra.mxu0 0.0
        %2539 = vmatpush.msra.mxu0 0.0
        %2540 = vmatpush.msra.mxu0 0.0
        %2541 = vmatpush.msra.mxu0 0.0
        %2542 = vmatpush.msra.mxu0 0.0
        %2543 = vmatpush.msra.mxu0 0.0
        %2544 = vmatpush.msra.mxu0 0.0
        %2545 = vmatpush.msra.mxu0 %v2350
        %2546 = vmatpush.msra.mxu0 %v2342
        %2547 = vmatpush.msra.mxu0 %v2334
        %2548 = vmatpush.msra.mxu0 %v2326
        %2549 = vmatpush.msra.mxu0 %v2318
        %2550 = vmatmul.f32.gmra.mxu0 %v2392
        %v2551 = vpop.f32.mrf.mxu0
        %v2552 = vadd.f32 %v2369, %v2551
        %2553 = vmatmul.f32.gmra.mxu0 %v2395
        %v2554 = vpop.f32.mrf.mxu0
        %v2555 = vadd.f32 %v2374, %v2554
        %2556 = vmatmul.f32.gmra.mxu0 %v2398
        %v2557 = vpop.f32.mrf.mxu0
        %v2558 = vadd.f32 %v2379, %v2557
        %2559 = vmatmul.f32.gmra.mxu0 %v2401
        %v2560 = vpop.f32.mrf.mxu0
        %v2561 = vadd.f32 %v2384, %v2560
        %2562 = vmatmul.f32.gmra.mxu0 %v2404
        %v2563 = vpop.f32.mrf.mxu0
        %v2564 = vadd.f32 %v2389, %v2563
        %2565 = vdwg.mxu0
        %2566 = vmatpush.msra.mxu0 0.0
        %2567 = vmatpush.msra.mxu0 0.0
        %2568 = vmatpush.msra.mxu0 0.0
        %2569 = vmatpush.msra.mxu0 0.0
        %2570 = vmatpush.msra.mxu0 0.0
        %2571 = vmatpush.msra.mxu0 0.0
        %2572 = vmatpush.msra.mxu0 0.0
        %2573 = vmatpush.msra.mxu0 0.0
        %2574 = vmatpush.msra.mxu0 0.0
        %2575 = vmatpush.msra.mxu0 0.0
        %2576 = vmatpush.msra.mxu0 0.0
        %2577 = vmatpush.msra.mxu0 %v2351
        %2578 = vmatpush.msra.mxu0 %v2343
        %2579 = vmatpush.msra.mxu0 %v2335
        %2580 = vmatpush.msra.mxu0 %v2327
        %2581 = vmatpush.msra.mxu0 %v2319
        %2582 = vmatmul.f32.gmra.mxu0 %v2392
        %v2583 = vpop.f32.mrf.mxu0
        %v2584 = vadd.f32 %v2369, %v2583
        %2585 = vmatmul.f32.gmra.mxu0 %v2395
        %v2586 = vpop.f32.mrf.mxu0
        %v2587 = vadd.f32 %v2374, %v2586
        %2588 = vmatmul.f32.gmra.mxu0 %v2398
        %v2589 = vpop.f32.mrf.mxu0
        %v2590 = vadd.f32 %v2379, %v2589
        %2591 = vmatmul.f32.gmra.mxu0 %v2401
        %v2592 = vpop.f32.mrf.mxu0
        %v2593 = vadd.f32 %v2384, %v2592
        %2594 = vmatmul.f32.gmra.mxu0 %v2404
        %v2595 = vpop.f32.mrf.mxu0
        %v2596 = vadd.f32 %v2389, %v2595
        %2597 = vdwg.mxu0
        %2598 = vmatpush.msra.mxu0 0.0
        %2599 = vmatpush.msra.mxu0 0.0
        %2600 = vmatpush.msra.mxu0 0.0
        %2601 = vmatpush.msra.mxu0 0.0
        %2602 = vmatpush.msra.mxu0 0.0
        %2603 = vmatpush.msra.mxu0 0.0
        %2604 = vmatpush.msra.mxu0 0.0
        %2605 = vmatpush.msra.mxu0 0.0
        %2606 = vmatpush.msra.mxu0 0.0
        %2607 = vmatpush.msra.mxu0 0.0
        %2608 = vmatpush.msra.mxu0 0.0
        %2609 = vmatpush.msra.mxu0 %v2352
        %2610 = vmatpush.msra.mxu0 %v2344
        %2611 = vmatpush.msra.mxu0 %v2336
        %2612 = vmatpush.msra.mxu0 %v2328
        %2613 = vmatpush.msra.mxu0 %v2320
        %2614 = vmatmul.f32.gmra.mxu0 %v2392
        %v2615 = vpop.f32.mrf.mxu0
        %v2616 = vadd.f32 %v2369, %v2615
        %2617 = vmatmul.f32.gmra.mxu0 %v2395
        %v2618 = vpop.f32.mrf.mxu0
        %v2619 = vadd.f32 %v2374, %v2618
        %2620 = vmatmul.f32.gmra.mxu0 %v2398
        %v2621 = vpop.f32.mrf.mxu0
        %v2622 = vadd.f32 %v2379, %v2621
        %2623 = vmatmul.f32.gmra.mxu0 %v2401
        %v2624 = vpop.f32.mrf.mxu0
        %v2625 = vadd.f32 %v2384, %v2624
        %2626 = vmatmul.f32.gmra.mxu0 %v2404
        %v2627 = vpop.f32.mrf.mxu0
        %v2628 = vadd.f32 %v2389, %v2627
        %2629 = vdwg.mxu0
        %2630 = vmatpush.msra.mxu0 0.0
        %2631 = vmatpush.msra.mxu0 0.0
        %2632 = vmatpush.msra.mxu0 0.0
        %2633 = vmatpush.msra.mxu0 0.0
        %2634 = vmatpush.msra.mxu0 0.0
        %2635 = vmatpush.msra.mxu0 0.0
        %2636 = vmatpush.msra.mxu0 0.0
        %2637 = vmatpush.msra.mxu0 0.0
        %2638 = vmatpush.msra.mxu0 0.0
        %2639 = vmatpush.msra.mxu0 0.0
        %2640 = vmatpush.msra.mxu0 0.0
        %2641 = vmatpush.msra.mxu0 %v2353
        %2642 = vmatpush.msra.mxu0 %v2345
        %2643 = vmatpush.msra.mxu0 %v2337
        %2644 = vmatpush.msra.mxu0 %v2329
        %2645 = vmatpush.msra.mxu0 %v2321
        %2646 = vmatmul.f32.gmra.mxu0 %v2392
        %v2647 = vpop.f32.mrf.mxu0
        %v2648 = vadd.f32 %v2369, %v2647
        %2649 = vmatmul.f32.gmra.mxu0 %v2395
        %v2650 = vpop.f32.mrf.mxu0
        %v2651 = vadd.f32 %v2374, %v2650
        %2652 = vmatmul.f32.gmra.mxu0 %v2398
        %v2653 = vpop.f32.mrf.mxu0
        %v2654 = vadd.f32 %v2379, %v2653
        %2655 = vmatmul.f32.gmra.mxu0 %v2401
        %v2656 = vpop.f32.mrf.mxu0
        %v2657 = vadd.f32 %v2384, %v2656
        %2658 = vmatmul.f32.gmra.mxu0 %v2404
        %v2659 = vpop.f32.mrf.mxu0
        %v2660 = vadd.f32 %v2389, %v2659
        %2661 = vdwg.mxu0
        %v2662 = vmax.f32 %v2424, 0.0
        %v2663 = vmax.f32 %v2456, 0.0
        %v2664 = vmax.f32 %v2488, 0.0
        %v2665 = vmax.f32 %v2520, 0.0
        %v2666 = vmax.f32 %v2552, 0.0
        %v2667 = vmax.f32 %v2584, 0.0
        %v2668 = vmax.f32 %v2616, 0.0
        %v2669 = vmax.f32 %v2648, 0.0
        %v2670 = vmax.f32 %v2427, 0.0
        %v2671 = vmax.f32 %v2459, 0.0
        %v2672 = vmax.f32 %v2491, 0.0
        %v2673 = vmax.f32 %v2523, 0.0
        %v2674 = vmax.f32 %v2555, 0.0
        %v2675 = vmax.f32 %v2587, 0.0
        %v2676 = vmax.f32 %v2619, 0.0
        %v2677 = vmax.f32 %v2651, 0.0
        %v2678 = vmax.f32 %v2430, 0.0
        %v2679 = vmax.f32 %v2462, 0.0
        %v2680 = vmax.f32 %v2494, 0.0
        %v2681 = vmax.f32 %v2526, 0.0
        %v2682 = vmax.f32 %v2558, 0.0
        %v2683 = vmax.f32 %v2590, 0.0
        %v2684 = vmax.f32 %v2622, 0.0
        %v2685 = vmax.f32 %v2654, 0.0
        %v2686 = vmax.f32 %v2433, 0.0
        %v2687 = vmax.f32 %v2465, 0.0
        %v2688 = vmax.f32 %v2497, 0.0
        %v2689 = vmax.f32 %v2529, 0.0
        %v2690 = vmax.f32 %v2561, 0.0
        %v2691 = vmax.f32 %v2593, 0.0
        %v2692 = vmax.f32 %v2625, 0.0
        %v2693 = vmax.f32 %v2657, 0.0
        %v2694 = vmax.f32 %v2436, 0.0
        %v2695 = vmax.f32 %v2468, 0.0
        %v2696 = vmax.f32 %v2500, 0.0
        %v2697 = vmax.f32 %v2532, 0.0
        %v2698 = vmax.f32 %v2564, 0.0
        %v2699 = vmax.f32 %v2596, 0.0
        %v2700 = vmax.f32 %v2628, 0.0
        %v2701 = vmax.f32 %v2660, 0.0
        %s2702 = scalar_lea.vmem %s1, 280
        %v2703 = vld [vmem:[%s2702] sm:$0xff]
        %v2704 = vld [vmem:[%s2702 + $0x8] sm:$0xff]
        %v2705 = vld [vmem:[%s2702 + $0x10] sm:$0xff]
        %v2706 = vld [vmem:[%s2702 + $0x18] sm:$0xff]
        %v2707 = vld [vmem:[%s2702 + $0x20] sm:$0xff]
        %s2708 = scalar_lea.vmem %s2, 280
        %v2709 = vld [vmem:[%s2708] sm:$0xff]
        %v2710 = vld [vmem:[%s2708 + $0x8] sm:$0xff]
        %v2711 = vld [vmem:[%s2708 + $0x10] sm:$0xff]
        %v2712 = vld [vmem:[%s2708 + $0x18] sm:$0xff]
        %v2713 = vld [vmem:[%s2708 + $0x20] sm:$0xff]
        %2715 = vset.pattern.permute.xlu0 0
        %2716 = vperm.xlu0 %2715, %v2709
        %v2717 = vpop.permute.xlu0 %2716
        %2720 = vset.pattern.permute.xlu0 0
        %2721 = vperm.xlu0 %2720, %v2710
        %v2722 = vpop.permute.xlu0 %2721
        %2725 = vset.pattern.permute.xlu0 0
        %2726 = vperm.xlu0 %2725, %v2711
        %v2727 = vpop.permute.xlu0 %2726
        %2730 = vset.pattern.permute.xlu0 0
        %2731 = vperm.xlu0 %2730, %v2712
        %v2732 = vpop.permute.xlu0 %2731
        %2735 = vset.pattern.permute.xlu0 0
        %2736 = vperm.xlu0 %2735, %v2713
        %v2737 = vpop.permute.xlu0 %2736
        %v2740 = vsel %vm650, %v2703, 0
        %v2743 = vsel %vm650, %v2704, 0
        %v2746 = vsel %vm650, %v2705, 0
        %v2749 = vsel %vm650, %v2706, 0
        %v2752 = vsel %vm650, %v2707, 0
        %2754 = vmatpush.msra.mxu0 0.0
        %2755 = vmatpush.msra.mxu0 0.0
        %2756 = vmatpush.msra.mxu0 0.0
        %2757 = vmatpush.msra.mxu0 0.0
        %2758 = vmatpush.msra.mxu0 0.0
        %2759 = vmatpush.msra.mxu0 0.0
        %2760 = vmatpush.msra.mxu0 0.0
        %2761 = vmatpush.msra.mxu0 0.0
        %2762 = vmatpush.msra.mxu0 0.0
        %2763 = vmatpush.msra.mxu0 0.0
        %2764 = vmatpush.msra.mxu0 0.0
        %2765 = vmatpush.msra.mxu0 %v2694
        %2766 = vmatpush.msra.mxu0 %v2686
        %2767 = vmatpush.msra.mxu0 %v2678
        %2768 = vmatpush.msra.mxu0 %v2670
        %2769 = vmatpush.msra.mxu0 %v2662
        %2770 = vmatmul.f32.gmra.mxu0 %v2740
        %v2771 = vpop.f32.mrf.mxu0
        %v2772 = vadd.f32 %v2717, %v2771
        %2773 = vmatmul.f32.gmra.mxu0 %v2743
        %v2774 = vpop.f32.mrf.mxu0
        %v2775 = vadd.f32 %v2722, %v2774
        %2776 = vmatmul.f32.gmra.mxu0 %v2746
        %v2777 = vpop.f32.mrf.mxu0
        %v2778 = vadd.f32 %v2727, %v2777
        %2779 = vmatmul.f32.gmra.mxu0 %v2749
        %v2780 = vpop.f32.mrf.mxu0
        %v2781 = vadd.f32 %v2732, %v2780
        %2782 = vmatmul.f32.gmra.mxu0 %v2752
        %v2783 = vpop.f32.mrf.mxu0
        %v2784 = vadd.f32 %v2737, %v2783
        %2785 = vdwg.mxu0
        %2786 = vmatpush.msra.mxu0 0.0
        %2787 = vmatpush.msra.mxu0 0.0
        %2788 = vmatpush.msra.mxu0 0.0
        %2789 = vmatpush.msra.mxu0 0.0
        %2790 = vmatpush.msra.mxu0 0.0
        %2791 = vmatpush.msra.mxu0 0.0
        %2792 = vmatpush.msra.mxu0 0.0
        %2793 = vmatpush.msra.mxu0 0.0
        %2794 = vmatpush.msra.mxu0 0.0
        %2795 = vmatpush.msra.mxu0 0.0
        %2796 = vmatpush.msra.mxu0 0.0
        %2797 = vmatpush.msra.mxu0 %v2695
        %2798 = vmatpush.msra.mxu0 %v2687
        %2799 = vmatpush.msra.mxu0 %v2679
        %2800 = vmatpush.msra.mxu0 %v2671
        %2801 = vmatpush.msra.mxu0 %v2663
        %2802 = vmatmul.f32.gmra.mxu0 %v2740
        %v2803 = vpop.f32.mrf.mxu0
        %v2804 = vadd.f32 %v2717, %v2803
        %2805 = vmatmul.f32.gmra.mxu0 %v2743
        %v2806 = vpop.f32.mrf.mxu0
        %v2807 = vadd.f32 %v2722, %v2806
        %2808 = vmatmul.f32.gmra.mxu0 %v2746
        %v2809 = vpop.f32.mrf.mxu0
        %v2810 = vadd.f32 %v2727, %v2809
        %2811 = vmatmul.f32.gmra.mxu0 %v2749
        %v2812 = vpop.f32.mrf.mxu0
        %v2813 = vadd.f32 %v2732, %v2812
        %2814 = vmatmul.f32.gmra.mxu0 %v2752
        %v2815 = vpop.f32.mrf.mxu0
        %v2816 = vadd.f32 %v2737, %v2815
        %2817 = vdwg.mxu0
        %2818 = vmatpush.msra.mxu0 0.0
        %2819 = vmatpush.msra.mxu0 0.0
        %2820 = vmatpush.msra.mxu0 0.0
        %2821 = vmatpush.msra.mxu0 0.0
        %2822 = vmatpush.msra.mxu0 0.0
        %2823 = vmatpush.msra.mxu0 0.0
        %2824 = vmatpush.msra.mxu0 0.0
        %2825 = vmatpush.msra.mxu0 0.0
        %2826 = vmatpush.msra.mxu0 0.0
        %2827 = vmatpush.msra.mxu0 0.0
        %2828 = vmatpush.msra.mxu0 0.0
        %2829 = vmatpush.msra.mxu0 %v2696
        %2830 = vmatpush.msra.mxu0 %v2688
        %2831 = vmatpush.msra.mxu0 %v2680
        %2832 = vmatpush.msra.mxu0 %v2672
        %2833 = vmatpush.msra.mxu0 %v2664
        %2834 = vmatmul.f32.gmra.mxu0 %v2740
        %v2835 = vpop.f32.mrf.mxu0
        %v2836 = vadd.f32 %v2717, %v2835
        %2837 = vmatmul.f32.gmra.mxu0 %v2743
        %v2838 = vpop.f32.mrf.mxu0
        %v2839 = vadd.f32 %v2722, %v2838
        %2840 = vmatmul.f32.gmra.mxu0 %v2746
        %v2841 = vpop.f32.mrf.mxu0
        %v2842 = vadd.f32 %v2727, %v2841
        %2843 = vmatmul.f32.gmra.mxu0 %v2749
        %v2844 = vpop.f32.mrf.mxu0
        %v2845 = vadd.f32 %v2732, %v2844
        %2846 = vmatmul.f32.gmra.mxu0 %v2752
        %v2847 = vpop.f32.mrf.mxu0
        %v2848 = vadd.f32 %v2737, %v2847
        %2849 = vdwg.mxu0
        %2850 = vmatpush.msra.mxu0 0.0
        %2851 = vmatpush.msra.mxu0 0.0
        %2852 = vmatpush.msra.mxu0 0.0
        %2853 = vmatpush.msra.mxu0 0.0
        %2854 = vmatpush.msra.mxu0 0.0
        %2855 = vmatpush.msra.mxu0 0.0
        %2856 = vmatpush.msra.mxu0 0.0
        %2857 = vmatpush.msra.mxu0 0.0
        %2858 = vmatpush.msra.mxu0 0.0
        %2859 = vmatpush.msra.mxu0 0.0
        %2860 = vmatpush.msra.mxu0 0.0
        %2861 = vmatpush.msra.mxu0 %v2697
        %2862 = vmatpush.msra.mxu0 %v2689
        %2863 = vmatpush.msra.mxu0 %v2681
        %2864 = vmatpush.msra.mxu0 %v2673
        %2865 = vmatpush.msra.mxu0 %v2665
        %2866 = vmatmul.f32.gmra.mxu0 %v2740
        %v2867 = vpop.f32.mrf.mxu0
        %v2868 = vadd.f32 %v2717, %v2867
        %2869 = vmatmul.f32.gmra.mxu0 %v2743
        %v2870 = vpop.f32.mrf.mxu0
        %v2871 = vadd.f32 %v2722, %v2870
        %2872 = vmatmul.f32.gmra.mxu0 %v2746
        %v2873 = vpop.f32.mrf.mxu0
        %v2874 = vadd.f32 %v2727, %v2873
        %2875 = vmatmul.f32.gmra.mxu0 %v2749
        %v2876 = vpop.f32.mrf.mxu0
        %v2877 = vadd.f32 %v2732, %v2876
        %2878 = vmatmul.f32.gmra.mxu0 %v2752
        %v2879 = vpop.f32.mrf.mxu0
        %v2880 = vadd.f32 %v2737, %v2879
        %2881 = vdwg.mxu0
        %2882 = vmatpush.msra.mxu0 0.0
        %2883 = vmatpush.msra.mxu0 0.0
        %2884 = vmatpush.msra.mxu0 0.0
        %2885 = vmatpush.msra.mxu0 0.0
        %2886 = vmatpush.msra.mxu0 0.0
        %2887 = vmatpush.msra.mxu0 0.0
        %2888 = vmatpush.msra.mxu0 0.0
        %2889 = vmatpush.msra.mxu0 0.0
        %2890 = vmatpush.msra.mxu0 0.0
        %2891 = vmatpush.msra.mxu0 0.0
        %2892 = vmatpush.msra.mxu0 0.0
        %2893 = vmatpush.msra.mxu0 %v2698
        %2894 = vmatpush.msra.mxu0 %v2690
        %2895 = vmatpush.msra.mxu0 %v2682
        %2896 = vmatpush.msra.mxu0 %v2674
        %2897 = vmatpush.msra.mxu0 %v2666
        %2898 = vmatmul.f32.gmra.mxu0 %v2740
        %v2899 = vpop.f32.mrf.mxu0
        %v2900 = vadd.f32 %v2717, %v2899
        %2901 = vmatmul.f32.gmra.mxu0 %v2743
        %v2902 = vpop.f32.mrf.mxu0
        %v2903 = vadd.f32 %v2722, %v2902
        %2904 = vmatmul.f32.gmra.mxu0 %v2746
        %v2905 = vpop.f32.mrf.mxu0
        %v2906 = vadd.f32 %v2727, %v2905
        %2907 = vmatmul.f32.gmra.mxu0 %v2749
        %v2908 = vpop.f32.mrf.mxu0
        %v2909 = vadd.f32 %v2732, %v2908
        %2910 = vmatmul.f32.gmra.mxu0 %v2752
        %v2911 = vpop.f32.mrf.mxu0
        %v2912 = vadd.f32 %v2737, %v2911
        %2913 = vdwg.mxu0
        %2914 = vmatpush.msra.mxu0 0.0
        %2915 = vmatpush.msra.mxu0 0.0
        %2916 = vmatpush.msra.mxu0 0.0
        %2917 = vmatpush.msra.mxu0 0.0
        %2918 = vmatpush.msra.mxu0 0.0
        %2919 = vmatpush.msra.mxu0 0.0
        %2920 = vmatpush.msra.mxu0 0.0
        %2921 = vmatpush.msra.mxu0 0.0
        %2922 = vmatpush.msra.mxu0 0.0
        %2923 = vmatpush.msra.mxu0 0.0
        %2924 = vmatpush.msra.mxu0 0.0
        %2925 = vmatpush.msra.mxu0 %v2699
        %2926 = vmatpush.msra.mxu0 %v2691
        %2927 = vmatpush.msra.mxu0 %v2683
        %2928 = vmatpush.msra.mxu0 %v2675
        %2929 = vmatpush.msra.mxu0 %v2667
        %2930 = vmatmul.f32.gmra.mxu0 %v2740
        %v2931 = vpop.f32.mrf.mxu0
        %v2932 = vadd.f32 %v2717, %v2931
        %2933 = vmatmul.f32.gmra.mxu0 %v2743
        %v2934 = vpop.f32.mrf.mxu0
        %v2935 = vadd.f32 %v2722, %v2934
        %2936 = vmatmul.f32.gmra.mxu0 %v2746
        %v2937 = vpop.f32.mrf.mxu0
        %v2938 = vadd.f32 %v2727, %v2937
        %2939 = vmatmul.f32.gmra.mxu0 %v2749
        %v2940 = vpop.f32.mrf.mxu0
        %v2941 = vadd.f32 %v2732, %v2940
        %2942 = vmatmul.f32.gmra.mxu0 %v2752
        %v2943 = vpop.f32.mrf.mxu0
        %v2944 = vadd.f32 %v2737, %v2943
        %2945 = vdwg.mxu0
        %2946 = vmatpush.msra.mxu0 0.0
        %2947 = vmatpush.msra.mxu0 0.0
        %2948 = vmatpush.msra.mxu0 0.0
        %2949 = vmatpush.msra.mxu0 0.0
        %2950 = vmatpush.msra.mxu0 0.0
        %2951 = vmatpush.msra.mxu0 0.0
        %2952 = vmatpush.msra.mxu0 0.0
        %2953 = vmatpush.msra.mxu0 0.0
        %2954 = vmatpush.msra.mxu0 0.0
        %2955 = vmatpush.msra.mxu0 0.0
        %2956 = vmatpush.msra.mxu0 0.0
        %2957 = vmatpush.msra.mxu0 %v2700
        %2958 = vmatpush.msra.mxu0 %v2692
        %2959 = vmatpush.msra.mxu0 %v2684
        %2960 = vmatpush.msra.mxu0 %v2676
        %2961 = vmatpush.msra.mxu0 %v2668
        %2962 = vmatmul.f32.gmra.mxu0 %v2740
        %v2963 = vpop.f32.mrf.mxu0
        %v2964 = vadd.f32 %v2717, %v2963
        %2965 = vmatmul.f32.gmra.mxu0 %v2743
        %v2966 = vpop.f32.mrf.mxu0
        %v2967 = vadd.f32 %v2722, %v2966
        %2968 = vmatmul.f32.gmra.mxu0 %v2746
        %v2969 = vpop.f32.mrf.mxu0
        %v2970 = vadd.f32 %v2727, %v2969
        %2971 = vmatmul.f32.gmra.mxu0 %v2749
        %v2972 = vpop.f32.mrf.mxu0
        %v2973 = vadd.f32 %v2732, %v2972
        %2974 = vmatmul.f32.gmra.mxu0 %v2752
        %v2975 = vpop.f32.mrf.mxu0
        %v2976 = vadd.f32 %v2737, %v2975
        %2977 = vdwg.mxu0
        %2978 = vmatpush.msra.mxu0 0.0
        %2979 = vmatpush.msra.mxu0 0.0
        %2980 = vmatpush.msra.mxu0 0.0
        %2981 = vmatpush.msra.mxu0 0.0
        %2982 = vmatpush.msra.mxu0 0.0
        %2983 = vmatpush.msra.mxu0 0.0
        %2984 = vmatpush.msra.mxu0 0.0
        %2985 = vmatpush.msra.mxu0 0.0
        %2986 = vmatpush.msra.mxu0 0.0
        %2987 = vmatpush.msra.mxu0 0.0
        %2988 = vmatpush.msra.mxu0 0.0
        %2989 = vmatpush.msra.mxu0 %v2701
        %2990 = vmatpush.msra.mxu0 %v2693
        %2991 = vmatpush.msra.mxu0 %v2685
        %2992 = vmatpush.msra.mxu0 %v2677
        %2993 = vmatpush.msra.mxu0 %v2669
        %2994 = vmatmul.f32.gmra.mxu0 %v2740
        %v2995 = vpop.f32.mrf.mxu0
        %v2996 = vadd.f32 %v2717, %v2995
        %2997 = vmatmul.f32.gmra.mxu0 %v2743
        %v2998 = vpop.f32.mrf.mxu0
        %v2999 = vadd.f32 %v2722, %v2998
        %3000 = vmatmul.f32.gmra.mxu0 %v2746
        %v3001 = vpop.f32.mrf.mxu0
        %v3002 = vadd.f32 %v2727, %v3001
        %3003 = vmatmul.f32.gmra.mxu0 %v2749
        %v3004 = vpop.f32.mrf.mxu0
        %v3005 = vadd.f32 %v2732, %v3004
        %3006 = vmatmul.f32.gmra.mxu0 %v2752
        %v3007 = vpop.f32.mrf.mxu0
        %v3008 = vadd.f32 %v2737, %v3007
        %3009 = vdwg.mxu0
        %v3010 = vmax.f32 %v2772, 0.0
        %v3011 = vmax.f32 %v2804, 0.0
        %v3012 = vmax.f32 %v2836, 0.0
        %v3013 = vmax.f32 %v2868, 0.0
        %v3014 = vmax.f32 %v2900, 0.0
        %v3015 = vmax.f32 %v2932, 0.0
        %v3016 = vmax.f32 %v2964, 0.0
        %v3017 = vmax.f32 %v2996, 0.0
        %v3018 = vmax.f32 %v2775, 0.0
        %v3019 = vmax.f32 %v2807, 0.0
        %v3020 = vmax.f32 %v2839, 0.0
        %v3021 = vmax.f32 %v2871, 0.0
        %v3022 = vmax.f32 %v2903, 0.0
        %v3023 = vmax.f32 %v2935, 0.0
        %v3024 = vmax.f32 %v2967, 0.0
        %v3025 = vmax.f32 %v2999, 0.0
        %v3026 = vmax.f32 %v2778, 0.0
        %v3027 = vmax.f32 %v2810, 0.0
        %v3028 = vmax.f32 %v2842, 0.0
        %v3029 = vmax.f32 %v2874, 0.0
        %v3030 = vmax.f32 %v2906, 0.0
        %v3031 = vmax.f32 %v2938, 0.0
        %v3032 = vmax.f32 %v2970, 0.0
        %v3033 = vmax.f32 %v3002, 0.0
        %v3034 = vmax.f32 %v2781, 0.0
        %v3035 = vmax.f32 %v2813, 0.0
        %v3036 = vmax.f32 %v2845, 0.0
        %v3037 = vmax.f32 %v2877, 0.0
        %v3038 = vmax.f32 %v2909, 0.0
        %v3039 = vmax.f32 %v2941, 0.0
        %v3040 = vmax.f32 %v2973, 0.0
        %v3041 = vmax.f32 %v3005, 0.0
        %v3042 = vmax.f32 %v2784, 0.0
        %v3043 = vmax.f32 %v2816, 0.0
        %v3044 = vmax.f32 %v2848, 0.0
        %v3045 = vmax.f32 %v2880, 0.0
        %v3046 = vmax.f32 %v2912, 0.0
        %v3047 = vmax.f32 %v2944, 0.0
        %v3048 = vmax.f32 %v2976, 0.0
        %v3049 = vmax.f32 %v3008, 0.0
        %s3050 = scalar_lea.vmem %s1, 320
        %v3051 = vld [vmem:[%s3050] sm:$0xff]
        %v3052 = vld [vmem:[%s3050 + $0x8] sm:$0xff]
        %v3053 = vld [vmem:[%s3050 + $0x10] sm:$0xff]
        %v3054 = vld [vmem:[%s3050 + $0x18] sm:$0xff]
        %v3055 = vld [vmem:[%s3050 + $0x20] sm:$0xff]
        %s3056 = scalar_lea.vmem %s2, 320
        %v3057 = vld [vmem:[%s3056] sm:$0xff]
        %v3058 = vld [vmem:[%s3056 + $0x8] sm:$0xff]
        %v3059 = vld [vmem:[%s3056 + $0x10] sm:$0xff]
        %v3060 = vld [vmem:[%s3056 + $0x18] sm:$0xff]
        %v3061 = vld [vmem:[%s3056 + $0x20] sm:$0xff]
        %3063 = vset.pattern.permute.xlu0 0
        %3064 = vperm.xlu0 %3063, %v3057
        %v3065 = vpop.permute.xlu0 %3064
        %3068 = vset.pattern.permute.xlu0 0
        %3069 = vperm.xlu0 %3068, %v3058
        %v3070 = vpop.permute.xlu0 %3069
        %3073 = vset.pattern.permute.xlu0 0
        %3074 = vperm.xlu0 %3073, %v3059
        %v3075 = vpop.permute.xlu0 %3074
        %3078 = vset.pattern.permute.xlu0 0
        %3079 = vperm.xlu0 %3078, %v3060
        %v3080 = vpop.permute.xlu0 %3079
        %3083 = vset.pattern.permute.xlu0 0
        %3084 = vperm.xlu0 %3083, %v3061
        %v3085 = vpop.permute.xlu0 %3084
        %v3088 = vsel %vm650, %v3051, 0
        %v3091 = vsel %vm650, %v3052, 0
        %v3094 = vsel %vm650, %v3053, 0
        %v3097 = vsel %vm650, %v3054, 0
        %v3100 = vsel %vm650, %v3055, 0
        %3102 = vmatpush.msra.mxu0 0.0
        %3103 = vmatpush.msra.mxu0 0.0
        %3104 = vmatpush.msra.mxu0 0.0
        %3105 = vmatpush.msra.mxu0 0.0
        %3106 = vmatpush.msra.mxu0 0.0
        %3107 = vmatpush.msra.mxu0 0.0
        %3108 = vmatpush.msra.mxu0 0.0
        %3109 = vmatpush.msra.mxu0 0.0
        %3110 = vmatpush.msra.mxu0 0.0
        %3111 = vmatpush.msra.mxu0 0.0
        %3112 = vmatpush.msra.mxu0 0.0
        %3113 = vmatpush.msra.mxu0 %v3042
        %3114 = vmatpush.msra.mxu0 %v3034
        %3115 = vmatpush.msra.mxu0 %v3026
        %3116 = vmatpush.msra.mxu0 %v3018
        %3117 = vmatpush.msra.mxu0 %v3010
        %3118 = vmatmul.f32.gmra.mxu0 %v3088
        %v3119 = vpop.f32.mrf.mxu0
        %v3120 = vadd.f32 %v3065, %v3119
        %3121 = vmatmul.f32.gmra.mxu0 %v3091
        %v3122 = vpop.f32.mrf.mxu0
        %v3123 = vadd.f32 %v3070, %v3122
        %3124 = vmatmul.f32.gmra.mxu0 %v3094
        %v3125 = vpop.f32.mrf.mxu0
        %v3126 = vadd.f32 %v3075, %v3125
        %3127 = vmatmul.f32.gmra.mxu0 %v3097
        %v3128 = vpop.f32.mrf.mxu0
        %v3129 = vadd.f32 %v3080, %v3128
        %3130 = vmatmul.f32.gmra.mxu0 %v3100
        %v3131 = vpop.f32.mrf.mxu0
        %v3132 = vadd.f32 %v3085, %v3131
        %3133 = vdwg.mxu0
        %3134 = vmatpush.msra.mxu0 0.0
        %3135 = vmatpush.msra.mxu0 0.0
        %3136 = vmatpush.msra.mxu0 0.0
        %3137 = vmatpush.msra.mxu0 0.0
        %3138 = vmatpush.msra.mxu0 0.0
        %3139 = vmatpush.msra.mxu0 0.0
        %3140 = vmatpush.msra.mxu0 0.0
        %3141 = vmatpush.msra.mxu0 0.0
        %3142 = vmatpush.msra.mxu0 0.0
        %3143 = vmatpush.msra.mxu0 0.0
        %3144 = vmatpush.msra.mxu0 0.0
        %3145 = vmatpush.msra.mxu0 %v3043
        %3146 = vmatpush.msra.mxu0 %v3035
        %3147 = vmatpush.msra.mxu0 %v3027
        %3148 = vmatpush.msra.mxu0 %v3019
        %3149 = vmatpush.msra.mxu0 %v3011
        %3150 = vmatmul.f32.gmra.mxu0 %v3088
        %v3151 = vpop.f32.mrf.mxu0
        %v3152 = vadd.f32 %v3065, %v3151
        %3153 = vmatmul.f32.gmra.mxu0 %v3091
        %v3154 = vpop.f32.mrf.mxu0
        %v3155 = vadd.f32 %v3070, %v3154
        %3156 = vmatmul.f32.gmra.mxu0 %v3094
        %v3157 = vpop.f32.mrf.mxu0
        %v3158 = vadd.f32 %v3075, %v3157
        %3159 = vmatmul.f32.gmra.mxu0 %v3097
        %v3160 = vpop.f32.mrf.mxu0
        %v3161 = vadd.f32 %v3080, %v3160
        %3162 = vmatmul.f32.gmra.mxu0 %v3100
        %v3163 = vpop.f32.mrf.mxu0
        %v3164 = vadd.f32 %v3085, %v3163
        %3165 = vdwg.mxu0
        %3166 = vmatpush.msra.mxu0 0.0
        %3167 = vmatpush.msra.mxu0 0.0
        %3168 = vmatpush.msra.mxu0 0.0
        %3169 = vmatpush.msra.mxu0 0.0
        %3170 = vmatpush.msra.mxu0 0.0
        %3171 = vmatpush.msra.mxu0 0.0
        %3172 = vmatpush.msra.mxu0 0.0
        %3173 = vmatpush.msra.mxu0 0.0
        %3174 = vmatpush.msra.mxu0 0.0
        %3175 = vmatpush.msra.mxu0 0.0
        %3176 = vmatpush.msra.mxu0 0.0
        %3177 = vmatpush.msra.mxu0 %v3044
        %3178 = vmatpush.msra.mxu0 %v3036
        %3179 = vmatpush.msra.mxu0 %v3028
        %3180 = vmatpush.msra.mxu0 %v3020
        %3181 = vmatpush.msra.mxu0 %v3012
        %3182 = vmatmul.f32.gmra.mxu0 %v3088
        %v3183 = vpop.f32.mrf.mxu0
        %v3184 = vadd.f32 %v3065, %v3183
        %3185 = vmatmul.f32.gmra.mxu0 %v3091
        %v3186 = vpop.f32.mrf.mxu0
        %v3187 = vadd.f32 %v3070, %v3186
        %3188 = vmatmul.f32.gmra.mxu0 %v3094
        %v3189 = vpop.f32.mrf.mxu0
        %v3190 = vadd.f32 %v3075, %v3189
        %3191 = vmatmul.f32.gmra.mxu0 %v3097
        %v3192 = vpop.f32.mrf.mxu0
        %v3193 = vadd.f32 %v3080, %v3192
        %3194 = vmatmul.f32.gmra.mxu0 %v3100
        %v3195 = vpop.f32.mrf.mxu0
        %v3196 = vadd.f32 %v3085, %v3195
        %3197 = vdwg.mxu0
        %3198 = vmatpush.msra.mxu0 0.0
        %3199 = vmatpush.msra.mxu0 0.0
        %3200 = vmatpush.msra.mxu0 0.0
        %3201 = vmatpush.msra.mxu0 0.0
        %3202 = vmatpush.msra.mxu0 0.0
        %3203 = vmatpush.msra.mxu0 0.0
        %3204 = vmatpush.msra.mxu0 0.0
        %3205 = vmatpush.msra.mxu0 0.0
        %3206 = vmatpush.msra.mxu0 0.0
        %3207 = vmatpush.msra.mxu0 0.0
        %3208 = vmatpush.msra.mxu0 0.0
        %3209 = vmatpush.msra.mxu0 %v3045
        %3210 = vmatpush.msra.mxu0 %v3037
        %3211 = vmatpush.msra.mxu0 %v3029
        %3212 = vmatpush.msra.mxu0 %v3021
        %3213 = vmatpush.msra.mxu0 %v3013
        %3214 = vmatmul.f32.gmra.mxu0 %v3088
        %v3215 = vpop.f32.mrf.mxu0
        %v3216 = vadd.f32 %v3065, %v3215
        %3217 = vmatmul.f32.gmra.mxu0 %v3091
        %v3218 = vpop.f32.mrf.mxu0
        %v3219 = vadd.f32 %v3070, %v3218
        %3220 = vmatmul.f32.gmra.mxu0 %v3094
        %v3221 = vpop.f32.mrf.mxu0
        %v3222 = vadd.f32 %v3075, %v3221
        %3223 = vmatmul.f32.gmra.mxu0 %v3097
        %v3224 = vpop.f32.mrf.mxu0
        %v3225 = vadd.f32 %v3080, %v3224
        %3226 = vmatmul.f32.gmra.mxu0 %v3100
        %v3227 = vpop.f32.mrf.mxu0
        %v3228 = vadd.f32 %v3085, %v3227
        %3229 = vdwg.mxu0
        %3230 = vmatpush.msra.mxu0 0.0
        %3231 = vmatpush.msra.mxu0 0.0
        %3232 = vmatpush.msra.mxu0 0.0
        %3233 = vmatpush.msra.mxu0 0.0
        %3234 = vmatpush.msra.mxu0 0.0
        %3235 = vmatpush.msra.mxu0 0.0
        %3236 = vmatpush.msra.mxu0 0.0
        %3237 = vmatpush.msra.mxu0 0.0
        %3238 = vmatpush.msra.mxu0 0.0
        %3239 = vmatpush.msra.mxu0 0.0
        %3240 = vmatpush.msra.mxu0 0.0
        %3241 = vmatpush.msra.mxu0 %v3046
        %3242 = vmatpush.msra.mxu0 %v3038
        %3243 = vmatpush.msra.mxu0 %v3030
        %3244 = vmatpush.msra.mxu0 %v3022
        %3245 = vmatpush.msra.mxu0 %v3014
        %3246 = vmatmul.f32.gmra.mxu0 %v3088
        %v3247 = vpop.f32.mrf.mxu0
        %v3248 = vadd.f32 %v3065, %v3247
        %3249 = vmatmul.f32.gmra.mxu0 %v3091
        %v3250 = vpop.f32.mrf.mxu0
        %v3251 = vadd.f32 %v3070, %v3250
        %3252 = vmatmul.f32.gmra.mxu0 %v3094
        %v3253 = vpop.f32.mrf.mxu0
        %v3254 = vadd.f32 %v3075, %v3253
        %3255 = vmatmul.f32.gmra.mxu0 %v3097
        %v3256 = vpop.f32.mrf.mxu0
        %v3257 = vadd.f32 %v3080, %v3256
        %3258 = vmatmul.f32.gmra.mxu0 %v3100
        %v3259 = vpop.f32.mrf.mxu0
        %v3260 = vadd.f32 %v3085, %v3259
        %3261 = vdwg.mxu0
        %3262 = vmatpush.msra.mxu0 0.0
        %3263 = vmatpush.msra.mxu0 0.0
        %3264 = vmatpush.msra.mxu0 0.0
        %3265 = vmatpush.msra.mxu0 0.0
        %3266 = vmatpush.msra.mxu0 0.0
        %3267 = vmatpush.msra.mxu0 0.0
        %3268 = vmatpush.msra.mxu0 0.0
        %3269 = vmatpush.msra.mxu0 0.0
        %3270 = vmatpush.msra.mxu0 0.0
        %3271 = vmatpush.msra.mxu0 0.0
        %3272 = vmatpush.msra.mxu0 0.0
        %3273 = vmatpush.msra.mxu0 %v3047
        %3274 = vmatpush.msra.mxu0 %v3039
        %3275 = vmatpush.msra.mxu0 %v3031
        %3276 = vmatpush.msra.mxu0 %v3023
        %3277 = vmatpush.msra.mxu0 %v3015
        %3278 = vmatmul.f32.gmra.mxu0 %v3088
        %v3279 = vpop.f32.mrf.mxu0
        %v3280 = vadd.f32 %v3065, %v3279
        %3281 = vmatmul.f32.gmra.mxu0 %v3091
        %v3282 = vpop.f32.mrf.mxu0
        %v3283 = vadd.f32 %v3070, %v3282
        %3284 = vmatmul.f32.gmra.mxu0 %v3094
        %v3285 = vpop.f32.mrf.mxu0
        %v3286 = vadd.f32 %v3075, %v3285
        %3287 = vmatmul.f32.gmra.mxu0 %v3097
        %v3288 = vpop.f32.mrf.mxu0
        %v3289 = vadd.f32 %v3080, %v3288
        %3290 = vmatmul.f32.gmra.mxu0 %v3100
        %v3291 = vpop.f32.mrf.mxu0
        %v3292 = vadd.f32 %v3085, %v3291
        %3293 = vdwg.mxu0
        %3294 = vmatpush.msra.mxu0 0.0
        %3295 = vmatpush.msra.mxu0 0.0
        %3296 = vmatpush.msra.mxu0 0.0
        %3297 = vmatpush.msra.mxu0 0.0
        %3298 = vmatpush.msra.mxu0 0.0
        %3299 = vmatpush.msra.mxu0 0.0
        %3300 = vmatpush.msra.mxu0 0.0
        %3301 = vmatpush.msra.mxu0 0.0
        %3302 = vmatpush.msra.mxu0 0.0
        %3303 = vmatpush.msra.mxu0 0.0
        %3304 = vmatpush.msra.mxu0 0.0
        %3305 = vmatpush.msra.mxu0 %v3048
        %3306 = vmatpush.msra.mxu0 %v3040
        %3307 = vmatpush.msra.mxu0 %v3032
        %3308 = vmatpush.msra.mxu0 %v3024
        %3309 = vmatpush.msra.mxu0 %v3016
        %3310 = vmatmul.f32.gmra.mxu0 %v3088
        %v3311 = vpop.f32.mrf.mxu0
        %v3312 = vadd.f32 %v3065, %v3311
        %3313 = vmatmul.f32.gmra.mxu0 %v3091
        %v3314 = vpop.f32.mrf.mxu0
        %v3315 = vadd.f32 %v3070, %v3314
        %3316 = vmatmul.f32.gmra.mxu0 %v3094
        %v3317 = vpop.f32.mrf.mxu0
        %v3318 = vadd.f32 %v3075, %v3317
        %3319 = vmatmul.f32.gmra.mxu0 %v3097
        %v3320 = vpop.f32.mrf.mxu0
        %v3321 = vadd.f32 %v3080, %v3320
        %3322 = vmatmul.f32.gmra.mxu0 %v3100
        %v3323 = vpop.f32.mrf.mxu0
        %v3324 = vadd.f32 %v3085, %v3323
        %3325 = vdwg.mxu0
        %3326 = vmatpush.msra.mxu0 0.0
        %3327 = vmatpush.msra.mxu0 0.0
        %3328 = vmatpush.msra.mxu0 0.0
        %3329 = vmatpush.msra.mxu0 0.0
        %3330 = vmatpush.msra.mxu0 0.0
        %3331 = vmatpush.msra.mxu0 0.0
        %3332 = vmatpush.msra.mxu0 0.0
        %3333 = vmatpush.msra.mxu0 0.0
        %3334 = vmatpush.msra.mxu0 0.0
        %3335 = vmatpush.msra.mxu0 0.0
        %3336 = vmatpush.msra.mxu0 0.0
        %3337 = vmatpush.msra.mxu0 %v3049
        %3338 = vmatpush.msra.mxu0 %v3041
        %3339 = vmatpush.msra.mxu0 %v3033
        %3340 = vmatpush.msra.mxu0 %v3025
        %3341 = vmatpush.msra.mxu0 %v3017
        %3342 = vmatmul.f32.gmra.mxu0 %v3088
        %v3343 = vpop.f32.mrf.mxu0
        %v3344 = vadd.f32 %v3065, %v3343
        %3345 = vmatmul.f32.gmra.mxu0 %v3091
        %v3346 = vpop.f32.mrf.mxu0
        %v3347 = vadd.f32 %v3070, %v3346
        %3348 = vmatmul.f32.gmra.mxu0 %v3094
        %v3349 = vpop.f32.mrf.mxu0
        %v3350 = vadd.f32 %v3075, %v3349
        %3351 = vmatmul.f32.gmra.mxu0 %v3097
        %v3352 = vpop.f32.mrf.mxu0
        %v3353 = vadd.f32 %v3080, %v3352
        %3354 = vmatmul.f32.gmra.mxu0 %v3100
        %v3355 = vpop.f32.mrf.mxu0
        %v3356 = vadd.f32 %v3085, %v3355
        %3357 = vdwg.mxu0
        %v3358 = vmax.f32 %v3120, 0.0
        %v3359 = vmax.f32 %v3152, 0.0
        %v3360 = vmax.f32 %v3184, 0.0
        %v3361 = vmax.f32 %v3216, 0.0
        %v3362 = vmax.f32 %v3248, 0.0
        %v3363 = vmax.f32 %v3280, 0.0
        %v3364 = vmax.f32 %v3312, 0.0
        %v3365 = vmax.f32 %v3344, 0.0
        %v3366 = vmax.f32 %v3123, 0.0
        %v3367 = vmax.f32 %v3155, 0.0
        %v3368 = vmax.f32 %v3187, 0.0
        %v3369 = vmax.f32 %v3219, 0.0
        %v3370 = vmax.f32 %v3251, 0.0
        %v3371 = vmax.f32 %v3283, 0.0
        %v3372 = vmax.f32 %v3315, 0.0
        %v3373 = vmax.f32 %v3347, 0.0
        %v3374 = vmax.f32 %v3126, 0.0
        %v3375 = vmax.f32 %v3158, 0.0
        %v3376 = vmax.f32 %v3190, 0.0
        %v3377 = vmax.f32 %v3222, 0.0
        %v3378 = vmax.f32 %v3254, 0.0
        %v3379 = vmax.f32 %v3286, 0.0
        %v3380 = vmax.f32 %v3318, 0.0
        %v3381 = vmax.f32 %v3350, 0.0
        %v3382 = vmax.f32 %v3129, 0.0
        %v3383 = vmax.f32 %v3161, 0.0
        %v3384 = vmax.f32 %v3193, 0.0
        %v3385 = vmax.f32 %v3225, 0.0
        %v3386 = vmax.f32 %v3257, 0.0
        %v3387 = vmax.f32 %v3289, 0.0
        %v3388 = vmax.f32 %v3321, 0.0
        %v3389 = vmax.f32 %v3353, 0.0
        %v3390 = vmax.f32 %v3132, 0.0
        %v3391 = vmax.f32 %v3164, 0.0
        %v3392 = vmax.f32 %v3196, 0.0
        %v3393 = vmax.f32 %v3228, 0.0
        %v3394 = vmax.f32 %v3260, 0.0
        %v3395 = vmax.f32 %v3292, 0.0
        %v3396 = vmax.f32 %v3324, 0.0
        %v3397 = vmax.f32 %v3356, 0.0
        %s3398 = scalar_lea.vmem %s1, 360
        %v3399 = vld [vmem:[%s3398] sm:$0x1]
        %s3400 = scalar_lea.vmem %s2, 360
        %v3401 = vld [vmem:[%s3400] sm:$0x1]
        %3403 = vset.pattern.permute.xlu0 0
        %3404 = vperm.xlu0 %3403, %v3401
        %v3405 = vpop.permute.xlu0 %3404
        %v3408 = vsel %vm650, %v3399, 0
        %3410 = vmatpush.msra.mxu0 0.0
        %3411 = vmatpush.msra.mxu0 0.0
        %3412 = vmatpush.msra.mxu0 0.0
        %3413 = vmatpush.msra.mxu0 0.0
        %3414 = vmatpush.msra.mxu0 0.0
        %3415 = vmatpush.msra.mxu0 0.0
        %3416 = vmatpush.msra.mxu0 0.0
        %3417 = vmatpush.msra.mxu0 0.0
        %3418 = vmatpush.msra.mxu0 0.0
        %3419 = vmatpush.msra.mxu0 0.0
        %3420 = vmatpush.msra.mxu0 0.0
        %3421 = vmatpush.msra.mxu0 %v3390
        %3422 = vmatpush.msra.mxu0 %v3382
        %3423 = vmatpush.msra.mxu0 %v3374
        %3424 = vmatpush.msra.mxu0 %v3366
        %3425 = vmatpush.msra.mxu0 %v3358
        %3426 = vmatmul.f32.gmra.mxu0 %v3408
        %v3427 = vpop.f32.mrf.mxu0
        %v3428 = vadd.f32 %v3405, %v3427
        %3429 = vdwg.mxu0
        %3430 = vmatpush.msra.mxu0 0.0
        %3431 = vmatpush.msra.mxu0 0.0
        %3432 = vmatpush.msra.mxu0 0.0
        %3433 = vmatpush.msra.mxu0 0.0
        %3434 = vmatpush.msra.mxu0 0.0
        %3435 = vmatpush.msra.mxu0 0.0
        %3436 = vmatpush.msra.mxu0 0.0
        %3437 = vmatpush.msra.mxu0 0.0
        %3438 = vmatpush.msra.mxu0 0.0
        %3439 = vmatpush.msra.mxu0 0.0
        %3440 = vmatpush.msra.mxu0 0.0
        %3441 = vmatpush.msra.mxu0 %v3391
        %3442 = vmatpush.msra.mxu0 %v3383
        %3443 = vmatpush.msra.mxu0 %v3375
        %3444 = vmatpush.msra.mxu0 %v3367
        %3445 = vmatpush.msra.mxu0 %v3359
        %3446 = vmatmul.f32.gmra.mxu0 %v3408
        %v3447 = vpop.f32.mrf.mxu0
        %v3448 = vadd.f32 %v3405, %v3447
        %3449 = vdwg.mxu0
        %3450 = vmatpush.msra.mxu0 0.0
        %3451 = vmatpush.msra.mxu0 0.0
        %3452 = vmatpush.msra.mxu0 0.0
        %3453 = vmatpush.msra.mxu0 0.0
        %3454 = vmatpush.msra.mxu0 0.0
        %3455 = vmatpush.msra.mxu0 0.0
        %3456 = vmatpush.msra.mxu0 0.0
        %3457 = vmatpush.msra.mxu0 0.0
        %3458 = vmatpush.msra.mxu0 0.0
        %3459 = vmatpush.msra.mxu0 0.0
        %3460 = vmatpush.msra.mxu0 0.0
        %3461 = vmatpush.msra.mxu0 %v3392
        %3462 = vmatpush.msra.mxu0 %v3384
        %3463 = vmatpush.msra.mxu0 %v3376
        %3464 = vmatpush.msra.mxu0 %v3368
        %3465 = vmatpush.msra.mxu0 %v3360
        %3466 = vmatmul.f32.gmra.mxu0 %v3408
        %v3467 = vpop.f32.mrf.mxu0
        %v3468 = vadd.f32 %v3405, %v3467
        %3469 = vdwg.mxu0
        %3470 = vmatpush.msra.mxu0 0.0
        %3471 = vmatpush.msra.mxu0 0.0
        %3472 = vmatpush.msra.mxu0 0.0
        %3473 = vmatpush.msra.mxu0 0.0
        %3474 = vmatpush.msra.mxu0 0.0
        %3475 = vmatpush.msra.mxu0 0.0
        %3476 = vmatpush.msra.mxu0 0.0
        %3477 = vmatpush.msra.mxu0 0.0
        %3478 = vmatpush.msra.mxu0 0.0
        %3479 = vmatpush.msra.mxu0 0.0
        %3480 = vmatpush.msra.mxu0 0.0
        %3481 = vmatpush.msra.mxu0 %v3393
        %3482 = vmatpush.msra.mxu0 %v3385
        %3483 = vmatpush.msra.mxu0 %v3377
        %3484 = vmatpush.msra.mxu0 %v3369
        %3485 = vmatpush.msra.mxu0 %v3361
        %3486 = vmatmul.f32.gmra.mxu0 %v3408
        %v3487 = vpop.f32.mrf.mxu0
        %v3488 = vadd.f32 %v3405, %v3487
        %3489 = vdwg.mxu0
        %3490 = vmatpush.msra.mxu0 0.0
        %3491 = vmatpush.msra.mxu0 0.0
        %3492 = vmatpush.msra.mxu0 0.0
        %3493 = vmatpush.msra.mxu0 0.0
        %3494 = vmatpush.msra.mxu0 0.0
        %3495 = vmatpush.msra.mxu0 0.0
        %3496 = vmatpush.msra.mxu0 0.0
        %3497 = vmatpush.msra.mxu0 0.0
        %3498 = vmatpush.msra.mxu0 0.0
        %3499 = vmatpush.msra.mxu0 0.0
        %3500 = vmatpush.msra.mxu0 0.0
        %3501 = vmatpush.msra.mxu0 %v3394
        %3502 = vmatpush.msra.mxu0 %v3386
        %3503 = vmatpush.msra.mxu0 %v3378
        %3504 = vmatpush.msra.mxu0 %v3370
        %3505 = vmatpush.msra.mxu0 %v3362
        %3506 = vmatmul.f32.gmra.mxu0 %v3408
        %v3507 = vpop.f32.mrf.mxu0
        %v3508 = vadd.f32 %v3405, %v3507
        %3509 = vdwg.mxu0
        %3510 = vmatpush.msra.mxu0 0.0
        %3511 = vmatpush.msra.mxu0 0.0
        %3512 = vmatpush.msra.mxu0 0.0
        %3513 = vmatpush.msra.mxu0 0.0
        %3514 = vmatpush.msra.mxu0 0.0
        %3515 = vmatpush.msra.mxu0 0.0
        %3516 = vmatpush.msra.mxu0 0.0
        %3517 = vmatpush.msra.mxu0 0.0
        %3518 = vmatpush.msra.mxu0 0.0
        %3519 = vmatpush.msra.mxu0 0.0
        %3520 = vmatpush.msra.mxu0 0.0
        %3521 = vmatpush.msra.mxu0 %v3395
        %3522 = vmatpush.msra.mxu0 %v3387
        %3523 = vmatpush.msra.mxu0 %v3379
        %3524 = vmatpush.msra.mxu0 %v3371
        %3525 = vmatpush.msra.mxu0 %v3363
        %3526 = vmatmul.f32.gmra.mxu0 %v3408
        %v3527 = vpop.f32.mrf.mxu0
        %v3528 = vadd.f32 %v3405, %v3527
        %3529 = vdwg.mxu0
        %3530 = vmatpush.msra.mxu0 0.0
        %3531 = vmatpush.msra.mxu0 0.0
        %3532 = vmatpush.msra.mxu0 0.0
        %3533 = vmatpush.msra.mxu0 0.0
        %3534 = vmatpush.msra.mxu0 0.0
        %3535 = vmatpush.msra.mxu0 0.0
        %3536 = vmatpush.msra.mxu0 0.0
        %3537 = vmatpush.msra.mxu0 0.0
        %3538 = vmatpush.msra.mxu0 0.0
        %3539 = vmatpush.msra.mxu0 0.0
        %3540 = vmatpush.msra.mxu0 0.0
        %3541 = vmatpush.msra.mxu0 %v3396
        %3542 = vmatpush.msra.mxu0 %v3388
        %3543 = vmatpush.msra.mxu0 %v3380
        %3544 = vmatpush.msra.mxu0 %v3372
        %3545 = vmatpush.msra.mxu0 %v3364
        %3546 = vmatmul.f32.gmra.mxu0 %v3408
        %v3547 = vpop.f32.mrf.mxu0
        %v3548 = vadd.f32 %v3405, %v3547
        %3549 = vdwg.mxu0
        %3550 = vmatpush.msra.mxu0 0.0
        %3551 = vmatpush.msra.mxu0 0.0
        %3552 = vmatpush.msra.mxu0 0.0
        %3553 = vmatpush.msra.mxu0 0.0
        %3554 = vmatpush.msra.mxu0 0.0
        %3555 = vmatpush.msra.mxu0 0.0
        %3556 = vmatpush.msra.mxu0 0.0
        %3557 = vmatpush.msra.mxu0 0.0
        %3558 = vmatpush.msra.mxu0 0.0
        %3559 = vmatpush.msra.mxu0 0.0
        %3560 = vmatpush.msra.mxu0 0.0
        %3561 = vmatpush.msra.mxu0 %v3397
        %3562 = vmatpush.msra.mxu0 %v3389
        %3563 = vmatpush.msra.mxu0 %v3381
        %3564 = vmatpush.msra.mxu0 %v3373
        %3565 = vmatpush.msra.mxu0 %v3365
        %3566 = vmatmul.f32.gmra.mxu0 %v3408
        %v3567 = vpop.f32.mrf.mxu0
        %v3568 = vadd.f32 %v3405, %v3567
        %3569 = vdwg.mxu0
        %v3570 = vld [vmem:[%s3] sm:$0xff]
        %v3571 = vld [vmem:[%s3 + $0x8] sm:$0x3]
        %3573 = vset.pattern.permute.xlu0 0
        %3574 = vperm.xlu0 %3573, %v3570
        %v3575 = vpop.permute.xlu0 %3574
        %3578 = vset.pattern.permute.xlu0 0
        %3579 = vperm.xlu0 %3578, %v3571
        %v3580 = vpop.permute.xlu0 %3579
        %v3582 = vperm.slane %v226, 2
        %v3583 = vperm.slane %v226, 6
        %v3584 = vperm.slane %v227, 2
        %v3585 = vperm.slane %v227, 6
        %v3586 = vperm.slane %v228, 2
        %v3587 = vperm.slane %v228, 6
        %v3588 = vperm.slane %v229, 2
        %v3589 = vperm.slane %v229, 6
        %v3598 = vperm.slane %v3582, 2
        %v3599 = vperm.slane %v3583, 2
        %v3600 = vperm.slane %v3584, 2
        %v3601 = vperm.slane %v3585, 2
        %v3602 = vperm.slane %v3586, 2
        %v3603 = vperm.slane %v3587, 2
        %v3604 = vperm.slane %v3588, 2
        %v3605 = vperm.slane %v3589, 2
        %v3606 = vmul.f32 %v3575, %v3598
        %v3607 = vmul.f32 %v3575, %v3599
        %v3608 = vmul.f32 %v3575, %v3600
        %v3609 = vmul.f32 %v3575, %v3601
        %v3610 = vmul.f32 %v3575, %v3602
        %v3611 = vmul.f32 %v3575, %v3603
        %v3612 = vmul.f32 %v3575, %v3604
        %v3613 = vmul.f32 %v3575, %v3605
        %v3614 = vmul.f32 %v3580, %v3598
        %v3615 = vmul.f32 %v3580, %v3599
        %v3616 = vmul.f32 %v3580, %v3600
        %v3617 = vmul.f32 %v3580, %v3601
        %v3618 = vmul.f32 %v3580, %v3602
        %v3619 = vmul.f32 %v3580, %v3603
        %v3620 = vmul.f32 %v3580, %v3604
        %v3621 = vmul.f32 %v3580, %v3605
        %v3622 = vld [vmem:[%s4] sm:$0xff]
        %v3623 = vld [vmem:[%s4 + $0x8] sm:$0x3]
        %3625 = vset.pattern.permute.xlu0 0
        %3626 = vperm.xlu0 %3625, %v3622
        %v3627 = vpop.permute.xlu0 %3626
        %3630 = vset.pattern.permute.xlu0 0
        %3631 = vperm.xlu0 %3630, %v3623
        %v3632 = vpop.permute.xlu0 %3631
        %v3634 = vadd.f32 %v3606, %v3627
        %v3635 = vadd.f32 %v3607, %v3627
        %v3636 = vadd.f32 %v3608, %v3627
        %v3637 = vadd.f32 %v3609, %v3627
        %v3638 = vadd.f32 %v3610, %v3627
        %v3639 = vadd.f32 %v3611, %v3627
        %v3640 = vadd.f32 %v3612, %v3627
        %v3641 = vadd.f32 %v3613, %v3627
        %v3642 = vadd.f32 %v3614, %v3632
        %v3643 = vadd.f32 %v3615, %v3632
        %v3644 = vadd.f32 %v3616, %v3632
        %v3645 = vadd.f32 %v3617, %v3632
        %v3646 = vadd.f32 %v3618, %v3632
        %v3647 = vadd.f32 %v3619, %v3632
        %v3648 = vadd.f32 %v3620, %v3632
        %v3649 = vadd.f32 %v3621, %v3632
        %v3650 = vxor.u32 %v3634, 2147483648
        %v3651 = vxor.u32 %v3635, 2147483648
        %v3652 = vxor.u32 %v3636, 2147483648
        %v3653 = vxor.u32 %v3637, 2147483648
        %v3654 = vxor.u32 %v3638, 2147483648
        %v3655 = vxor.u32 %v3639, 2147483648
        %v3656 = vxor.u32 %v3640, 2147483648
        %v3657 = vxor.u32 %v3641, 2147483648
        %v3658 = vxor.u32 %v3642, 2147483648
        %v3659 = vxor.u32 %v3643, 2147483648
        %v3660 = vxor.u32 %v3644, 2147483648
        %v3661 = vxor.u32 %v3645, 2147483648
        %v3662 = vxor.u32 %v3646, 2147483648
        %v3663 = vxor.u32 %v3647, 2147483648
        %v3664 = vxor.u32 %v3648, 2147483648
        %v3665 = vxor.u32 %v3649, 2147483648
        %v3666 = vmul.f32 %v3650, 1.442695
        %v3667 = vpow.pop %v3666
        %v3668 = vmul.f32 %v3651, 1.442695
        %v3669 = vpow.pop %v3668
        %v3670 = vmul.f32 %v3652, 1.442695
        %v3671 = vpow.pop %v3670
        %v3672 = vmul.f32 %v3653, 1.442695
        %v3673 = vpow.pop %v3672
        %v3674 = vmul.f32 %v3654, 1.442695
        %v3675 = vpow.pop %v3674
        %v3676 = vmul.f32 %v3655, 1.442695
        %v3677 = vpow.pop %v3676
        %v3678 = vmul.f32 %v3656, 1.442695
        %v3679 = vpow.pop %v3678
        %v3680 = vmul.f32 %v3657, 1.442695
        %v3681 = vpow.pop %v3680
        %v3682 = vmul.f32 %v3658, 1.442695
        %v3683 = vpow.pop %v3682
        %v3684 = vmul.f32 %v3659, 1.442695
        %v3685 = vpow.pop %v3684
        %v3686 = vmul.f32 %v3660, 1.442695
        %v3687 = vpow.pop %v3686
        %v3688 = vmul.f32 %v3661, 1.442695
        %v3689 = vpow.pop %v3688
        %v3690 = vmul.f32 %v3662, 1.442695
        %v3691 = vpow.pop %v3690
        %v3692 = vmul.f32 %v3663, 1.442695
        %v3693 = vpow.pop %v3692
        %v3694 = vmul.f32 %v3664, 1.442695
        %v3695 = vpow.pop %v3694
        %v3696 = vmul.f32 %v3665, 1.442695
        %v3697 = vpow.pop %v3696
        %v3698 = vadd.f32 %v3667, 1.0
        %v3699 = vadd.f32 %v3669, 1.0
        %v3700 = vadd.f32 %v3671, 1.0
        %v3701 = vadd.f32 %v3673, 1.0
        %v3702 = vadd.f32 %v3675, 1.0
        %v3703 = vadd.f32 %v3677, 1.0
        %v3704 = vadd.f32 %v3679, 1.0
        %v3705 = vadd.f32 %v3681, 1.0
        %v3706 = vadd.f32 %v3683, 1.0
        %v3707 = vadd.f32 %v3685, 1.0
        %v3708 = vadd.f32 %v3687, 1.0
        %v3709 = vadd.f32 %v3689, 1.0
        %v3710 = vadd.f32 %v3691, 1.0
        %v3711 = vadd.f32 %v3693, 1.0
        %v3712 = vadd.f32 %v3695, 1.0
        %v3713 = vadd.f32 %v3697, 1.0
        %v3714 = vrcp.pop %v3698
        %v3715 = vmul.f32 %v3698, %v3714
        %v3716 = vsub.f32 1.0, %v3715
        %v3717 = vmul.f32 %v3714, %v3716
        %v3718 = vadd.f32 %v3714, %v3717
        %vm3719 = vweird.f32 %v3698
        %vm3720 = vweird.f32 %v3714
        %vm3721 = vmor %vm3719, %vm3720
        %v3722 = vsel %vm3721, %v3714, %v3718
        %v3723 = vand.u32 2147483647, %v3698
        %vm3724 = vcmp.eq.f32.partialorder %v3723, 8.507059e+37
        %v3725 = vand.u32 %v3698, 2147483648
        %v3726 = vor.u32 1.1754944e-38, %v3725
        %v3727 = vsel %vm3724, %v3726, %v3722
        %v3728 = vmul.f32 1.0, %v3727
        %v3729 = vrcp.pop %v3699
        %v3730 = vmul.f32 %v3699, %v3729
        %v3731 = vsub.f32 1.0, %v3730
        %v3732 = vmul.f32 %v3729, %v3731
        %v3733 = vadd.f32 %v3729, %v3732
        %vm3734 = vweird.f32 %v3699
        %vm3735 = vweird.f32 %v3729
        %vm3736 = vmor %vm3734, %vm3735
        %v3737 = vsel %vm3736, %v3729, %v3733
        %v3738 = vand.u32 2147483647, %v3699
        %vm3739 = vcmp.eq.f32.partialorder %v3738, 8.507059e+37
        %v3740 = vand.u32 %v3699, 2147483648
        %v3741 = vor.u32 1.1754944e-38, %v3740
        %v3742 = vsel %vm3739, %v3741, %v3737
        %v3743 = vmul.f32 1.0, %v3742
        %v3744 = vrcp.pop %v3700
        %v3745 = vmul.f32 %v3700, %v3744
        %v3746 = vsub.f32 1.0, %v3745
        %v3747 = vmul.f32 %v3744, %v3746
        %v3748 = vadd.f32 %v3744, %v3747
        %vm3749 = vweird.f32 %v3700
        %vm3750 = vweird.f32 %v3744
        %vm3751 = vmor %vm3749, %vm3750
        %v3752 = vsel %vm3751, %v3744, %v3748
        %v3753 = vand.u32 2147483647, %v3700
        %vm3754 = vcmp.eq.f32.partialorder %v3753, 8.507059e+37
        %v3755 = vand.u32 %v3700, 2147483648
        %v3756 = vor.u32 1.1754944e-38, %v3755
        %v3757 = vsel %vm3754, %v3756, %v3752
        %v3758 = vmul.f32 1.0, %v3757
        %v3759 = vrcp.pop %v3701
        %v3760 = vmul.f32 %v3701, %v3759
        %v3761 = vsub.f32 1.0, %v3760
        %v3762 = vmul.f32 %v3759, %v3761
        %v3763 = vadd.f32 %v3759, %v3762
        %vm3764 = vweird.f32 %v3701
        %vm3765 = vweird.f32 %v3759
        %vm3766 = vmor %vm3764, %vm3765
        %v3767 = vsel %vm3766, %v3759, %v3763
        %v3768 = vand.u32 2147483647, %v3701
        %vm3769 = vcmp.eq.f32.partialorder %v3768, 8.507059e+37
        %v3770 = vand.u32 %v3701, 2147483648
        %v3771 = vor.u32 1.1754944e-38, %v3770
        %v3772 = vsel %vm3769, %v3771, %v3767
        %v3773 = vmul.f32 1.0, %v3772
        %v3774 = vrcp.pop %v3702
        %v3775 = vmul.f32 %v3702, %v3774
        %v3776 = vsub.f32 1.0, %v3775
        %v3777 = vmul.f32 %v3774, %v3776
        %v3778 = vadd.f32 %v3774, %v3777
        %vm3779 = vweird.f32 %v3702
        %vm3780 = vweird.f32 %v3774
        %vm3781 = vmor %vm3779, %vm3780
        %v3782 = vsel %vm3781, %v3774, %v3778
        %v3783 = vand.u32 2147483647, %v3702
        %vm3784 = vcmp.eq.f32.partialorder %v3783, 8.507059e+37
        %v3785 = vand.u32 %v3702, 2147483648
        %v3786 = vor.u32 1.1754944e-38, %v3785
        %v3787 = vsel %vm3784, %v3786, %v3782
        %v3788 = vmul.f32 1.0, %v3787
        %v3789 = vrcp.pop %v3703
        %v3790 = vmul.f32 %v3703, %v3789
        %v3791 = vsub.f32 1.0, %v3790
        %v3792 = vmul.f32 %v3789, %v3791
        %v3793 = vadd.f32 %v3789, %v3792
        %vm3794 = vweird.f32 %v3703
        %vm3795 = vweird.f32 %v3789
        %vm3796 = vmor %vm3794, %vm3795
        %v3797 = vsel %vm3796, %v3789, %v3793
        %v3798 = vand.u32 2147483647, %v3703
        %vm3799 = vcmp.eq.f32.partialorder %v3798, 8.507059e+37
        %v3800 = vand.u32 %v3703, 2147483648
        %v3801 = vor.u32 1.1754944e-38, %v3800
        %v3802 = vsel %vm3799, %v3801, %v3797
        %v3803 = vmul.f32 1.0, %v3802
        %v3804 = vrcp.pop %v3704
        %v3805 = vmul.f32 %v3704, %v3804
        %v3806 = vsub.f32 1.0, %v3805
        %v3807 = vmul.f32 %v3804, %v3806
        %v3808 = vadd.f32 %v3804, %v3807
        %vm3809 = vweird.f32 %v3704
        %vm3810 = vweird.f32 %v3804
        %vm3811 = vmor %vm3809, %vm3810
        %v3812 = vsel %vm3811, %v3804, %v3808
        %v3813 = vand.u32 2147483647, %v3704
        %vm3814 = vcmp.eq.f32.partialorder %v3813, 8.507059e+37
        %v3815 = vand.u32 %v3704, 2147483648
        %v3816 = vor.u32 1.1754944e-38, %v3815
        %v3817 = vsel %vm3814, %v3816, %v3812
        %v3818 = vmul.f32 1.0, %v3817
        %v3819 = vrcp.pop %v3705
        %v3820 = vmul.f32 %v3705, %v3819
        %v3821 = vsub.f32 1.0, %v3820
        %v3822 = vmul.f32 %v3819, %v3821
        %v3823 = vadd.f32 %v3819, %v3822
        %vm3824 = vweird.f32 %v3705
        %vm3825 = vweird.f32 %v3819
        %vm3826 = vmor %vm3824, %vm3825
        %v3827 = vsel %vm3826, %v3819, %v3823
        %v3828 = vand.u32 2147483647, %v3705
        %vm3829 = vcmp.eq.f32.partialorder %v3828, 8.507059e+37
        %v3830 = vand.u32 %v3705, 2147483648
        %v3831 = vor.u32 1.1754944e-38, %v3830
        %v3832 = vsel %vm3829, %v3831, %v3827
        %v3833 = vmul.f32 1.0, %v3832
        %v3834 = vrcp.pop %v3706
        %v3835 = vmul.f32 %v3706, %v3834
        %v3836 = vsub.f32 1.0, %v3835
        %v3837 = vmul.f32 %v3834, %v3836
        %v3838 = vadd.f32 %v3834, %v3837
        %vm3839 = vweird.f32 %v3706
        %vm3840 = vweird.f32 %v3834
        %vm3841 = vmor %vm3839, %vm3840
        %v3842 = vsel %vm3841, %v3834, %v3838
        %v3843 = vand.u32 2147483647, %v3706
        %vm3844 = vcmp.eq.f32.partialorder %v3843, 8.507059e+37
        %v3845 = vand.u32 %v3706, 2147483648
        %v3846 = vor.u32 1.1754944e-38, %v3845
        %v3847 = vsel %vm3844, %v3846, %v3842
        %v3848 = vmul.f32 1.0, %v3847
        %v3849 = vrcp.pop %v3707
        %v3850 = vmul.f32 %v3707, %v3849
        %v3851 = vsub.f32 1.0, %v3850
        %v3852 = vmul.f32 %v3849, %v3851
        %v3853 = vadd.f32 %v3849, %v3852
        %vm3854 = vweird.f32 %v3707
        %vm3855 = vweird.f32 %v3849
        %vm3856 = vmor %vm3854, %vm3855
        %v3857 = vsel %vm3856, %v3849, %v3853
        %v3858 = vand.u32 2147483647, %v3707
        %vm3859 = vcmp.eq.f32.partialorder %v3858, 8.507059e+37
        %v3860 = vand.u32 %v3707, 2147483648
        %v3861 = vor.u32 1.1754944e-38, %v3860
        %v3862 = vsel %vm3859, %v3861, %v3857
        %v3863 = vmul.f32 1.0, %v3862
        %v3864 = vrcp.pop %v3708
        %v3865 = vmul.f32 %v3708, %v3864
        %v3866 = vsub.f32 1.0, %v3865
        %v3867 = vmul.f32 %v3864, %v3866
        %v3868 = vadd.f32 %v3864, %v3867
        %vm3869 = vweird.f32 %v3708
        %vm3870 = vweird.f32 %v3864
        %vm3871 = vmor %vm3869, %vm3870
        %v3872 = vsel %vm3871, %v3864, %v3868
        %v3873 = vand.u32 2147483647, %v3708
        %vm3874 = vcmp.eq.f32.partialorder %v3873, 8.507059e+37
        %v3875 = vand.u32 %v3708, 2147483648
        %v3876 = vor.u32 1.1754944e-38, %v3875
        %v3877 = vsel %vm3874, %v3876, %v3872
        %v3878 = vmul.f32 1.0, %v3877
        %v3879 = vrcp.pop %v3709
        %v3880 = vmul.f32 %v3709, %v3879
        %v3881 = vsub.f32 1.0, %v3880
        %v3882 = vmul.f32 %v3879, %v3881
        %v3883 = vadd.f32 %v3879, %v3882
        %vm3884 = vweird.f32 %v3709
        %vm3885 = vweird.f32 %v3879
        %vm3886 = vmor %vm3884, %vm3885
        %v3887 = vsel %vm3886, %v3879, %v3883
        %v3888 = vand.u32 2147483647, %v3709
        %vm3889 = vcmp.eq.f32.partialorder %v3888, 8.507059e+37
        %v3890 = vand.u32 %v3709, 2147483648
        %v3891 = vor.u32 1.1754944e-38, %v3890
        %v3892 = vsel %vm3889, %v3891, %v3887
        %v3893 = vmul.f32 1.0, %v3892
        %v3894 = vrcp.pop %v3710
        %v3895 = vmul.f32 %v3710, %v3894
        %v3896 = vsub.f32 1.0, %v3895
        %v3897 = vmul.f32 %v3894, %v3896
        %v3898 = vadd.f32 %v3894, %v3897
        %vm3899 = vweird.f32 %v3710
        %vm3900 = vweird.f32 %v3894
        %vm3901 = vmor %vm3899, %vm3900
        %v3902 = vsel %vm3901, %v3894, %v3898
        %v3903 = vand.u32 2147483647, %v3710
        %vm3904 = vcmp.eq.f32.partialorder %v3903, 8.507059e+37
        %v3905 = vand.u32 %v3710, 2147483648
        %v3906 = vor.u32 1.1754944e-38, %v3905
        %v3907 = vsel %vm3904, %v3906, %v3902
        %v3908 = vmul.f32 1.0, %v3907
        %v3909 = vrcp.pop %v3711
        %v3910 = vmul.f32 %v3711, %v3909
        %v3911 = vsub.f32 1.0, %v3910
        %v3912 = vmul.f32 %v3909, %v3911
        %v3913 = vadd.f32 %v3909, %v3912
        %vm3914 = vweird.f32 %v3711
        %vm3915 = vweird.f32 %v3909
        %vm3916 = vmor %vm3914, %vm3915
        %v3917 = vsel %vm3916, %v3909, %v3913
        %v3918 = vand.u32 2147483647, %v3711
        %vm3919 = vcmp.eq.f32.partialorder %v3918, 8.507059e+37
        %v3920 = vand.u32 %v3711, 2147483648
        %v3921 = vor.u32 1.1754944e-38, %v3920
        %v3922 = vsel %vm3919, %v3921, %v3917
        %v3923 = vmul.f32 1.0, %v3922
        %v3924 = vrcp.pop %v3712
        %v3925 = vmul.f32 %v3712, %v3924
        %v3926 = vsub.f32 1.0, %v3925
        %v3927 = vmul.f32 %v3924, %v3926
        %v3928 = vadd.f32 %v3924, %v3927
        %vm3929 = vweird.f32 %v3712
        %vm3930 = vweird.f32 %v3924
        %vm3931 = vmor %vm3929, %vm3930
        %v3932 = vsel %vm3931, %v3924, %v3928
        %v3933 = vand.u32 2147483647, %v3712
        %vm3934 = vcmp.eq.f32.partialorder %v3933, 8.507059e+37
        %v3935 = vand.u32 %v3712, 2147483648
        %v3936 = vor.u32 1.1754944e-38, %v3935
        %v3937 = vsel %vm3934, %v3936, %v3932
        %v3938 = vmul.f32 1.0, %v3937
        %v3939 = vrcp.pop %v3713
        %v3940 = vmul.f32 %v3713, %v3939
        %v3941 = vsub.f32 1.0, %v3940
        %v3942 = vmul.f32 %v3939, %v3941
        %v3943 = vadd.f32 %v3939, %v3942
        %vm3944 = vweird.f32 %v3713
        %vm3945 = vweird.f32 %v3939
        %vm3946 = vmor %vm3944, %vm3945
        %v3947 = vsel %vm3946, %v3939, %v3943
        %v3948 = vand.u32 2147483647, %v3713
        %vm3949 = vcmp.eq.f32.partialorder %v3948, 8.507059e+37
        %v3950 = vand.u32 %v3713, 2147483648
        %v3951 = vor.u32 1.1754944e-38, %v3950
        %v3952 = vsel %vm3949, %v3951, %v3947
        %v3953 = vmul.f32 1.0, %v3952
        %s3954 = scalar_lea.vmem %s3, 16
        %v3955 = vld [vmem:[%s3954] sm:$0xff]
        %v3956 = vld [vmem:[%s3954 + $0x8] sm:$0x3]
        %s3957 = scalar_lea.vmem %s4, 16
        %v3958 = vld [vmem:[%s3957] sm:$0xff]
        %v3959 = vld [vmem:[%s3957 + $0x8] sm:$0x3]
        %3961 = vset.pattern.permute.xlu0 0
        %3962 = vperm.xlu0 %3961, %v3958
        %v3963 = vpop.permute.xlu0 %3962
        %3966 = vset.pattern.permute.xlu0 0
        %3967 = vperm.xlu0 %3966, %v3959
        %v3968 = vpop.permute.xlu0 %3967
        %vm3970 = vcmask 80896
        %v3972 = vsel %vm3970, %v3955, 0
        %v3975 = vsel %vm3970, %v3956, 0
        %vm3977 = vcmask 1041408
        %v3979 = vsel %vm3977, %v3848, 0
        %v3982 = vsel %vm3977, %v3863, 0
        %v3985 = vsel %vm3977, %v3878, 0
        %v3988 = vsel %vm3977, %v3893, 0
        %v3991 = vsel %vm3977, %v3908, 0
        %v3994 = vsel %vm3977, %v3923, 0
        %v3997 = vsel %vm3977, %v3938, 0
        %v4000 = vsel %vm3977, %v3953, 0
        %4002 = vmatpush.msra.mxu0 0.0
        %4003 = vmatpush.msra.mxu0 0.0
        %4004 = vmatpush.msra.mxu0 0.0
        %4005 = vmatpush.msra.mxu0 0.0
        %4006 = vmatpush.msra.mxu0 0.0
        %4007 = vmatpush.msra.mxu0 0.0
        %4008 = vmatpush.msra.mxu0 0.0
        %4009 = vmatpush.msra.mxu0 0.0
        %4010 = vmatpush.msra.mxu0 0.0
        %4011 = vmatpush.msra.mxu0 0.0
        %4012 = vmatpush.msra.mxu0 0.0
        %4013 = vmatpush.msra.mxu0 0.0
        %4014 = vmatpush.msra.mxu0 0.0
        %4015 = vmatpush.msra.mxu0 0.0
        %4016 = vmatpush.msra.mxu0 %v3979
        %4017 = vmatpush.msra.mxu0 %v3728
        %4018 = vmatmul.f32.gmra.mxu0 %v3972
        %v4019 = vpop.f32.mrf.mxu0
        %v4020 = vadd.f32 %v3963, %v4019
        %4021 = vmatmul.f32.gmra.mxu0 %v3975
        %v4022 = vpop.f32.mrf.mxu0
        %v4023 = vadd.f32 %v3968, %v4022
        %4024 = vdwg.mxu0
        %4025 = vmatpush.msra.mxu0 0.0
        %4026 = vmatpush.msra.mxu0 0.0
        %4027 = vmatpush.msra.mxu0 0.0
        %4028 = vmatpush.msra.mxu0 0.0
        %4029 = vmatpush.msra.mxu0 0.0
        %4030 = vmatpush.msra.mxu0 0.0
        %4031 = vmatpush.msra.mxu0 0.0
        %4032 = vmatpush.msra.mxu0 0.0
        %4033 = vmatpush.msra.mxu0 0.0
        %4034 = vmatpush.msra.mxu0 0.0
        %4035 = vmatpush.msra.mxu0 0.0
        %4036 = vmatpush.msra.mxu0 0.0
        %4037 = vmatpush.msra.mxu0 0.0
        %4038 = vmatpush.msra.mxu0 0.0
        %4039 = vmatpush.msra.mxu0 %v3982
        %4040 = vmatpush.msra.mxu0 %v3743
        %4041 = vmatmul.f32.gmra.mxu0 %v3972
        %v4042 = vpop.f32.mrf.mxu0
        %v4043 = vadd.f32 %v3963, %v4042
        %4044 = vmatmul.f32.gmra.mxu0 %v3975
        %v4045 = vpop.f32.mrf.mxu0
        %v4046 = vadd.f32 %v3968, %v4045
        %4047 = vdwg.mxu0
        %4048 = vmatpush.msra.mxu0 0.0
        %4049 = vmatpush.msra.mxu0 0.0
        %4050 = vmatpush.msra.mxu0 0.0
        %4051 = vmatpush.msra.mxu0 0.0
        %4052 = vmatpush.msra.mxu0 0.0
        %4053 = vmatpush.msra.mxu0 0.0
        %4054 = vmatpush.msra.mxu0 0.0
        %4055 = vmatpush.msra.mxu0 0.0
        %4056 = vmatpush.msra.mxu0 0.0
        %4057 = vmatpush.msra.mxu0 0.0
        %4058 = vmatpush.msra.mxu0 0.0
        %4059 = vmatpush.msra.mxu0 0.0
        %4060 = vmatpush.msra.mxu0 0.0
        %4061 = vmatpush.msra.mxu0 0.0
        %4062 = vmatpush.msra.mxu0 %v3985
        %4063 = vmatpush.msra.mxu0 %v3758
        %4064 = vmatmul.f32.gmra.mxu0 %v3972
        %v4065 = vpop.f32.mrf.mxu0
        %v4066 = vadd.f32 %v3963, %v4065
        %4067 = vmatmul.f32.gmra.mxu0 %v3975
        %v4068 = vpop.f32.mrf.mxu0
        %v4069 = vadd.f32 %v3968, %v4068
        %4070 = vdwg.mxu0
        %4071 = vmatpush.msra.mxu0 0.0
        %4072 = vmatpush.msra.mxu0 0.0
        %4073 = vmatpush.msra.mxu0 0.0
        %4074 = vmatpush.msra.mxu0 0.0
        %4075 = vmatpush.msra.mxu0 0.0
        %4076 = vmatpush.msra.mxu0 0.0
        %4077 = vmatpush.msra.mxu0 0.0
        %4078 = vmatpush.msra.mxu0 0.0
        %4079 = vmatpush.msra.mxu0 0.0
        %4080 = vmatpush.msra.mxu0 0.0
        %4081 = vmatpush.msra.mxu0 0.0
        %4082 = vmatpush.msra.mxu0 0.0
        %4083 = vmatpush.msra.mxu0 0.0
        %4084 = vmatpush.msra.mxu0 0.0
        %4085 = vmatpush.msra.mxu0 %v3988
        %4086 = vmatpush.msra.mxu0 %v3773
        %4087 = vmatmul.f32.gmra.mxu0 %v3972
        %v4088 = vpop.f32.mrf.mxu0
        %v4089 = vadd.f32 %v3963, %v4088
        %4090 = vmatmul.f32.gmra.mxu0 %v3975
        %v4091 = vpop.f32.mrf.mxu0
        %v4092 = vadd.f32 %v3968, %v4091
        %4093 = vdwg.mxu0
        %4094 = vmatpush.msra.mxu0 0.0
        %4095 = vmatpush.msra.mxu0 0.0
        %4096 = vmatpush.msra.mxu0 0.0
        %4097 = vmatpush.msra.mxu0 0.0
        %4098 = vmatpush.msra.mxu0 0.0
        %4099 = vmatpush.msra.mxu0 0.0
        %4100 = vmatpush.msra.mxu0 0.0
        %4101 = vmatpush.msra.mxu0 0.0
        %4102 = vmatpush.msra.mxu0 0.0
        %4103 = vmatpush.msra.mxu0 0.0
        %4104 = vmatpush.msra.mxu0 0.0
        %4105 = vmatpush.msra.mxu0 0.0
        %4106 = vmatpush.msra.mxu0 0.0
        %4107 = vmatpush.msra.mxu0 0.0
        %4108 = vmatpush.msra.mxu0 %v3991
        %4109 = vmatpush.msra.mxu0 %v3788
        %4110 = vmatmul.f32.gmra.mxu0 %v3972
        %v4111 = vpop.f32.mrf.mxu0
        %v4112 = vadd.f32 %v3963, %v4111
        %4113 = vmatmul.f32.gmra.mxu0 %v3975
        %v4114 = vpop.f32.mrf.mxu0
        %v4115 = vadd.f32 %v3968, %v4114
        %4116 = vdwg.mxu0
        %4117 = vmatpush.msra.mxu0 0.0
        %4118 = vmatpush.msra.mxu0 0.0
        %4119 = vmatpush.msra.mxu0 0.0
        %4120 = vmatpush.msra.mxu0 0.0
        %4121 = vmatpush.msra.mxu0 0.0
        %4122 = vmatpush.msra.mxu0 0.0
        %4123 = vmatpush.msra.mxu0 0.0
        %4124 = vmatpush.msra.mxu0 0.0
        %4125 = vmatpush.msra.mxu0 0.0
        %4126 = vmatpush.msra.mxu0 0.0
        %4127 = vmatpush.msra.mxu0 0.0
        %4128 = vmatpush.msra.mxu0 0.0
        %4129 = vmatpush.msra.mxu0 0.0
        %4130 = vmatpush.msra.mxu0 0.0
        %4131 = vmatpush.msra.mxu0 %v3994
        %4132 = vmatpush.msra.mxu0 %v3803
        %4133 = vmatmul.f32.gmra.mxu0 %v3972
        %v4134 = vpop.f32.mrf.mxu0
        %v4135 = vadd.f32 %v3963, %v4134
        %4136 = vmatmul.f32.gmra.mxu0 %v3975
        %v4137 = vpop.f32.mrf.mxu0
        %v4138 = vadd.f32 %v3968, %v4137
        %4139 = vdwg.mxu0
        %4140 = vmatpush.msra.mxu0 0.0
        %4141 = vmatpush.msra.mxu0 0.0
        %4142 = vmatpush.msra.mxu0 0.0
        %4143 = vmatpush.msra.mxu0 0.0
        %4144 = vmatpush.msra.mxu0 0.0
        %4145 = vmatpush.msra.mxu0 0.0
        %4146 = vmatpush.msra.mxu0 0.0
        %4147 = vmatpush.msra.mxu0 0.0
        %4148 = vmatpush.msra.mxu0 0.0
        %4149 = vmatpush.msra.mxu0 0.0
        %4150 = vmatpush.msra.mxu0 0.0
        %4151 = vmatpush.msra.mxu0 0.0
        %4152 = vmatpush.msra.mxu0 0.0
        %4153 = vmatpush.msra.mxu0 0.0
        %4154 = vmatpush.msra.mxu0 %v3997
        %4155 = vmatpush.msra.mxu0 %v3818
        %4156 = vmatmul.f32.gmra.mxu0 %v3972
        %v4157 = vpop.f32.mrf.mxu0
        %v4158 = vadd.f32 %v3963, %v4157
        %4159 = vmatmul.f32.gmra.mxu0 %v3975
        %v4160 = vpop.f32.mrf.mxu0
        %v4161 = vadd.f32 %v3968, %v4160
        %4162 = vdwg.mxu0
        %4163 = vmatpush.msra.mxu0 0.0
        %4164 = vmatpush.msra.mxu0 0.0
        %4165 = vmatpush.msra.mxu0 0.0
        %4166 = vmatpush.msra.mxu0 0.0
        %4167 = vmatpush.msra.mxu0 0.0
        %4168 = vmatpush.msra.mxu0 0.0
        %4169 = vmatpush.msra.mxu0 0.0
        %4170 = vmatpush.msra.mxu0 0.0
        %4171 = vmatpush.msra.mxu0 0.0
        %4172 = vmatpush.msra.mxu0 0.0
        %4173 = vmatpush.msra.mxu0 0.0
        %4174 = vmatpush.msra.mxu0 0.0
        %4175 = vmatpush.msra.mxu0 0.0
        %4176 = vmatpush.msra.mxu0 0.0
        %4177 = vmatpush.msra.mxu0 %v4000
        %4178 = vmatpush.msra.mxu0 %v3833
        %4179 = vmatmul.f32.gmra.mxu0 %v3972
        %v4180 = vpop.f32.mrf.mxu0
        %v4181 = vadd.f32 %v3963, %v4180
        %4182 = vmatmul.f32.gmra.mxu0 %v3975
        %v4183 = vpop.f32.mrf.mxu0
        %v4184 = vadd.f32 %v3968, %v4183
        %4185 = vdwg.mxu0
        %v4186 = vxor.u32 %v4020, 2147483648
        %v4187 = vxor.u32 %v4043, 2147483648
        %v4188 = vxor.u32 %v4066, 2147483648
        %v4189 = vxor.u32 %v4089, 2147483648
        %v4190 = vxor.u32 %v4112, 2147483648
        %v4191 = vxor.u32 %v4135, 2147483648
        %v4192 = vxor.u32 %v4158, 2147483648
        %v4193 = vxor.u32 %v4181, 2147483648
        %v4194 = vxor.u32 %v4023, 2147483648
        %v4195 = vxor.u32 %v4046, 2147483648
        %v4196 = vxor.u32 %v4069, 2147483648
        %v4197 = vxor.u32 %v4092, 2147483648
        %v4198 = vxor.u32 %v4115, 2147483648
        %v4199 = vxor.u32 %v4138, 2147483648
        %v4200 = vxor.u32 %v4161, 2147483648
        %v4201 = vxor.u32 %v4184, 2147483648
        %v4202 = vmul.f32 %v4186, 1.442695
        %v4203 = vpow.pop %v4202
        %v4204 = vmul.f32 %v4187, 1.442695
        %v4205 = vpow.pop %v4204
        %v4206 = vmul.f32 %v4188, 1.442695
        %v4207 = vpow.pop %v4206
        %v4208 = vmul.f32 %v4189, 1.442695
        %v4209 = vpow.pop %v4208
        %v4210 = vmul.f32 %v4190, 1.442695
        %v4211 = vpow.pop %v4210
        %v4212 = vmul.f32 %v4191, 1.442695
        %v4213 = vpow.pop %v4212
        %v4214 = vmul.f32 %v4192, 1.442695
        %v4215 = vpow.pop %v4214
        %v4216 = vmul.f32 %v4193, 1.442695
        %v4217 = vpow.pop %v4216
        %v4218 = vmul.f32 %v4194, 1.442695
        %v4219 = vpow.pop %v4218
        %v4220 = vmul.f32 %v4195, 1.442695
        %v4221 = vpow.pop %v4220
        %v4222 = vmul.f32 %v4196, 1.442695
        %v4223 = vpow.pop %v4222
        %v4224 = vmul.f32 %v4197, 1.442695
        %v4225 = vpow.pop %v4224
        %v4226 = vmul.f32 %v4198, 1.442695
        %v4227 = vpow.pop %v4226
        %v4228 = vmul.f32 %v4199, 1.442695
        %v4229 = vpow.pop %v4228
        %v4230 = vmul.f32 %v4200, 1.442695
        %v4231 = vpow.pop %v4230
        %v4232 = vmul.f32 %v4201, 1.442695
        %v4233 = vpow.pop %v4232
        %v4234 = vadd.f32 %v4203, 1.0
        %v4235 = vadd.f32 %v4205, 1.0
        %v4236 = vadd.f32 %v4207, 1.0
        %v4237 = vadd.f32 %v4209, 1.0
        %v4238 = vadd.f32 %v4211, 1.0
        %v4239 = vadd.f32 %v4213, 1.0
        %v4240 = vadd.f32 %v4215, 1.0
        %v4241 = vadd.f32 %v4217, 1.0
        %v4242 = vadd.f32 %v4219, 1.0
        %v4243 = vadd.f32 %v4221, 1.0
        %v4244 = vadd.f32 %v4223, 1.0
        %v4245 = vadd.f32 %v4225, 1.0
        %v4246 = vadd.f32 %v4227, 1.0
        %v4247 = vadd.f32 %v4229, 1.0
        %v4248 = vadd.f32 %v4231, 1.0
        %v4249 = vadd.f32 %v4233, 1.0
        %v4250 = vrcp.pop %v4234
        %v4251 = vmul.f32 %v4234, %v4250
        %v4252 = vsub.f32 1.0, %v4251
        %v4253 = vmul.f32 %v4250, %v4252
        %v4254 = vadd.f32 %v4250, %v4253
        %vm4255 = vweird.f32 %v4234
        %vm4256 = vweird.f32 %v4250
        %vm4257 = vmor %vm4255, %vm4256
        %v4258 = vsel %vm4257, %v4250, %v4254
        %v4259 = vand.u32 2147483647, %v4234
        %vm4260 = vcmp.eq.f32.partialorder %v4259, 8.507059e+37
        %v4261 = vand.u32 %v4234, 2147483648
        %v4262 = vor.u32 1.1754944e-38, %v4261
        %v4263 = vsel %vm4260, %v4262, %v4258
        %v4264 = vmul.f32 1.0, %v4263
        %v4265 = vrcp.pop %v4235
        %v4266 = vmul.f32 %v4235, %v4265
        %v4267 = vsub.f32 1.0, %v4266
        %v4268 = vmul.f32 %v4265, %v4267
        %v4269 = vadd.f32 %v4265, %v4268
        %vm4270 = vweird.f32 %v4235
        %vm4271 = vweird.f32 %v4265
        %vm4272 = vmor %vm4270, %vm4271
        %v4273 = vsel %vm4272, %v4265, %v4269
        %v4274 = vand.u32 2147483647, %v4235
        %vm4275 = vcmp.eq.f32.partialorder %v4274, 8.507059e+37
        %v4276 = vand.u32 %v4235, 2147483648
        %v4277 = vor.u32 1.1754944e-38, %v4276
        %v4278 = vsel %vm4275, %v4277, %v4273
        %v4279 = vmul.f32 1.0, %v4278
        %v4280 = vrcp.pop %v4236
        %v4281 = vmul.f32 %v4236, %v4280
        %v4282 = vsub.f32 1.0, %v4281
        %v4283 = vmul.f32 %v4280, %v4282
        %v4284 = vadd.f32 %v4280, %v4283
        %vm4285 = vweird.f32 %v4236
        %vm4286 = vweird.f32 %v4280
        %vm4287 = vmor %vm4285, %vm4286
        %v4288 = vsel %vm4287, %v4280, %v4284
        %v4289 = vand.u32 2147483647, %v4236
        %vm4290 = vcmp.eq.f32.partialorder %v4289, 8.507059e+37
        %v4291 = vand.u32 %v4236, 2147483648
        %v4292 = vor.u32 1.1754944e-38, %v4291
        %v4293 = vsel %vm4290, %v4292, %v4288
        %v4294 = vmul.f32 1.0, %v4293
        %v4295 = vrcp.pop %v4237
        %v4296 = vmul.f32 %v4237, %v4295
        %v4297 = vsub.f32 1.0, %v4296
        %v4298 = vmul.f32 %v4295, %v4297
        %v4299 = vadd.f32 %v4295, %v4298
        %vm4300 = vweird.f32 %v4237
        %vm4301 = vweird.f32 %v4295
        %vm4302 = vmor %vm4300, %vm4301
        %v4303 = vsel %vm4302, %v4295, %v4299
        %v4304 = vand.u32 2147483647, %v4237
        %vm4305 = vcmp.eq.f32.partialorder %v4304, 8.507059e+37
        %v4306 = vand.u32 %v4237, 2147483648
        %v4307 = vor.u32 1.1754944e-38, %v4306
        %v4308 = vsel %vm4305, %v4307, %v4303
        %v4309 = vmul.f32 1.0, %v4308
        %v4310 = vrcp.pop %v4238
        %v4311 = vmul.f32 %v4238, %v4310
        %v4312 = vsub.f32 1.0, %v4311
        %v4313 = vmul.f32 %v4310, %v4312
        %v4314 = vadd.f32 %v4310, %v4313
        %vm4315 = vweird.f32 %v4238
        %vm4316 = vweird.f32 %v4310
        %vm4317 = vmor %vm4315, %vm4316
        %v4318 = vsel %vm4317, %v4310, %v4314
        %v4319 = vand.u32 2147483647, %v4238
        %vm4320 = vcmp.eq.f32.partialorder %v4319, 8.507059e+37
        %v4321 = vand.u32 %v4238, 2147483648
        %v4322 = vor.u32 1.1754944e-38, %v4321
        %v4323 = vsel %vm4320, %v4322, %v4318
        %v4324 = vmul.f32 1.0, %v4323
        %v4325 = vrcp.pop %v4239
        %v4326 = vmul.f32 %v4239, %v4325
        %v4327 = vsub.f32 1.0, %v4326
        %v4328 = vmul.f32 %v4325, %v4327
        %v4329 = vadd.f32 %v4325, %v4328
        %vm4330 = vweird.f32 %v4239
        %vm4331 = vweird.f32 %v4325
        %vm4332 = vmor %vm4330, %vm4331
        %v4333 = vsel %vm4332, %v4325, %v4329
        %v4334 = vand.u32 2147483647, %v4239
        %vm4335 = vcmp.eq.f32.partialorder %v4334, 8.507059e+37
        %v4336 = vand.u32 %v4239, 2147483648
        %v4337 = vor.u32 1.1754944e-38, %v4336
        %v4338 = vsel %vm4335, %v4337, %v4333
        %v4339 = vmul.f32 1.0, %v4338
        %v4340 = vrcp.pop %v4240
        %v4341 = vmul.f32 %v4240, %v4340
        %v4342 = vsub.f32 1.0, %v4341
        %v4343 = vmul.f32 %v4340, %v4342
        %v4344 = vadd.f32 %v4340, %v4343
        %vm4345 = vweird.f32 %v4240
        %vm4346 = vweird.f32 %v4340
        %vm4347 = vmor %vm4345, %vm4346
        %v4348 = vsel %vm4347, %v4340, %v4344
        %v4349 = vand.u32 2147483647, %v4240
        %vm4350 = vcmp.eq.f32.partialorder %v4349, 8.507059e+37
        %v4351 = vand.u32 %v4240, 2147483648
        %v4352 = vor.u32 1.1754944e-38, %v4351
        %v4353 = vsel %vm4350, %v4352, %v4348
        %v4354 = vmul.f32 1.0, %v4353
        %v4355 = vrcp.pop %v4241
        %v4356 = vmul.f32 %v4241, %v4355
        %v4357 = vsub.f32 1.0, %v4356
        %v4358 = vmul.f32 %v4355, %v4357
        %v4359 = vadd.f32 %v4355, %v4358
        %vm4360 = vweird.f32 %v4241
        %vm4361 = vweird.f32 %v4355
        %vm4362 = vmor %vm4360, %vm4361
        %v4363 = vsel %vm4362, %v4355, %v4359
        %v4364 = vand.u32 2147483647, %v4241
        %vm4365 = vcmp.eq.f32.partialorder %v4364, 8.507059e+37
        %v4366 = vand.u32 %v4241, 2147483648
        %v4367 = vor.u32 1.1754944e-38, %v4366
        %v4368 = vsel %vm4365, %v4367, %v4363
        %v4369 = vmul.f32 1.0, %v4368
        %v4370 = vrcp.pop %v4242
        %v4371 = vmul.f32 %v4242, %v4370
        %v4372 = vsub.f32 1.0, %v4371
        %v4373 = vmul.f32 %v4370, %v4372
        %v4374 = vadd.f32 %v4370, %v4373
        %vm4375 = vweird.f32 %v4242
        %vm4376 = vweird.f32 %v4370
        %vm4377 = vmor %vm4375, %vm4376
        %v4378 = vsel %vm4377, %v4370, %v4374
        %v4379 = vand.u32 2147483647, %v4242
        %vm4380 = vcmp.eq.f32.partialorder %v4379, 8.507059e+37
        %v4381 = vand.u32 %v4242, 2147483648
        %v4382 = vor.u32 1.1754944e-38, %v4381
        %v4383 = vsel %vm4380, %v4382, %v4378
        %v4384 = vmul.f32 1.0, %v4383
        %v4385 = vrcp.pop %v4243
        %v4386 = vmul.f32 %v4243, %v4385
        %v4387 = vsub.f32 1.0, %v4386
        %v4388 = vmul.f32 %v4385, %v4387
        %v4389 = vadd.f32 %v4385, %v4388
        %vm4390 = vweird.f32 %v4243
        %vm4391 = vweird.f32 %v4385
        %vm4392 = vmor %vm4390, %vm4391
        %v4393 = vsel %vm4392, %v4385, %v4389
        %v4394 = vand.u32 2147483647, %v4243
        %vm4395 = vcmp.eq.f32.partialorder %v4394, 8.507059e+37
        %v4396 = vand.u32 %v4243, 2147483648
        %v4397 = vor.u32 1.1754944e-38, %v4396
        %v4398 = vsel %vm4395, %v4397, %v4393
        %v4399 = vmul.f32 1.0, %v4398
        %v4400 = vrcp.pop %v4244
        %v4401 = vmul.f32 %v4244, %v4400
        %v4402 = vsub.f32 1.0, %v4401
        %v4403 = vmul.f32 %v4400, %v4402
        %v4404 = vadd.f32 %v4400, %v4403
        %vm4405 = vweird.f32 %v4244
        %vm4406 = vweird.f32 %v4400
        %vm4407 = vmor %vm4405, %vm4406
        %v4408 = vsel %vm4407, %v4400, %v4404
        %v4409 = vand.u32 2147483647, %v4244
        %vm4410 = vcmp.eq.f32.partialorder %v4409, 8.507059e+37
        %v4411 = vand.u32 %v4244, 2147483648
        %v4412 = vor.u32 1.1754944e-38, %v4411
        %v4413 = vsel %vm4410, %v4412, %v4408
        %v4414 = vmul.f32 1.0, %v4413
        %v4415 = vrcp.pop %v4245
        %v4416 = vmul.f32 %v4245, %v4415
        %v4417 = vsub.f32 1.0, %v4416
        %v4418 = vmul.f32 %v4415, %v4417
        %v4419 = vadd.f32 %v4415, %v4418
        %vm4420 = vweird.f32 %v4245
        %vm4421 = vweird.f32 %v4415
        %vm4422 = vmor %vm4420, %vm4421
        %v4423 = vsel %vm4422, %v4415, %v4419
        %v4424 = vand.u32 2147483647, %v4245
        %vm4425 = vcmp.eq.f32.partialorder %v4424, 8.507059e+37
        %v4426 = vand.u32 %v4245, 2147483648
        %v4427 = vor.u32 1.1754944e-38, %v4426
        %v4428 = vsel %vm4425, %v4427, %v4423
        %v4429 = vmul.f32 1.0, %v4428
        %v4430 = vrcp.pop %v4246
        %v4431 = vmul.f32 %v4246, %v4430
        %v4432 = vsub.f32 1.0, %v4431
        %v4433 = vmul.f32 %v4430, %v4432
        %v4434 = vadd.f32 %v4430, %v4433
        %vm4435 = vweird.f32 %v4246
        %vm4436 = vweird.f32 %v4430
        %vm4437 = vmor %vm4435, %vm4436
        %v4438 = vsel %vm4437, %v4430, %v4434
        %v4439 = vand.u32 2147483647, %v4246
        %vm4440 = vcmp.eq.f32.partialorder %v4439, 8.507059e+37
        %v4441 = vand.u32 %v4246, 2147483648
        %v4442 = vor.u32 1.1754944e-38, %v4441
        %v4443 = vsel %vm4440, %v4442, %v4438
        %v4444 = vmul.f32 1.0, %v4443
        %v4445 = vrcp.pop %v4247
        %v4446 = vmul.f32 %v4247, %v4445
        %v4447 = vsub.f32 1.0, %v4446
        %v4448 = vmul.f32 %v4445, %v4447
        %v4449 = vadd.f32 %v4445, %v4448
        %vm4450 = vweird.f32 %v4247
        %vm4451 = vweird.f32 %v4445
        %vm4452 = vmor %vm4450, %vm4451
        %v4453 = vsel %vm4452, %v4445, %v4449
        %v4454 = vand.u32 2147483647, %v4247
        %vm4455 = vcmp.eq.f32.partialorder %v4454, 8.507059e+37
        %v4456 = vand.u32 %v4247, 2147483648
        %v4457 = vor.u32 1.1754944e-38, %v4456
        %v4458 = vsel %vm4455, %v4457, %v4453
        %v4459 = vmul.f32 1.0, %v4458
        %v4460 = vrcp.pop %v4248
        %v4461 = vmul.f32 %v4248, %v4460
        %v4462 = vsub.f32 1.0, %v4461
        %v4463 = vmul.f32 %v4460, %v4462
        %v4464 = vadd.f32 %v4460, %v4463
        %vm4465 = vweird.f32 %v4248
        %vm4466 = vweird.f32 %v4460
        %vm4467 = vmor %vm4465, %vm4466
        %v4468 = vsel %vm4467, %v4460, %v4464
        %v4469 = vand.u32 2147483647, %v4248
        %vm4470 = vcmp.eq.f32.partialorder %v4469, 8.507059e+37
        %v4471 = vand.u32 %v4248, 2147483648
        %v4472 = vor.u32 1.1754944e-38, %v4471
        %v4473 = vsel %vm4470, %v4472, %v4468
        %v4474 = vmul.f32 1.0, %v4473
        %v4475 = vrcp.pop %v4249
        %v4476 = vmul.f32 %v4249, %v4475
        %v4477 = vsub.f32 1.0, %v4476
        %v4478 = vmul.f32 %v4475, %v4477
        %v4479 = vadd.f32 %v4475, %v4478
        %vm4480 = vweird.f32 %v4249
        %vm4481 = vweird.f32 %v4475
        %vm4482 = vmor %vm4480, %vm4481
        %v4483 = vsel %vm4482, %v4475, %v4479
        %v4484 = vand.u32 2147483647, %v4249
        %vm4485 = vcmp.eq.f32.partialorder %v4484, 8.507059e+37
        %v4486 = vand.u32 %v4249, 2147483648
        %v4487 = vor.u32 1.1754944e-38, %v4486
        %v4488 = vsel %vm4485, %v4487, %v4483
        %v4489 = vmul.f32 1.0, %v4488
        %s4490 = scalar_lea.vmem %s3, 32
        %v4491 = vld [vmem:[%s4490] sm:$0xff]
        %v4492 = vld [vmem:[%s4490 + $0x8] sm:$0x3]
        %s4493 = scalar_lea.vmem %s4, 32
        %v4494 = vld [vmem:[%s4493] sm:$0xff]
        %v4495 = vld [vmem:[%s4493 + $0x8] sm:$0x3]
        %4497 = vset.pattern.permute.xlu0 0
        %4498 = vperm.xlu0 %4497, %v4494
        %v4499 = vpop.permute.xlu0 %4498
        %4502 = vset.pattern.permute.xlu0 0
        %4503 = vperm.xlu0 %4502, %v4495
        %v4504 = vpop.permute.xlu0 %4503
        %v4507 = vsel %vm3970, %v4491, 0
        %v4510 = vsel %vm3970, %v4492, 0
        %v4513 = vsel %vm3977, %v4384, 0
        %v4516 = vsel %vm3977, %v4399, 0
        %v4519 = vsel %vm3977, %v4414, 0
        %v4522 = vsel %vm3977, %v4429, 0
        %v4525 = vsel %vm3977, %v4444, 0
        %v4528 = vsel %vm3977, %v4459, 0
        %v4531 = vsel %vm3977, %v4474, 0
        %v4534 = vsel %vm3977, %v4489, 0
        %4536 = vmatpush.msra.mxu0 0.0
        %4537 = vmatpush.msra.mxu0 0.0
        %4538 = vmatpush.msra.mxu0 0.0
        %4539 = vmatpush.msra.mxu0 0.0
        %4540 = vmatpush.msra.mxu0 0.0
        %4541 = vmatpush.msra.mxu0 0.0
        %4542 = vmatpush.msra.mxu0 0.0
        %4543 = vmatpush.msra.mxu0 0.0
        %4544 = vmatpush.msra.mxu0 0.0
        %4545 = vmatpush.msra.mxu0 0.0
        %4546 = vmatpush.msra.mxu0 0.0
        %4547 = vmatpush.msra.mxu0 0.0
        %4548 = vmatpush.msra.mxu0 0.0
        %4549 = vmatpush.msra.mxu0 0.0
        %4550 = vmatpush.msra.mxu0 %v4513
        %4551 = vmatpush.msra.mxu0 %v4264
        %4552 = vmatmul.f32.gmra.mxu0 %v4507
        %v4553 = vpop.f32.mrf.mxu0
        %v4554 = vadd.f32 %v4499, %v4553
        %4555 = vmatmul.f32.gmra.mxu0 %v4510
        %v4556 = vpop.f32.mrf.mxu0
        %v4557 = vadd.f32 %v4504, %v4556
        %4558 = vdwg.mxu0
        %4559 = vmatpush.msra.mxu0 0.0
        %4560 = vmatpush.msra.mxu0 0.0
        %4561 = vmatpush.msra.mxu0 0.0
        %4562 = vmatpush.msra.mxu0 0.0
        %4563 = vmatpush.msra.mxu0 0.0
        %4564 = vmatpush.msra.mxu0 0.0
        %4565 = vmatpush.msra.mxu0 0.0
        %4566 = vmatpush.msra.mxu0 0.0
        %4567 = vmatpush.msra.mxu0 0.0
        %4568 = vmatpush.msra.mxu0 0.0
        %4569 = vmatpush.msra.mxu0 0.0
        %4570 = vmatpush.msra.mxu0 0.0
        %4571 = vmatpush.msra.mxu0 0.0
        %4572 = vmatpush.msra.mxu0 0.0
        %4573 = vmatpush.msra.mxu0 %v4516
        %4574 = vmatpush.msra.mxu0 %v4279
        %4575 = vmatmul.f32.gmra.mxu0 %v4507
        %v4576 = vpop.f32.mrf.mxu0
        %v4577 = vadd.f32 %v4499, %v4576
        %4578 = vmatmul.f32.gmra.mxu0 %v4510
        %v4579 = vpop.f32.mrf.mxu0
        %v4580 = vadd.f32 %v4504, %v4579
        %4581 = vdwg.mxu0
        %4582 = vmatpush.msra.mxu0 0.0
        %4583 = vmatpush.msra.mxu0 0.0
        %4584 = vmatpush.msra.mxu0 0.0
        %4585 = vmatpush.msra.mxu0 0.0
        %4586 = vmatpush.msra.mxu0 0.0
        %4587 = vmatpush.msra.mxu0 0.0
        %4588 = vmatpush.msra.mxu0 0.0
        %4589 = vmatpush.msra.mxu0 0.0
        %4590 = vmatpush.msra.mxu0 0.0
        %4591 = vmatpush.msra.mxu0 0.0
        %4592 = vmatpush.msra.mxu0 0.0
        %4593 = vmatpush.msra.mxu0 0.0
        %4594 = vmatpush.msra.mxu0 0.0
        %4595 = vmatpush.msra.mxu0 0.0
        %4596 = vmatpush.msra.mxu0 %v4519
        %4597 = vmatpush.msra.mxu0 %v4294
        %4598 = vmatmul.f32.gmra.mxu0 %v4507
        %v4599 = vpop.f32.mrf.mxu0
        %v4600 = vadd.f32 %v4499, %v4599
        %4601 = vmatmul.f32.gmra.mxu0 %v4510
        %v4602 = vpop.f32.mrf.mxu0
        %v4603 = vadd.f32 %v4504, %v4602
        %4604 = vdwg.mxu0
        %4605 = vmatpush.msra.mxu0 0.0
        %4606 = vmatpush.msra.mxu0 0.0
        %4607 = vmatpush.msra.mxu0 0.0
        %4608 = vmatpush.msra.mxu0 0.0
        %4609 = vmatpush.msra.mxu0 0.0
        %4610 = vmatpush.msra.mxu0 0.0
        %4611 = vmatpush.msra.mxu0 0.0
        %4612 = vmatpush.msra.mxu0 0.0
        %4613 = vmatpush.msra.mxu0 0.0
        %4614 = vmatpush.msra.mxu0 0.0
        %4615 = vmatpush.msra.mxu0 0.0
        %4616 = vmatpush.msra.mxu0 0.0
        %4617 = vmatpush.msra.mxu0 0.0
        %4618 = vmatpush.msra.mxu0 0.0
        %4619 = vmatpush.msra.mxu0 %v4522
        %4620 = vmatpush.msra.mxu0 %v4309
        %4621 = vmatmul.f32.gmra.mxu0 %v4507
        %v4622 = vpop.f32.mrf.mxu0
        %v4623 = vadd.f32 %v4499, %v4622
        %4624 = vmatmul.f32.gmra.mxu0 %v4510
        %v4625 = vpop.f32.mrf.mxu0
        %v4626 = vadd.f32 %v4504, %v4625
        %4627 = vdwg.mxu0
        %4628 = vmatpush.msra.mxu0 0.0
        %4629 = vmatpush.msra.mxu0 0.0
        %4630 = vmatpush.msra.mxu0 0.0
        %4631 = vmatpush.msra.mxu0 0.0
        %4632 = vmatpush.msra.mxu0 0.0
        %4633 = vmatpush.msra.mxu0 0.0
        %4634 = vmatpush.msra.mxu0 0.0
        %4635 = vmatpush.msra.mxu0 0.0
        %4636 = vmatpush.msra.mxu0 0.0
        %4637 = vmatpush.msra.mxu0 0.0
        %4638 = vmatpush.msra.mxu0 0.0
        %4639 = vmatpush.msra.mxu0 0.0
        %4640 = vmatpush.msra.mxu0 0.0
        %4641 = vmatpush.msra.mxu0 0.0
        %4642 = vmatpush.msra.mxu0 %v4525
        %4643 = vmatpush.msra.mxu0 %v4324
        %4644 = vmatmul.f32.gmra.mxu0 %v4507
        %v4645 = vpop.f32.mrf.mxu0
        %v4646 = vadd.f32 %v4499, %v4645
        %4647 = vmatmul.f32.gmra.mxu0 %v4510
        %v4648 = vpop.f32.mrf.mxu0
        %v4649 = vadd.f32 %v4504, %v4648
        %4650 = vdwg.mxu0
        %4651 = vmatpush.msra.mxu0 0.0
        %4652 = vmatpush.msra.mxu0 0.0
        %4653 = vmatpush.msra.mxu0 0.0
        %4654 = vmatpush.msra.mxu0 0.0
        %4655 = vmatpush.msra.mxu0 0.0
        %4656 = vmatpush.msra.mxu0 0.0
        %4657 = vmatpush.msra.mxu0 0.0
        %4658 = vmatpush.msra.mxu0 0.0
        %4659 = vmatpush.msra.mxu0 0.0
        %4660 = vmatpush.msra.mxu0 0.0
        %4661 = vmatpush.msra.mxu0 0.0
        %4662 = vmatpush.msra.mxu0 0.0
        %4663 = vmatpush.msra.mxu0 0.0
        %4664 = vmatpush.msra.mxu0 0.0
        %4665 = vmatpush.msra.mxu0 %v4528
        %4666 = vmatpush.msra.mxu0 %v4339
        %4667 = vmatmul.f32.gmra.mxu0 %v4507
        %v4668 = vpop.f32.mrf.mxu0
        %v4669 = vadd.f32 %v4499, %v4668
        %4670 = vmatmul.f32.gmra.mxu0 %v4510
        %v4671 = vpop.f32.mrf.mxu0
        %v4672 = vadd.f32 %v4504, %v4671
        %4673 = vdwg.mxu0
        %4674 = vmatpush.msra.mxu0 0.0
        %4675 = vmatpush.msra.mxu0 0.0
        %4676 = vmatpush.msra.mxu0 0.0
        %4677 = vmatpush.msra.mxu0 0.0
        %4678 = vmatpush.msra.mxu0 0.0
        %4679 = vmatpush.msra.mxu0 0.0
        %4680 = vmatpush.msra.mxu0 0.0
        %4681 = vmatpush.msra.mxu0 0.0
        %4682 = vmatpush.msra.mxu0 0.0
        %4683 = vmatpush.msra.mxu0 0.0
        %4684 = vmatpush.msra.mxu0 0.0
        %4685 = vmatpush.msra.mxu0 0.0
        %4686 = vmatpush.msra.mxu0 0.0
        %4687 = vmatpush.msra.mxu0 0.0
        %4688 = vmatpush.msra.mxu0 %v4531
        %4689 = vmatpush.msra.mxu0 %v4354
        %4690 = vmatmul.f32.gmra.mxu0 %v4507
        %v4691 = vpop.f32.mrf.mxu0
        %v4692 = vadd.f32 %v4499, %v4691
        %4693 = vmatmul.f32.gmra.mxu0 %v4510
        %v4694 = vpop.f32.mrf.mxu0
        %v4695 = vadd.f32 %v4504, %v4694
        %4696 = vdwg.mxu0
        %4697 = vmatpush.msra.mxu0 0.0
        %4698 = vmatpush.msra.mxu0 0.0
        %4699 = vmatpush.msra.mxu0 0.0
        %4700 = vmatpush.msra.mxu0 0.0
        %4701 = vmatpush.msra.mxu0 0.0
        %4702 = vmatpush.msra.mxu0 0.0
        %4703 = vmatpush.msra.mxu0 0.0
        %4704 = vmatpush.msra.mxu0 0.0
        %4705 = vmatpush.msra.mxu0 0.0
        %4706 = vmatpush.msra.mxu0 0.0
        %4707 = vmatpush.msra.mxu0 0.0
        %4708 = vmatpush.msra.mxu0 0.0
        %4709 = vmatpush.msra.mxu0 0.0
        %4710 = vmatpush.msra.mxu0 0.0
        %4711 = vmatpush.msra.mxu0 %v4534
        %4712 = vmatpush.msra.mxu0 %v4369
        %4713 = vmatmul.f32.gmra.mxu0 %v4507
        %v4714 = vpop.f32.mrf.mxu0
        %v4715 = vadd.f32 %v4499, %v4714
        %4716 = vmatmul.f32.gmra.mxu0 %v4510
        %v4717 = vpop.f32.mrf.mxu0
        %v4718 = vadd.f32 %v4504, %v4717
        %4719 = vdwg.mxu0
        %v4720 = vxor.u32 %v4554, 2147483648
        %v4721 = vxor.u32 %v4577, 2147483648
        %v4722 = vxor.u32 %v4600, 2147483648
        %v4723 = vxor.u32 %v4623, 2147483648
        %v4724 = vxor.u32 %v4646, 2147483648
        %v4725 = vxor.u32 %v4669, 2147483648
        %v4726 = vxor.u32 %v4692, 2147483648
        %v4727 = vxor.u32 %v4715, 2147483648
        %v4728 = vxor.u32 %v4557, 2147483648
        %v4729 = vxor.u32 %v4580, 2147483648
        %v4730 = vxor.u32 %v4603, 2147483648
        %v4731 = vxor.u32 %v4626, 2147483648
        %v4732 = vxor.u32 %v4649, 2147483648
        %v4733 = vxor.u32 %v4672, 2147483648
        %v4734 = vxor.u32 %v4695, 2147483648
        %v4735 = vxor.u32 %v4718, 2147483648
        %v4736 = vmul.f32 %v4720, 1.442695
        %v4737 = vpow.pop %v4736
        %v4738 = vmul.f32 %v4721, 1.442695
        %v4739 = vpow.pop %v4738
        %v4740 = vmul.f32 %v4722, 1.442695
        %v4741 = vpow.pop %v4740
        %v4742 = vmul.f32 %v4723, 1.442695
        %v4743 = vpow.pop %v4742
        %v4744 = vmul.f32 %v4724, 1.442695
        %v4745 = vpow.pop %v4744
        %v4746 = vmul.f32 %v4725, 1.442695
        %v4747 = vpow.pop %v4746
        %v4748 = vmul.f32 %v4726, 1.442695
        %v4749 = vpow.pop %v4748
        %v4750 = vmul.f32 %v4727, 1.442695
        %v4751 = vpow.pop %v4750
        %v4752 = vmul.f32 %v4728, 1.442695
        %v4753 = vpow.pop %v4752
        %v4754 = vmul.f32 %v4729, 1.442695
        %v4755 = vpow.pop %v4754
        %v4756 = vmul.f32 %v4730, 1.442695
        %v4757 = vpow.pop %v4756
        %v4758 = vmul.f32 %v4731, 1.442695
        %v4759 = vpow.pop %v4758
        %v4760 = vmul.f32 %v4732, 1.442695
        %v4761 = vpow.pop %v4760
        %v4762 = vmul.f32 %v4733, 1.442695
        %v4763 = vpow.pop %v4762
        %v4764 = vmul.f32 %v4734, 1.442695
        %v4765 = vpow.pop %v4764
        %v4766 = vmul.f32 %v4735, 1.442695
        %v4767 = vpow.pop %v4766
        %v4768 = vadd.f32 %v4737, 1.0
        %v4769 = vadd.f32 %v4739, 1.0
        %v4770 = vadd.f32 %v4741, 1.0
        %v4771 = vadd.f32 %v4743, 1.0
        %v4772 = vadd.f32 %v4745, 1.0
        %v4773 = vadd.f32 %v4747, 1.0
        %v4774 = vadd.f32 %v4749, 1.0
        %v4775 = vadd.f32 %v4751, 1.0
        %v4776 = vadd.f32 %v4753, 1.0
        %v4777 = vadd.f32 %v4755, 1.0
        %v4778 = vadd.f32 %v4757, 1.0
        %v4779 = vadd.f32 %v4759, 1.0
        %v4780 = vadd.f32 %v4761, 1.0
        %v4781 = vadd.f32 %v4763, 1.0
        %v4782 = vadd.f32 %v4765, 1.0
        %v4783 = vadd.f32 %v4767, 1.0
        %v4784 = vrcp.pop %v4768
        %v4785 = vmul.f32 %v4768, %v4784
        %v4786 = vsub.f32 1.0, %v4785
        %v4787 = vmul.f32 %v4784, %v4786
        %v4788 = vadd.f32 %v4784, %v4787
        %vm4789 = vweird.f32 %v4768
        %vm4790 = vweird.f32 %v4784
        %vm4791 = vmor %vm4789, %vm4790
        %v4792 = vsel %vm4791, %v4784, %v4788
        %v4793 = vand.u32 2147483647, %v4768
        %vm4794 = vcmp.eq.f32.partialorder %v4793, 8.507059e+37
        %v4795 = vand.u32 %v4768, 2147483648
        %v4796 = vor.u32 1.1754944e-38, %v4795
        %v4797 = vsel %vm4794, %v4796, %v4792
        %v4798 = vmul.f32 1.0, %v4797
        %v4799 = vrcp.pop %v4769
        %v4800 = vmul.f32 %v4769, %v4799
        %v4801 = vsub.f32 1.0, %v4800
        %v4802 = vmul.f32 %v4799, %v4801
        %v4803 = vadd.f32 %v4799, %v4802
        %vm4804 = vweird.f32 %v4769
        %vm4805 = vweird.f32 %v4799
        %vm4806 = vmor %vm4804, %vm4805
        %v4807 = vsel %vm4806, %v4799, %v4803
        %v4808 = vand.u32 2147483647, %v4769
        %vm4809 = vcmp.eq.f32.partialorder %v4808, 8.507059e+37
        %v4810 = vand.u32 %v4769, 2147483648
        %v4811 = vor.u32 1.1754944e-38, %v4810
        %v4812 = vsel %vm4809, %v4811, %v4807
        %v4813 = vmul.f32 1.0, %v4812
        %v4814 = vrcp.pop %v4770
        %v4815 = vmul.f32 %v4770, %v4814
        %v4816 = vsub.f32 1.0, %v4815
        %v4817 = vmul.f32 %v4814, %v4816
        %v4818 = vadd.f32 %v4814, %v4817
        %vm4819 = vweird.f32 %v4770
        %vm4820 = vweird.f32 %v4814
        %vm4821 = vmor %vm4819, %vm4820
        %v4822 = vsel %vm4821, %v4814, %v4818
        %v4823 = vand.u32 2147483647, %v4770
        %vm4824 = vcmp.eq.f32.partialorder %v4823, 8.507059e+37
        %v4825 = vand.u32 %v4770, 2147483648
        %v4826 = vor.u32 1.1754944e-38, %v4825
        %v4827 = vsel %vm4824, %v4826, %v4822
        %v4828 = vmul.f32 1.0, %v4827
        %v4829 = vrcp.pop %v4771
        %v4830 = vmul.f32 %v4771, %v4829
        %v4831 = vsub.f32 1.0, %v4830
        %v4832 = vmul.f32 %v4829, %v4831
        %v4833 = vadd.f32 %v4829, %v4832
        %vm4834 = vweird.f32 %v4771
        %vm4835 = vweird.f32 %v4829
        %vm4836 = vmor %vm4834, %vm4835
        %v4837 = vsel %vm4836, %v4829, %v4833
        %v4838 = vand.u32 2147483647, %v4771
        %vm4839 = vcmp.eq.f32.partialorder %v4838, 8.507059e+37
        %v4840 = vand.u32 %v4771, 2147483648
        %v4841 = vor.u32 1.1754944e-38, %v4840
        %v4842 = vsel %vm4839, %v4841, %v4837
        %v4843 = vmul.f32 1.0, %v4842
        %v4844 = vrcp.pop %v4772
        %v4845 = vmul.f32 %v4772, %v4844
        %v4846 = vsub.f32 1.0, %v4845
        %v4847 = vmul.f32 %v4844, %v4846
        %v4848 = vadd.f32 %v4844, %v4847
        %vm4849 = vweird.f32 %v4772
        %vm4850 = vweird.f32 %v4844
        %vm4851 = vmor %vm4849, %vm4850
        %v4852 = vsel %vm4851, %v4844, %v4848
        %v4853 = vand.u32 2147483647, %v4772
        %vm4854 = vcmp.eq.f32.partialorder %v4853, 8.507059e+37
        %v4855 = vand.u32 %v4772, 2147483648
        %v4856 = vor.u32 1.1754944e-38, %v4855
        %v4857 = vsel %vm4854, %v4856, %v4852
        %v4858 = vmul.f32 1.0, %v4857
        %v4859 = vrcp.pop %v4773
        %v4860 = vmul.f32 %v4773, %v4859
        %v4861 = vsub.f32 1.0, %v4860
        %v4862 = vmul.f32 %v4859, %v4861
        %v4863 = vadd.f32 %v4859, %v4862
        %vm4864 = vweird.f32 %v4773
        %vm4865 = vweird.f32 %v4859
        %vm4866 = vmor %vm4864, %vm4865
        %v4867 = vsel %vm4866, %v4859, %v4863
        %v4868 = vand.u32 2147483647, %v4773
        %vm4869 = vcmp.eq.f32.partialorder %v4868, 8.507059e+37
        %v4870 = vand.u32 %v4773, 2147483648
        %v4871 = vor.u32 1.1754944e-38, %v4870
        %v4872 = vsel %vm4869, %v4871, %v4867
        %v4873 = vmul.f32 1.0, %v4872
        %v4874 = vrcp.pop %v4774
        %v4875 = vmul.f32 %v4774, %v4874
        %v4876 = vsub.f32 1.0, %v4875
        %v4877 = vmul.f32 %v4874, %v4876
        %v4878 = vadd.f32 %v4874, %v4877
        %vm4879 = vweird.f32 %v4774
        %vm4880 = vweird.f32 %v4874
        %vm4881 = vmor %vm4879, %vm4880
        %v4882 = vsel %vm4881, %v4874, %v4878
        %v4883 = vand.u32 2147483647, %v4774
        %vm4884 = vcmp.eq.f32.partialorder %v4883, 8.507059e+37
        %v4885 = vand.u32 %v4774, 2147483648
        %v4886 = vor.u32 1.1754944e-38, %v4885
        %v4887 = vsel %vm4884, %v4886, %v4882
        %v4888 = vmul.f32 1.0, %v4887
        %v4889 = vrcp.pop %v4775
        %v4890 = vmul.f32 %v4775, %v4889
        %v4891 = vsub.f32 1.0, %v4890
        %v4892 = vmul.f32 %v4889, %v4891
        %v4893 = vadd.f32 %v4889, %v4892
        %vm4894 = vweird.f32 %v4775
        %vm4895 = vweird.f32 %v4889
        %vm4896 = vmor %vm4894, %vm4895
        %v4897 = vsel %vm4896, %v4889, %v4893
        %v4898 = vand.u32 2147483647, %v4775
        %vm4899 = vcmp.eq.f32.partialorder %v4898, 8.507059e+37
        %v4900 = vand.u32 %v4775, 2147483648
        %v4901 = vor.u32 1.1754944e-38, %v4900
        %v4902 = vsel %vm4899, %v4901, %v4897
        %v4903 = vmul.f32 1.0, %v4902
        %v4904 = vrcp.pop %v4776
        %v4905 = vmul.f32 %v4776, %v4904
        %v4906 = vsub.f32 1.0, %v4905
        %v4907 = vmul.f32 %v4904, %v4906
        %v4908 = vadd.f32 %v4904, %v4907
        %vm4909 = vweird.f32 %v4776
        %vm4910 = vweird.f32 %v4904
        %vm4911 = vmor %vm4909, %vm4910
        %v4912 = vsel %vm4911, %v4904, %v4908
        %v4913 = vand.u32 2147483647, %v4776
        %vm4914 = vcmp.eq.f32.partialorder %v4913, 8.507059e+37
        %v4915 = vand.u32 %v4776, 2147483648
        %v4916 = vor.u32 1.1754944e-38, %v4915
        %v4917 = vsel %vm4914, %v4916, %v4912
        %v4918 = vmul.f32 1.0, %v4917
        %v4919 = vrcp.pop %v4777
        %v4920 = vmul.f32 %v4777, %v4919
        %v4921 = vsub.f32 1.0, %v4920
        %v4922 = vmul.f32 %v4919, %v4921
        %v4923 = vadd.f32 %v4919, %v4922
        %vm4924 = vweird.f32 %v4777
        %vm4925 = vweird.f32 %v4919
        %vm4926 = vmor %vm4924, %vm4925
        %v4927 = vsel %vm4926, %v4919, %v4923
        %v4928 = vand.u32 2147483647, %v4777
        %vm4929 = vcmp.eq.f32.partialorder %v4928, 8.507059e+37
        %v4930 = vand.u32 %v4777, 2147483648
        %v4931 = vor.u32 1.1754944e-38, %v4930
        %v4932 = vsel %vm4929, %v4931, %v4927
        %v4933 = vmul.f32 1.0, %v4932
        %v4934 = vrcp.pop %v4778
        %v4935 = vmul.f32 %v4778, %v4934
        %v4936 = vsub.f32 1.0, %v4935
        %v4937 = vmul.f32 %v4934, %v4936
        %v4938 = vadd.f32 %v4934, %v4937
        %vm4939 = vweird.f32 %v4778
        %vm4940 = vweird.f32 %v4934
        %vm4941 = vmor %vm4939, %vm4940
        %v4942 = vsel %vm4941, %v4934, %v4938
        %v4943 = vand.u32 2147483647, %v4778
        %vm4944 = vcmp.eq.f32.partialorder %v4943, 8.507059e+37
        %v4945 = vand.u32 %v4778, 2147483648
        %v4946 = vor.u32 1.1754944e-38, %v4945
        %v4947 = vsel %vm4944, %v4946, %v4942
        %v4948 = vmul.f32 1.0, %v4947
        %v4949 = vrcp.pop %v4779
        %v4950 = vmul.f32 %v4779, %v4949
        %v4951 = vsub.f32 1.0, %v4950
        %v4952 = vmul.f32 %v4949, %v4951
        %v4953 = vadd.f32 %v4949, %v4952
        %vm4954 = vweird.f32 %v4779
        %vm4955 = vweird.f32 %v4949
        %vm4956 = vmor %vm4954, %vm4955
        %v4957 = vsel %vm4956, %v4949, %v4953
        %v4958 = vand.u32 2147483647, %v4779
        %vm4959 = vcmp.eq.f32.partialorder %v4958, 8.507059e+37
        %v4960 = vand.u32 %v4779, 2147483648
        %v4961 = vor.u32 1.1754944e-38, %v4960
        %v4962 = vsel %vm4959, %v4961, %v4957
        %v4963 = vmul.f32 1.0, %v4962
        %v4964 = vrcp.pop %v4780
        %v4965 = vmul.f32 %v4780, %v4964
        %v4966 = vsub.f32 1.0, %v4965
        %v4967 = vmul.f32 %v4964, %v4966
        %v4968 = vadd.f32 %v4964, %v4967
        %vm4969 = vweird.f32 %v4780
        %vm4970 = vweird.f32 %v4964
        %vm4971 = vmor %vm4969, %vm4970
        %v4972 = vsel %vm4971, %v4964, %v4968
        %v4973 = vand.u32 2147483647, %v4780
        %vm4974 = vcmp.eq.f32.partialorder %v4973, 8.507059e+37
        %v4975 = vand.u32 %v4780, 2147483648
        %v4976 = vor.u32 1.1754944e-38, %v4975
        %v4977 = vsel %vm4974, %v4976, %v4972
        %v4978 = vmul.f32 1.0, %v4977
        %v4979 = vrcp.pop %v4781
        %v4980 = vmul.f32 %v4781, %v4979
        %v4981 = vsub.f32 1.0, %v4980
        %v4982 = vmul.f32 %v4979, %v4981
        %v4983 = vadd.f32 %v4979, %v4982
        %vm4984 = vweird.f32 %v4781
        %vm4985 = vweird.f32 %v4979
        %vm4986 = vmor %vm4984, %vm4985
        %v4987 = vsel %vm4986, %v4979, %v4983
        %v4988 = vand.u32 2147483647, %v4781
        %vm4989 = vcmp.eq.f32.partialorder %v4988, 8.507059e+37
        %v4990 = vand.u32 %v4781, 2147483648
        %v4991 = vor.u32 1.1754944e-38, %v4990
        %v4992 = vsel %vm4989, %v4991, %v4987
        %v4993 = vmul.f32 1.0, %v4992
        %v4994 = vrcp.pop %v4782
        %v4995 = vmul.f32 %v4782, %v4994
        %v4996 = vsub.f32 1.0, %v4995
        %v4997 = vmul.f32 %v4994, %v4996
        %v4998 = vadd.f32 %v4994, %v4997
        %vm4999 = vweird.f32 %v4782
        %vm5000 = vweird.f32 %v4994
        %vm5001 = vmor %vm4999, %vm5000
        %v5002 = vsel %vm5001, %v4994, %v4998
        %v5003 = vand.u32 2147483647, %v4782
        %vm5004 = vcmp.eq.f32.partialorder %v5003, 8.507059e+37
        %v5005 = vand.u32 %v4782, 2147483648
        %v5006 = vor.u32 1.1754944e-38, %v5005
        %v5007 = vsel %vm5004, %v5006, %v5002
        %v5008 = vmul.f32 1.0, %v5007
        %v5009 = vrcp.pop %v4783
        %v5010 = vmul.f32 %v4783, %v5009
        %v5011 = vsub.f32 1.0, %v5010
        %v5012 = vmul.f32 %v5009, %v5011
        %v5013 = vadd.f32 %v5009, %v5012
        %vm5014 = vweird.f32 %v4783
        %vm5015 = vweird.f32 %v5009
        %vm5016 = vmor %vm5014, %vm5015
        %v5017 = vsel %vm5016, %v5009, %v5013
        %v5018 = vand.u32 2147483647, %v4783
        %vm5019 = vcmp.eq.f32.partialorder %v5018, 8.507059e+37
        %v5020 = vand.u32 %v4783, 2147483648
        %v5021 = vor.u32 1.1754944e-38, %v5020
        %v5022 = vsel %vm5019, %v5021, %v5017
        %v5023 = vmul.f32 1.0, %v5022
        %s5024 = scalar_lea.vmem %s3, 48
        %v5025 = vld [vmem:[%s5024] sm:$0x7]
        %s5026 = scalar_lea.vmem %s4, 48
        %v5027 = vld [vmem:[%s5026] sm:$0x7]
        %5029 = vset.pattern.permute.xlu0 0
        %5030 = vperm.xlu0 %5029, %v5027
        %v5031 = vpop.permute.xlu0 %5030
        %v5034 = vsel %vm3970, %v5025, 0
        %v5037 = vsel %vm3977, %v4918, 0
        %v5040 = vsel %vm3977, %v4933, 0
        %v5043 = vsel %vm3977, %v4948, 0
        %v5046 = vsel %vm3977, %v4963, 0
        %v5049 = vsel %vm3977, %v4978, 0
        %v5052 = vsel %vm3977, %v4993, 0
        %v5055 = vsel %vm3977, %v5008, 0
        %v5058 = vsel %vm3977, %v5023, 0
        %5060 = vmatpush.msra.mxu0 0.0
        %5061 = vmatpush.msra.mxu0 0.0
        %5062 = vmatpush.msra.mxu0 0.0
        %5063 = vmatpush.msra.mxu0 0.0
        %5064 = vmatpush.msra.mxu0 0.0
        %5065 = vmatpush.msra.mxu0 0.0
        %5066 = vmatpush.msra.mxu0 0.0
        %5067 = vmatpush.msra.mxu0 0.0
        %5068 = vmatpush.msra.mxu0 0.0
        %5069 = vmatpush.msra.mxu0 0.0
        %5070 = vmatpush.msra.mxu0 0.0
        %5071 = vmatpush.msra.mxu0 0.0
        %5072 = vmatpush.msra.mxu0 0.0
        %5073 = vmatpush.msra.mxu0 0.0
        %5074 = vmatpush.msra.mxu0 %v5037
        %5075 = vmatpush.msra.mxu0 %v4798
        %5076 = vmatmul.f32.gmra.mxu0 %v5034
        %v5077 = vpop.f32.mrf.mxu0
        %v5078 = vadd.f32 %v5031, %v5077
        %5079 = vdwg.mxu0
        %5080 = vmatpush.msra.mxu0 0.0
        %5081 = vmatpush.msra.mxu0 0.0
        %5082 = vmatpush.msra.mxu0 0.0
        %5083 = vmatpush.msra.mxu0 0.0
        %5084 = vmatpush.msra.mxu0 0.0
        %5085 = vmatpush.msra.mxu0 0.0
        %5086 = vmatpush.msra.mxu0 0.0
        %5087 = vmatpush.msra.mxu0 0.0
        %5088 = vmatpush.msra.mxu0 0.0
        %5089 = vmatpush.msra.mxu0 0.0
        %5090 = vmatpush.msra.mxu0 0.0
        %5091 = vmatpush.msra.mxu0 0.0
        %5092 = vmatpush.msra.mxu0 0.0
        %5093 = vmatpush.msra.mxu0 0.0
        %5094 = vmatpush.msra.mxu0 %v5040
        %5095 = vmatpush.msra.mxu0 %v4813
        %5096 = vmatmul.f32.gmra.mxu0 %v5034
        %v5097 = vpop.f32.mrf.mxu0
        %v5098 = vadd.f32 %v5031, %v5097
        %5099 = vdwg.mxu0
        %5100 = vmatpush.msra.mxu0 0.0
        %5101 = vmatpush.msra.mxu0 0.0
        %5102 = vmatpush.msra.mxu0 0.0
        %5103 = vmatpush.msra.mxu0 0.0
        %5104 = vmatpush.msra.mxu0 0.0
        %5105 = vmatpush.msra.mxu0 0.0
        %5106 = vmatpush.msra.mxu0 0.0
        %5107 = vmatpush.msra.mxu0 0.0
        %5108 = vmatpush.msra.mxu0 0.0
        %5109 = vmatpush.msra.mxu0 0.0
        %5110 = vmatpush.msra.mxu0 0.0
        %5111 = vmatpush.msra.mxu0 0.0
        %5112 = vmatpush.msra.mxu0 0.0
        %5113 = vmatpush.msra.mxu0 0.0
        %5114 = vmatpush.msra.mxu0 %v5043
        %5115 = vmatpush.msra.mxu0 %v4828
        %5116 = vmatmul.f32.gmra.mxu0 %v5034
        %v5117 = vpop.f32.mrf.mxu0
        %v5118 = vadd.f32 %v5031, %v5117
        %5119 = vdwg.mxu0
        %5120 = vmatpush.msra.mxu0 0.0
        %5121 = vmatpush.msra.mxu0 0.0
        %5122 = vmatpush.msra.mxu0 0.0
        %5123 = vmatpush.msra.mxu0 0.0
        %5124 = vmatpush.msra.mxu0 0.0
        %5125 = vmatpush.msra.mxu0 0.0
        %5126 = vmatpush.msra.mxu0 0.0
        %5127 = vmatpush.msra.mxu0 0.0
        %5128 = vmatpush.msra.mxu0 0.0
        %5129 = vmatpush.msra.mxu0 0.0
        %5130 = vmatpush.msra.mxu0 0.0
        %5131 = vmatpush.msra.mxu0 0.0
        %5132 = vmatpush.msra.mxu0 0.0
        %5133 = vmatpush.msra.mxu0 0.0
        %5134 = vmatpush.msra.mxu0 %v5046
        %5135 = vmatpush.msra.mxu0 %v4843
        %5136 = vmatmul.f32.gmra.mxu0 %v5034
        %v5137 = vpop.f32.mrf.mxu0
        %v5138 = vadd.f32 %v5031, %v5137
        %5139 = vdwg.mxu0
        %5140 = vmatpush.msra.mxu0 0.0
        %5141 = vmatpush.msra.mxu0 0.0
        %5142 = vmatpush.msra.mxu0 0.0
        %5143 = vmatpush.msra.mxu0 0.0
        %5144 = vmatpush.msra.mxu0 0.0
        %5145 = vmatpush.msra.mxu0 0.0
        %5146 = vmatpush.msra.mxu0 0.0
        %5147 = vmatpush.msra.mxu0 0.0
        %5148 = vmatpush.msra.mxu0 0.0
        %5149 = vmatpush.msra.mxu0 0.0
        %5150 = vmatpush.msra.mxu0 0.0
        %5151 = vmatpush.msra.mxu0 0.0
        %5152 = vmatpush.msra.mxu0 0.0
        %5153 = vmatpush.msra.mxu0 0.0
        %5154 = vmatpush.msra.mxu0 %v5049
        %5155 = vmatpush.msra.mxu0 %v4858
        %5156 = vmatmul.f32.gmra.mxu0 %v5034
        %v5157 = vpop.f32.mrf.mxu0
        %v5158 = vadd.f32 %v5031, %v5157
        %5159 = vdwg.mxu0
        %5160 = vmatpush.msra.mxu0 0.0
        %5161 = vmatpush.msra.mxu0 0.0
        %5162 = vmatpush.msra.mxu0 0.0
        %5163 = vmatpush.msra.mxu0 0.0
        %5164 = vmatpush.msra.mxu0 0.0
        %5165 = vmatpush.msra.mxu0 0.0
        %5166 = vmatpush.msra.mxu0 0.0
        %5167 = vmatpush.msra.mxu0 0.0
        %5168 = vmatpush.msra.mxu0 0.0
        %5169 = vmatpush.msra.mxu0 0.0
        %5170 = vmatpush.msra.mxu0 0.0
        %5171 = vmatpush.msra.mxu0 0.0
        %5172 = vmatpush.msra.mxu0 0.0
        %5173 = vmatpush.msra.mxu0 0.0
        %5174 = vmatpush.msra.mxu0 %v5052
        %5175 = vmatpush.msra.mxu0 %v4873
        %5176 = vmatmul.f32.gmra.mxu0 %v5034
        %v5177 = vpop.f32.mrf.mxu0
        %v5178 = vadd.f32 %v5031, %v5177
        %5179 = vdwg.mxu0
        %5180 = vmatpush.msra.mxu0 0.0
        %5181 = vmatpush.msra.mxu0 0.0
        %5182 = vmatpush.msra.mxu0 0.0
        %5183 = vmatpush.msra.mxu0 0.0
        %5184 = vmatpush.msra.mxu0 0.0
        %5185 = vmatpush.msra.mxu0 0.0
        %5186 = vmatpush.msra.mxu0 0.0
        %5187 = vmatpush.msra.mxu0 0.0
        %5188 = vmatpush.msra.mxu0 0.0
        %5189 = vmatpush.msra.mxu0 0.0
        %5190 = vmatpush.msra.mxu0 0.0
        %5191 = vmatpush.msra.mxu0 0.0
        %5192 = vmatpush.msra.mxu0 0.0
        %5193 = vmatpush.msra.mxu0 0.0
        %5194 = vmatpush.msra.mxu0 %v5055
        %5195 = vmatpush.msra.mxu0 %v4888
        %5196 = vmatmul.f32.gmra.mxu0 %v5034
        %v5197 = vpop.f32.mrf.mxu0
        %v5198 = vadd.f32 %v5031, %v5197
        %5199 = vdwg.mxu0
        %5200 = vmatpush.msra.mxu0 0.0
        %5201 = vmatpush.msra.mxu0 0.0
        %5202 = vmatpush.msra.mxu0 0.0
        %5203 = vmatpush.msra.mxu0 0.0
        %5204 = vmatpush.msra.mxu0 0.0
        %5205 = vmatpush.msra.mxu0 0.0
        %5206 = vmatpush.msra.mxu0 0.0
        %5207 = vmatpush.msra.mxu0 0.0
        %5208 = vmatpush.msra.mxu0 0.0
        %5209 = vmatpush.msra.mxu0 0.0
        %5210 = vmatpush.msra.mxu0 0.0
        %5211 = vmatpush.msra.mxu0 0.0
        %5212 = vmatpush.msra.mxu0 0.0
        %5213 = vmatpush.msra.mxu0 0.0
        %5214 = vmatpush.msra.mxu0 %v5058
        %5215 = vmatpush.msra.mxu0 %v4903
        %5216 = vmatmul.f32.gmra.mxu0 %v5034
        %v5217 = vpop.f32.mrf.mxu0
        %v5218 = vadd.f32 %v5031, %v5217
        %5219 = vdwg.mxu0
        %v5220 = vand.u32 2147483647, %v226
        %vm5221 = vcmp.le.f32.partialorder %v5220, 0.7853982
        %vm5222 = vcmp.lt.s32.totalorder %v226, 0
        %v5223 = vand.u32 %v226, 2139095040
        %v5224 = vshrl.u32 %v5223, 23
        %v5225 = vsub.s32 %v5224, 127
        %v5226 = vand.u32 2147483647, %v226
        %v5227 = vand.u32 %v5226, 8388607
        %v5228 = vor.u32 %v5227, 8388608
        %v5229 = vsub.s32 0, %v5228
        %v5230 = vadd.s32 %v5225, 1
        %vm5231 = vcmp.gt.s32.totalorder %v5230, 0
        %v5232 = vsel %vm5231, %v5230, 0
        %v5233 = vshrl.u32 %v5232, 5
        %v5234 = vand.u32 %v5232, 31
        %v5235 = vsub.s32 32, %v5234
        %v5236 = vshrl.u32 683565275, %v5235
        %v5237 = vshll.u32 683565275, %v5234
        %v5238 = vshrl.u32 2475754826, %v5235
        %v5239 = vor.u32 %v5237, %v5238
        %v5240 = vshll.u32 2475754826, %v5234
        %v5241 = vshrl.u32 2131351028, %v5235
        %v5242 = vor.u32 %v5240, %v5241
        %v5243 = vshll.u32 2131351028, %v5234
        %v5244 = vshrl.u32 2102212464, %v5235
        %v5245 = vor.u32 %v5243, %v5244
        %v5246 = vshll.u32 2102212464, %v5234
        %v5247 = vshrl.u32 920167782, %v5235
        %v5248 = vor.u32 %v5246, %v5247
        %v5249 = vshll.u32 920167782, %v5234
        %v5250 = vshrl.u32 1326507024, %v5235
        %v5251 = vor.u32 %v5249, %v5250
        %vm5252 = vcmp.lt.s32.totalorder %v5233, 1
        %vm5253 = vcmp.lt.s32.totalorder %v5233, 2
        %vm5254 = vcmp.lt.s32.totalorder %v5233, 3
        %vm5255 = vcmp.lt.s32.totalorder %v5233, 4
        %v5256 = vsel %vm5252, %v5236, %v5239
        %v5257 = vsel %vm5255, %v5245, 2102212464
        %v5258 = vsel %vm5254, %v5242, %v5257
        %v5259 = vsel %vm5253, %v5256, %v5258
        %v5260 = vsel %vm5252, %v5239, %v5242
        %v5261 = vsel %vm5255, %v5248, 920167782
        %v5262 = vsel %vm5254, %v5245, %v5261
        %v5263 = vsel %vm5253, %v5260, %v5262
        %v5264 = vsel %vm5252, %v5242, %v5245
        %v5265 = vsel %vm5255, %v5251, 1326507024
        %v5266 = vsel %vm5254, %v5248, %v5265
        %v5267 = vsel %vm5253, %v5264, %v5266
        %v5268 = vshll.u32 %v5228, 8
        %v5269 = vand.u32 %v5268, 65535
        %v5270 = vshrl.u32 %v5268, 16
        %v5271 = vand.u32 %v5267, 65535
        %v5272 = vshrl.u32 %v5267, 16
        %v5273 = vmul.u32 %v5269, %v5271
        %v5274 = vmul.u32 %v5269, %v5272
        %v5275 = vmul.u32 %v5270, %v5271
        %v5276 = vmul.u32 %v5270, %v5272
        %v5277 = vshll.u32 %v5274, 16
        %v5278 = vshrl.u32 %v5274, 16
        %v5279 = vshll.u32 %v5275, 16
        %v5280 = vshrl.u32 %v5275, 16
        %vm5281 = vc.u32 %v5273, %v5277
        %v5282 = vsel %vm5281, 1, 0
        %v5283 = vadd.s32 %v5273, %v5277
        %v5284 = vadd.s32 %v5276, %v5282
        %vm5285 = vc.u32 %v5283, %v5279
        %v5286 = vsel %vm5285, 1, 0
        %v5287 = vadd.s32 %v5283, %v5279
        %v5288 = vadd.s32 %v5284, %v5286
        %v5289 = vadd.s32 %v5288, %v5278
        %v5290 = vadd.s32 %v5289, %v5280
        %v5291 = vand.u32 %v5268, 65535
        %v5292 = vshrl.u32 %v5268, 16
        %v5293 = vand.u32 %v5263, 65535
        %v5294 = vshrl.u32 %v5263, 16
        %v5295 = vmul.u32 %v5291, %v5293
        %v5296 = vmul.u32 %v5291, %v5294
        %v5297 = vmul.u32 %v5292, %v5293
        %v5298 = vmul.u32 %v5292, %v5294
        %v5299 = vshll.u32 %v5296, 16
        %v5300 = vshrl.u32 %v5296, 16
        %v5301 = vshll.u32 %v5297, 16
        %v5302 = vshrl.u32 %v5297, 16
        %vm5303 = vc.u32 %v5295, %v5299
        %v5304 = vsel %vm5303, 1, 0
        %v5305 = vadd.s32 %v5295, %v5299
        %v5306 = vadd.s32 %v5298, %v5304
        %vm5307 = vc.u32 %v5305, %v5301
        %v5308 = vsel %vm5307, 1, 0
        %v5309 = vadd.s32 %v5305, %v5301
        %v5310 = vadd.s32 %v5306, %v5308
        %v5311 = vadd.s32 %v5310, %v5300
        %v5312 = vadd.s32 %v5311, %v5302
        %v5313 = vmul.u32 %v5268, %v5259
        %v5314 = vadd.s32 %v5290, %v5309
        %vm5315 = vc.u32 %v5290, %v5309
        %v5316 = vadd.s32 %v5312, 1
        %v5317 = vsel %vm5315, %v5316, %v5312
        %v5318 = vadd.s32 %v5313, %v5317
        %v5319 = vadd.s32 %v5318, 536870912
        %v5320 = vshrl.u32 %v5319, 30
        %v5321 = vshll.u32 %v5320, 30
        %v5322 = vsub.s32 %v5318, %v5321
        %vm5323 = vcmp.lt.s32.totalorder %v5322, 0
        %v5324 = vsub.s32 0, %v5322
        %v5325 = vsel %vm5323, %v5324, %v5322
        %v5326 = vclz %v5325
        %v5327 = vsub.s32 %v5326, 2
        %vm5328 = vcmp.gt.s32.totalorder 0, %v5327
        %v5329 = vsel %vm5328, 0, %v5327
        %v5330 = vsub.s32 32, %v5329
        %v5331 = vshll.u32 %v5322, %v5329
        %v5332 = vshrl.u32 %v5314, %v5330
        %v5333 = vor.u32 %v5331, %v5332
        %v5334 = vsub.s32 4294967266, %v5329
        %v5335 = vadd.s32 %v5334, 127
        %v5336 = vshll.u32 %v5335, 23
        %v5337 = vor.u32 4788187, %v5336
        %v5338 = vand.u32 2147483647, %v5337
        %v5340 = vcvt.s32.f32 %v5333
        %v5341 = vmul.f32 %v5340, %v5338
        %v5342 = vxor.u32 %v5341, 2147483648
        %v5343 = vsel %vm5222, %v5342, %v5341
        %v5344 = vsub.s32 4, %v5320
        %v5345 = vsel %vm5222, %v5344, %v5320
        %v5346 = vsel %vm5221, %v226, %v5343
        %v5347 = vsel %vm5221, 0, %v5345
        %v5348 = vmul.f32 %v5346, %v5346
        %v5349 = vmul.f32 %v5348, -0.001358992
        %v5350 = vadd.f32 %v5349, 0.041655596
        %v5351 = vmul.f32 %v5348, %v5350
        %v5352 = vadd.f32 %v5351, -0.4999988
        %v5353 = vmul.f32 %v5348, %v5352
        %v5354 = vadd.f32 1.0, %v5353
        %v5355 = vmul.f32 %v5346, %v5346
        %v5356 = vmul.f32 %v5355, -0.00019511016
        %v5357 = vadd.f32 %v5356, 0.008332121
        %v5358 = vmul.f32 %v5355, %v5357
        %v5359 = vadd.f32 %v5358, -0.16666654
        %v5360 = vmul.f32 %v5355, %v5359
        %v5361 = vadd.f32 %v5360, 1.0
        %v5362 = vmul.f32 %v5361, %v5346
        %vm5363 = vweird.f32 %v226
        %v5364 = vadd.s32 %v5347, 3
        %v5365 = vand.u32 %v5364, 3
        %vm5366 = vcmp.lt.s32.totalorder %v5365, 2
        %vm5367 = vcmp.eq.s32.totalorder %v5365, 0
        %v5368 = vxor.u32 %v5362, 2147483648
        %v5369 = vsel %vm5367, %v5354, %v5368
        %vm5370 = vcmp.eq.s32.totalorder %v5365, 2
        %v5371 = vxor.u32 %v5354, 2147483648
        %v5372 = vsel %vm5370, %v5371, %v5362
        %v5373 = vsel %vm5366, %v5369, %v5372
        %v5374 = vsel %vm5363, nan, %v5373
        %v5375 = vand.u32 2147483647, %v227
        %vm5376 = vcmp.le.f32.partialorder %v5375, 0.7853982
        %vm5377 = vcmp.lt.s32.totalorder %v227, 0
        %v5378 = vand.u32 %v227, 2139095040
        %v5379 = vshrl.u32 %v5378, 23
        %v5380 = vsub.s32 %v5379, 127
        %v5381 = vand.u32 2147483647, %v227
        %v5382 = vand.u32 %v5381, 8388607
        %v5383 = vor.u32 %v5382, 8388608
        %v5384 = vsub.s32 0, %v5383
        %v5385 = vadd.s32 %v5380, 1
        %vm5386 = vcmp.gt.s32.totalorder %v5385, 0
        %v5387 = vsel %vm5386, %v5385, 0
        %v5388 = vshrl.u32 %v5387, 5
        %v5389 = vand.u32 %v5387, 31
        %v5390 = vsub.s32 32, %v5389
        %v5391 = vshrl.u32 683565275, %v5390
        %v5392 = vshll.u32 683565275, %v5389
        %v5393 = vshrl.u32 2475754826, %v5390
        %v5394 = vor.u32 %v5392, %v5393
        %v5395 = vshll.u32 2475754826, %v5389
        %v5396 = vshrl.u32 2131351028, %v5390
        %v5397 = vor.u32 %v5395, %v5396
        %v5398 = vshll.u32 2131351028, %v5389
        %v5399 = vshrl.u32 2102212464, %v5390
        %v5400 = vor.u32 %v5398, %v5399
        %v5401 = vshll.u32 2102212464, %v5389
        %v5402 = vshrl.u32 920167782, %v5390
        %v5403 = vor.u32 %v5401, %v5402
        %v5404 = vshll.u32 920167782, %v5389
        %v5405 = vshrl.u32 1326507024, %v5390
        %v5406 = vor.u32 %v5404, %v5405
        %vm5407 = vcmp.lt.s32.totalorder %v5388, 1
        %vm5408 = vcmp.lt.s32.totalorder %v5388, 2
        %vm5409 = vcmp.lt.s32.totalorder %v5388, 3
        %vm5410 = vcmp.lt.s32.totalorder %v5388, 4
        %v5411 = vsel %vm5407, %v5391, %v5394
        %v5412 = vsel %vm5410, %v5400, 2102212464
        %v5413 = vsel %vm5409, %v5397, %v5412
        %v5414 = vsel %vm5408, %v5411, %v5413
        %v5415 = vsel %vm5407, %v5394, %v5397
        %v5416 = vsel %vm5410, %v5403, 920167782
        %v5417 = vsel %vm5409, %v5400, %v5416
        %v5418 = vsel %vm5408, %v5415, %v5417
        %v5419 = vsel %vm5407, %v5397, %v5400
        %v5420 = vsel %vm5410, %v5406, 1326507024
        %v5421 = vsel %vm5409, %v5403, %v5420
        %v5422 = vsel %vm5408, %v5419, %v5421
        %v5423 = vshll.u32 %v5383, 8
        %v5424 = vand.u32 %v5423, 65535
        %v5425 = vshrl.u32 %v5423, 16
        %v5426 = vand.u32 %v5422, 65535
        %v5427 = vshrl.u32 %v5422, 16
        %v5428 = vmul.u32 %v5424, %v5426
        %v5429 = vmul.u32 %v5424, %v5427
        %v5430 = vmul.u32 %v5425, %v5426
        %v5431 = vmul.u32 %v5425, %v5427
        %v5432 = vshll.u32 %v5429, 16
        %v5433 = vshrl.u32 %v5429, 16
        %v5434 = vshll.u32 %v5430, 16
        %v5435 = vshrl.u32 %v5430, 16
        %vm5436 = vc.u32 %v5428, %v5432
        %v5437 = vsel %vm5436, 1, 0
        %v5438 = vadd.s32 %v5428, %v5432
        %v5439 = vadd.s32 %v5431, %v5437
        %vm5440 = vc.u32 %v5438, %v5434
        %v5441 = vsel %vm5440, 1, 0
        %v5442 = vadd.s32 %v5438, %v5434
        %v5443 = vadd.s32 %v5439, %v5441
        %v5444 = vadd.s32 %v5443, %v5433
        %v5445 = vadd.s32 %v5444, %v5435
        %v5446 = vand.u32 %v5423, 65535
        %v5447 = vshrl.u32 %v5423, 16
        %v5448 = vand.u32 %v5418, 65535
        %v5449 = vshrl.u32 %v5418, 16
        %v5450 = vmul.u32 %v5446, %v5448
        %v5451 = vmul.u32 %v5446, %v5449
        %v5452 = vmul.u32 %v5447, %v5448
        %v5453 = vmul.u32 %v5447, %v5449
        %v5454 = vshll.u32 %v5451, 16
        %v5455 = vshrl.u32 %v5451, 16
        %v5456 = vshll.u32 %v5452, 16
        %v5457 = vshrl.u32 %v5452, 16
        %vm5458 = vc.u32 %v5450, %v5454
        %v5459 = vsel %vm5458, 1, 0
        %v5460 = vadd.s32 %v5450, %v5454
        %v5461 = vadd.s32 %v5453, %v5459
        %vm5462 = vc.u32 %v5460, %v5456
        %v5463 = vsel %vm5462, 1, 0
        %v5464 = vadd.s32 %v5460, %v5456
        %v5465 = vadd.s32 %v5461, %v5463
        %v5466 = vadd.s32 %v5465, %v5455
        %v5467 = vadd.s32 %v5466, %v5457
        %v5468 = vmul.u32 %v5423, %v5414
        %v5469 = vadd.s32 %v5445, %v5464
        %vm5470 = vc.u32 %v5445, %v5464
        %v5471 = vadd.s32 %v5467, 1
        %v5472 = vsel %vm5470, %v5471, %v5467
        %v5473 = vadd.s32 %v5468, %v5472
        %v5474 = vadd.s32 %v5473, 536870912
        %v5475 = vshrl.u32 %v5474, 30
        %v5476 = vshll.u32 %v5475, 30
        %v5477 = vsub.s32 %v5473, %v5476
        %vm5478 = vcmp.lt.s32.totalorder %v5477, 0
        %v5479 = vsub.s32 0, %v5477
        %v5480 = vsel %vm5478, %v5479, %v5477
        %v5481 = vclz %v5480
        %v5482 = vsub.s32 %v5481, 2
        %vm5483 = vcmp.gt.s32.totalorder 0, %v5482
        %v5484 = vsel %vm5483, 0, %v5482
        %v5485 = vsub.s32 32, %v5484
        %v5486 = vshll.u32 %v5477, %v5484
        %v5487 = vshrl.u32 %v5469, %v5485
        %v5488 = vor.u32 %v5486, %v5487
        %v5489 = vsub.s32 4294967266, %v5484
        %v5490 = vadd.s32 %v5489, 127
        %v5491 = vshll.u32 %v5490, 23
        %v5492 = vor.u32 4788187, %v5491
        %v5493 = vand.u32 2147483647, %v5492
        %v5495 = vcvt.s32.f32 %v5488
        %v5496 = vmul.f32 %v5495, %v5493
        %v5497 = vxor.u32 %v5496, 2147483648
        %v5498 = vsel %vm5377, %v5497, %v5496
        %v5499 = vsub.s32 4, %v5475
        %v5500 = vsel %vm5377, %v5499, %v5475
        %v5501 = vsel %vm5376, %v227, %v5498
        %v5502 = vsel %vm5376, 0, %v5500
        %v5503 = vmul.f32 %v5501, %v5501
        %v5504 = vmul.f32 %v5503, -0.001358992
        %v5505 = vadd.f32 %v5504, 0.041655596
        %v5506 = vmul.f32 %v5503, %v5505
        %v5507 = vadd.f32 %v5506, -0.4999988
        %v5508 = vmul.f32 %v5503, %v5507
        %v5509 = vadd.f32 1.0, %v5508
        %v5510 = vmul.f32 %v5501, %v5501
        %v5511 = vmul.f32 %v5510, -0.00019511016
        %v5512 = vadd.f32 %v5511, 0.008332121
        %v5513 = vmul.f32 %v5510, %v5512
        %v5514 = vadd.f32 %v5513, -0.16666654
        %v5515 = vmul.f32 %v5510, %v5514
        %v5516 = vadd.f32 %v5515, 1.0
        %v5517 = vmul.f32 %v5516, %v5501
        %vm5518 = vweird.f32 %v227
        %v5519 = vadd.s32 %v5502, 3
        %v5520 = vand.u32 %v5519, 3
        %vm5521 = vcmp.lt.s32.totalorder %v5520, 2
        %vm5522 = vcmp.eq.s32.totalorder %v5520, 0
        %v5523 = vxor.u32 %v5517, 2147483648
        %v5524 = vsel %vm5522, %v5509, %v5523
        %vm5525 = vcmp.eq.s32.totalorder %v5520, 2
        %v5526 = vxor.u32 %v5509, 2147483648
        %v5527 = vsel %vm5525, %v5526, %v5517
        %v5528 = vsel %vm5521, %v5524, %v5527
        %v5529 = vsel %vm5518, nan, %v5528
        %v5530 = vand.u32 2147483647, %v228
        %vm5531 = vcmp.le.f32.partialorder %v5530, 0.7853982
        %vm5532 = vcmp.lt.s32.totalorder %v228, 0
        %v5533 = vand.u32 %v228, 2139095040
        %v5534 = vshrl.u32 %v5533, 23
        %v5535 = vsub.s32 %v5534, 127
        %v5536 = vand.u32 2147483647, %v228
        %v5537 = vand.u32 %v5536, 8388607
        %v5538 = vor.u32 %v5537, 8388608
        %v5539 = vsub.s32 0, %v5538
        %v5540 = vadd.s32 %v5535, 1
        %vm5541 = vcmp.gt.s32.totalorder %v5540, 0
        %v5542 = vsel %vm5541, %v5540, 0
        %v5543 = vshrl.u32 %v5542, 5
        %v5544 = vand.u32 %v5542, 31
        %v5545 = vsub.s32 32, %v5544
        %v5546 = vshrl.u32 683565275, %v5545
        %v5547 = vshll.u32 683565275, %v5544
        %v5548 = vshrl.u32 2475754826, %v5545
        %v5549 = vor.u32 %v5547, %v5548
        %v5550 = vshll.u32 2475754826, %v5544
        %v5551 = vshrl.u32 2131351028, %v5545
        %v5552 = vor.u32 %v5550, %v5551
        %v5553 = vshll.u32 2131351028, %v5544
        %v5554 = vshrl.u32 2102212464, %v5545
        %v5555 = vor.u32 %v5553, %v5554
        %v5556 = vshll.u32 2102212464, %v5544
        %v5557 = vshrl.u32 920167782, %v5545
        %v5558 = vor.u32 %v5556, %v5557
        %v5559 = vshll.u32 920167782, %v5544
        %v5560 = vshrl.u32 1326507024, %v5545
        %v5561 = vor.u32 %v5559, %v5560
        %vm5562 = vcmp.lt.s32.totalorder %v5543, 1
        %vm5563 = vcmp.lt.s32.totalorder %v5543, 2
        %vm5564 = vcmp.lt.s32.totalorder %v5543, 3
        %vm5565 = vcmp.lt.s32.totalorder %v5543, 4
        %v5566 = vsel %vm5562, %v5546, %v5549
        %v5567 = vsel %vm5565, %v5555, 2102212464
        %v5568 = vsel %vm5564, %v5552, %v5567
        %v5569 = vsel %vm5563, %v5566, %v5568
        %v5570 = vsel %vm5562, %v5549, %v5552
        %v5571 = vsel %vm5565, %v5558, 920167782
        %v5572 = vsel %vm5564, %v5555, %v5571
        %v5573 = vsel %vm5563, %v5570, %v5572
        %v5574 = vsel %vm5562, %v5552, %v5555
        %v5575 = vsel %vm5565, %v5561, 1326507024
        %v5576 = vsel %vm5564, %v5558, %v5575
        %v5577 = vsel %vm5563, %v5574, %v5576
        %v5578 = vshll.u32 %v5538, 8
        %v5579 = vand.u32 %v5578, 65535
        %v5580 = vshrl.u32 %v5578, 16
        %v5581 = vand.u32 %v5577, 65535
        %v5582 = vshrl.u32 %v5577, 16
        %v5583 = vmul.u32 %v5579, %v5581
        %v5584 = vmul.u32 %v5579, %v5582
        %v5585 = vmul.u32 %v5580, %v5581
        %v5586 = vmul.u32 %v5580, %v5582
        %v5587 = vshll.u32 %v5584, 16
        %v5588 = vshrl.u32 %v5584, 16
        %v5589 = vshll.u32 %v5585, 16
        %v5590 = vshrl.u32 %v5585, 16
        %vm5591 = vc.u32 %v5583, %v5587
        %v5592 = vsel %vm5591, 1, 0
        %v5593 = vadd.s32 %v5583, %v5587
        %v5594 = vadd.s32 %v5586, %v5592
        %vm5595 = vc.u32 %v5593, %v5589
        %v5596 = vsel %vm5595, 1, 0
        %v5597 = vadd.s32 %v5593, %v5589
        %v5598 = vadd.s32 %v5594, %v5596
        %v5599 = vadd.s32 %v5598, %v5588
        %v5600 = vadd.s32 %v5599, %v5590
        %v5601 = vand.u32 %v5578, 65535
        %v5602 = vshrl.u32 %v5578, 16
        %v5603 = vand.u32 %v5573, 65535
        %v5604 = vshrl.u32 %v5573, 16
        %v5605 = vmul.u32 %v5601, %v5603
        %v5606 = vmul.u32 %v5601, %v5604
        %v5607 = vmul.u32 %v5602, %v5603
        %v5608 = vmul.u32 %v5602, %v5604
        %v5609 = vshll.u32 %v5606, 16
        %v5610 = vshrl.u32 %v5606, 16
        %v5611 = vshll.u32 %v5607, 16
        %v5612 = vshrl.u32 %v5607, 16
        %vm5613 = vc.u32 %v5605, %v5609
        %v5614 = vsel %vm5613, 1, 0
        %v5615 = vadd.s32 %v5605, %v5609
        %v5616 = vadd.s32 %v5608, %v5614
        %vm5617 = vc.u32 %v5615, %v5611
        %v5618 = vsel %vm5617, 1, 0
        %v5619 = vadd.s32 %v5615, %v5611
        %v5620 = vadd.s32 %v5616, %v5618
        %v5621 = vadd.s32 %v5620, %v5610
        %v5622 = vadd.s32 %v5621, %v5612
        %v5623 = vmul.u32 %v5578, %v5569
        %v5624 = vadd.s32 %v5600, %v5619
        %vm5625 = vc.u32 %v5600, %v5619
        %v5626 = vadd.s32 %v5622, 1
        %v5627 = vsel %vm5625, %v5626, %v5622
        %v5628 = vadd.s32 %v5623, %v5627
        %v5629 = vadd.s32 %v5628, 536870912
        %v5630 = vshrl.u32 %v5629, 30
        %v5631 = vshll.u32 %v5630, 30
        %v5632 = vsub.s32 %v5628, %v5631
        %vm5633 = vcmp.lt.s32.totalorder %v5632, 0
        %v5634 = vsub.s32 0, %v5632
        %v5635 = vsel %vm5633, %v5634, %v5632
        %v5636 = vclz %v5635
        %v5637 = vsub.s32 %v5636, 2
        %vm5638 = vcmp.gt.s32.totalorder 0, %v5637
        %v5639 = vsel %vm5638, 0, %v5637
        %v5640 = vsub.s32 32, %v5639
        %v5641 = vshll.u32 %v5632, %v5639
        %v5642 = vshrl.u32 %v5624, %v5640
        %v5643 = vor.u32 %v5641, %v5642
        %v5644 = vsub.s32 4294967266, %v5639
        %v5645 = vadd.s32 %v5644, 127
        %v5646 = vshll.u32 %v5645, 23
        %v5647 = vor.u32 4788187, %v5646
        %v5648 = vand.u32 2147483647, %v5647
        %v5650 = vcvt.s32.f32 %v5643
        %v5651 = vmul.f32 %v5650, %v5648
        %v5652 = vxor.u32 %v5651, 2147483648
        %v5653 = vsel %vm5532, %v5652, %v5651
        %v5654 = vsub.s32 4, %v5630
        %v5655 = vsel %vm5532, %v5654, %v5630
        %v5656 = vsel %vm5531, %v228, %v5653
        %v5657 = vsel %vm5531, 0, %v5655
        %v5658 = vmul.f32 %v5656, %v5656
        %v5659 = vmul.f32 %v5658, -0.001358992
        %v5660 = vadd.f32 %v5659, 0.041655596
        %v5661 = vmul.f32 %v5658, %v5660
        %v5662 = vadd.f32 %v5661, -0.4999988
        %v5663 = vmul.f32 %v5658, %v5662
        %v5664 = vadd.f32 1.0, %v5663
        %v5665 = vmul.f32 %v5656, %v5656
        %v5666 = vmul.f32 %v5665, -0.00019511016
        %v5667 = vadd.f32 %v5666, 0.008332121
        %v5668 = vmul.f32 %v5665, %v5667
        %v5669 = vadd.f32 %v5668, -0.16666654
        %v5670 = vmul.f32 %v5665, %v5669
        %v5671 = vadd.f32 %v5670, 1.0
        %v5672 = vmul.f32 %v5671, %v5656
        %vm5673 = vweird.f32 %v228
        %v5674 = vadd.s32 %v5657, 3
        %v5675 = vand.u32 %v5674, 3
        %vm5676 = vcmp.lt.s32.totalorder %v5675, 2
        %vm5677 = vcmp.eq.s32.totalorder %v5675, 0
        %v5678 = vxor.u32 %v5672, 2147483648
        %v5679 = vsel %vm5677, %v5664, %v5678
        %vm5680 = vcmp.eq.s32.totalorder %v5675, 2
        %v5681 = vxor.u32 %v5664, 2147483648
        %v5682 = vsel %vm5680, %v5681, %v5672
        %v5683 = vsel %vm5676, %v5679, %v5682
        %v5684 = vsel %vm5673, nan, %v5683
        %v5685 = vand.u32 2147483647, %v229
        %vm5686 = vcmp.le.f32.partialorder %v5685, 0.7853982
        %vm5687 = vcmp.lt.s32.totalorder %v229, 0
        %v5688 = vand.u32 %v229, 2139095040
        %v5689 = vshrl.u32 %v5688, 23
        %v5690 = vsub.s32 %v5689, 127
        %v5691 = vand.u32 2147483647, %v229
        %v5692 = vand.u32 %v5691, 8388607
        %v5693 = vor.u32 %v5692, 8388608
        %v5694 = vsub.s32 0, %v5693
        %v5695 = vadd.s32 %v5690, 1
        %vm5696 = vcmp.gt.s32.totalorder %v5695, 0
        %v5697 = vsel %vm5696, %v5695, 0
        %v5698 = vshrl.u32 %v5697, 5
        %v5699 = vand.u32 %v5697, 31
        %v5700 = vsub.s32 32, %v5699
        %v5701 = vshrl.u32 683565275, %v5700
        %v5702 = vshll.u32 683565275, %v5699
        %v5703 = vshrl.u32 2475754826, %v5700
        %v5704 = vor.u32 %v5702, %v5703
        %v5705 = vshll.u32 2475754826, %v5699
        %v5706 = vshrl.u32 2131351028, %v5700
        %v5707 = vor.u32 %v5705, %v5706
        %v5708 = vshll.u32 2131351028, %v5699
        %v5709 = vshrl.u32 2102212464, %v5700
        %v5710 = vor.u32 %v5708, %v5709
        %v5711 = vshll.u32 2102212464, %v5699
        %v5712 = vshrl.u32 920167782, %v5700
        %v5713 = vor.u32 %v5711, %v5712
        %v5714 = vshll.u32 920167782, %v5699
        %v5715 = vshrl.u32 1326507024, %v5700
        %v5716 = vor.u32 %v5714, %v5715
        %vm5717 = vcmp.lt.s32.totalorder %v5698, 1
        %vm5718 = vcmp.lt.s32.totalorder %v5698, 2
        %vm5719 = vcmp.lt.s32.totalorder %v5698, 3
        %vm5720 = vcmp.lt.s32.totalorder %v5698, 4
        %v5721 = vsel %vm5717, %v5701, %v5704
        %v5722 = vsel %vm5720, %v5710, 2102212464
        %v5723 = vsel %vm5719, %v5707, %v5722
        %v5724 = vsel %vm5718, %v5721, %v5723
        %v5725 = vsel %vm5717, %v5704, %v5707
        %v5726 = vsel %vm5720, %v5713, 920167782
        %v5727 = vsel %vm5719, %v5710, %v5726
        %v5728 = vsel %vm5718, %v5725, %v5727
        %v5729 = vsel %vm5717, %v5707, %v5710
        %v5730 = vsel %vm5720, %v5716, 1326507024
        %v5731 = vsel %vm5719, %v5713, %v5730
        %v5732 = vsel %vm5718, %v5729, %v5731
        %v5733 = vshll.u32 %v5693, 8
        %v5734 = vand.u32 %v5733, 65535
        %v5735 = vshrl.u32 %v5733, 16
        %v5736 = vand.u32 %v5732, 65535
        %v5737 = vshrl.u32 %v5732, 16
        %v5738 = vmul.u32 %v5734, %v5736
        %v5739 = vmul.u32 %v5734, %v5737
        %v5740 = vmul.u32 %v5735, %v5736
        %v5741 = vmul.u32 %v5735, %v5737
        %v5742 = vshll.u32 %v5739, 16
        %v5743 = vshrl.u32 %v5739, 16
        %v5744 = vshll.u32 %v5740, 16
        %v5745 = vshrl.u32 %v5740, 16
        %vm5746 = vc.u32 %v5738, %v5742
        %v5747 = vsel %vm5746, 1, 0
        %v5748 = vadd.s32 %v5738, %v5742
        %v5749 = vadd.s32 %v5741, %v5747
        %vm5750 = vc.u32 %v5748, %v5744
        %v5751 = vsel %vm5750, 1, 0
        %v5752 = vadd.s32 %v5748, %v5744
        %v5753 = vadd.s32 %v5749, %v5751
        %v5754 = vadd.s32 %v5753, %v5743
        %v5755 = vadd.s32 %v5754, %v5745
        %v5756 = vand.u32 %v5733, 65535
        %v5757 = vshrl.u32 %v5733, 16
        %v5758 = vand.u32 %v5728, 65535
        %v5759 = vshrl.u32 %v5728, 16
        %v5760 = vmul.u32 %v5756, %v5758
        %v5761 = vmul.u32 %v5756, %v5759
        %v5762 = vmul.u32 %v5757, %v5758
        %v5763 = vmul.u32 %v5757, %v5759
        %v5764 = vshll.u32 %v5761, 16
        %v5765 = vshrl.u32 %v5761, 16
        %v5766 = vshll.u32 %v5762, 16
        %v5767 = vshrl.u32 %v5762, 16
        %vm5768 = vc.u32 %v5760, %v5764
        %v5769 = vsel %vm5768, 1, 0
        %v5770 = vadd.s32 %v5760, %v5764
        %v5771 = vadd.s32 %v5763, %v5769
        %vm5772 = vc.u32 %v5770, %v5766
        %v5773 = vsel %vm5772, 1, 0
        %v5774 = vadd.s32 %v5770, %v5766
        %v5775 = vadd.s32 %v5771, %v5773
        %v5776 = vadd.s32 %v5775, %v5765
        %v5777 = vadd.s32 %v5776, %v5767
        %v5778 = vmul.u32 %v5733, %v5724
        %v5779 = vadd.s32 %v5755, %v5774
        %vm5780 = vc.u32 %v5755, %v5774
        %v5781 = vadd.s32 %v5777, 1
        %v5782 = vsel %vm5780, %v5781, %v5777
        %v5783 = vadd.s32 %v5778, %v5782
        %v5784 = vadd.s32 %v5783, 536870912
        %v5785 = vshrl.u32 %v5784, 30
        %v5786 = vshll.u32 %v5785, 30
        %v5787 = vsub.s32 %v5783, %v5786
        %vm5788 = vcmp.lt.s32.totalorder %v5787, 0
        %v5789 = vsub.s32 0, %v5787
        %v5790 = vsel %vm5788, %v5789, %v5787
        %v5791 = vclz %v5790
        %v5792 = vsub.s32 %v5791, 2
        %vm5793 = vcmp.gt.s32.totalorder 0, %v5792
        %v5794 = vsel %vm5793, 0, %v5792
        %v5795 = vsub.s32 32, %v5794
        %v5796 = vshll.u32 %v5787, %v5794
        %v5797 = vshrl.u32 %v5779, %v5795
        %v5798 = vor.u32 %v5796, %v5797
        %v5799 = vsub.s32 4294967266, %v5794
        %v5800 = vadd.s32 %v5799, 127
        %v5801 = vshll.u32 %v5800, 23
        %v5802 = vor.u32 4788187, %v5801
        %v5803 = vand.u32 2147483647, %v5802
        %v5805 = vcvt.s32.f32 %v5798
        %v5806 = vmul.f32 %v5805, %v5803
        %v5807 = vxor.u32 %v5806, 2147483648
        %v5808 = vsel %vm5687, %v5807, %v5806
        %v5809 = vsub.s32 4, %v5785
        %v5810 = vsel %vm5687, %v5809, %v5785
        %v5811 = vsel %vm5686, %v229, %v5808
        %v5812 = vsel %vm5686, 0, %v5810
        %v5813 = vmul.f32 %v5811, %v5811
        %v5814 = vmul.f32 %v5813, -0.001358992
        %v5815 = vadd.f32 %v5814, 0.041655596
        %v5816 = vmul.f32 %v5813, %v5815
        %v5817 = vadd.f32 %v5816, -0.4999988
        %v5818 = vmul.f32 %v5813, %v5817
        %v5819 = vadd.f32 1.0, %v5818
        %v5820 = vmul.f32 %v5811, %v5811
        %v5821 = vmul.f32 %v5820, -0.00019511016
        %v5822 = vadd.f32 %v5821, 0.008332121
        %v5823 = vmul.f32 %v5820, %v5822
        %v5824 = vadd.f32 %v5823, -0.16666654
        %v5825 = vmul.f32 %v5820, %v5824
        %v5826 = vadd.f32 %v5825, 1.0
        %v5827 = vmul.f32 %v5826, %v5811
        %vm5828 = vweird.f32 %v229
        %v5829 = vadd.s32 %v5812, 3
        %v5830 = vand.u32 %v5829, 3
        %vm5831 = vcmp.lt.s32.totalorder %v5830, 2
        %vm5832 = vcmp.eq.s32.totalorder %v5830, 0
        %v5833 = vxor.u32 %v5827, 2147483648
        %v5834 = vsel %vm5832, %v5819, %v5833
        %vm5835 = vcmp.eq.s32.totalorder %v5830, 2
        %v5836 = vxor.u32 %v5819, 2147483648
        %v5837 = vsel %vm5835, %v5836, %v5827
        %v5838 = vsel %vm5831, %v5834, %v5837
        %v5839 = vsel %vm5828, nan, %v5838
        %v5840 = vand.u32 2147483647, %v226
        %vm5841 = vcmp.le.f32.partialorder %v5840, 0.7853982
        %vm5842 = vcmp.lt.s32.totalorder %v226, 0
        %v5843 = vand.u32 %v226, 2139095040
        %v5844 = vshrl.u32 %v5843, 23
        %v5845 = vsub.s32 %v5844, 127
        %v5846 = vand.u32 2147483647, %v226
        %v5847 = vand.u32 %v5846, 8388607
        %v5848 = vor.u32 %v5847, 8388608
        %v5849 = vsub.s32 0, %v5848
        %v5850 = vadd.s32 %v5845, 1
        %vm5851 = vcmp.gt.s32.totalorder %v5850, 0
        %v5852 = vsel %vm5851, %v5850, 0
        %v5853 = vshrl.u32 %v5852, 5
        %v5854 = vand.u32 %v5852, 31
        %v5855 = vsub.s32 32, %v5854
        %v5856 = vshrl.u32 683565275, %v5855
        %v5857 = vshll.u32 683565275, %v5854
        %v5858 = vshrl.u32 2475754826, %v5855
        %v5859 = vor.u32 %v5857, %v5858
        %v5860 = vshll.u32 2475754826, %v5854
        %v5861 = vshrl.u32 2131351028, %v5855
        %v5862 = vor.u32 %v5860, %v5861
        %v5863 = vshll.u32 2131351028, %v5854
        %v5864 = vshrl.u32 2102212464, %v5855
        %v5865 = vor.u32 %v5863, %v5864
        %v5866 = vshll.u32 2102212464, %v5854
        %v5867 = vshrl.u32 920167782, %v5855
        %v5868 = vor.u32 %v5866, %v5867
        %v5869 = vshll.u32 920167782, %v5854
        %v5870 = vshrl.u32 1326507024, %v5855
        %v5871 = vor.u32 %v5869, %v5870
        %vm5872 = vcmp.lt.s32.totalorder %v5853, 1
        %vm5873 = vcmp.lt.s32.totalorder %v5853, 2
        %vm5874 = vcmp.lt.s32.totalorder %v5853, 3
        %vm5875 = vcmp.lt.s32.totalorder %v5853, 4
        %v5876 = vsel %vm5872, %v5856, %v5859
        %v5877 = vsel %vm5875, %v5865, 2102212464
        %v5878 = vsel %vm5874, %v5862, %v5877
        %v5879 = vsel %vm5873, %v5876, %v5878
        %v5880 = vsel %vm5872, %v5859, %v5862
        %v5881 = vsel %vm5875, %v5868, 920167782
        %v5882 = vsel %vm5874, %v5865, %v5881
        %v5883 = vsel %vm5873, %v5880, %v5882
        %v5884 = vsel %vm5872, %v5862, %v5865
        %v5885 = vsel %vm5875, %v5871, 1326507024
        %v5886 = vsel %vm5874, %v5868, %v5885
        %v5887 = vsel %vm5873, %v5884, %v5886
        %v5888 = vshll.u32 %v5848, 8
        %v5889 = vand.u32 %v5888, 65535
        %v5890 = vshrl.u32 %v5888, 16
        %v5891 = vand.u32 %v5887, 65535
        %v5892 = vshrl.u32 %v5887, 16
        %v5893 = vmul.u32 %v5889, %v5891
        %v5894 = vmul.u32 %v5889, %v5892
        %v5895 = vmul.u32 %v5890, %v5891
        %v5896 = vmul.u32 %v5890, %v5892
        %v5897 = vshll.u32 %v5894, 16
        %v5898 = vshrl.u32 %v5894, 16
        %v5899 = vshll.u32 %v5895, 16
        %v5900 = vshrl.u32 %v5895, 16
        %vm5901 = vc.u32 %v5893, %v5897
        %v5902 = vsel %vm5901, 1, 0
        %v5903 = vadd.s32 %v5893, %v5897
        %v5904 = vadd.s32 %v5896, %v5902
        %vm5905 = vc.u32 %v5903, %v5899
        %v5906 = vsel %vm5905, 1, 0
        %v5907 = vadd.s32 %v5903, %v5899
        %v5908 = vadd.s32 %v5904, %v5906
        %v5909 = vadd.s32 %v5908, %v5898
        %v5910 = vadd.s32 %v5909, %v5900
        %v5911 = vand.u32 %v5888, 65535
        %v5912 = vshrl.u32 %v5888, 16
        %v5913 = vand.u32 %v5883, 65535
        %v5914 = vshrl.u32 %v5883, 16
        %v5915 = vmul.u32 %v5911, %v5913
        %v5916 = vmul.u32 %v5911, %v5914
        %v5917 = vmul.u32 %v5912, %v5913
        %v5918 = vmul.u32 %v5912, %v5914
        %v5919 = vshll.u32 %v5916, 16
        %v5920 = vshrl.u32 %v5916, 16
        %v5921 = vshll.u32 %v5917, 16
        %v5922 = vshrl.u32 %v5917, 16
        %vm5923 = vc.u32 %v5915, %v5919
        %v5924 = vsel %vm5923, 1, 0
        %v5925 = vadd.s32 %v5915, %v5919
        %v5926 = vadd.s32 %v5918, %v5924
        %vm5927 = vc.u32 %v5925, %v5921
        %v5928 = vsel %vm5927, 1, 0
        %v5929 = vadd.s32 %v5925, %v5921
        %v5930 = vadd.s32 %v5926, %v5928
        %v5931 = vadd.s32 %v5930, %v5920
        %v5932 = vadd.s32 %v5931, %v5922
        %v5933 = vmul.u32 %v5888, %v5879
        %v5934 = vadd.s32 %v5910, %v5929
        %vm5935 = vc.u32 %v5910, %v5929
        %v5936 = vadd.s32 %v5932, 1
        %v5937 = vsel %vm5935, %v5936, %v5932
        %v5938 = vadd.s32 %v5933, %v5937
        %v5939 = vadd.s32 %v5938, 536870912
        %v5940 = vshrl.u32 %v5939, 30
        %v5941 = vshll.u32 %v5940, 30
        %v5942 = vsub.s32 %v5938, %v5941
        %vm5943 = vcmp.lt.s32.totalorder %v5942, 0
        %v5944 = vsub.s32 0, %v5942
        %v5945 = vsel %vm5943, %v5944, %v5942
        %v5946 = vclz %v5945
        %v5947 = vsub.s32 %v5946, 2
        %vm5948 = vcmp.gt.s32.totalorder 0, %v5947
        %v5949 = vsel %vm5948, 0, %v5947
        %v5950 = vsub.s32 32, %v5949
        %v5951 = vshll.u32 %v5942, %v5949
        %v5952 = vshrl.u32 %v5934, %v5950
        %v5953 = vor.u32 %v5951, %v5952
        %v5954 = vsub.s32 4294967266, %v5949
        %v5955 = vadd.s32 %v5954, 127
        %v5956 = vshll.u32 %v5955, 23
        %v5957 = vor.u32 4788187, %v5956
        %v5958 = vand.u32 2147483647, %v5957
        %v5960 = vcvt.s32.f32 %v5953
        %v5961 = vmul.f32 %v5960, %v5958
        %v5962 = vxor.u32 %v5961, 2147483648
        %v5963 = vsel %vm5842, %v5962, %v5961
        %v5964 = vsub.s32 4, %v5940
        %v5965 = vsel %vm5842, %v5964, %v5940
        %v5966 = vsel %vm5841, %v226, %v5963
        %v5967 = vsel %vm5841, 0, %v5965
        %v5968 = vmul.f32 %v5966, %v5966
        %v5969 = vmul.f32 %v5968, -0.001358992
        %v5970 = vadd.f32 %v5969, 0.041655596
        %v5971 = vmul.f32 %v5968, %v5970
        %v5972 = vadd.f32 %v5971, -0.4999988
        %v5973 = vmul.f32 %v5968, %v5972
        %v5974 = vadd.f32 1.0, %v5973
        %v5975 = vmul.f32 %v5966, %v5966
        %v5976 = vmul.f32 %v5975, -0.00019511016
        %v5977 = vadd.f32 %v5976, 0.008332121
        %v5978 = vmul.f32 %v5975, %v5977
        %v5979 = vadd.f32 %v5978, -0.16666654
        %v5980 = vmul.f32 %v5975, %v5979
        %v5981 = vadd.f32 %v5980, 1.0
        %v5982 = vmul.f32 %v5981, %v5966
        %vm5983 = vweird.f32 %v226
        %v5984 = vand.u32 %v5967, 3
        %vm5985 = vcmp.lt.s32.totalorder %v5984, 2
        %vm5986 = vcmp.eq.s32.totalorder %v5984, 0
        %v5987 = vxor.u32 %v5982, 2147483648
        %v5988 = vsel %vm5986, %v5974, %v5987
        %vm5989 = vcmp.eq.s32.totalorder %v5984, 2
        %v5990 = vxor.u32 %v5974, 2147483648
        %v5991 = vsel %vm5989, %v5990, %v5982
        %v5992 = vsel %vm5985, %v5988, %v5991
        %v5993 = vsel %vm5983, nan, %v5992
        %v5994 = vand.u32 2147483647, %v227
        %vm5995 = vcmp.le.f32.partialorder %v5994, 0.7853982
        %vm5996 = vcmp.lt.s32.totalorder %v227, 0
        %v5997 = vand.u32 %v227, 2139095040
        %v5998 = vshrl.u32 %v5997, 23
        %v5999 = vsub.s32 %v5998, 127
        %v6000 = vand.u32 2147483647, %v227
        %v6001 = vand.u32 %v6000, 8388607
        %v6002 = vor.u32 %v6001, 8388608
        %v6003 = vsub.s32 0, %v6002
        %v6004 = vadd.s32 %v5999, 1
        %vm6005 = vcmp.gt.s32.totalorder %v6004, 0
        %v6006 = vsel %vm6005, %v6004, 0
        %v6007 = vshrl.u32 %v6006, 5
        %v6008 = vand.u32 %v6006, 31
        %v6009 = vsub.s32 32, %v6008
        %v6010 = vshrl.u32 683565275, %v6009
        %v6011 = vshll.u32 683565275, %v6008
        %v6012 = vshrl.u32 2475754826, %v6009
        %v6013 = vor.u32 %v6011, %v6012
        %v6014 = vshll.u32 2475754826, %v6008
        %v6015 = vshrl.u32 2131351028, %v6009
        %v6016 = vor.u32 %v6014, %v6015
        %v6017 = vshll.u32 2131351028, %v6008
        %v6018 = vshrl.u32 2102212464, %v6009
        %v6019 = vor.u32 %v6017, %v6018
        %v6020 = vshll.u32 2102212464, %v6008
        %v6021 = vshrl.u32 920167782, %v6009
        %v6022 = vor.u32 %v6020, %v6021
        %v6023 = vshll.u32 920167782, %v6008
        %v6024 = vshrl.u32 1326507024, %v6009
        %v6025 = vor.u32 %v6023, %v6024
        %vm6026 = vcmp.lt.s32.totalorder %v6007, 1
        %vm6027 = vcmp.lt.s32.totalorder %v6007, 2
        %vm6028 = vcmp.lt.s32.totalorder %v6007, 3
        %vm6029 = vcmp.lt.s32.totalorder %v6007, 4
        %v6030 = vsel %vm6026, %v6010, %v6013
        %v6031 = vsel %vm6029, %v6019, 2102212464
        %v6032 = vsel %vm6028, %v6016, %v6031
        %v6033 = vsel %vm6027, %v6030, %v6032
        %v6034 = vsel %vm6026, %v6013, %v6016
        %v6035 = vsel %vm6029, %v6022, 920167782
        %v6036 = vsel %vm6028, %v6019, %v6035
        %v6037 = vsel %vm6027, %v6034, %v6036
        %v6038 = vsel %vm6026, %v6016, %v6019
        %v6039 = vsel %vm6029, %v6025, 1326507024
        %v6040 = vsel %vm6028, %v6022, %v6039
        %v6041 = vsel %vm6027, %v6038, %v6040
        %v6042 = vshll.u32 %v6002, 8
        %v6043 = vand.u32 %v6042, 65535
        %v6044 = vshrl.u32 %v6042, 16
        %v6045 = vand.u32 %v6041, 65535
        %v6046 = vshrl.u32 %v6041, 16
        %v6047 = vmul.u32 %v6043, %v6045
        %v6048 = vmul.u32 %v6043, %v6046
        %v6049 = vmul.u32 %v6044, %v6045
        %v6050 = vmul.u32 %v6044, %v6046
        %v6051 = vshll.u32 %v6048, 16
        %v6052 = vshrl.u32 %v6048, 16
        %v6053 = vshll.u32 %v6049, 16
        %v6054 = vshrl.u32 %v6049, 16
        %vm6055 = vc.u32 %v6047, %v6051
        %v6056 = vsel %vm6055, 1, 0
        %v6057 = vadd.s32 %v6047, %v6051
        %v6058 = vadd.s32 %v6050, %v6056
        %vm6059 = vc.u32 %v6057, %v6053
        %v6060 = vsel %vm6059, 1, 0
        %v6061 = vadd.s32 %v6057, %v6053
        %v6062 = vadd.s32 %v6058, %v6060
        %v6063 = vadd.s32 %v6062, %v6052
        %v6064 = vadd.s32 %v6063, %v6054
        %v6065 = vand.u32 %v6042, 65535
        %v6066 = vshrl.u32 %v6042, 16
        %v6067 = vand.u32 %v6037, 65535
        %v6068 = vshrl.u32 %v6037, 16
        %v6069 = vmul.u32 %v6065, %v6067
        %v6070 = vmul.u32 %v6065, %v6068
        %v6071 = vmul.u32 %v6066, %v6067
        %v6072 = vmul.u32 %v6066, %v6068
        %v6073 = vshll.u32 %v6070, 16
        %v6074 = vshrl.u32 %v6070, 16
        %v6075 = vshll.u32 %v6071, 16
        %v6076 = vshrl.u32 %v6071, 16
        %vm6077 = vc.u32 %v6069, %v6073
        %v6078 = vsel %vm6077, 1, 0
        %v6079 = vadd.s32 %v6069, %v6073
        %v6080 = vadd.s32 %v6072, %v6078
        %vm6081 = vc.u32 %v6079, %v6075
        %v6082 = vsel %vm6081, 1, 0
        %v6083 = vadd.s32 %v6079, %v6075
        %v6084 = vadd.s32 %v6080, %v6082
        %v6085 = vadd.s32 %v6084, %v6074
        %v6086 = vadd.s32 %v6085, %v6076
        %v6087 = vmul.u32 %v6042, %v6033
        %v6088 = vadd.s32 %v6064, %v6083
        %vm6089 = vc.u32 %v6064, %v6083
        %v6090 = vadd.s32 %v6086, 1
        %v6091 = vsel %vm6089, %v6090, %v6086
        %v6092 = vadd.s32 %v6087, %v6091
        %v6093 = vadd.s32 %v6092, 536870912
        %v6094 = vshrl.u32 %v6093, 30
        %v6095 = vshll.u32 %v6094, 30
        %v6096 = vsub.s32 %v6092, %v6095
        %vm6097 = vcmp.lt.s32.totalorder %v6096, 0
        %v6098 = vsub.s32 0, %v6096
        %v6099 = vsel %vm6097, %v6098, %v6096
        %v6100 = vclz %v6099
        %v6101 = vsub.s32 %v6100, 2
        %vm6102 = vcmp.gt.s32.totalorder 0, %v6101
        %v6103 = vsel %vm6102, 0, %v6101
        %v6104 = vsub.s32 32, %v6103
        %v6105 = vshll.u32 %v6096, %v6103
        %v6106 = vshrl.u32 %v6088, %v6104
        %v6107 = vor.u32 %v6105, %v6106
        %v6108 = vsub.s32 4294967266, %v6103
        %v6109 = vadd.s32 %v6108, 127
        %v6110 = vshll.u32 %v6109, 23
        %v6111 = vor.u32 4788187, %v6110
        %v6112 = vand.u32 2147483647, %v6111
        %v6114 = vcvt.s32.f32 %v6107
        %v6115 = vmul.f32 %v6114, %v6112
        %v6116 = vxor.u32 %v6115, 2147483648
        %v6117 = vsel %vm5996, %v6116, %v6115
        %v6118 = vsub.s32 4, %v6094
        %v6119 = vsel %vm5996, %v6118, %v6094
        %v6120 = vsel %vm5995, %v227, %v6117
        %v6121 = vsel %vm5995, 0, %v6119
        %v6122 = vmul.f32 %v6120, %v6120
        %v6123 = vmul.f32 %v6122, -0.001358992
        %v6124 = vadd.f32 %v6123, 0.041655596
        %v6125 = vmul.f32 %v6122, %v6124
        %v6126 = vadd.f32 %v6125, -0.4999988
        %v6127 = vmul.f32 %v6122, %v6126
        %v6128 = vadd.f32 1.0, %v6127
        %v6129 = vmul.f32 %v6120, %v6120
        %v6130 = vmul.f32 %v6129, -0.00019511016
        %v6131 = vadd.f32 %v6130, 0.008332121
        %v6132 = vmul.f32 %v6129, %v6131
        %v6133 = vadd.f32 %v6132, -0.16666654
        %v6134 = vmul.f32 %v6129, %v6133
        %v6135 = vadd.f32 %v6134, 1.0
        %v6136 = vmul.f32 %v6135, %v6120
        %vm6137 = vweird.f32 %v227
        %v6138 = vand.u32 %v6121, 3
        %vm6139 = vcmp.lt.s32.totalorder %v6138, 2
        %vm6140 = vcmp.eq.s32.totalorder %v6138, 0
        %v6141 = vxor.u32 %v6136, 2147483648
        %v6142 = vsel %vm6140, %v6128, %v6141
        %vm6143 = vcmp.eq.s32.totalorder %v6138, 2
        %v6144 = vxor.u32 %v6128, 2147483648
        %v6145 = vsel %vm6143, %v6144, %v6136
        %v6146 = vsel %vm6139, %v6142, %v6145
        %v6147 = vsel %vm6137, nan, %v6146
        %v6148 = vand.u32 2147483647, %v228
        %vm6149 = vcmp.le.f32.partialorder %v6148, 0.7853982
        %vm6150 = vcmp.lt.s32.totalorder %v228, 0
        %v6151 = vand.u32 %v228, 2139095040
        %v6152 = vshrl.u32 %v6151, 23
        %v6153 = vsub.s32 %v6152, 127
        %v6154 = vand.u32 2147483647, %v228
        %v6155 = vand.u32 %v6154, 8388607
        %v6156 = vor.u32 %v6155, 8388608
        %v6157 = vsub.s32 0, %v6156
        %v6158 = vadd.s32 %v6153, 1
        %vm6159 = vcmp.gt.s32.totalorder %v6158, 0
        %v6160 = vsel %vm6159, %v6158, 0
        %v6161 = vshrl.u32 %v6160, 5
        %v6162 = vand.u32 %v6160, 31
        %v6163 = vsub.s32 32, %v6162
        %v6164 = vshrl.u32 683565275, %v6163
        %v6165 = vshll.u32 683565275, %v6162
        %v6166 = vshrl.u32 2475754826, %v6163
        %v6167 = vor.u32 %v6165, %v6166
        %v6168 = vshll.u32 2475754826, %v6162
        %v6169 = vshrl.u32 2131351028, %v6163
        %v6170 = vor.u32 %v6168, %v6169
        %v6171 = vshll.u32 2131351028, %v6162
        %v6172 = vshrl.u32 2102212464, %v6163
        %v6173 = vor.u32 %v6171, %v6172
        %v6174 = vshll.u32 2102212464, %v6162
        %v6175 = vshrl.u32 920167782, %v6163
        %v6176 = vor.u32 %v6174, %v6175
        %v6177 = vshll.u32 920167782, %v6162
        %v6178 = vshrl.u32 1326507024, %v6163
        %v6179 = vor.u32 %v6177, %v6178
        %vm6180 = vcmp.lt.s32.totalorder %v6161, 1
        %vm6181 = vcmp.lt.s32.totalorder %v6161, 2
        %vm6182 = vcmp.lt.s32.totalorder %v6161, 3
        %vm6183 = vcmp.lt.s32.totalorder %v6161, 4
        %v6184 = vsel %vm6180, %v6164, %v6167
        %v6185 = vsel %vm6183, %v6173, 2102212464
        %v6186 = vsel %vm6182, %v6170, %v6185
        %v6187 = vsel %vm6181, %v6184, %v6186
        %v6188 = vsel %vm6180, %v6167, %v6170
        %v6189 = vsel %vm6183, %v6176, 920167782
        %v6190 = vsel %vm6182, %v6173, %v6189
        %v6191 = vsel %vm6181, %v6188, %v6190
        %v6192 = vsel %vm6180, %v6170, %v6173
        %v6193 = vsel %vm6183, %v6179, 1326507024
        %v6194 = vsel %vm6182, %v6176, %v6193
        %v6195 = vsel %vm6181, %v6192, %v6194
        %v6196 = vshll.u32 %v6156, 8
        %v6197 = vand.u32 %v6196, 65535
        %v6198 = vshrl.u32 %v6196, 16
        %v6199 = vand.u32 %v6195, 65535
        %v6200 = vshrl.u32 %v6195, 16
        %v6201 = vmul.u32 %v6197, %v6199
        %v6202 = vmul.u32 %v6197, %v6200
        %v6203 = vmul.u32 %v6198, %v6199
        %v6204 = vmul.u32 %v6198, %v6200
        %v6205 = vshll.u32 %v6202, 16
        %v6206 = vshrl.u32 %v6202, 16
        %v6207 = vshll.u32 %v6203, 16
        %v6208 = vshrl.u32 %v6203, 16
        %vm6209 = vc.u32 %v6201, %v6205
        %v6210 = vsel %vm6209, 1, 0
        %v6211 = vadd.s32 %v6201, %v6205
        %v6212 = vadd.s32 %v6204, %v6210
        %vm6213 = vc.u32 %v6211, %v6207
        %v6214 = vsel %vm6213, 1, 0
        %v6215 = vadd.s32 %v6211, %v6207
        %v6216 = vadd.s32 %v6212, %v6214
        %v6217 = vadd.s32 %v6216, %v6206
        %v6218 = vadd.s32 %v6217, %v6208
        %v6219 = vand.u32 %v6196, 65535
        %v6220 = vshrl.u32 %v6196, 16
        %v6221 = vand.u32 %v6191, 65535
        %v6222 = vshrl.u32 %v6191, 16
        %v6223 = vmul.u32 %v6219, %v6221
        %v6224 = vmul.u32 %v6219, %v6222
        %v6225 = vmul.u32 %v6220, %v6221
        %v6226 = vmul.u32 %v6220, %v6222
        %v6227 = vshll.u32 %v6224, 16
        %v6228 = vshrl.u32 %v6224, 16
        %v6229 = vshll.u32 %v6225, 16
        %v6230 = vshrl.u32 %v6225, 16
        %vm6231 = vc.u32 %v6223, %v6227
        %v6232 = vsel %vm6231, 1, 0
        %v6233 = vadd.s32 %v6223, %v6227
        %v6234 = vadd.s32 %v6226, %v6232
        %vm6235 = vc.u32 %v6233, %v6229
        %v6236 = vsel %vm6235, 1, 0
        %v6237 = vadd.s32 %v6233, %v6229
        %v6238 = vadd.s32 %v6234, %v6236
        %v6239 = vadd.s32 %v6238, %v6228
        %v6240 = vadd.s32 %v6239, %v6230
        %v6241 = vmul.u32 %v6196, %v6187
        %v6242 = vadd.s32 %v6218, %v6237
        %vm6243 = vc.u32 %v6218, %v6237
        %v6244 = vadd.s32 %v6240, 1
        %v6245 = vsel %vm6243, %v6244, %v6240
        %v6246 = vadd.s32 %v6241, %v6245
        %v6247 = vadd.s32 %v6246, 536870912
        %v6248 = vshrl.u32 %v6247, 30
        %v6249 = vshll.u32 %v6248, 30
        %v6250 = vsub.s32 %v6246, %v6249
        %vm6251 = vcmp.lt.s32.totalorder %v6250, 0
        %v6252 = vsub.s32 0, %v6250
        %v6253 = vsel %vm6251, %v6252, %v6250
        %v6254 = vclz %v6253
        %v6255 = vsub.s32 %v6254, 2
        %vm6256 = vcmp.gt.s32.totalorder 0, %v6255
        %v6257 = vsel %vm6256, 0, %v6255
        %v6258 = vsub.s32 32, %v6257
        %v6259 = vshll.u32 %v6250, %v6257
        %v6260 = vshrl.u32 %v6242, %v6258
        %v6261 = vor.u32 %v6259, %v6260
        %v6262 = vsub.s32 4294967266, %v6257
        %v6263 = vadd.s32 %v6262, 127
        %v6264 = vshll.u32 %v6263, 23
        %v6265 = vor.u32 4788187, %v6264
        %v6266 = vand.u32 2147483647, %v6265
        %v6268 = vcvt.s32.f32 %v6261
        %v6269 = vmul.f32 %v6268, %v6266
        %v6270 = vxor.u32 %v6269, 2147483648
        %v6271 = vsel %vm6150, %v6270, %v6269
        %v6272 = vsub.s32 4, %v6248
        %v6273 = vsel %vm6150, %v6272, %v6248
        %v6274 = vsel %vm6149, %v228, %v6271
        %v6275 = vsel %vm6149, 0, %v6273
        %v6276 = vmul.f32 %v6274, %v6274
        %v6277 = vmul.f32 %v6276, -0.001358992
        %v6278 = vadd.f32 %v6277, 0.041655596
        %v6279 = vmul.f32 %v6276, %v6278
        %v6280 = vadd.f32 %v6279, -0.4999988
        %v6281 = vmul.f32 %v6276, %v6280
        %v6282 = vadd.f32 1.0, %v6281
        %v6283 = vmul.f32 %v6274, %v6274
        %v6284 = vmul.f32 %v6283, -0.00019511016
        %v6285 = vadd.f32 %v6284, 0.008332121
        %v6286 = vmul.f32 %v6283, %v6285
        %v6287 = vadd.f32 %v6286, -0.16666654
        %v6288 = vmul.f32 %v6283, %v6287
        %v6289 = vadd.f32 %v6288, 1.0
        %v6290 = vmul.f32 %v6289, %v6274
        %vm6291 = vweird.f32 %v228
        %v6292 = vand.u32 %v6275, 3
        %vm6293 = vcmp.lt.s32.totalorder %v6292, 2
        %vm6294 = vcmp.eq.s32.totalorder %v6292, 0
        %v6295 = vxor.u32 %v6290, 2147483648
        %v6296 = vsel %vm6294, %v6282, %v6295
        %vm6297 = vcmp.eq.s32.totalorder %v6292, 2
        %v6298 = vxor.u32 %v6282, 2147483648
        %v6299 = vsel %vm6297, %v6298, %v6290
        %v6300 = vsel %vm6293, %v6296, %v6299
        %v6301 = vsel %vm6291, nan, %v6300
        %v6302 = vand.u32 2147483647, %v229
        %vm6303 = vcmp.le.f32.partialorder %v6302, 0.7853982
        %vm6304 = vcmp.lt.s32.totalorder %v229, 0
        %v6305 = vand.u32 %v229, 2139095040
        %v6306 = vshrl.u32 %v6305, 23
        %v6307 = vsub.s32 %v6306, 127
        %v6308 = vand.u32 2147483647, %v229
        %v6309 = vand.u32 %v6308, 8388607
        %v6310 = vor.u32 %v6309, 8388608
        %v6311 = vsub.s32 0, %v6310
        %v6312 = vadd.s32 %v6307, 1
        %vm6313 = vcmp.gt.s32.totalorder %v6312, 0
        %v6314 = vsel %vm6313, %v6312, 0
        %v6315 = vshrl.u32 %v6314, 5
        %v6316 = vand.u32 %v6314, 31
        %v6317 = vsub.s32 32, %v6316
        %v6318 = vshrl.u32 683565275, %v6317
        %v6319 = vshll.u32 683565275, %v6316
        %v6320 = vshrl.u32 2475754826, %v6317
        %v6321 = vor.u32 %v6319, %v6320
        %v6322 = vshll.u32 2475754826, %v6316
        %v6323 = vshrl.u32 2131351028, %v6317
        %v6324 = vor.u32 %v6322, %v6323
        %v6325 = vshll.u32 2131351028, %v6316
        %v6326 = vshrl.u32 2102212464, %v6317
        %v6327 = vor.u32 %v6325, %v6326
        %v6328 = vshll.u32 2102212464, %v6316
        %v6329 = vshrl.u32 920167782, %v6317
        %v6330 = vor.u32 %v6328, %v6329
        %v6331 = vshll.u32 920167782, %v6316
        %v6332 = vshrl.u32 1326507024, %v6317
        %v6333 = vor.u32 %v6331, %v6332
        %vm6334 = vcmp.lt.s32.totalorder %v6315, 1
        %vm6335 = vcmp.lt.s32.totalorder %v6315, 2
        %vm6336 = vcmp.lt.s32.totalorder %v6315, 3
        %vm6337 = vcmp.lt.s32.totalorder %v6315, 4
        %v6338 = vsel %vm6334, %v6318, %v6321
        %v6339 = vsel %vm6337, %v6327, 2102212464
        %v6340 = vsel %vm6336, %v6324, %v6339
        %v6341 = vsel %vm6335, %v6338, %v6340
        %v6342 = vsel %vm6334, %v6321, %v6324
        %v6343 = vsel %vm6337, %v6330, 920167782
        %v6344 = vsel %vm6336, %v6327, %v6343
        %v6345 = vsel %vm6335, %v6342, %v6344
        %v6346 = vsel %vm6334, %v6324, %v6327
        %v6347 = vsel %vm6337, %v6333, 1326507024
        %v6348 = vsel %vm6336, %v6330, %v6347
        %v6349 = vsel %vm6335, %v6346, %v6348
        %v6350 = vshll.u32 %v6310, 8
        %v6351 = vand.u32 %v6350, 65535
        %v6352 = vshrl.u32 %v6350, 16
        %v6353 = vand.u32 %v6349, 65535
        %v6354 = vshrl.u32 %v6349, 16
        %v6355 = vmul.u32 %v6351, %v6353
        %v6356 = vmul.u32 %v6351, %v6354
        %v6357 = vmul.u32 %v6352, %v6353
        %v6358 = vmul.u32 %v6352, %v6354
        %v6359 = vshll.u32 %v6356, 16
        %v6360 = vshrl.u32 %v6356, 16
        %v6361 = vshll.u32 %v6357, 16
        %v6362 = vshrl.u32 %v6357, 16
        %vm6363 = vc.u32 %v6355, %v6359
        %v6364 = vsel %vm6363, 1, 0
        %v6365 = vadd.s32 %v6355, %v6359
        %v6366 = vadd.s32 %v6358, %v6364
        %vm6367 = vc.u32 %v6365, %v6361
        %v6368 = vsel %vm6367, 1, 0
        %v6369 = vadd.s32 %v6365, %v6361
        %v6370 = vadd.s32 %v6366, %v6368
        %v6371 = vadd.s32 %v6370, %v6360
        %v6372 = vadd.s32 %v6371, %v6362
        %v6373 = vand.u32 %v6350, 65535
        %v6374 = vshrl.u32 %v6350, 16
        %v6375 = vand.u32 %v6345, 65535
        %v6376 = vshrl.u32 %v6345, 16
        %v6377 = vmul.u32 %v6373, %v6375
        %v6378 = vmul.u32 %v6373, %v6376
        %v6379 = vmul.u32 %v6374, %v6375
        %v6380 = vmul.u32 %v6374, %v6376
        %v6381 = vshll.u32 %v6378, 16
        %v6382 = vshrl.u32 %v6378, 16
        %v6383 = vshll.u32 %v6379, 16
        %v6384 = vshrl.u32 %v6379, 16
        %vm6385 = vc.u32 %v6377, %v6381
        %v6386 = vsel %vm6385, 1, 0
        %v6387 = vadd.s32 %v6377, %v6381
        %v6388 = vadd.s32 %v6380, %v6386
        %vm6389 = vc.u32 %v6387, %v6383
        %v6390 = vsel %vm6389, 1, 0
        %v6391 = vadd.s32 %v6387, %v6383
        %v6392 = vadd.s32 %v6388, %v6390
        %v6393 = vadd.s32 %v6392, %v6382
        %v6394 = vadd.s32 %v6393, %v6384
        %v6395 = vmul.u32 %v6350, %v6341
        %v6396 = vadd.s32 %v6372, %v6391
        %vm6397 = vc.u32 %v6372, %v6391
        %v6398 = vadd.s32 %v6394, 1
        %v6399 = vsel %vm6397, %v6398, %v6394
        %v6400 = vadd.s32 %v6395, %v6399
        %v6401 = vadd.s32 %v6400, 536870912
        %v6402 = vshrl.u32 %v6401, 30
        %v6403 = vshll.u32 %v6402, 30
        %v6404 = vsub.s32 %v6400, %v6403
        %vm6405 = vcmp.lt.s32.totalorder %v6404, 0
        %v6406 = vsub.s32 0, %v6404
        %v6407 = vsel %vm6405, %v6406, %v6404
        %v6408 = vclz %v6407
        %v6409 = vsub.s32 %v6408, 2
        %vm6410 = vcmp.gt.s32.totalorder 0, %v6409
        %v6411 = vsel %vm6410, 0, %v6409
        %v6412 = vsub.s32 32, %v6411
        %v6413 = vshll.u32 %v6404, %v6411
        %v6414 = vshrl.u32 %v6396, %v6412
        %v6415 = vor.u32 %v6413, %v6414
        %v6416 = vsub.s32 4294967266, %v6411
        %v6417 = vadd.s32 %v6416, 127
        %v6418 = vshll.u32 %v6417, 23
        %v6419 = vor.u32 4788187, %v6418
        %v6420 = vand.u32 2147483647, %v6419
        %v6422 = vcvt.s32.f32 %v6415
        %v6423 = vmul.f32 %v6422, %v6420
        %v6424 = vxor.u32 %v6423, 2147483648
        %v6425 = vsel %vm6304, %v6424, %v6423
        %v6426 = vsub.s32 4, %v6402
        %v6427 = vsel %vm6304, %v6426, %v6402
        %v6428 = vsel %vm6303, %v229, %v6425
        %v6429 = vsel %vm6303, 0, %v6427
        %v6430 = vmul.f32 %v6428, %v6428
        %v6431 = vmul.f32 %v6430, -0.001358992
        %v6432 = vadd.f32 %v6431, 0.041655596
        %v6433 = vmul.f32 %v6430, %v6432
        %v6434 = vadd.f32 %v6433, -0.4999988
        %v6435 = vmul.f32 %v6430, %v6434
        %v6436 = vadd.f32 1.0, %v6435
        %v6437 = vmul.f32 %v6428, %v6428
        %v6438 = vmul.f32 %v6437, -0.00019511016
        %v6439 = vadd.f32 %v6438, 0.008332121
        %v6440 = vmul.f32 %v6437, %v6439
        %v6441 = vadd.f32 %v6440, -0.16666654
        %v6442 = vmul.f32 %v6437, %v6441
        %v6443 = vadd.f32 %v6442, 1.0
        %v6444 = vmul.f32 %v6443, %v6428
        %vm6445 = vweird.f32 %v229
        %v6446 = vand.u32 %v6429, 3
        %vm6447 = vcmp.lt.s32.totalorder %v6446, 2
        %vm6448 = vcmp.eq.s32.totalorder %v6446, 0
        %v6449 = vxor.u32 %v6444, 2147483648
        %v6450 = vsel %vm6448, %v6436, %v6449
        %vm6451 = vcmp.eq.s32.totalorder %v6446, 2
        %v6452 = vxor.u32 %v6436, 2147483648
        %v6453 = vsel %vm6451, %v6452, %v6444
        %v6454 = vsel %vm6447, %v6450, %v6453
        %v6455 = vsel %vm6445, nan, %v6454
        %v6460 = vperm.slane %v5374, 0
        %v6461 = vperm.slane %v5374, 4
        %v6462 = vperm.slane %v5529, 0
        %v6463 = vperm.slane %v5529, 4
        %v6464 = vperm.slane %v5684, 0
        %v6465 = vperm.slane %v5684, 4
        %v6466 = vperm.slane %v5839, 0
        %v6467 = vperm.slane %v5839, 4
        %v6476 = vmul.f32 %v5078, %v6460
        %v6477 = vmul.f32 %v5098, %v6461
        %v6478 = vmul.f32 %v5118, %v6462
        %v6479 = vmul.f32 %v5138, %v6463
        %v6480 = vmul.f32 %v5158, %v6464
        %v6481 = vmul.f32 %v5178, %v6465
        %v6482 = vmul.f32 %v5198, %v6466
        %v6483 = vmul.f32 %v5218, %v6467
        %v6488 = vperm.slane %v5993, 1
        %v6489 = vperm.slane %v5993, 5
        %v6490 = vperm.slane %v6147, 1
        %v6491 = vperm.slane %v6147, 5
        %v6492 = vperm.slane %v6301, 1
        %v6493 = vperm.slane %v6301, 5
        %v6494 = vperm.slane %v6455, 1
        %v6495 = vperm.slane %v6455, 5
        %v6504 = vmul.f32 %v6476, %v6488
        %v6505 = vmul.f32 %v6477, %v6489
        %v6506 = vmul.f32 %v6478, %v6490
        %v6507 = vmul.f32 %v6479, %v6491
        %v6508 = vmul.f32 %v6480, %v6492
        %v6509 = vmul.f32 %v6481, %v6493
        %v6510 = vmul.f32 %v6482, %v6494
        %v6511 = vmul.f32 %v6483, %v6495
        %v6512 = vmul.f32 %v6504, %v6504
        %v6513 = vmul.f32 %v6505, %v6505
        %v6514 = vmul.f32 %v6506, %v6506
        %v6515 = vmul.f32 %v6507, %v6507
        %v6516 = vmul.f32 %v6508, %v6508
        %v6517 = vmul.f32 %v6509, %v6509
        %v6518 = vmul.f32 %v6510, %v6510
        %v6519 = vmul.f32 %v6511, %v6511
        %v6520 = vperm.slane %v5993, 0
        %v6521 = vperm.slane %v5993, 4
        %v6522 = vperm.slane %v6147, 0
        %v6523 = vperm.slane %v6147, 4
        %v6524 = vperm.slane %v6301, 0
        %v6525 = vperm.slane %v6301, 4
        %v6526 = vperm.slane %v6455, 0
        %v6527 = vperm.slane %v6455, 4
        %v6536 = vmul.f32 %v5078, %v6520
        %v6537 = vmul.f32 %v5098, %v6521
        %v6538 = vmul.f32 %v5118, %v6522
        %v6539 = vmul.f32 %v5138, %v6523
        %v6540 = vmul.f32 %v5158, %v6524
        %v6541 = vmul.f32 %v5178, %v6525
        %v6542 = vmul.f32 %v5198, %v6526
        %v6543 = vmul.f32 %v5218, %v6527
        %v6544 = vmul.f32 %v6536, %v6536
        %v6545 = vmul.f32 %v6537, %v6537
        %v6546 = vmul.f32 %v6538, %v6538
        %v6547 = vmul.f32 %v6539, %v6539
        %v6548 = vmul.f32 %v6540, %v6540
        %v6549 = vmul.f32 %v6541, %v6541
        %v6550 = vmul.f32 %v6542, %v6542
        %v6551 = vmul.f32 %v6543, %v6543
        %v6560 = vrot.slane %v6544, 1
        %v6561 = vrot.slane %v6545, 1
        %v6562 = vrot.slane %v6546, 1
        %v6563 = vrot.slane %v6547, 1
        %v6564 = vrot.slane %v6548, 1
        %v6565 = vrot.slane %v6549, 1
        %v6566 = vrot.slane %v6550, 1
        %v6567 = vrot.slane %v6551, 1
        %v6576 = vadd.f32 %v6512, %v6560
        %v6577 = vadd.f32 %v6513, %v6561
        %v6578 = vadd.f32 %v6514, %v6562
        %v6579 = vadd.f32 %v6515, %v6563
        %v6580 = vadd.f32 %v6516, %v6564
        %v6581 = vadd.f32 %v6517, %v6565
        %v6582 = vadd.f32 %v6518, %v6566
        %v6583 = vadd.f32 %v6519, %v6567
        %v6584 = vperm.slane %v5374, 1
        %v6585 = vperm.slane %v5374, 5
        %v6586 = vperm.slane %v5529, 1
        %v6587 = vperm.slane %v5529, 5
        %v6588 = vperm.slane %v5684, 1
        %v6589 = vperm.slane %v5684, 5
        %v6590 = vperm.slane %v5839, 1
        %v6591 = vperm.slane %v5839, 5
        %v6600 = vmul.f32 %v6476, %v6584
        %v6601 = vmul.f32 %v6477, %v6585
        %v6602 = vmul.f32 %v6478, %v6586
        %v6603 = vmul.f32 %v6479, %v6587
        %v6604 = vmul.f32 %v6480, %v6588
        %v6605 = vmul.f32 %v6481, %v6589
        %v6606 = vmul.f32 %v6482, %v6590
        %v6607 = vmul.f32 %v6483, %v6591
        %v6608 = vmul.f32 %v6600, %v6600
        %v6609 = vmul.f32 %v6601, %v6601
        %v6610 = vmul.f32 %v6602, %v6602
        %v6611 = vmul.f32 %v6603, %v6603
        %v6612 = vmul.f32 %v6604, %v6604
        %v6613 = vmul.f32 %v6605, %v6605
        %v6614 = vmul.f32 %v6606, %v6606
        %v6615 = vmul.f32 %v6607, %v6607
        %v6624 = vrot.slane %v6608, 2
        %v6625 = vrot.slane %v6609, 2
        %v6626 = vrot.slane %v6610, 2
        %v6627 = vrot.slane %v6611, 2
        %v6628 = vrot.slane %v6612, 2
        %v6629 = vrot.slane %v6613, 2
        %v6630 = vrot.slane %v6614, 2
        %v6631 = vrot.slane %v6615, 2
        %v6640 = vadd.f32 %v6576, %v6624
        %v6641 = vadd.f32 %v6577, %v6625
        %v6642 = vadd.f32 %v6578, %v6626
        %v6643 = vadd.f32 %v6579, %v6627
        %v6644 = vadd.f32 %v6580, %v6628
        %v6645 = vadd.f32 %v6581, %v6629
        %v6646 = vadd.f32 %v6582, %v6630
        %v6647 = vadd.f32 %v6583, %v6631
        %v6648 = vrsqrt.pop %v6640
        %v6649 = vmul.f32 %v6648, %v6640
        %v6650 = vmul.f32 %v6649, %v6648
        %v6651 = vmul.f32 0.5, %v6650
        %v6652 = vsub.f32 1.5, %v6651
        %v6653 = vmul.f32 %v6648, %v6652
        %v6654 = vmul.f32 %v6640, %v6653
        %vm6655 = vcmp.eq.f32.partialorder %v6640, inf
        %v6656 = vsel %vm6655, %v6640, %v6654
        %vm6657 = vcmp.eq.f32.partialorder %v6640, 0.0
        %v6658 = vand.u32 %v6640, 2147483648
        %v6659 = vsel %vm6657, %v6658, %v6656
        %v6660 = vrsqrt.pop %v6641
        %v6661 = vmul.f32 %v6660, %v6641
        %v6662 = vmul.f32 %v6661, %v6660
        %v6663 = vmul.f32 0.5, %v6662
        %v6664 = vsub.f32 1.5, %v6663
        %v6665 = vmul.f32 %v6660, %v6664
        %v6666 = vmul.f32 %v6641, %v6665
        %vm6667 = vcmp.eq.f32.partialorder %v6641, inf
        %v6668 = vsel %vm6667, %v6641, %v6666
        %vm6669 = vcmp.eq.f32.partialorder %v6641, 0.0
        %v6670 = vand.u32 %v6641, 2147483648
        %v6671 = vsel %vm6669, %v6670, %v6668
        %v6672 = vrsqrt.pop %v6642
        %v6673 = vmul.f32 %v6672, %v6642
        %v6674 = vmul.f32 %v6673, %v6672
        %v6675 = vmul.f32 0.5, %v6674
        %v6676 = vsub.f32 1.5, %v6675
        %v6677 = vmul.f32 %v6672, %v6676
        %v6678 = vmul.f32 %v6642, %v6677
        %vm6679 = vcmp.eq.f32.partialorder %v6642, inf
        %v6680 = vsel %vm6679, %v6642, %v6678
        %vm6681 = vcmp.eq.f32.partialorder %v6642, 0.0
        %v6682 = vand.u32 %v6642, 2147483648
        %v6683 = vsel %vm6681, %v6682, %v6680
        %v6684 = vrsqrt.pop %v6643
        %v6685 = vmul.f32 %v6684, %v6643
        %v6686 = vmul.f32 %v6685, %v6684
        %v6687 = vmul.f32 0.5, %v6686
        %v6688 = vsub.f32 1.5, %v6687
        %v6689 = vmul.f32 %v6684, %v6688
        %v6690 = vmul.f32 %v6643, %v6689
        %vm6691 = vcmp.eq.f32.partialorder %v6643, inf
        %v6692 = vsel %vm6691, %v6643, %v6690
        %vm6693 = vcmp.eq.f32.partialorder %v6643, 0.0
        %v6694 = vand.u32 %v6643, 2147483648
        %v6695 = vsel %vm6693, %v6694, %v6692
        %v6696 = vrsqrt.pop %v6644
        %v6697 = vmul.f32 %v6696, %v6644
        %v6698 = vmul.f32 %v6697, %v6696
        %v6699 = vmul.f32 0.5, %v6698
        %v6700 = vsub.f32 1.5, %v6699
        %v6701 = vmul.f32 %v6696, %v6700
        %v6702 = vmul.f32 %v6644, %v6701
        %vm6703 = vcmp.eq.f32.partialorder %v6644, inf
        %v6704 = vsel %vm6703, %v6644, %v6702
        %vm6705 = vcmp.eq.f32.partialorder %v6644, 0.0
        %v6706 = vand.u32 %v6644, 2147483648
        %v6707 = vsel %vm6705, %v6706, %v6704
        %v6708 = vrsqrt.pop %v6645
        %v6709 = vmul.f32 %v6708, %v6645
        %v6710 = vmul.f32 %v6709, %v6708
        %v6711 = vmul.f32 0.5, %v6710
        %v6712 = vsub.f32 1.5, %v6711
        %v6713 = vmul.f32 %v6708, %v6712
        %v6714 = vmul.f32 %v6645, %v6713
        %vm6715 = vcmp.eq.f32.partialorder %v6645, inf
        %v6716 = vsel %vm6715, %v6645, %v6714
        %vm6717 = vcmp.eq.f32.partialorder %v6645, 0.0
        %v6718 = vand.u32 %v6645, 2147483648
        %v6719 = vsel %vm6717, %v6718, %v6716
        %v6720 = vrsqrt.pop %v6646
        %v6721 = vmul.f32 %v6720, %v6646
        %v6722 = vmul.f32 %v6721, %v6720
        %v6723 = vmul.f32 0.5, %v6722
        %v6724 = vsub.f32 1.5, %v6723
        %v6725 = vmul.f32 %v6720, %v6724
        %v6726 = vmul.f32 %v6646, %v6725
        %vm6727 = vcmp.eq.f32.partialorder %v6646, inf
        %v6728 = vsel %vm6727, %v6646, %v6726
        %vm6729 = vcmp.eq.f32.partialorder %v6646, 0.0
        %v6730 = vand.u32 %v6646, 2147483648
        %v6731 = vsel %vm6729, %v6730, %v6728
        %v6732 = vrsqrt.pop %v6647
        %v6733 = vmul.f32 %v6732, %v6647
        %v6734 = vmul.f32 %v6733, %v6732
        %v6735 = vmul.f32 0.5, %v6734
        %v6736 = vsub.f32 1.5, %v6735
        %v6737 = vmul.f32 %v6732, %v6736
        %v6738 = vmul.f32 %v6647, %v6737
        %vm6739 = vcmp.eq.f32.partialorder %v6647, inf
        %v6740 = vsel %vm6739, %v6647, %v6738
        %vm6741 = vcmp.eq.f32.partialorder %v6647, 0.0
        %v6742 = vand.u32 %v6647, 2147483648
        %v6743 = vsel %vm6741, %v6742, %v6740
        %v6744 = vmul.f32 %v3428, 1.5
        %v6745 = vmul.f32 %v3448, 1.5
        %v6746 = vmul.f32 %v3468, 1.5
        %v6747 = vmul.f32 %v3488, 1.5
        %v6748 = vmul.f32 %v3508, 1.5
        %v6749 = vmul.f32 %v3528, 1.5
        %v6750 = vmul.f32 %v3548, 1.5
        %v6751 = vmul.f32 %v3568, 1.5
        %v6752 = vadd.f32 %v6744, 0.5
        %v6753 = vadd.f32 %v6745, 0.5
        %v6754 = vadd.f32 %v6746, 0.5
        %v6755 = vadd.f32 %v6747, 0.5
        %v6756 = vadd.f32 %v6748, 0.5
        %v6757 = vadd.f32 %v6749, 0.5
        %v6758 = vadd.f32 %v6750, 0.5
        %v6759 = vadd.f32 %v6751, 0.5
        %v6760 = vmul.f32 %v6752, %v6659
        %v6761 = vmul.f32 %v6753, %v6671
        %v6762 = vmul.f32 %v6754, %v6683
        %v6763 = vmul.f32 %v6755, %v6695
        %v6764 = vmul.f32 %v6756, %v6707
        %v6765 = vmul.f32 %v6757, %v6719
        %v6766 = vmul.f32 %v6758, %v6731
        %v6767 = vmul.f32 %v6759, %v6743
        %v6776 = vrot.slane %v6761, 7
        %v6777 = vrot.slane %v6762, 6
        %v6778 = vrot.slane %v6763, 5
        %v6779 = vrot.slane %v6764, 4
        %v6780 = vrot.slane %v6765, 3
        %v6781 = vrot.slane %v6766, 2
        %v6782 = vrot.slane %v6767, 1
        %vm6783 = vcmask 1040384
        %v6784 = vsel %vm6783, %v6760, %v6776
        %vm6785 = vcmask 1042434
        %v6786 = vsel %vm6785, %v6777, %v6778
        %v6787 = vsel %vm3977, %v6784, %v6786
        %vm6788 = vcmask 1044484
        %v6789 = vsel %vm6788, %v6779, %v6780
        %vm6790 = vcmask 1046534
        %v6791 = vsel %vm6790, %v6781, %v6782
        %vm6792 = vcmask 1045508
        %v6793 = vsel %vm6792, %v6789, %v6791
        %vm6794 = vcmask 1043456
        %v6795 = vsel %vm6794, %v6787, %v6793
        %6797 = vst [vmem:[%s218] sm:$0xff] %v6795
        %s6798 = sand.u32 %s137, 1
        %s6799 = scalar_lea.sflag [#allocation3], %s6798
        %s6800 = sand.u32 %s137, 1
        %s6801 = smul.addr %s6800, 8
        %s6802 = scalar_lea.vmem [#allocation2], %s6801
        // Predicated region
        $region41: #{tpu_custom_call.1} parent=39 // pred_check
          %p6803 = pneg %p147
        $region42: #{tpu_custom_call.1} parent=39 // pred_check_branch
          %6805 = sbr.rel (%p6803) target = $region44
        $region43: #{tpu_custom_call.1} parent=39 // pred_region
          %s6806 = smul.u32 8, %s19
          %6808 = vsyncadd %s6799, 0
          %s6809 = scalar_lea.hbm %s5, %s6806
          %s6811 = sshll.u32 %s6802, 4
          %s6812 = int_to_ptr.vmem [resolvable:$true] %s6811
          %s6813 = sshll.u32 %s6809, 4
          %s6814 = int_to_ptr.hbm [resolvable:$true] %s6813
          %6816 = dma.vmem_to_hbm [thread:$0]  %s6812, 128, %s6814, %s6799
        $region44: #{tpu_custom_call.1} parent=39 // pred_fallthru
          _
      $region40: #{tpu_custom_call.1} parent=5 // pred_fallthru
        _
      %p6817 = scmp.le.s32.totalorder 2, %s14
      // Predicated region
      $region45: #{tpu_custom_call.1} parent=5 // pred_check
        %p6818 = pneg %p6817
      $region46: #{tpu_custom_call.1} parent=5 // pred_check_branch
        %6820 = sbr.rel (%p6818) target = $region48
      $region47: #{tpu_custom_call.1} parent=5 // pred_region
        %s6821 = ssub.s32 %s14, 2
        // Predicated region
        $region49: #{tpu_custom_call.1} parent=47 // pred_check
          %p6822 = pneg %p153
        $region50: #{tpu_custom_call.1} parent=47 // pred_check_branch
          %6824 = sbr.rel (%p6822) target = $region52
        $region51: #{tpu_custom_call.1} parent=47 // pred_region
          %s6825 = sand.u32 %s138, 1
          %s6826 = scalar_lea.sflag [#allocation3], %s6825
          %s6827 = sand.u32 %s138, 1
          %s6828 = smul.addr %s6827, 8
          %s6829 = scalar_lea.vmem [#allocation2], %s6828
          %6831 = dma.done %s6826, 128
        $region52: #{tpu_custom_call.1} parent=47 // pred_fallthru
          _
      $region48: #{tpu_custom_call.1} parent=5 // pred_fallthru
        _
    $region6: #{tpu_custom_call.1} parent=1 // loop_footer
      %s18 = sadd.s32 1, %s14
    $region7: #{tpu_custom_call.1} parent=1 // loop_footer_branch
      %13 = sbr.rel target = $region3
    $region8: #{tpu_custom_call.1} parent=1 // loop_exit
      _
    %6832 = vsyncpa [#allocation3], 1
    %s6833 = scalar_lea.sflag [#allocation3], 1
    %6834 = vsyncpa %s6833, 1

</llo_original>
